<compile_context>
chip_gen: v7x
topology: tpu7x:2x2x1
jax: 0.10.0
libtpu: 0.0.40
codegen_flags: <defaults>
</compile_context>

<pallas_src>
import jax
import jax.numpy as jnp
from jax import lax
from jax.experimental import pallas as pl
from jax.experimental.pallas import tpu as pltpu  # noqa: F401  (kept for TPU-specific tuning hooks)

NOISE = 0.0025
LENGTHSCALE = 0.7
OUTPUTSCALE = 1.0
MEAN_CONSTANT = 0.0
_INV_2L2 = 1.0 / (2.0 * LENGTHSCALE * LENGTHSCALE)


# ------------------------------ in-kernel helpers -----------------------------
def _sq_norm_col(x):
    """(P, D) -> (P, 1): lane-axis reduce, natural layout."""
    return jnp.sum(x * x, axis=-1, keepdims=True)


def _sq_norm_row(x):
    """(P, D) -> (1, P) without an XLU transpose: ones-row matmul on the (idle) MXU."""
    ones_row = jnp.ones((1, x.shape[-1]), dtype=jnp.float32)
    return lax.dot_general(
        ones_row, x * x, (((1,), (1,)), ((), ())), preferred_element_type=jnp.float32
    )


def _rbf_from_parts(cross, s_col, s_row):
    """RBF from cross-products and squared norms. cross:(A,B) s_col:(A,1) s_row:(1,B)."""
    d2 = jnp.maximum(s_col + s_row - 2.0 * cross, 0.0)
    return OUTPUTSCALE * jnp.exp(-d2 * _INV_2L2)


# -------- fused kernel #1: (K_xx + noise*I) and K_sx in one pallas_call --------
def _kernels_body(tx_ref, sx_ref, a_ref, ksx_ref):
    tx = tx_ref[...]                                                   # (N, D)
    sx = sx_ref[...]                                                   # (M, D)
    st_col = _sq_norm_col(tx)                                          # (N, 1)
    st_row = _sq_norm_row(tx)                                          # (1, N)
    ss_col = _sq_norm_col(sx)                                          # (M, 1)
    # A @ B^T via dot_general contracting dim 1 of both operands (no materialized .T).
    cross_tt = lax.dot_general(tx, tx, (((1,), (1,)), ((), ())),
                               preferred_element_type=jnp.float32)     # (N, N)
    cross_st = lax.dot_general(sx, tx, (((1,), (1,)), ((), ())),
                               preferred_element_type=jnp.float32)     # (M, N)
    kxx = _rbf_from_parts(cross_tt, st_col, st_row)
    # Fold the observation-noise jitter onto the diagonal here (no eye() in the wrapper).
    n = kxx.shape[0]
    rows = lax.broadcasted_iota(jnp.int32, (n, n), 0)
    cols = lax.broadcasted_iota(jnp.int32, (n, n), 1)
    a_ref[...] = jnp.where(rows == cols, kxx + NOISE, kxx)
    ksx_ref[...] = _rbf_from_parts(cross_st, ss_col, st_row)


def rbf_train_test_kernels(tx, sx):
    """Returns (K_xx + noise*I, K_sx) from a single pallas_call."""
    N, D = tx.shape
    M, _ = sx.shape
    return pl.pallas_call(
        _kernels_body,
        out_shape=(
            jax.ShapeDtypeStruct((N, N), jnp.float32),
            jax.ShapeDtypeStruct((M, N), jnp.float32),
        ),
        grid=(1,),
        in_specs=[
            pl.BlockSpec((N, D), lambda i: (0, 0)),
            pl.BlockSpec((M, D), lambda i: (0, 0)),
        ],
        out_specs=(
            pl.BlockSpec((N, N), lambda i: (0, 0)),
            pl.BlockSpec((M, N), lambda i: (0, 0)),
        ),
    )(tx, sx)


# ----- fused kernel #2: predictive mean / covariance (K_ss computed in-kernel) -----
def _predict_body(ksx_ref, sx_ref, wt_ref, mean_ref, cov_ref):
    ksx = ksx_ref[...]                                                 # (M, N)
    sx = sx_ref[...]                                                   # (M, D)
    wt = wt_ref[...]                                                   # (M+1, N): rows 0..M-1 = W^T, row M = alpha^T
    M = ksx.shape[0]

    # One wide MXU contraction over the train axis: (M+1, N) x (M, N)^T -> (M+1, M).
    prod_t = lax.dot_general(wt, ksx, (((1,), (1,)), ((), ())),
                             preferred_element_type=jnp.float32)

    # K_ss computed here (never written to / read back from HBM).
    cross_ss = lax.dot_general(sx, sx, (((1,), (1,)), ((), ())),
                               preferred_element_type=jnp.float32)     # (M, M)
    kss = _rbf_from_parts(cross_ss, _sq_norm_col(sx), _sq_norm_row(sx))

    # K_sx A^{-1} K_xs is symmetric, so its transpose (rows 0..M-1 of prod_t) equals itself.
    cov = kss - prod_t[:M, :]
    rows = lax.broadcasted_iota(jnp.int32, (M, M), 0)
    cols = lax.broadcasted_iota(jnp.int32, (M, M), 1)
    cov_ref[...] = jnp.where(rows == cols, cov + NOISE, cov)           # likelihood noise on diag

    # Predictive mean, lane-dense (1, M).
    mean_ref[...] = prod_t[M:, :] + MEAN_CONSTANT


def gp_predict(k_sx, sx, w_t):
    M, N = k_sx.shape
    D = sx.shape[1]
    return pl.pallas_call(
        _predict_body,
        out_shape=(
            jax.ShapeDtypeStruct((1, M), jnp.float32),
            jax.ShapeDtypeStruct((M, M), jnp.float32),
        ),
        grid=(1,),
        in_specs=[
            pl.BlockSpec((M, N), lambda i: (0, 0)),
            pl.BlockSpec((M, D), lambda i: (0, 0)),
            pl.BlockSpec((M + 1, N), lambda i: (0, 0)),
        ],
        out_specs=(
            pl.BlockSpec((1, M), lambda i: (0, 0)),
            pl.BlockSpec((M, M), lambda i: (0, 0)),
        ),
    )(k_sx, sx, w_t)


# ----------------------------------- wrapper -----------------------------------
@jax.jit
def _gp_predict_jit(tx, ty, sx):
    """Shape-static part of the forward pass (Pallas kernels + the one stacked solve)."""
    a, k_sx = rbf_train_test_kernels(tx, sx)                           # A = K_xx + noise*I

    # TODO(synk): Cholesky factorization / triangular solve has no clean Pallas TPU
    # equivalent; the (single, stacked) linear solve stays in plain XLA.
    chol = jnp.linalg.cholesky(a)
    rhs = jnp.concatenate([k_sx.T, (ty - MEAN_CONSTANT)[:, None]], axis=1)   # (N, M+1)
    solved_t = jax.scipy.linalg.cho_solve((chol, True), rhs).T               # (M+1, N)

    mean_row, cov = gp_predict(k_sx, sx, solved_t)
    return mean_row[0], cov


def exclude_gp_forward(train_x, train_y, test_x, privacy_idx):
    """ExcludeGP.forward / .test: returns (predictive mean, predictive covariance)."""
    # Exclusion mask: data-dependent output shape -> eager JAX only (would break under jit).
    mask = jnp.ones(train_x.shape[0], dtype=bool)
    if privacy_idx.shape[0] > 0:
        mask = mask.at[privacy_idx].set(False)
    tx = train_x[mask].astype(jnp.float32)
    ty = train_y[mask].astype(jnp.float32)
    sx = test_x.astype(jnp.float32)
    return _gp_predict_jit(tx, ty, sx)


# NOTE: the module's `train()` (50 epochs of hyperparameter optimization) is not part of
# the forward compute path; hyperparameters are fixed to their deterministic defaults.


def _reference_forward(train_x, train_y, test_x, privacy_idx):
    """Pure-JAX reference for correctness checking."""
    mask = jnp.ones(train_x.shape[0], dtype=bool)
    if privacy_idx.shape[0] > 0:
        mask = mask.at[privacy_idx].set(False)
    tx = train_x[mask].astype(jnp.float32)
    ty = train_y[mask].astype(jnp.float32)
    sx = test_x.astype(jnp.float32)

    def rbf(a, b):
        d2 = jnp.sum((a[:, None, :] - b[None, :, :]) ** 2, axis=-1)
        return OUTPUTSCALE * jnp.exp(-d2 * _INV_2L2)

    n = tx.shape[0]
    a = rbf(tx, tx) + NOISE * jnp.eye(n, dtype=jnp.float32)
    k_sx = rbf(sx, tx)
    k_ss = rbf(sx, sx)
    chol = jnp.linalg.cholesky(a)
    alpha = jax.scipy.linalg.cho_solve((chol, True), (ty - MEAN_CONSTANT)[:, None])
    w = jax.scipy.linalg.cho_solve((chol, True), k_sx.T)
    mean = (k_sx @ alpha)[:, 0] + MEAN_CONSTANT
    cov = k_ss - k_sx @ w + NOISE * jnp.eye(sx.shape[0], dtype=jnp.float32)
    return mean, cov


if __name__ == "__main__":
    key = jax.random.PRNGKey(0)
    k1, k2, k3 = jax.random.split(key, 3)

    n_train, n_test, d = 67, 32, 4
    train_x = jax.random.normal(k1, (n_train, d), dtype=jnp.float32)
    train_y = jnp.sin(train_x.sum(axis=-1)) + 0.05 * jax.random.normal(
        k2, (n_train,), dtype=jnp.float32
    )
    test_x = jax.random.normal(k3, (n_test, d), dtype=jnp.float32)
    privacy_idx = jnp.array([3, 17, 42], dtype=jnp.int32)  # 67 - 3 = 64 kept points

    mean, cov = exclude_gp_forward(train_x, train_y, test_x, privacy_idx)
    jax.block_until_ready((mean, cov))

    assert mean.shape == (n_test,)
    assert cov.shape == (n_test, n_test)
    assert bool(jnp.all(jnp.isfinite(mean))) and bool(jnp.all(jnp.isfinite(cov)))

    ref_mean, ref_cov = _reference_forward(train_x, train_y, test_x, privacy_idx)
    assert bool(jnp.allclose(mean, ref_mean, rtol=1e-3, atol=5e-3)), "mean mismatch vs reference"
    assert bool(jnp.allclose(cov, ref_cov, rtol=1e-3, atol=5e-3)), "cov mismatch vs reference"

    print("KERNEL_OK")
</pallas_src>

<mosaic_0001>
module attributes {stable_mosaic.version = 11 : i64} {
  func.func @_kernels_body(%arg0: i32, %arg1: memref<64x4xf32, #tpu.memory_space<vmem>>, %arg2: memref<32x4xf32, #tpu.memory_space<vmem>>, %arg3: memref<64x64xf32, #tpu.memory_space<vmem>>, %arg4: memref<32x64xf32, #tpu.memory_space<vmem>>) attributes {dimension_semantics = [#tpu.dimension_semantics<arbitrary>], iteration_bounds = array<i64: 1>, scalar_prefetch = 0 : i64, scratch_operands = 0 : i64, tpu.core_type = #tpu.core_type<tc>, window_params = [{pipeline_mode = #tpu.pipeline_mode<synchronous>, transform_indices = @transform_0, window_bounds = array<i64: 64, 4>}, {pipeline_mode = #tpu.pipeline_mode<synchronous>, transform_indices = @transform_1, window_bounds = array<i64: 32, 4>}, {pipeline_mode = #tpu.pipeline_mode<synchronous>, transform_indices = @transform_2, window_bounds = array<i64: 64, 64>}, {pipeline_mode = #tpu.pipeline_mode<synchronous>, transform_indices = @transform_3, window_bounds = array<i64: 32, 64>}]} {
    %c0 = arith.constant 0 : index
    %c0_0 = arith.constant 0 : index
    %0 = vector.load %arg1[%c0, %c0_0] : memref<64x4xf32, #tpu.memory_space<vmem>>, vector<64x4xf32>
    %c0_1 = arith.constant 0 : index
    %c0_2 = arith.constant 0 : index
    %1 = vector.load %arg2[%c0_1, %c0_2] : memref<32x4xf32, #tpu.memory_space<vmem>>, vector<32x4xf32>
    %2 = arith.mulf %0, %0 : vector<64x4xf32>
    %cst = arith.constant dense<0.000000e+00> : vector<64xf32>
    %3 = vector.multi_reduction <add>, %2, %cst [1] : vector<64x4xf32> to vector<64xf32>
    %4 = vector.shape_cast %3 : vector<64xf32> to vector<64x1xf32>
    %cst_3 = arith.constant 1.000000e+00 : f32
    %5 = vector.broadcast %cst_3 : f32 to vector<1x4xf32>
    %6 = arith.mulf %0, %0 : vector<64x4xf32>
    %cst_4 = arith.constant dense<0.000000e+00> : vector<1x64xf32>
    %7 = tpu.matmul %5, %6, %cst_4 {dimension_numbers = #tpu.dot_dimension_numbers<[1], [1], [0], [0], [0, 0, 1, 0], [], []>} : vector<1x4xf32>, vector<64x4xf32>, vector<1x64xf32> -> vector<1x64xf32>
    %8 = arith.mulf %1, %1 : vector<32x4xf32>
    %cst_5 = arith.constant dense<0.000000e+00> : vector<32xf32>
    %9 = vector.multi_reduction <add>, %8, %cst_5 [1] : vector<32x4xf32> to vector<32xf32>
    %10 = vector.shape_cast %9 : vector<32xf32> to vector<32x1xf32>
    %cst_6 = arith.constant dense<0.000000e+00> : vector<64x64xf32>
    %11 = tpu.matmul %0, %0, %cst_6 {dimension_numbers = #tpu.dot_dimension_numbers<[1], [1], [0], [0], [0, 0, 1, 0], [], []>} : vector<64x4xf32>, vector<64x4xf32>, vector<64x64xf32> -> vector<64x64xf32>
    %cst_7 = arith.constant dense<0.000000e+00> : vector<32x64xf32>
    %12 = tpu.matmul %1, %0, %cst_7 {dimension_numbers = #tpu.dot_dimension_numbers<[1], [1], [0], [0], [0, 0, 1, 0], [], []>} : vector<32x4xf32>, vector<64x4xf32>, vector<32x64xf32> -> vector<32x64xf32>
    %13 = vector.broadcast %4 : vector<64x1xf32> to vector<64x64xf32>
    %14 = vector.broadcast %7 : vector<1x64xf32> to vector<64x64xf32>
    %15 = arith.addf %13, %14 : vector<64x64xf32>
    %cst_8 = arith.constant 2.000000e+00 : f32
    %16 = vector.broadcast %cst_8 : f32 to vector<64x64xf32>
    %17 = arith.mulf %16, %11 : vector<64x64xf32>
    %18 = arith.subf %15, %17 : vector<64x64xf32>
    %cst_9 = arith.constant 0.000000e+00 : f32
    %19 = vector.broadcast %cst_9 : f32 to vector<64x64xf32>
    %20 = arith.maximumf %18, %19 : vector<64x64xf32>
    %cst_10 = arith.constant 0.000000e+00 : f32
    %21 = vector.broadcast %cst_10 : f32 to vector<64x64xf32>
    %22 = arith.subf %21, %20 : vector<64x64xf32>
    %cst_11 = arith.constant 1.02040815 : f32
    %23 = vector.broadcast %cst_11 : f32 to vector<64x64xf32>
    %24 = arith.mulf %22, %23 : vector<64x64xf32>
    %25 = math.exp %24 : vector<64x64xf32>
    %cst_12 = arith.constant 1.000000e+00 : f32
    %26 = vector.broadcast %cst_12 : f32 to vector<64x64xf32>
    %27 = arith.mulf %26, %25 : vector<64x64xf32>
    %28 = tpu.iota {dimensions = array<i32: 0>} : vector<64x64xi32>
    %29 = tpu.iota {dimensions = array<i32: 1>} : vector<64x64xi32>
    %30 = arith.cmpi eq, %28, %29 : vector<64x64xi32>
    %cst_13 = arith.constant 2.500000e-03 : f32
    %31 = vector.broadcast %cst_13 : f32 to vector<64x64xf32>
    %32 = arith.addf %27, %31 : vector<64x64xf32>
    %33 = arith.select %30, %32, %27 : vector<64x64xi1>, vector<64x64xf32>
    %c0_14 = arith.constant 0 : index
    %c0_15 = arith.constant 0 : index
    %34 = vector.load %arg3[%c0_14, %c0_15] : memref<64x64xf32, #tpu.memory_space<vmem>>, vector<64x64xf32>
    tpu.vector_store %arg3[%c0_14, %c0_15], %33 {strides = array<i32>} : memref<64x64xf32, #tpu.memory_space<vmem>>, vector<64x64xf32>,
    %35 = vector.broadcast %10 : vector<32x1xf32> to vector<32x64xf32>
    %36 = vector.broadcast %7 : vector<1x64xf32> to vector<32x64xf32>
    %37 = arith.addf %35, %36 : vector<32x64xf32>
    %cst_16 = arith.constant 2.000000e+00 : f32
    %38 = vector.broadcast %cst_16 : f32 to vector<32x64xf32>
    %39 = arith.mulf %38, %12 : vector<32x64xf32>
    %40 = arith.subf %37, %39 : vector<32x64xf32>
    %cst_17 = arith.constant 0.000000e+00 : f32
    %41 = vector.broadcast %cst_17 : f32 to vector<32x64xf32>
    %42 = arith.maximumf %40, %41 : vector<32x64xf32>
    %cst_18 = arith.constant 0.000000e+00 : f32
    %43 = vector.broadcast %cst_18 : f32 to vector<32x64xf32>
    %44 = arith.subf %43, %42 : vector<32x64xf32>
    %cst_19 = arith.constant 1.02040815 : f32
    %45 = vector.broadcast %cst_19 : f32 to vector<32x64xf32>
    %46 = arith.mulf %44, %45 : vector<32x64xf32>
    %47 = math.exp %46 : vector<32x64xf32>
    %cst_20 = arith.constant 1.000000e+00 : f32
    %48 = vector.broadcast %cst_20 : f32 to vector<32x64xf32>
    %49 = arith.mulf %48, %47 : vector<32x64xf32>
    %c0_21 = arith.constant 0 : index
    %c0_22 = arith.constant 0 : index
    %50 = vector.load %arg4[%c0_21, %c0_22] : memref<32x64xf32, #tpu.memory_space<vmem>>, vector<32x64xf32>
    tpu.vector_store %arg4[%c0_21, %c0_22], %49 {strides = array<i32>} : memref<32x64xf32, #tpu.memory_space<vmem>>, vector<32x64xf32>,
    return
  }
  func.func @transform_0(%arg0: i32) -> (i32, i32) {
    %c0_i32 = arith.constant 0 : i32
    %c0_i32_0 = arith.constant 0 : i32
    %c0_i32_1 = arith.constant 0 : i32
    return %c0_i32, %c0_i32_0 : i32, i32
  }
  func.func @transform_1(%arg0: i32) -> (i32, i32) {
    %c0_i32 = arith.constant 0 : i32
    %c0_i32_0 = arith.constant 0 : i32
    %c0_i32_1 = arith.constant 0 : i32
    return %c0_i32, %c0_i32_0 : i32, i32
  }
  func.func @transform_2(%arg0: i32) -> (i32, i32) {
    %c0_i32 = arith.constant 0 : i32
    %c0_i32_0 = arith.constant 0 : i32
    %c0_i32_1 = arith.constant 0 : i32
    return %c0_i32, %c0_i32_0 : i32, i32
  }
  func.func @transform_3(%arg0: i32) -> (i32, i32) {
    %c0_i32 = arith.constant 0 : i32
    %c0_i32_0 = arith.constant 0 : i32
    %c0_i32_1 = arith.constant 0 : i32
    return %c0_i32, %c0_i32_0 : i32, i32
  }
}

module attributes {stable_mosaic.version = 11 : i64} {
  func.func @_predict_body(%arg0: i32, %arg1: memref<32x64xf32, #tpu.memory_space<vmem>>, %arg2: memref<32x4xf32, #tpu.memory_space<vmem>>, %arg3: memref<33x64xf32, #tpu.memory_space<vmem>>, %arg4: memref<1x32xf32, #tpu.memory_space<vmem>>, %arg5: memref<32x32xf32, #tpu.memory_space<vmem>>) attributes {dimension_semantics = [#tpu.dimension_semantics<arbitrary>], iteration_bounds = array<i64: 1>, scalar_prefetch = 0 : i64, scratch_operands = 0 : i64, tpu.core_type = #tpu.core_type<tc>, window_params = [{pipeline_mode = #tpu.pipeline_mode<synchronous>, transform_indices = @transform_0, window_bounds = array<i64: 32, 64>}, {pipeline_mode = #tpu.pipeline_mode<synchronous>, transform_indices = @transform_1, window_bounds = array<i64: 32, 4>}, {pipeline_mode = #tpu.pipeline_mode<synchronous>, transform_indices = @transform_2, window_bounds = array<i64: 33, 64>}, {pipeline_mode = #tpu.pipeline_mode<synchronous>, transform_indices = @transform_3, window_bounds = array<i64: 1, 32>}, {pipeline_mode = #tpu.pipeline_mode<synchronous>, transform_indices = @transform_4, window_bounds = array<i64: 32, 32>}]} {
    %c0 = arith.constant 0 : index
    %c0_0 = arith.constant 0 : index
    %0 = vector.load %arg1[%c0, %c0_0] : memref<32x64xf32, #tpu.memory_space<vmem>>, vector<32x64xf32>
    %c0_1 = arith.constant 0 : index
    %c0_2 = arith.constant 0 : index
    %1 = vector.load %arg2[%c0_1, %c0_2] : memref<32x4xf32, #tpu.memory_space<vmem>>, vector<32x4xf32>
    %c0_3 = arith.constant 0 : index
    %c0_4 = arith.constant 0 : index
    %2 = vector.load %arg3[%c0_3, %c0_4] : memref<33x64xf32, #tpu.memory_space<vmem>>, vector<33x64xf32>
    %cst = arith.constant dense<0.000000e+00> : vector<33x32xf32>
    %3 = tpu.matmul %2, %0, %cst {dimension_numbers = #tpu.dot_dimension_numbers<[1], [1], [0], [0], [0, 0, 1, 0], [], []>} : vector<33x64xf32>, vector<32x64xf32>, vector<33x32xf32> -> vector<33x32xf32>
    %cst_5 = arith.constant dense<0.000000e+00> : vector<32x32xf32>
    %4 = tpu.matmul %1, %1, %cst_5 {dimension_numbers = #tpu.dot_dimension_numbers<[1], [1], [0], [0], [0, 0, 1, 0], [], []>} : vector<32x4xf32>, vector<32x4xf32>, vector<32x32xf32> -> vector<32x32xf32>
    %5 = arith.mulf %1, %1 : vector<32x4xf32>
    %cst_6 = arith.constant dense<0.000000e+00> : vector<32xf32>
    %6 = vector.multi_reduction <add>, %5, %cst_6 [1] : vector<32x4xf32> to vector<32xf32>
    %7 = vector.shape_cast %6 : vector<32xf32> to vector<32x1xf32>
    %cst_7 = arith.constant 1.000000e+00 : f32
    %8 = vector.broadcast %cst_7 : f32 to vector<1x4xf32>
    %9 = arith.mulf %1, %1 : vector<32x4xf32>
    %cst_8 = arith.constant dense<0.000000e+00> : vector<1x32xf32>
    %10 = tpu.matmul %8, %9, %cst_8 {dimension_numbers = #tpu.dot_dimension_numbers<[1], [1], [0], [0], [0, 0, 1, 0], [], []>} : vector<1x4xf32>, vector<32x4xf32>, vector<1x32xf32> -> vector<1x32xf32>
    %11 = vector.broadcast %7 : vector<32x1xf32> to vector<32x32xf32>
    %12 = vector.broadcast %10 : vector<1x32xf32> to vector<32x32xf32>
    %13 = arith.addf %11, %12 : vector<32x32xf32>
    %cst_9 = arith.constant 2.000000e+00 : f32
    %14 = vector.broadcast %cst_9 : f32 to vector<32x32xf32>
    %15 = arith.mulf %14, %4 : vector<32x32xf32>
    %16 = arith.subf %13, %15 : vector<32x32xf32>
    %cst_10 = arith.constant 0.000000e+00 : f32
    %17 = vector.broadcast %cst_10 : f32 to vector<32x32xf32>
    %18 = arith.maximumf %16, %17 : vector<32x32xf32>
    %cst_11 = arith.constant 0.000000e+00 : f32
    %19 = vector.broadcast %cst_11 : f32 to vector<32x32xf32>
    %20 = arith.subf %19, %18 : vector<32x32xf32>
    %cst_12 = arith.constant 1.02040815 : f32
    %21 = vector.broadcast %cst_12 : f32 to vector<32x32xf32>
    %22 = arith.mulf %20, %21 : vector<32x32xf32>
    %23 = math.exp %22 : vector<32x32xf32>
    %cst_13 = arith.constant 1.000000e+00 : f32
    %24 = vector.broadcast %cst_13 : f32 to vector<32x32xf32>
    %25 = arith.mulf %24, %23 : vector<32x32xf32>
    %26 = vector.extract_strided_slice %3 {offsets = [0, 0], sizes = [32, 32], strides = [1, 1]} : vector<33x32xf32> to vector<32x32xf32>
    %27 = arith.subf %25, %26 : vector<32x32xf32>
    %28 = tpu.iota {dimensions = array<i32: 0>} : vector<32x32xi32>
    %29 = tpu.iota {dimensions = array<i32: 1>} : vector<32x32xi32>
    %30 = arith.cmpi eq, %28, %29 : vector<32x32xi32>
    %cst_14 = arith.constant 2.500000e-03 : f32
    %31 = vector.broadcast %cst_14 : f32 to vector<32x32xf32>
    %32 = arith.addf %27, %31 : vector<32x32xf32>
    %33 = arith.select %30, %32, %27 : vector<32x32xi1>, vector<32x32xf32>
    %c0_15 = arith.constant 0 : index
    %c0_16 = arith.constant 0 : index
    %34 = vector.load %arg5[%c0_15, %c0_16] : memref<32x32xf32, #tpu.memory_space<vmem>>, vector<32x32xf32>
    tpu.vector_store %arg5[%c0_15, %c0_16], %33 {strides = array<i32>} : memref<32x32xf32, #tpu.memory_space<vmem>>, vector<32x32xf32>,
    %35 = vector.extract_strided_slice %3 {offsets = [32, 0], sizes = [1, 32], strides = [1, 1]} : vector<33x32xf32> to vector<1x32xf32>
    %cst_17 = arith.constant 0.000000e+00 : f32
    %36 = vector.broadcast %cst_17 : f32 to vector<1x32xf32>
    %37 = arith.addf %35, %36 : vector<1x32xf32>
    %c0_18 = arith.constant 0 : index
    %c0_19 = arith.constant 0 : index
    %38 = vector.load %arg4[%c0_18, %c0_19] : memref<1x32xf32, #tpu.memory_space<vmem>>, vector<1x32xf32>
    tpu.vector_store %arg4[%c0_18, %c0_19], %37 {strides = array<i32>} : memref<1x32xf32, #tpu.memory_space<vmem>>, vector<1x32xf32>,
    return
  }
  func.func @transform_0(%arg0: i32) -> (i32, i32) {
    %c0_i32 = arith.constant 0 : i32
    %c0_i32_0 = arith.constant 0 : i32
    %c0_i32_1 = arith.constant 0 : i32
    return %c0_i32, %c0_i32_0 : i32, i32
  }
  func.func @transform_1(%arg0: i32) -> (i32, i32) {
    %c0_i32 = arith.constant 0 : i32
    %c0_i32_0 = arith.constant 0 : i32
    %c0_i32_1 = arith.constant 0 : i32
    return %c0_i32, %c0_i32_0 : i32, i32
  }
  func.func @transform_2(%arg0: i32) -> (i32, i32) {
    %c0_i32 = arith.constant 0 : i32
    %c0_i32_0 = arith.constant 0 : i32
    %c0_i32_1 = arith.constant 0 : i32
    return %c0_i32, %c0_i32_0 : i32, i32
  }
  func.func @transform_3(%arg0: i32) -> (i32, i32) {
    %c0_i32 = arith.constant 0 : i32
    %c0_i32_0 = arith.constant 0 : i32
    %c0_i32_1 = arith.constant 0 : i32
    return %c0_i32, %c0_i32_0 : i32, i32
  }
  func.func @transform_4(%arg0: i32) -> (i32, i32) {
    %c0_i32 = arith.constant 0 : i32
    %c0_i32_0 = arith.constant 0 : i32
    %c0_i32_1 = arith.constant 0 : i32
    return %c0_i32, %c0_i32_0 : i32, i32
  }
}

</mosaic_0001>

<llo_original>
// kernel: custom-call.6
$region0: #{custom-call.6}
  %s0 = inlined_call_operand.vmem [shape: f32[64,64], index: 0, kind: input, shape index: {}]
  %s1 = inlined_call_operand.vmem [shape: f32[64,64], index: 1, kind: output, shape index: {}]
  $region1: #{custom-call.6} parent=0
    #allocation0 [shape = 'u8[32768]{0}', space=vmem, size = 0x8000, scoped, tag = 'operand span for operand 0']
    #allocation1 [shape = 'u8[32768]{0}', space=vmem, size = 0x8000, scoped, tag = 'operand span for operand 1']
    // Predicated region
    $region2: #{custom-call.6} parent=1 // pred_check
      _
    $region3: #{custom-call.6} parent=1 // pred_check_branch
      %3 = sbr.rel (0) target = $region5
    $region4: #{custom-call.6} parent=1 // pred_region
      // Predicated region
      $region6: #{custom-call.6} parent=4 // pred_check
        _
      $region7: #{custom-call.6} parent=4 // pred_check_branch
        %5 = sbr.rel (0) target = $region9
      $region8: #{custom-call.6} parent=4 // pred_region
        // Predicated region
        $region21: #{custom-call.6} parent=8 // pred_check
          _
        $region22: #{custom-call.6} parent=8 // pred_check_branch
          %34 = sbr.rel (0) target = $region24
        $region23: #{custom-call.6} parent=8 // pred_region
          loop: start=0, step=1, limit=1
          $region25: #{custom-call.6} parent=23 // loop_pre_header
            _
          $region26: #{custom-call.6} parent=23 // loop_header
            %s36 = sphi 0, %s40
            %p37 = scmp.ge.s32.totalorder %s36, 1
            %s41 = sphi %s0, %s0
            %s42 = sphi [#allocation0], [#allocation0]
          $region27: #{custom-call.6} parent=23 // loop_header_branch
            %39 = sbr.rel (%p37) target = $region31
          $region28: #{custom-call.6} parent=23 // loop_body
            %v43 = vld [vmem:[%s41] sm:$0xff]
            %44 = vst [vmem:[%s42] sm:$0xff] %v43
            %v45 = vld [vmem:[%s41 + $0x8] sm:$0xff]
            %46 = vst [vmem:[%s42 + $0x8] sm:$0xff] %v45
            %v47 = vld [vmem:[%s41 + $0x10] sm:$0xff]
            %48 = vst [vmem:[%s42 + $0x10] sm:$0xff] %v47
            %v49 = vld [vmem:[%s41 + $0x18] sm:$0xff]
            %50 = vst [vmem:[%s42 + $0x18] sm:$0xff] %v49
            %v51 = vld [vmem:[%s41 + $0x20] sm:$0xff]
            %52 = vst [vmem:[%s42 + $0x20] sm:$0xff] %v51
            %v53 = vld [vmem:[%s41 + $0x28] sm:$0xff]
            %54 = vst [vmem:[%s42 + $0x28] sm:$0xff] %v53
            %v55 = vld [vmem:[%s41 + $0x30] sm:$0xff]
            %56 = vst [vmem:[%s42 + $0x30] sm:$0xff] %v55
            %v57 = vld [vmem:[%s41 + $0x38] sm:$0xff]
            %58 = vst [vmem:[%s42 + $0x38] sm:$0xff] %v57
          $region29: #{custom-call.6} parent=23 // loop_footer
            %s40 = sadd.s32 1, %s36
          $region30: #{custom-call.6} parent=23 // loop_footer_branch
            %35 = sbr.rel target = $region26
          $region31: #{custom-call.6} parent=23 // loop_exit
            _
        $region24: #{custom-call.6} parent=8 // pred_fallthru
          _
        // Predicated region
        $region32: #{custom-call.6} parent=8 // pred_check
          _
        $region33: #{custom-call.6} parent=8 // pred_check_branch
          %60 = sbr.rel target = $region35
        $region34: #{custom-call.6} parent=8 // pred_region
          _
        $region35: #{custom-call.6} parent=8 // pred_fallthru
          _
      $region9: #{custom-call.6} parent=4 // pred_fallthru
        _
      // Predicated region
      $region10: #{custom-call.6} parent=4 // pred_check
        _
      $region11: #{custom-call.6} parent=4 // pred_check_branch
        %7 = sbr.rel target = $region13
      $region12: #{custom-call.6} parent=4 // pred_region
        loop: start=0, step=1, limit=1
        $region14: #{custom-call.6} parent=12 // loop_pre_header
          _
        $region15: #{custom-call.6} parent=12 // loop_header
          %s10 = sphi 0, %s14
          %p11 = scmp.ge.s32.totalorder %s10, 1
          %s15 = sphi %s0, %s0
          %s16 = sphi [#allocation0], [#allocation0]
        $region16: #{custom-call.6} parent=12 // loop_header_branch
          %13 = sbr.rel (%p11) target = $region20
        $region17: #{custom-call.6} parent=12 // loop_body
          %v17 = vld [vmem:[%s15] sm:$0xff]
          %18 = vst [vmem:[%s16] sm:$0xff] %v17
          %v19 = vld [vmem:[%s15 + $0x8] sm:$0xff]
          %20 = vst [vmem:[%s16 + $0x8] sm:$0xff] %v19
          %v21 = vld [vmem:[%s15 + $0x10] sm:$0xff]
          %22 = vst [vmem:[%s16 + $0x10] sm:$0xff] %v21
          %v23 = vld [vmem:[%s15 + $0x18] sm:$0xff]
          %24 = vst [vmem:[%s16 + $0x18] sm:$0xff] %v23
          %v25 = vld [vmem:[%s15 + $0x20] sm:$0xff]
          %26 = vst [vmem:[%s16 + $0x20] sm:$0xff] %v25
          %v27 = vld [vmem:[%s15 + $0x28] sm:$0xff]
          %28 = vst [vmem:[%s16 + $0x28] sm:$0xff] %v27
          %v29 = vld [vmem:[%s15 + $0x30] sm:$0xff]
          %30 = vst [vmem:[%s16 + $0x30] sm:$0xff] %v29
          %v31 = vld [vmem:[%s15 + $0x38] sm:$0xff]
          %32 = vst [vmem:[%s16 + $0x38] sm:$0xff] %v31
        $region18: #{custom-call.6} parent=12 // loop_footer
          %s14 = sadd.s32 1, %s10
        $region19: #{custom-call.6} parent=12 // loop_footer_branch
          %9 = sbr.rel target = $region15
        $region20: #{custom-call.6} parent=12 // loop_exit
          _
      $region13: #{custom-call.6} parent=4 // pred_fallthru
        _
    $region5: #{custom-call.6} parent=1 // pred_fallthru
      _
    %61 = vnop
    %62 = vst [vmem:[#allocation1] sm:$0xff] 0.0
    %s63 = scalar_lea.vmem [#allocation1], 8
    %64 = vst [vmem:[%s63] sm:$0xff] 0.0
    %s65 = scalar_lea.vmem [#allocation1], 16
    %66 = vst [vmem:[%s65] sm:$0xff] 0.0
    %s67 = scalar_lea.vmem [#allocation1], 24
    %68 = vst [vmem:[%s67] sm:$0xff] 0.0
    %s69 = scalar_lea.vmem [#allocation1], 32
    %70 = vst [vmem:[%s69] sm:$0xff] 0.0
    %s71 = scalar_lea.vmem [#allocation1], 40
    %72 = vst [vmem:[%s71] sm:$0xff] 0.0
    %s73 = scalar_lea.vmem [#allocation1], 48
    %74 = vst [vmem:[%s73] sm:$0xff] 0.0
    %s75 = scalar_lea.vmem [#allocation1], 56
    %76 = vst [vmem:[%s75] sm:$0xff] 0.0
    %vm77 = vcmask 7168
    %v78 = vld [vmem:[#allocation1] ss:$0 sm:$0xff]
    %v79 = vld [vmem:[#allocation0] ss:$0 sm:$0xff]
    %v80 = vmul.f32 %v78, %v78
    %81 = vadd.xlane.f32.xlu0 %v80
    %v82 = vpop.xlane.xlu0 %81
    %v83 = vsub.f32 %v79, %v82
    %v84 = vrsqrt.pop %v83
    %v85 = vld [vmem:[#allocation0] sm:$0xff]
    %v86 = vld [vmem:[#allocation1] sm:$0xff]
    %v87 = vmul.f32 %v86, %v78
    %88 = vadd.xlane.f32.xlu0 %v87
    %v89 = vpop.xlane.xlu0 %88
    %v90 = vsub.f32 %v85, %v89
    %v91 = vmul.f32 %v90, %v84
    %v92 = vsel %vm77, %v91, 0.0
    %v93 = vadd.f32 %v86, %v92
    %94 = vst [vmem:[#allocation1] sm:$0xff] %v93
    %s95 = scalar_lea.vmem [#allocation0], 8
    %v96 = vld [vmem:[%s95] sm:$0xff]
    %s97 = scalar_lea.vmem [#allocation1], 8
    %v98 = vld [vmem:[%s97] sm:$0xff]
    %v99 = vmul.f32 %v98, %v78
    %100 = vadd.xlane.f32.xlu0 %v99
    %v101 = vpop.xlane.xlu0 %100
    %v102 = vsub.f32 %v96, %v101
    %v103 = vmul.f32 %v102, %v84
    %v104 = vsel %vm77, %v103, 0.0
    %v105 = vadd.f32 %v98, %v104
    %s106 = scalar_lea.vmem [#allocation1], 8
    %107 = vst [vmem:[%s106] sm:$0xff] %v105
    %s108 = scalar_lea.vmem [#allocation0], 16
    %v109 = vld [vmem:[%s108] sm:$0xff]
    %s110 = scalar_lea.vmem [#allocation1], 16
    %v111 = vld [vmem:[%s110] sm:$0xff]
    %v112 = vmul.f32 %v111, %v78
    %113 = vadd.xlane.f32.xlu0 %v112
    %v114 = vpop.xlane.xlu0 %113
    %v115 = vsub.f32 %v109, %v114
    %v116 = vmul.f32 %v115, %v84
    %v117 = vsel %vm77, %v116, 0.0
    %v118 = vadd.f32 %v111, %v117
    %s119 = scalar_lea.vmem [#allocation1], 16
    %120 = vst [vmem:[%s119] sm:$0xff] %v118
    %s121 = scalar_lea.vmem [#allocation0], 24
    %v122 = vld [vmem:[%s121] sm:$0xff]
    %s123 = scalar_lea.vmem [#allocation1], 24
    %v124 = vld [vmem:[%s123] sm:$0xff]
    %v125 = vmul.f32 %v124, %v78
    %126 = vadd.xlane.f32.xlu0 %v125
    %v127 = vpop.xlane.xlu0 %126
    %v128 = vsub.f32 %v122, %v127
    %v129 = vmul.f32 %v128, %v84
    %v130 = vsel %vm77, %v129, 0.0
    %v131 = vadd.f32 %v124, %v130
    %s132 = scalar_lea.vmem [#allocation1], 24
    %133 = vst [vmem:[%s132] sm:$0xff] %v131
    %s134 = scalar_lea.vmem [#allocation0], 32
    %v135 = vld [vmem:[%s134] sm:$0xff]
    %s136 = scalar_lea.vmem [#allocation1], 32
    %v137 = vld [vmem:[%s136] sm:$0xff]
    %v138 = vmul.f32 %v137, %v78
    %139 = vadd.xlane.f32.xlu0 %v138
    %v140 = vpop.xlane.xlu0 %139
    %v141 = vsub.f32 %v135, %v140
    %v142 = vmul.f32 %v141, %v84
    %v143 = vsel %vm77, %v142, 0.0
    %v144 = vadd.f32 %v137, %v143
    %s145 = scalar_lea.vmem [#allocation1], 32
    %146 = vst [vmem:[%s145] sm:$0xff] %v144
    %s147 = scalar_lea.vmem [#allocation0], 40
    %v148 = vld [vmem:[%s147] sm:$0xff]
    %s149 = scalar_lea.vmem [#allocation1], 40
    %v150 = vld [vmem:[%s149] sm:$0xff]
    %v151 = vmul.f32 %v150, %v78
    %152 = vadd.xlane.f32.xlu0 %v151
    %v153 = vpop.xlane.xlu0 %152
    %v154 = vsub.f32 %v148, %v153
    %v155 = vmul.f32 %v154, %v84
    %v156 = vsel %vm77, %v155, 0.0
    %v157 = vadd.f32 %v150, %v156
    %s158 = scalar_lea.vmem [#allocation1], 40
    %159 = vst [vmem:[%s158] sm:$0xff] %v157
    %s160 = scalar_lea.vmem [#allocation0], 48
    %v161 = vld [vmem:[%s160] sm:$0xff]
    %s162 = scalar_lea.vmem [#allocation1], 48
    %v163 = vld [vmem:[%s162] sm:$0xff]
    %v164 = vmul.f32 %v163, %v78
    %165 = vadd.xlane.f32.xlu0 %v164
    %v166 = vpop.xlane.xlu0 %165
    %v167 = vsub.f32 %v161, %v166
    %v168 = vmul.f32 %v167, %v84
    %v169 = vsel %vm77, %v168, 0.0
    %v170 = vadd.f32 %v163, %v169
    %s171 = scalar_lea.vmem [#allocation1], 48
    %172 = vst [vmem:[%s171] sm:$0xff] %v170
    %s173 = scalar_lea.vmem [#allocation0], 56
    %v174 = vld [vmem:[%s173] sm:$0xff]
    %s175 = scalar_lea.vmem [#allocation1], 56
    %v176 = vld [vmem:[%s175] sm:$0xff]
    %v177 = vmul.f32 %v176, %v78
    %178 = vadd.xlane.f32.xlu0 %v177
    %v179 = vpop.xlane.xlu0 %178
    %v180 = vsub.f32 %v174, %v179
    %v181 = vmul.f32 %v180, %v84
    %v182 = vsel %vm77, %v181, 0.0
    %v183 = vadd.f32 %v176, %v182
    %s184 = scalar_lea.vmem [#allocation1], 56
    %185 = vst [vmem:[%s184] sm:$0xff] %v183
    %vm186 = vcmask 15368
    %s187 = scalar_lea.vmem [#allocation1], 1
    %v188 = vld [vmem:[%s187] ss:$0 sm:$0xff]
    %s189 = scalar_lea.vmem [#allocation0], 1
    %v190 = vld [vmem:[%s189] ss:$0 sm:$0xff]
    %v191 = vmul.f32 %v188, %v188
    %192 = vadd.xlane.f32.xlu0 %v191
    %v193 = vpop.xlane.xlu0 %192
    %v194 = vsub.f32 %v190, %v193
    %v195 = vrsqrt.pop %v194
    %v196 = vld [vmem:[#allocation0] sm:$0xff]
    %v197 = vld [vmem:[#allocation1] sm:$0xff]
    %v198 = vmul.f32 %v197, %v188
    %199 = vadd.xlane.f32.xlu0 %v198
    %v200 = vpop.xlane.xlu0 %199
    %v201 = vsub.f32 %v196, %v200
    %v202 = vmul.f32 %v201, %v195
    %vm203 = vcmask 1047553
    %vm204 = vmand %vm186, %vm203
    %v205 = vsel %vm204, %v202, 0.0
    %v206 = vadd.f32 %v197, %v205
    %207 = vst [vmem:[#allocation1] sm:$0xff] %v206
    %s208 = scalar_lea.vmem [#allocation0], 8
    %v209 = vld [vmem:[%s208] sm:$0xff]
    %s210 = scalar_lea.vmem [#allocation1], 8
    %v211 = vld [vmem:[%s210] sm:$0xff]
    %v212 = vmul.f32 %v211, %v188
    %213 = vadd.xlane.f32.xlu0 %v212
    %v214 = vpop.xlane.xlu0 %213
    %v215 = vsub.f32 %v209, %v214
    %v216 = vmul.f32 %v215, %v195
    %v217 = vsel %vm186, %v216, 0.0
    %v218 = vadd.f32 %v211, %v217
    %s219 = scalar_lea.vmem [#allocation1], 8
    %220 = vst [vmem:[%s219] sm:$0xff] %v218
    %s221 = scalar_lea.vmem [#allocation0], 16
    %v222 = vld [vmem:[%s221] sm:$0xff]
    %s223 = scalar_lea.vmem [#allocation1], 16
    %v224 = vld [vmem:[%s223] sm:$0xff]
    %v225 = vmul.f32 %v224, %v188
    %226 = vadd.xlane.f32.xlu0 %v225
    %v227 = vpop.xlane.xlu0 %226
    %v228 = vsub.f32 %v222, %v227
    %v229 = vmul.f32 %v228, %v195
    %v230 = vsel %vm186, %v229, 0.0
    %v231 = vadd.f32 %v224, %v230
    %s232 = scalar_lea.vmem [#allocation1], 16
    %233 = vst [vmem:[%s232] sm:$0xff] %v231
    %s234 = scalar_lea.vmem [#allocation0], 24
    %v235 = vld [vmem:[%s234] sm:$0xff]
    %s236 = scalar_lea.vmem [#allocation1], 24
    %v237 = vld [vmem:[%s236] sm:$0xff]
    %v238 = vmul.f32 %v237, %v188
    %239 = vadd.xlane.f32.xlu0 %v238
    %v240 = vpop.xlane.xlu0 %239
    %v241 = vsub.f32 %v235, %v240
    %v242 = vmul.f32 %v241, %v195
    %v243 = vsel %vm186, %v242, 0.0
    %v244 = vadd.f32 %v237, %v243
    %s245 = scalar_lea.vmem [#allocation1], 24
    %246 = vst [vmem:[%s245] sm:$0xff] %v244
    %s247 = scalar_lea.vmem [#allocation0], 32
    %v248 = vld [vmem:[%s247] sm:$0xff]
    %s249 = scalar_lea.vmem [#allocation1], 32
    %v250 = vld [vmem:[%s249] sm:$0xff]
    %v251 = vmul.f32 %v250, %v188
    %252 = vadd.xlane.f32.xlu0 %v251
    %v253 = vpop.xlane.xlu0 %252
    %v254 = vsub.f32 %v248, %v253
    %v255 = vmul.f32 %v254, %v195
    %v256 = vsel %vm186, %v255, 0.0
    %v257 = vadd.f32 %v250, %v256
    %s258 = scalar_lea.vmem [#allocation1], 32
    %259 = vst [vmem:[%s258] sm:$0xff] %v257
    %s260 = scalar_lea.vmem [#allocation0], 40
    %v261 = vld [vmem:[%s260] sm:$0xff]
    %s262 = scalar_lea.vmem [#allocation1], 40
    %v263 = vld [vmem:[%s262] sm:$0xff]
    %v264 = vmul.f32 %v263, %v188
    %265 = vadd.xlane.f32.xlu0 %v264
    %v266 = vpop.xlane.xlu0 %265
    %v267 = vsub.f32 %v261, %v266
    %v268 = vmul.f32 %v267, %v195
    %v269 = vsel %vm186, %v268, 0.0
    %v270 = vadd.f32 %v263, %v269
    %s271 = scalar_lea.vmem [#allocation1], 40
    %272 = vst [vmem:[%s271] sm:$0xff] %v270
    %s273 = scalar_lea.vmem [#allocation0], 48
    %v274 = vld [vmem:[%s273] sm:$0xff]
    %s275 = scalar_lea.vmem [#allocation1], 48
    %v276 = vld [vmem:[%s275] sm:$0xff]
    %v277 = vmul.f32 %v276, %v188
    %278 = vadd.xlane.f32.xlu0 %v277
    %v279 = vpop.xlane.xlu0 %278
    %v280 = vsub.f32 %v274, %v279
    %v281 = vmul.f32 %v280, %v195
    %v282 = vsel %vm186, %v281, 0.0
    %v283 = vadd.f32 %v276, %v282
    %s284 = scalar_lea.vmem [#allocation1], 48
    %285 = vst [vmem:[%s284] sm:$0xff] %v283
    %s286 = scalar_lea.vmem [#allocation0], 56
    %v287 = vld [vmem:[%s286] sm:$0xff]
    %s288 = scalar_lea.vmem [#allocation1], 56
    %v289 = vld [vmem:[%s288] sm:$0xff]
    %v290 = vmul.f32 %v289, %v188
    %291 = vadd.xlane.f32.xlu0 %v290
    %v292 = vpop.xlane.xlu0 %291
    %v293 = vsub.f32 %v287, %v292
    %v294 = vmul.f32 %v293, %v195
    %v295 = vsel %vm186, %v294, 0.0
    %v296 = vadd.f32 %v289, %v295
    %s297 = scalar_lea.vmem [#allocation1], 56
    %298 = vst [vmem:[%s297] sm:$0xff] %v296
    %vm299 = vcmask 23568
    %s300 = scalar_lea.vmem [#allocation1], 2
    %v301 = vld [vmem:[%s300] ss:$0 sm:$0xff]
    %s302 = scalar_lea.vmem [#allocation0], 2
    %v303 = vld [vmem:[%s302] ss:$0 sm:$0xff]
    %v304 = vmul.f32 %v301, %v301
    %305 = vadd.xlane.f32.xlu0 %v304
    %v306 = vpop.xlane.xlu0 %305
    %v307 = vsub.f32 %v303, %v306
    %v308 = vrsqrt.pop %v307
    %v309 = vld [vmem:[#allocation0] sm:$0xff]
    %v310 = vld [vmem:[#allocation1] sm:$0xff]
    %v311 = vmul.f32 %v310, %v301
    %312 = vadd.xlane.f32.xlu0 %v311
    %v313 = vpop.xlane.xlu0 %312
    %v314 = vsub.f32 %v309, %v313
    %v315 = vmul.f32 %v314, %v308
    %vm316 = vcmask 1047554
    %vm317 = vmand %vm299, %vm316
    %v318 = vsel %vm317, %v315, 0.0
    %v319 = vadd.f32 %v310, %v318
    %320 = vst [vmem:[#allocation1] sm:$0xff] %v319
    %s321 = scalar_lea.vmem [#allocation0], 8
    %v322 = vld [vmem:[%s321] sm:$0xff]
    %s323 = scalar_lea.vmem [#allocation1], 8
    %v324 = vld [vmem:[%s323] sm:$0xff]
    %v325 = vmul.f32 %v324, %v301
    %326 = vadd.xlane.f32.xlu0 %v325
    %v327 = vpop.xlane.xlu0 %326
    %v328 = vsub.f32 %v322, %v327
    %v329 = vmul.f32 %v328, %v308
    %v330 = vsel %vm299, %v329, 0.0
    %v331 = vadd.f32 %v324, %v330
    %s332 = scalar_lea.vmem [#allocation1], 8
    %333 = vst [vmem:[%s332] sm:$0xff] %v331
    %s334 = scalar_lea.vmem [#allocation0], 16
    %v335 = vld [vmem:[%s334] sm:$0xff]
    %s336 = scalar_lea.vmem [#allocation1], 16
    %v337 = vld [vmem:[%s336] sm:$0xff]
    %v338 = vmul.f32 %v337, %v301
    %339 = vadd.xlane.f32.xlu0 %v338
    %v340 = vpop.xlane.xlu0 %339
    %v341 = vsub.f32 %v335, %v340
    %v342 = vmul.f32 %v341, %v308
    %v343 = vsel %vm299, %v342, 0.0
    %v344 = vadd.f32 %v337, %v343
    %s345 = scalar_lea.vmem [#allocation1], 16
    %346 = vst [vmem:[%s345] sm:$0xff] %v344
    %s347 = scalar_lea.vmem [#allocation0], 24
    %v348 = vld [vmem:[%s347] sm:$0xff]
    %s349 = scalar_lea.vmem [#allocation1], 24
    %v350 = vld [vmem:[%s349] sm:$0xff]
    %v351 = vmul.f32 %v350, %v301
    %352 = vadd.xlane.f32.xlu0 %v351
    %v353 = vpop.xlane.xlu0 %352
    %v354 = vsub.f32 %v348, %v353
    %v355 = vmul.f32 %v354, %v308
    %v356 = vsel %vm299, %v355, 0.0
    %v357 = vadd.f32 %v350, %v356
    %s358 = scalar_lea.vmem [#allocation1], 24
    %359 = vst [vmem:[%s358] sm:$0xff] %v357
    %s360 = scalar_lea.vmem [#allocation0], 32
    %v361 = vld [vmem:[%s360] sm:$0xff]
    %s362 = scalar_lea.vmem [#allocation1], 32
    %v363 = vld [vmem:[%s362] sm:$0xff]
    %v364 = vmul.f32 %v363, %v301
    %365 = vadd.xlane.f32.xlu0 %v364
    %v366 = vpop.xlane.xlu0 %365
    %v367 = vsub.f32 %v361, %v366
    %v368 = vmul.f32 %v367, %v308
    %v369 = vsel %vm299, %v368, 0.0
    %v370 = vadd.f32 %v363, %v369
    %s371 = scalar_lea.vmem [#allocation1], 32
    %372 = vst [vmem:[%s371] sm:$0xff] %v370
    %s373 = scalar_lea.vmem [#allocation0], 40
    %v374 = vld [vmem:[%s373] sm:$0xff]
    %s375 = scalar_lea.vmem [#allocation1], 40
    %v376 = vld [vmem:[%s375] sm:$0xff]
    %v377 = vmul.f32 %v376, %v301
    %378 = vadd.xlane.f32.xlu0 %v377
    %v379 = vpop.xlane.xlu0 %378
    %v380 = vsub.f32 %v374, %v379
    %v381 = vmul.f32 %v380, %v308
    %v382 = vsel %vm299, %v381, 0.0
    %v383 = vadd.f32 %v376, %v382
    %s384 = scalar_lea.vmem [#allocation1], 40
    %385 = vst [vmem:[%s384] sm:$0xff] %v383
    %s386 = scalar_lea.vmem [#allocation0], 48
    %v387 = vld [vmem:[%s386] sm:$0xff]
    %s388 = scalar_lea.vmem [#allocation1], 48
    %v389 = vld [vmem:[%s388] sm:$0xff]
    %v390 = vmul.f32 %v389, %v301
    %391 = vadd.xlane.f32.xlu0 %v390
    %v392 = vpop.xlane.xlu0 %391
    %v393 = vsub.f32 %v387, %v392
    %v394 = vmul.f32 %v393, %v308
    %v395 = vsel %vm299, %v394, 0.0
    %v396 = vadd.f32 %v389, %v395
    %s397 = scalar_lea.vmem [#allocation1], 48
    %398 = vst [vmem:[%s397] sm:$0xff] %v396
    %s399 = scalar_lea.vmem [#allocation0], 56
    %v400 = vld [vmem:[%s399] sm:$0xff]
    %s401 = scalar_lea.vmem [#allocation1], 56
    %v402 = vld [vmem:[%s401] sm:$0xff]
    %v403 = vmul.f32 %v402, %v301
    %404 = vadd.xlane.f32.xlu0 %v403
    %v405 = vpop.xlane.xlu0 %404
    %v406 = vsub.f32 %v400, %v405
    %v407 = vmul.f32 %v406, %v308
    %v408 = vsel %vm299, %v407, 0.0
    %v409 = vadd.f32 %v402, %v408
    %s410 = scalar_lea.vmem [#allocation1], 56
    %411 = vst [vmem:[%s410] sm:$0xff] %v409
    %vm412 = vcmask 31768
    %s413 = scalar_lea.vmem [#allocation1], 3
    %v414 = vld [vmem:[%s413] ss:$0 sm:$0xff]
    %s415 = scalar_lea.vmem [#allocation0], 3
    %v416 = vld [vmem:[%s415] ss:$0 sm:$0xff]
    %v417 = vmul.f32 %v414, %v414
    %418 = vadd.xlane.f32.xlu0 %v417
    %v419 = vpop.xlane.xlu0 %418
    %v420 = vsub.f32 %v416, %v419
    %v421 = vrsqrt.pop %v420
    %v422 = vld [vmem:[#allocation0] sm:$0xff]
    %v423 = vld [vmem:[#allocation1] sm:$0xff]
    %v424 = vmul.f32 %v423, %v414
    %425 = vadd.xlane.f32.xlu0 %v424
    %v426 = vpop.xlane.xlu0 %425
    %v427 = vsub.f32 %v422, %v426
    %v428 = vmul.f32 %v427, %v421
    %vm429 = vcmask 1047555
    %vm430 = vmand %vm412, %vm429
    %v431 = vsel %vm430, %v428, 0.0
    %v432 = vadd.f32 %v423, %v431
    %433 = vst [vmem:[#allocation1] sm:$0xff] %v432
    %s434 = scalar_lea.vmem [#allocation0], 8
    %v435 = vld [vmem:[%s434] sm:$0xff]
    %s436 = scalar_lea.vmem [#allocation1], 8
    %v437 = vld [vmem:[%s436] sm:$0xff]
    %v438 = vmul.f32 %v437, %v414
    %439 = vadd.xlane.f32.xlu0 %v438
    %v440 = vpop.xlane.xlu0 %439
    %v441 = vsub.f32 %v435, %v440
    %v442 = vmul.f32 %v441, %v421
    %v443 = vsel %vm412, %v442, 0.0
    %v444 = vadd.f32 %v437, %v443
    %s445 = scalar_lea.vmem [#allocation1], 8
    %446 = vst [vmem:[%s445] sm:$0xff] %v444
    %s447 = scalar_lea.vmem [#allocation0], 16
    %v448 = vld [vmem:[%s447] sm:$0xff]
    %s449 = scalar_lea.vmem [#allocation1], 16
    %v450 = vld [vmem:[%s449] sm:$0xff]
    %v451 = vmul.f32 %v450, %v414
    %452 = vadd.xlane.f32.xlu0 %v451
    %v453 = vpop.xlane.xlu0 %452
    %v454 = vsub.f32 %v448, %v453
    %v455 = vmul.f32 %v454, %v421
    %v456 = vsel %vm412, %v455, 0.0
    %v457 = vadd.f32 %v450, %v456
    %s458 = scalar_lea.vmem [#allocation1], 16
    %459 = vst [vmem:[%s458] sm:$0xff] %v457
    %s460 = scalar_lea.vmem [#allocation0], 24
    %v461 = vld [vmem:[%s460] sm:$0xff]
    %s462 = scalar_lea.vmem [#allocation1], 24
    %v463 = vld [vmem:[%s462] sm:$0xff]
    %v464 = vmul.f32 %v463, %v414
    %465 = vadd.xlane.f32.xlu0 %v464
    %v466 = vpop.xlane.xlu0 %465
    %v467 = vsub.f32 %v461, %v466
    %v468 = vmul.f32 %v467, %v421
    %v469 = vsel %vm412, %v468, 0.0
    %v470 = vadd.f32 %v463, %v469
    %s471 = scalar_lea.vmem [#allocation1], 24
    %472 = vst [vmem:[%s471] sm:$0xff] %v470
    %s473 = scalar_lea.vmem [#allocation0], 32
    %v474 = vld [vmem:[%s473] sm:$0xff]
    %s475 = scalar_lea.vmem [#allocation1], 32
    %v476 = vld [vmem:[%s475] sm:$0xff]
    %v477 = vmul.f32 %v476, %v414
    %478 = vadd.xlane.f32.xlu0 %v477
    %v479 = vpop.xlane.xlu0 %478
    %v480 = vsub.f32 %v474, %v479
    %v481 = vmul.f32 %v480, %v421
    %v482 = vsel %vm412, %v481, 0.0
    %v483 = vadd.f32 %v476, %v482
    %s484 = scalar_lea.vmem [#allocation1], 32
    %485 = vst [vmem:[%s484] sm:$0xff] %v483
    %s486 = scalar_lea.vmem [#allocation0], 40
    %v487 = vld [vmem:[%s486] sm:$0xff]
    %s488 = scalar_lea.vmem [#allocation1], 40
    %v489 = vld [vmem:[%s488] sm:$0xff]
    %v490 = vmul.f32 %v489, %v414
    %491 = vadd.xlane.f32.xlu0 %v490
    %v492 = vpop.xlane.xlu0 %491
    %v493 = vsub.f32 %v487, %v492
    %v494 = vmul.f32 %v493, %v421
    %v495 = vsel %vm412, %v494, 0.0
    %v496 = vadd.f32 %v489, %v495
    %s497 = scalar_lea.vmem [#allocation1], 40
    %498 = vst [vmem:[%s497] sm:$0xff] %v496
    %s499 = scalar_lea.vmem [#allocation0], 48
    %v500 = vld [vmem:[%s499] sm:$0xff]
    %s501 = scalar_lea.vmem [#allocation1], 48
    %v502 = vld [vmem:[%s501] sm:$0xff]
    %v503 = vmul.f32 %v502, %v414
    %504 = vadd.xlane.f32.xlu0 %v503
    %v505 = vpop.xlane.xlu0 %504
    %v506 = vsub.f32 %v500, %v505
    %v507 = vmul.f32 %v506, %v421
    %v508 = vsel %vm412, %v507, 0.0
    %v509 = vadd.f32 %v502, %v508
    %s510 = scalar_lea.vmem [#allocation1], 48
    %511 = vst [vmem:[%s510] sm:$0xff] %v509
    %s512 = scalar_lea.vmem [#allocation0], 56
    %v513 = vld [vmem:[%s512] sm:$0xff]
    %s514 = scalar_lea.vmem [#allocation1], 56
    %v515 = vld [vmem:[%s514] sm:$0xff]
    %v516 = vmul.f32 %v515, %v414
    %517 = vadd.xlane.f32.xlu0 %v516
    %v518 = vpop.xlane.xlu0 %517
    %v519 = vsub.f32 %v513, %v518
    %v520 = vmul.f32 %v519, %v421
    %v521 = vsel %vm412, %v520, 0.0
    %v522 = vadd.f32 %v515, %v521
    %s523 = scalar_lea.vmem [#allocation1], 56
    %524 = vst [vmem:[%s523] sm:$0xff] %v522
    %vm525 = vcmask 39968
    %s526 = scalar_lea.vmem [#allocation1], 4
    %v527 = vld [vmem:[%s526] ss:$0 sm:$0xff]
    %s528 = scalar_lea.vmem [#allocation0], 4
    %v529 = vld [vmem:[%s528] ss:$0 sm:$0xff]
    %v530 = vmul.f32 %v527, %v527
    %531 = vadd.xlane.f32.xlu0 %v530
    %v532 = vpop.xlane.xlu0 %531
    %v533 = vsub.f32 %v529, %v532
    %v534 = vrsqrt.pop %v533
    %v535 = vld [vmem:[#allocation0] sm:$0xff]
    %v536 = vld [vmem:[#allocation1] sm:$0xff]
    %v537 = vmul.f32 %v536, %v527
    %538 = vadd.xlane.f32.xlu0 %v537
    %v539 = vpop.xlane.xlu0 %538
    %v540 = vsub.f32 %v535, %v539
    %v541 = vmul.f32 %v540, %v534
    %vm542 = vcmask 1047556
    %vm543 = vmand %vm525, %vm542
    %v544 = vsel %vm543, %v541, 0.0
    %v545 = vadd.f32 %v536, %v544
    %546 = vst [vmem:[#allocation1] sm:$0xff] %v545
    %s547 = scalar_lea.vmem [#allocation0], 8
    %v548 = vld [vmem:[%s547] sm:$0xff]
    %s549 = scalar_lea.vmem [#allocation1], 8
    %v550 = vld [vmem:[%s549] sm:$0xff]
    %v551 = vmul.f32 %v550, %v527
    %552 = vadd.xlane.f32.xlu0 %v551
    %v553 = vpop.xlane.xlu0 %552
    %v554 = vsub.f32 %v548, %v553
    %v555 = vmul.f32 %v554, %v534
    %v556 = vsel %vm525, %v555, 0.0
    %v557 = vadd.f32 %v550, %v556
    %s558 = scalar_lea.vmem [#allocation1], 8
    %559 = vst [vmem:[%s558] sm:$0xff] %v557
    %s560 = scalar_lea.vmem [#allocation0], 16
    %v561 = vld [vmem:[%s560] sm:$0xff]
    %s562 = scalar_lea.vmem [#allocation1], 16
    %v563 = vld [vmem:[%s562] sm:$0xff]
    %v564 = vmul.f32 %v563, %v527
    %565 = vadd.xlane.f32.xlu0 %v564
    %v566 = vpop.xlane.xlu0 %565
    %v567 = vsub.f32 %v561, %v566
    %v568 = vmul.f32 %v567, %v534
    %v569 = vsel %vm525, %v568, 0.0
    %v570 = vadd.f32 %v563, %v569
    %s571 = scalar_lea.vmem [#allocation1], 16
    %572 = vst [vmem:[%s571] sm:$0xff] %v570
    %s573 = scalar_lea.vmem [#allocation0], 24
    %v574 = vld [vmem:[%s573] sm:$0xff]
    %s575 = scalar_lea.vmem [#allocation1], 24
    %v576 = vld [vmem:[%s575] sm:$0xff]
    %v577 = vmul.f32 %v576, %v527
    %578 = vadd.xlane.f32.xlu0 %v577
    %v579 = vpop.xlane.xlu0 %578
    %v580 = vsub.f32 %v574, %v579
    %v581 = vmul.f32 %v580, %v534
    %v582 = vsel %vm525, %v581, 0.0
    %v583 = vadd.f32 %v576, %v582
    %s584 = scalar_lea.vmem [#allocation1], 24
    %585 = vst [vmem:[%s584] sm:$0xff] %v583
    %s586 = scalar_lea.vmem [#allocation0], 32
    %v587 = vld [vmem:[%s586] sm:$0xff]
    %s588 = scalar_lea.vmem [#allocation1], 32
    %v589 = vld [vmem:[%s588] sm:$0xff]
    %v590 = vmul.f32 %v589, %v527
    %591 = vadd.xlane.f32.xlu0 %v590
    %v592 = vpop.xlane.xlu0 %591
    %v593 = vsub.f32 %v587, %v592
    %v594 = vmul.f32 %v593, %v534
    %v595 = vsel %vm525, %v594, 0.0
    %v596 = vadd.f32 %v589, %v595
    %s597 = scalar_lea.vmem [#allocation1], 32
    %598 = vst [vmem:[%s597] sm:$0xff] %v596
    %s599 = scalar_lea.vmem [#allocation0], 40
    %v600 = vld [vmem:[%s599] sm:$0xff]
    %s601 = scalar_lea.vmem [#allocation1], 40
    %v602 = vld [vmem:[%s601] sm:$0xff]
    %v603 = vmul.f32 %v602, %v527
    %604 = vadd.xlane.f32.xlu0 %v603
    %v605 = vpop.xlane.xlu0 %604
    %v606 = vsub.f32 %v600, %v605
    %v607 = vmul.f32 %v606, %v534
    %v608 = vsel %vm525, %v607, 0.0
    %v609 = vadd.f32 %v602, %v608
    %s610 = scalar_lea.vmem [#allocation1], 40
    %611 = vst [vmem:[%s610] sm:$0xff] %v609
    %s612 = scalar_lea.vmem [#allocation0], 48
    %v613 = vld [vmem:[%s612] sm:$0xff]
    %s614 = scalar_lea.vmem [#allocation1], 48
    %v615 = vld [vmem:[%s614] sm:$0xff]
    %v616 = vmul.f32 %v615, %v527
    %617 = vadd.xlane.f32.xlu0 %v616
    %v618 = vpop.xlane.xlu0 %617
    %v619 = vsub.f32 %v613, %v618
    %v620 = vmul.f32 %v619, %v534
    %v621 = vsel %vm525, %v620, 0.0
    %v622 = vadd.f32 %v615, %v621
    %s623 = scalar_lea.vmem [#allocation1], 48
    %624 = vst [vmem:[%s623] sm:$0xff] %v622
    %s625 = scalar_lea.vmem [#allocation0], 56
    %v626 = vld [vmem:[%s625] sm:$0xff]
    %s627 = scalar_lea.vmem [#allocation1], 56
    %v628 = vld [vmem:[%s627] sm:$0xff]
    %v629 = vmul.f32 %v628, %v527
    %630 = vadd.xlane.f32.xlu0 %v629
    %v631 = vpop.xlane.xlu0 %630
    %v632 = vsub.f32 %v626, %v631
    %v633 = vmul.f32 %v632, %v534
    %v634 = vsel %vm525, %v633, 0.0
    %v635 = vadd.f32 %v628, %v634
    %s636 = scalar_lea.vmem [#allocation1], 56
    %637 = vst [vmem:[%s636] sm:$0xff] %v635
    %vm638 = vcmask 48168
    %s639 = scalar_lea.vmem [#allocation1], 5
    %v640 = vld [vmem:[%s639] ss:$0 sm:$0xff]
    %s641 = scalar_lea.vmem [#allocation0], 5
    %v642 = vld [vmem:[%s641] ss:$0 sm:$0xff]
    %v643 = vmul.f32 %v640, %v640
    %644 = vadd.xlane.f32.xlu0 %v643
    %v645 = vpop.xlane.xlu0 %644
    %v646 = vsub.f32 %v642, %v645
    %v647 = vrsqrt.pop %v646
    %v648 = vld [vmem:[#allocation0] sm:$0xff]
    %v649 = vld [vmem:[#allocation1] sm:$0xff]
    %v650 = vmul.f32 %v649, %v640
    %651 = vadd.xlane.f32.xlu0 %v650
    %v652 = vpop.xlane.xlu0 %651
    %v653 = vsub.f32 %v648, %v652
    %v654 = vmul.f32 %v653, %v647
    %vm655 = vcmask 1047557
    %vm656 = vmand %vm638, %vm655
    %v657 = vsel %vm656, %v654, 0.0
    %v658 = vadd.f32 %v649, %v657
    %659 = vst [vmem:[#allocation1] sm:$0xff] %v658
    %s660 = scalar_lea.vmem [#allocation0], 8
    %v661 = vld [vmem:[%s660] sm:$0xff]
    %s662 = scalar_lea.vmem [#allocation1], 8
    %v663 = vld [vmem:[%s662] sm:$0xff]
    %v664 = vmul.f32 %v663, %v640
    %665 = vadd.xlane.f32.xlu0 %v664
    %v666 = vpop.xlane.xlu0 %665
    %v667 = vsub.f32 %v661, %v666
    %v668 = vmul.f32 %v667, %v647
    %v669 = vsel %vm638, %v668, 0.0
    %v670 = vadd.f32 %v663, %v669
    %s671 = scalar_lea.vmem [#allocation1], 8
    %672 = vst [vmem:[%s671] sm:$0xff] %v670
    %s673 = scalar_lea.vmem [#allocation0], 16
    %v674 = vld [vmem:[%s673] sm:$0xff]
    %s675 = scalar_lea.vmem [#allocation1], 16
    %v676 = vld [vmem:[%s675] sm:$0xff]
    %v677 = vmul.f32 %v676, %v640
    %678 = vadd.xlane.f32.xlu0 %v677
    %v679 = vpop.xlane.xlu0 %678
    %v680 = vsub.f32 %v674, %v679
    %v681 = vmul.f32 %v680, %v647
    %v682 = vsel %vm638, %v681, 0.0
    %v683 = vadd.f32 %v676, %v682
    %s684 = scalar_lea.vmem [#allocation1], 16
    %685 = vst [vmem:[%s684] sm:$0xff] %v683
    %s686 = scalar_lea.vmem [#allocation0], 24
    %v687 = vld [vmem:[%s686] sm:$0xff]
    %s688 = scalar_lea.vmem [#allocation1], 24
    %v689 = vld [vmem:[%s688] sm:$0xff]
    %v690 = vmul.f32 %v689, %v640
    %691 = vadd.xlane.f32.xlu0 %v690
    %v692 = vpop.xlane.xlu0 %691
    %v693 = vsub.f32 %v687, %v692
    %v694 = vmul.f32 %v693, %v647
    %v695 = vsel %vm638, %v694, 0.0
    %v696 = vadd.f32 %v689, %v695
    %s697 = scalar_lea.vmem [#allocation1], 24
    %698 = vst [vmem:[%s697] sm:$0xff] %v696
    %s699 = scalar_lea.vmem [#allocation0], 32
    %v700 = vld [vmem:[%s699] sm:$0xff]
    %s701 = scalar_lea.vmem [#allocation1], 32
    %v702 = vld [vmem:[%s701] sm:$0xff]
    %v703 = vmul.f32 %v702, %v640
    %704 = vadd.xlane.f32.xlu0 %v703
    %v705 = vpop.xlane.xlu0 %704
    %v706 = vsub.f32 %v700, %v705
    %v707 = vmul.f32 %v706, %v647
    %v708 = vsel %vm638, %v707, 0.0
    %v709 = vadd.f32 %v702, %v708
    %s710 = scalar_lea.vmem [#allocation1], 32
    %711 = vst [vmem:[%s710] sm:$0xff] %v709
    %s712 = scalar_lea.vmem [#allocation0], 40
    %v713 = vld [vmem:[%s712] sm:$0xff]
    %s714 = scalar_lea.vmem [#allocation1], 40
    %v715 = vld [vmem:[%s714] sm:$0xff]
    %v716 = vmul.f32 %v715, %v640
    %717 = vadd.xlane.f32.xlu0 %v716
    %v718 = vpop.xlane.xlu0 %717
    %v719 = vsub.f32 %v713, %v718
    %v720 = vmul.f32 %v719, %v647
    %v721 = vsel %vm638, %v720, 0.0
    %v722 = vadd.f32 %v715, %v721
    %s723 = scalar_lea.vmem [#allocation1], 40
    %724 = vst [vmem:[%s723] sm:$0xff] %v722
    %s725 = scalar_lea.vmem [#allocation0], 48
    %v726 = vld [vmem:[%s725] sm:$0xff]
    %s727 = scalar_lea.vmem [#allocation1], 48
    %v728 = vld [vmem:[%s727] sm:$0xff]
    %v729 = vmul.f32 %v728, %v640
    %730 = vadd.xlane.f32.xlu0 %v729
    %v731 = vpop.xlane.xlu0 %730
    %v732 = vsub.f32 %v726, %v731
    %v733 = vmul.f32 %v732, %v647
    %v734 = vsel %vm638, %v733, 0.0
    %v735 = vadd.f32 %v728, %v734
    %s736 = scalar_lea.vmem [#allocation1], 48
    %737 = vst [vmem:[%s736] sm:$0xff] %v735
    %s738 = scalar_lea.vmem [#allocation0], 56
    %v739 = vld [vmem:[%s738] sm:$0xff]
    %s740 = scalar_lea.vmem [#allocation1], 56
    %v741 = vld [vmem:[%s740] sm:$0xff]
    %v742 = vmul.f32 %v741, %v640
    %743 = vadd.xlane.f32.xlu0 %v742
    %v744 = vpop.xlane.xlu0 %743
    %v745 = vsub.f32 %v739, %v744
    %v746 = vmul.f32 %v745, %v647
    %v747 = vsel %vm638, %v746, 0.0
    %v748 = vadd.f32 %v741, %v747
    %s749 = scalar_lea.vmem [#allocation1], 56
    %750 = vst [vmem:[%s749] sm:$0xff] %v748
    %vm751 = vcmask 56368
    %s752 = scalar_lea.vmem [#allocation1], 6
    %v753 = vld [vmem:[%s752] ss:$0 sm:$0xff]
    %s754 = scalar_lea.vmem [#allocation0], 6
    %v755 = vld [vmem:[%s754] ss:$0 sm:$0xff]
    %v756 = vmul.f32 %v753, %v753
    %757 = vadd.xlane.f32.xlu0 %v756
    %v758 = vpop.xlane.xlu0 %757
    %v759 = vsub.f32 %v755, %v758
    %v760 = vrsqrt.pop %v759
    %v761 = vld [vmem:[#allocation0] sm:$0xff]
    %v762 = vld [vmem:[#allocation1] sm:$0xff]
    %v763 = vmul.f32 %v762, %v753
    %764 = vadd.xlane.f32.xlu0 %v763
    %v765 = vpop.xlane.xlu0 %764
    %v766 = vsub.f32 %v761, %v765
    %v767 = vmul.f32 %v766, %v760
    %vm768 = vcmask 1047558
    %vm769 = vmand %vm751, %vm768
    %v770 = vsel %vm769, %v767, 0.0
    %v771 = vadd.f32 %v762, %v770
    %772 = vst [vmem:[#allocation1] sm:$0xff] %v771
    %s773 = scalar_lea.vmem [#allocation0], 8
    %v774 = vld [vmem:[%s773] sm:$0xff]
    %s775 = scalar_lea.vmem [#allocation1], 8
    %v776 = vld [vmem:[%s775] sm:$0xff]
    %v777 = vmul.f32 %v776, %v753
    %778 = vadd.xlane.f32.xlu0 %v777
    %v779 = vpop.xlane.xlu0 %778
    %v780 = vsub.f32 %v774, %v779
    %v781 = vmul.f32 %v780, %v760
    %v782 = vsel %vm751, %v781, 0.0
    %v783 = vadd.f32 %v776, %v782
    %s784 = scalar_lea.vmem [#allocation1], 8
    %785 = vst [vmem:[%s784] sm:$0xff] %v783
    %s786 = scalar_lea.vmem [#allocation0], 16
    %v787 = vld [vmem:[%s786] sm:$0xff]
    %s788 = scalar_lea.vmem [#allocation1], 16
    %v789 = vld [vmem:[%s788] sm:$0xff]
    %v790 = vmul.f32 %v789, %v753
    %791 = vadd.xlane.f32.xlu0 %v790
    %v792 = vpop.xlane.xlu0 %791
    %v793 = vsub.f32 %v787, %v792
    %v794 = vmul.f32 %v793, %v760
    %v795 = vsel %vm751, %v794, 0.0
    %v796 = vadd.f32 %v789, %v795
    %s797 = scalar_lea.vmem [#allocation1], 16
    %798 = vst [vmem:[%s797] sm:$0xff] %v796
    %s799 = scalar_lea.vmem [#allocation0], 24
    %v800 = vld [vmem:[%s799] sm:$0xff]
    %s801 = scalar_lea.vmem [#allocation1], 24
    %v802 = vld [vmem:[%s801] sm:$0xff]
    %v803 = vmul.f32 %v802, %v753
    %804 = vadd.xlane.f32.xlu0 %v803
    %v805 = vpop.xlane.xlu0 %804
    %v806 = vsub.f32 %v800, %v805
    %v807 = vmul.f32 %v806, %v760
    %v808 = vsel %vm751, %v807, 0.0
    %v809 = vadd.f32 %v802, %v808
    %s810 = scalar_lea.vmem [#allocation1], 24
    %811 = vst [vmem:[%s810] sm:$0xff] %v809
    %s812 = scalar_lea.vmem [#allocation0], 32
    %v813 = vld [vmem:[%s812] sm:$0xff]
    %s814 = scalar_lea.vmem [#allocation1], 32
    %v815 = vld [vmem:[%s814] sm:$0xff]
    %v816 = vmul.f32 %v815, %v753
    %817 = vadd.xlane.f32.xlu0 %v816
    %v818 = vpop.xlane.xlu0 %817
    %v819 = vsub.f32 %v813, %v818
    %v820 = vmul.f32 %v819, %v760
    %v821 = vsel %vm751, %v820, 0.0
    %v822 = vadd.f32 %v815, %v821
    %s823 = scalar_lea.vmem [#allocation1], 32
    %824 = vst [vmem:[%s823] sm:$0xff] %v822
    %s825 = scalar_lea.vmem [#allocation0], 40
    %v826 = vld [vmem:[%s825] sm:$0xff]
    %s827 = scalar_lea.vmem [#allocation1], 40
    %v828 = vld [vmem:[%s827] sm:$0xff]
    %v829 = vmul.f32 %v828, %v753
    %830 = vadd.xlane.f32.xlu0 %v829
    %v831 = vpop.xlane.xlu0 %830
    %v832 = vsub.f32 %v826, %v831
    %v833 = vmul.f32 %v832, %v760
    %v834 = vsel %vm751, %v833, 0.0
    %v835 = vadd.f32 %v828, %v834
    %s836 = scalar_lea.vmem [#allocation1], 40
    %837 = vst [vmem:[%s836] sm:$0xff] %v835
    %s838 = scalar_lea.vmem [#allocation0], 48
    %v839 = vld [vmem:[%s838] sm:$0xff]
    %s840 = scalar_lea.vmem [#allocation1], 48
    %v841 = vld [vmem:[%s840] sm:$0xff]
    %v842 = vmul.f32 %v841, %v753
    %843 = vadd.xlane.f32.xlu0 %v842
    %v844 = vpop.xlane.xlu0 %843
    %v845 = vsub.f32 %v839, %v844
    %v846 = vmul.f32 %v845, %v760
    %v847 = vsel %vm751, %v846, 0.0
    %v848 = vadd.f32 %v841, %v847
    %s849 = scalar_lea.vmem [#allocation1], 48
    %850 = vst [vmem:[%s849] sm:$0xff] %v848
    %s851 = scalar_lea.vmem [#allocation0], 56
    %v852 = vld [vmem:[%s851] sm:$0xff]
    %s853 = scalar_lea.vmem [#allocation1], 56
    %v854 = vld [vmem:[%s853] sm:$0xff]
    %v855 = vmul.f32 %v854, %v753
    %856 = vadd.xlane.f32.xlu0 %v855
    %v857 = vpop.xlane.xlu0 %856
    %v858 = vsub.f32 %v852, %v857
    %v859 = vmul.f32 %v858, %v760
    %v860 = vsel %vm751, %v859, 0.0
    %v861 = vadd.f32 %v854, %v860
    %s862 = scalar_lea.vmem [#allocation1], 56
    %863 = vst [vmem:[%s862] sm:$0xff] %v861
    %vm864 = vcmask 64568
    %s865 = scalar_lea.vmem [#allocation1], 7
    %v866 = vld [vmem:[%s865] ss:$0 sm:$0xff]
    %s867 = scalar_lea.vmem [#allocation0], 7
    %v868 = vld [vmem:[%s867] ss:$0 sm:$0xff]
    %v869 = vmul.f32 %v866, %v866
    %870 = vadd.xlane.f32.xlu0 %v869
    %v871 = vpop.xlane.xlu0 %870
    %v872 = vsub.f32 %v868, %v871
    %v873 = vrsqrt.pop %v872
    %v874 = vld [vmem:[#allocation0] sm:$0xff]
    %v875 = vld [vmem:[#allocation1] sm:$0xff]
    %v876 = vmul.f32 %v875, %v866
    %877 = vadd.xlane.f32.xlu0 %v876
    %v878 = vpop.xlane.xlu0 %877
    %v879 = vsub.f32 %v874, %v878
    %v880 = vmul.f32 %v879, %v873
    %vm881 = vcmask 1047559
    %vm882 = vmand %vm864, %vm881
    %v883 = vsel %vm882, %v880, 0.0
    %v884 = vadd.f32 %v875, %v883
    %885 = vst [vmem:[#allocation1] sm:$0xff] %v884
    %s886 = scalar_lea.vmem [#allocation0], 8
    %v887 = vld [vmem:[%s886] sm:$0xff]
    %s888 = scalar_lea.vmem [#allocation1], 8
    %v889 = vld [vmem:[%s888] sm:$0xff]
    %v890 = vmul.f32 %v889, %v866
    %891 = vadd.xlane.f32.xlu0 %v890
    %v892 = vpop.xlane.xlu0 %891
    %v893 = vsub.f32 %v887, %v892
    %v894 = vmul.f32 %v893, %v873
    %v895 = vsel %vm864, %v894, 0.0
    %v896 = vadd.f32 %v889, %v895
    %s897 = scalar_lea.vmem [#allocation1], 8
    %898 = vst [vmem:[%s897] sm:$0xff] %v896
    %s899 = scalar_lea.vmem [#allocation0], 16
    %v900 = vld [vmem:[%s899] sm:$0xff]
    %s901 = scalar_lea.vmem [#allocation1], 16
    %v902 = vld [vmem:[%s901] sm:$0xff]
    %v903 = vmul.f32 %v902, %v866
    %904 = vadd.xlane.f32.xlu0 %v903
    %v905 = vpop.xlane.xlu0 %904
    %v906 = vsub.f32 %v900, %v905
    %v907 = vmul.f32 %v906, %v873
    %v908 = vsel %vm864, %v907, 0.0
    %v909 = vadd.f32 %v902, %v908
    %s910 = scalar_lea.vmem [#allocation1], 16
    %911 = vst [vmem:[%s910] sm:$0xff] %v909
    %s912 = scalar_lea.vmem [#allocation0], 24
    %v913 = vld [vmem:[%s912] sm:$0xff]
    %s914 = scalar_lea.vmem [#allocation1], 24
    %v915 = vld [vmem:[%s914] sm:$0xff]
    %v916 = vmul.f32 %v915, %v866
    %917 = vadd.xlane.f32.xlu0 %v916
    %v918 = vpop.xlane.xlu0 %917
    %v919 = vsub.f32 %v913, %v918
    %v920 = vmul.f32 %v919, %v873
    %v921 = vsel %vm864, %v920, 0.0
    %v922 = vadd.f32 %v915, %v921
    %s923 = scalar_lea.vmem [#allocation1], 24
    %924 = vst [vmem:[%s923] sm:$0xff] %v922
    %s925 = scalar_lea.vmem [#allocation0], 32
    %v926 = vld [vmem:[%s925] sm:$0xff]
    %s927 = scalar_lea.vmem [#allocation1], 32
    %v928 = vld [vmem:[%s927] sm:$0xff]
    %v929 = vmul.f32 %v928, %v866
    %930 = vadd.xlane.f32.xlu0 %v929
    %v931 = vpop.xlane.xlu0 %930
    %v932 = vsub.f32 %v926, %v931
    %v933 = vmul.f32 %v932, %v873
    %v934 = vsel %vm864, %v933, 0.0
    %v935 = vadd.f32 %v928, %v934
    %s936 = scalar_lea.vmem [#allocation1], 32
    %937 = vst [vmem:[%s936] sm:$0xff] %v935
    %s938 = scalar_lea.vmem [#allocation0], 40
    %v939 = vld [vmem:[%s938] sm:$0xff]
    %s940 = scalar_lea.vmem [#allocation1], 40
    %v941 = vld [vmem:[%s940] sm:$0xff]
    %v942 = vmul.f32 %v941, %v866
    %943 = vadd.xlane.f32.xlu0 %v942
    %v944 = vpop.xlane.xlu0 %943
    %v945 = vsub.f32 %v939, %v944
    %v946 = vmul.f32 %v945, %v873
    %v947 = vsel %vm864, %v946, 0.0
    %v948 = vadd.f32 %v941, %v947
    %s949 = scalar_lea.vmem [#allocation1], 40
    %950 = vst [vmem:[%s949] sm:$0xff] %v948
    %s951 = scalar_lea.vmem [#allocation0], 48
    %v952 = vld [vmem:[%s951] sm:$0xff]
    %s953 = scalar_lea.vmem [#allocation1], 48
    %v954 = vld [vmem:[%s953] sm:$0xff]
    %v955 = vmul.f32 %v954, %v866
    %956 = vadd.xlane.f32.xlu0 %v955
    %v957 = vpop.xlane.xlu0 %956
    %v958 = vsub.f32 %v952, %v957
    %v959 = vmul.f32 %v958, %v873
    %v960 = vsel %vm864, %v959, 0.0
    %v961 = vadd.f32 %v954, %v960
    %s962 = scalar_lea.vmem [#allocation1], 48
    %963 = vst [vmem:[%s962] sm:$0xff] %v961
    %s964 = scalar_lea.vmem [#allocation0], 56
    %v965 = vld [vmem:[%s964] sm:$0xff]
    %s966 = scalar_lea.vmem [#allocation1], 56
    %v967 = vld [vmem:[%s966] sm:$0xff]
    %v968 = vmul.f32 %v967, %v866
    %969 = vadd.xlane.f32.xlu0 %v968
    %v970 = vpop.xlane.xlu0 %969
    %v971 = vsub.f32 %v965, %v970
    %v972 = vmul.f32 %v971, %v873
    %v973 = vsel %vm864, %v972, 0.0
    %v974 = vadd.f32 %v967, %v973
    %s975 = scalar_lea.vmem [#allocation1], 56
    %976 = vst [vmem:[%s975] sm:$0xff] %v974
    %vm977 = vcmask 72768
    %s978 = scalar_lea.vmem [#allocation1], 8
    %v979 = vld [vmem:[%s978] ss:$0 sm:$0xff]
    %s980 = scalar_lea.vmem [#allocation0], 8
    %v981 = vld [vmem:[%s980] ss:$0 sm:$0xff]
    %v982 = vmul.f32 %v979, %v979
    %983 = vadd.xlane.f32.xlu0 %v982
    %v984 = vpop.xlane.xlu0 %983
    %v985 = vsub.f32 %v981, %v984
    %v986 = vrsqrt.pop %v985
    %s987 = scalar_lea.vmem [#allocation0], 8
    %v988 = vld [vmem:[%s987] sm:$0xff]
    %s989 = scalar_lea.vmem [#allocation1], 8
    %v990 = vld [vmem:[%s989] sm:$0xff]
    %v991 = vmul.f32 %v990, %v979
    %992 = vadd.xlane.f32.xlu0 %v991
    %v993 = vpop.xlane.xlu0 %992
    %v994 = vsub.f32 %v988, %v993
    %v995 = vmul.f32 %v994, %v986
    %v996 = vsel %vm977, %v995, 0.0
    %v997 = vadd.f32 %v990, %v996
    %s998 = scalar_lea.vmem [#allocation1], 8
    %999 = vst [vmem:[%s998] sm:$0xff] %v997
    %s1000 = scalar_lea.vmem [#allocation0], 16
    %v1001 = vld [vmem:[%s1000] sm:$0xff]
    %s1002 = scalar_lea.vmem [#allocation1], 16
    %v1003 = vld [vmem:[%s1002] sm:$0xff]
    %v1004 = vmul.f32 %v1003, %v979
    %1005 = vadd.xlane.f32.xlu0 %v1004
    %v1006 = vpop.xlane.xlu0 %1005
    %v1007 = vsub.f32 %v1001, %v1006
    %v1008 = vmul.f32 %v1007, %v986
    %v1009 = vsel %vm977, %v1008, 0.0
    %v1010 = vadd.f32 %v1003, %v1009
    %s1011 = scalar_lea.vmem [#allocation1], 16
    %1012 = vst [vmem:[%s1011] sm:$0xff] %v1010
    %s1013 = scalar_lea.vmem [#allocation0], 24
    %v1014 = vld [vmem:[%s1013] sm:$0xff]
    %s1015 = scalar_lea.vmem [#allocation1], 24
    %v1016 = vld [vmem:[%s1015] sm:$0xff]
    %v1017 = vmul.f32 %v1016, %v979
    %1018 = vadd.xlane.f32.xlu0 %v1017
    %v1019 = vpop.xlane.xlu0 %1018
    %v1020 = vsub.f32 %v1014, %v1019
    %v1021 = vmul.f32 %v1020, %v986
    %v1022 = vsel %vm977, %v1021, 0.0
    %v1023 = vadd.f32 %v1016, %v1022
    %s1024 = scalar_lea.vmem [#allocation1], 24
    %1025 = vst [vmem:[%s1024] sm:$0xff] %v1023
    %s1026 = scalar_lea.vmem [#allocation0], 32
    %v1027 = vld [vmem:[%s1026] sm:$0xff]
    %s1028 = scalar_lea.vmem [#allocation1], 32
    %v1029 = vld [vmem:[%s1028] sm:$0xff]
    %v1030 = vmul.f32 %v1029, %v979
    %1031 = vadd.xlane.f32.xlu0 %v1030
    %v1032 = vpop.xlane.xlu0 %1031
    %v1033 = vsub.f32 %v1027, %v1032
    %v1034 = vmul.f32 %v1033, %v986
    %v1035 = vsel %vm977, %v1034, 0.0
    %v1036 = vadd.f32 %v1029, %v1035
    %s1037 = scalar_lea.vmem [#allocation1], 32
    %1038 = vst [vmem:[%s1037] sm:$0xff] %v1036
    %s1039 = scalar_lea.vmem [#allocation0], 40
    %v1040 = vld [vmem:[%s1039] sm:$0xff]
    %s1041 = scalar_lea.vmem [#allocation1], 40
    %v1042 = vld [vmem:[%s1041] sm:$0xff]
    %v1043 = vmul.f32 %v1042, %v979
    %1044 = vadd.xlane.f32.xlu0 %v1043
    %v1045 = vpop.xlane.xlu0 %1044
    %v1046 = vsub.f32 %v1040, %v1045
    %v1047 = vmul.f32 %v1046, %v986
    %v1048 = vsel %vm977, %v1047, 0.0
    %v1049 = vadd.f32 %v1042, %v1048
    %s1050 = scalar_lea.vmem [#allocation1], 40
    %1051 = vst [vmem:[%s1050] sm:$0xff] %v1049
    %s1052 = scalar_lea.vmem [#allocation0], 48
    %v1053 = vld [vmem:[%s1052] sm:$0xff]
    %s1054 = scalar_lea.vmem [#allocation1], 48
    %v1055 = vld [vmem:[%s1054] sm:$0xff]
    %v1056 = vmul.f32 %v1055, %v979
    %1057 = vadd.xlane.f32.xlu0 %v1056
    %v1058 = vpop.xlane.xlu0 %1057
    %v1059 = vsub.f32 %v1053, %v1058
    %v1060 = vmul.f32 %v1059, %v986
    %v1061 = vsel %vm977, %v1060, 0.0
    %v1062 = vadd.f32 %v1055, %v1061
    %s1063 = scalar_lea.vmem [#allocation1], 48
    %1064 = vst [vmem:[%s1063] sm:$0xff] %v1062
    %s1065 = scalar_lea.vmem [#allocation0], 56
    %v1066 = vld [vmem:[%s1065] sm:$0xff]
    %s1067 = scalar_lea.vmem [#allocation1], 56
    %v1068 = vld [vmem:[%s1067] sm:$0xff]
    %v1069 = vmul.f32 %v1068, %v979
    %1070 = vadd.xlane.f32.xlu0 %v1069
    %v1071 = vpop.xlane.xlu0 %1070
    %v1072 = vsub.f32 %v1066, %v1071
    %v1073 = vmul.f32 %v1072, %v986
    %v1074 = vsel %vm977, %v1073, 0.0
    %v1075 = vadd.f32 %v1068, %v1074
    %s1076 = scalar_lea.vmem [#allocation1], 56
    %1077 = vst [vmem:[%s1076] sm:$0xff] %v1075
    %vm1078 = vcmask 80968
    %s1079 = scalar_lea.vmem [#allocation1], 9
    %v1080 = vld [vmem:[%s1079] ss:$0 sm:$0xff]
    %s1081 = scalar_lea.vmem [#allocation0], 9
    %v1082 = vld [vmem:[%s1081] ss:$0 sm:$0xff]
    %v1083 = vmul.f32 %v1080, %v1080
    %1084 = vadd.xlane.f32.xlu0 %v1083
    %v1085 = vpop.xlane.xlu0 %1084
    %v1086 = vsub.f32 %v1082, %v1085
    %v1087 = vrsqrt.pop %v1086
    %s1088 = scalar_lea.vmem [#allocation0], 8
    %v1089 = vld [vmem:[%s1088] sm:$0xff]
    %s1090 = scalar_lea.vmem [#allocation1], 8
    %v1091 = vld [vmem:[%s1090] sm:$0xff]
    %v1092 = vmul.f32 %v1091, %v1080
    %1093 = vadd.xlane.f32.xlu0 %v1092
    %v1094 = vpop.xlane.xlu0 %1093
    %v1095 = vsub.f32 %v1089, %v1094
    %v1096 = vmul.f32 %v1095, %v1087
    %vm1097 = vcmask 1047553
    %vm1098 = vmand %vm1078, %vm1097
    %v1099 = vsel %vm1098, %v1096, 0.0
    %v1100 = vadd.f32 %v1091, %v1099
    %s1101 = scalar_lea.vmem [#allocation1], 8
    %1102 = vst [vmem:[%s1101] sm:$0xff] %v1100
    %s1103 = scalar_lea.vmem [#allocation0], 16
    %v1104 = vld [vmem:[%s1103] sm:$0xff]
    %s1105 = scalar_lea.vmem [#allocation1], 16
    %v1106 = vld [vmem:[%s1105] sm:$0xff]
    %v1107 = vmul.f32 %v1106, %v1080
    %1108 = vadd.xlane.f32.xlu0 %v1107
    %v1109 = vpop.xlane.xlu0 %1108
    %v1110 = vsub.f32 %v1104, %v1109
    %v1111 = vmul.f32 %v1110, %v1087
    %v1112 = vsel %vm1078, %v1111, 0.0
    %v1113 = vadd.f32 %v1106, %v1112
    %s1114 = scalar_lea.vmem [#allocation1], 16
    %1115 = vst [vmem:[%s1114] sm:$0xff] %v1113
    %s1116 = scalar_lea.vmem [#allocation0], 24
    %v1117 = vld [vmem:[%s1116] sm:$0xff]
    %s1118 = scalar_lea.vmem [#allocation1], 24
    %v1119 = vld [vmem:[%s1118] sm:$0xff]
    %v1120 = vmul.f32 %v1119, %v1080
    %1121 = vadd.xlane.f32.xlu0 %v1120
    %v1122 = vpop.xlane.xlu0 %1121
    %v1123 = vsub.f32 %v1117, %v1122
    %v1124 = vmul.f32 %v1123, %v1087
    %v1125 = vsel %vm1078, %v1124, 0.0
    %v1126 = vadd.f32 %v1119, %v1125
    %s1127 = scalar_lea.vmem [#allocation1], 24
    %1128 = vst [vmem:[%s1127] sm:$0xff] %v1126
    %s1129 = scalar_lea.vmem [#allocation0], 32
    %v1130 = vld [vmem:[%s1129] sm:$0xff]
    %s1131 = scalar_lea.vmem [#allocation1], 32
    %v1132 = vld [vmem:[%s1131] sm:$0xff]
    %v1133 = vmul.f32 %v1132, %v1080
    %1134 = vadd.xlane.f32.xlu0 %v1133
    %v1135 = vpop.xlane.xlu0 %1134
    %v1136 = vsub.f32 %v1130, %v1135
    %v1137 = vmul.f32 %v1136, %v1087
    %v1138 = vsel %vm1078, %v1137, 0.0
    %v1139 = vadd.f32 %v1132, %v1138
    %s1140 = scalar_lea.vmem [#allocation1], 32
    %1141 = vst [vmem:[%s1140] sm:$0xff] %v1139
    %s1142 = scalar_lea.vmem [#allocation0], 40
    %v1143 = vld [vmem:[%s1142] sm:$0xff]
    %s1144 = scalar_lea.vmem [#allocation1], 40
    %v1145 = vld [vmem:[%s1144] sm:$0xff]
    %v1146 = vmul.f32 %v1145, %v1080
    %1147 = vadd.xlane.f32.xlu0 %v1146
    %v1148 = vpop.xlane.xlu0 %1147
    %v1149 = vsub.f32 %v1143, %v1148
    %v1150 = vmul.f32 %v1149, %v1087
    %v1151 = vsel %vm1078, %v1150, 0.0
    %v1152 = vadd.f32 %v1145, %v1151
    %s1153 = scalar_lea.vmem [#allocation1], 40
    %1154 = vst [vmem:[%s1153] sm:$0xff] %v1152
    %s1155 = scalar_lea.vmem [#allocation0], 48
    %v1156 = vld [vmem:[%s1155] sm:$0xff]
    %s1157 = scalar_lea.vmem [#allocation1], 48
    %v1158 = vld [vmem:[%s1157] sm:$0xff]
    %v1159 = vmul.f32 %v1158, %v1080
    %1160 = vadd.xlane.f32.xlu0 %v1159
    %v1161 = vpop.xlane.xlu0 %1160
    %v1162 = vsub.f32 %v1156, %v1161
    %v1163 = vmul.f32 %v1162, %v1087
    %v1164 = vsel %vm1078, %v1163, 0.0
    %v1165 = vadd.f32 %v1158, %v1164
    %s1166 = scalar_lea.vmem [#allocation1], 48
    %1167 = vst [vmem:[%s1166] sm:$0xff] %v1165
    %s1168 = scalar_lea.vmem [#allocation0], 56
    %v1169 = vld [vmem:[%s1168] sm:$0xff]
    %s1170 = scalar_lea.vmem [#allocation1], 56
    %v1171 = vld [vmem:[%s1170] sm:$0xff]
    %v1172 = vmul.f32 %v1171, %v1080
    %1173 = vadd.xlane.f32.xlu0 %v1172
    %v1174 = vpop.xlane.xlu0 %1173
    %v1175 = vsub.f32 %v1169, %v1174
    %v1176 = vmul.f32 %v1175, %v1087
    %v1177 = vsel %vm1078, %v1176, 0.0
    %v1178 = vadd.f32 %v1171, %v1177
    %s1179 = scalar_lea.vmem [#allocation1], 56
    %1180 = vst [vmem:[%s1179] sm:$0xff] %v1178
    %vm1181 = vcmask 89168
    %s1182 = scalar_lea.vmem [#allocation1], 10
    %v1183 = vld [vmem:[%s1182] ss:$0 sm:$0xff]
    %s1184 = scalar_lea.vmem [#allocation0], 10
    %v1185 = vld [vmem:[%s1184] ss:$0 sm:$0xff]
    %v1186 = vmul.f32 %v1183, %v1183
    %1187 = vadd.xlane.f32.xlu0 %v1186
    %v1188 = vpop.xlane.xlu0 %1187
    %v1189 = vsub.f32 %v1185, %v1188
    %v1190 = vrsqrt.pop %v1189
    %s1191 = scalar_lea.vmem [#allocation0], 8
    %v1192 = vld [vmem:[%s1191] sm:$0xff]
    %s1193 = scalar_lea.vmem [#allocation1], 8
    %v1194 = vld [vmem:[%s1193] sm:$0xff]
    %v1195 = vmul.f32 %v1194, %v1183
    %1196 = vadd.xlane.f32.xlu0 %v1195
    %v1197 = vpop.xlane.xlu0 %1196
    %v1198 = vsub.f32 %v1192, %v1197
    %v1199 = vmul.f32 %v1198, %v1190
    %vm1200 = vcmask 1047554
    %vm1201 = vmand %vm1181, %vm1200
    %v1202 = vsel %vm1201, %v1199, 0.0
    %v1203 = vadd.f32 %v1194, %v1202
    %s1204 = scalar_lea.vmem [#allocation1], 8
    %1205 = vst [vmem:[%s1204] sm:$0xff] %v1203
    %s1206 = scalar_lea.vmem [#allocation0], 16
    %v1207 = vld [vmem:[%s1206] sm:$0xff]
    %s1208 = scalar_lea.vmem [#allocation1], 16
    %v1209 = vld [vmem:[%s1208] sm:$0xff]
    %v1210 = vmul.f32 %v1209, %v1183
    %1211 = vadd.xlane.f32.xlu0 %v1210
    %v1212 = vpop.xlane.xlu0 %1211
    %v1213 = vsub.f32 %v1207, %v1212
    %v1214 = vmul.f32 %v1213, %v1190
    %v1215 = vsel %vm1181, %v1214, 0.0
    %v1216 = vadd.f32 %v1209, %v1215
    %s1217 = scalar_lea.vmem [#allocation1], 16
    %1218 = vst [vmem:[%s1217] sm:$0xff] %v1216
    %s1219 = scalar_lea.vmem [#allocation0], 24
    %v1220 = vld [vmem:[%s1219] sm:$0xff]
    %s1221 = scalar_lea.vmem [#allocation1], 24
    %v1222 = vld [vmem:[%s1221] sm:$0xff]
    %v1223 = vmul.f32 %v1222, %v1183
    %1224 = vadd.xlane.f32.xlu0 %v1223
    %v1225 = vpop.xlane.xlu0 %1224
    %v1226 = vsub.f32 %v1220, %v1225
    %v1227 = vmul.f32 %v1226, %v1190
    %v1228 = vsel %vm1181, %v1227, 0.0
    %v1229 = vadd.f32 %v1222, %v1228
    %s1230 = scalar_lea.vmem [#allocation1], 24
    %1231 = vst [vmem:[%s1230] sm:$0xff] %v1229
    %s1232 = scalar_lea.vmem [#allocation0], 32
    %v1233 = vld [vmem:[%s1232] sm:$0xff]
    %s1234 = scalar_lea.vmem [#allocation1], 32
    %v1235 = vld [vmem:[%s1234] sm:$0xff]
    %v1236 = vmul.f32 %v1235, %v1183
    %1237 = vadd.xlane.f32.xlu0 %v1236
    %v1238 = vpop.xlane.xlu0 %1237
    %v1239 = vsub.f32 %v1233, %v1238
    %v1240 = vmul.f32 %v1239, %v1190
    %v1241 = vsel %vm1181, %v1240, 0.0
    %v1242 = vadd.f32 %v1235, %v1241
    %s1243 = scalar_lea.vmem [#allocation1], 32
    %1244 = vst [vmem:[%s1243] sm:$0xff] %v1242
    %s1245 = scalar_lea.vmem [#allocation0], 40
    %v1246 = vld [vmem:[%s1245] sm:$0xff]
    %s1247 = scalar_lea.vmem [#allocation1], 40
    %v1248 = vld [vmem:[%s1247] sm:$0xff]
    %v1249 = vmul.f32 %v1248, %v1183
    %1250 = vadd.xlane.f32.xlu0 %v1249
    %v1251 = vpop.xlane.xlu0 %1250
    %v1252 = vsub.f32 %v1246, %v1251
    %v1253 = vmul.f32 %v1252, %v1190
    %v1254 = vsel %vm1181, %v1253, 0.0
    %v1255 = vadd.f32 %v1248, %v1254
    %s1256 = scalar_lea.vmem [#allocation1], 40
    %1257 = vst [vmem:[%s1256] sm:$0xff] %v1255
    %s1258 = scalar_lea.vmem [#allocation0], 48
    %v1259 = vld [vmem:[%s1258] sm:$0xff]
    %s1260 = scalar_lea.vmem [#allocation1], 48
    %v1261 = vld [vmem:[%s1260] sm:$0xff]
    %v1262 = vmul.f32 %v1261, %v1183
    %1263 = vadd.xlane.f32.xlu0 %v1262
    %v1264 = vpop.xlane.xlu0 %1263
    %v1265 = vsub.f32 %v1259, %v1264
    %v1266 = vmul.f32 %v1265, %v1190
    %v1267 = vsel %vm1181, %v1266, 0.0
    %v1268 = vadd.f32 %v1261, %v1267
    %s1269 = scalar_lea.vmem [#allocation1], 48
    %1270 = vst [vmem:[%s1269] sm:$0xff] %v1268
    %s1271 = scalar_lea.vmem [#allocation0], 56
    %v1272 = vld [vmem:[%s1271] sm:$0xff]
    %s1273 = scalar_lea.vmem [#allocation1], 56
    %v1274 = vld [vmem:[%s1273] sm:$0xff]
    %v1275 = vmul.f32 %v1274, %v1183
    %1276 = vadd.xlane.f32.xlu0 %v1275
    %v1277 = vpop.xlane.xlu0 %1276
    %v1278 = vsub.f32 %v1272, %v1277
    %v1279 = vmul.f32 %v1278, %v1190
    %v1280 = vsel %vm1181, %v1279, 0.0
    %v1281 = vadd.f32 %v1274, %v1280
    %s1282 = scalar_lea.vmem [#allocation1], 56
    %1283 = vst [vmem:[%s1282] sm:$0xff] %v1281
    %vm1284 = vcmask 97368
    %s1285 = scalar_lea.vmem [#allocation1], 11
    %v1286 = vld [vmem:[%s1285] ss:$0 sm:$0xff]
    %s1287 = scalar_lea.vmem [#allocation0], 11
    %v1288 = vld [vmem:[%s1287] ss:$0 sm:$0xff]
    %v1289 = vmul.f32 %v1286, %v1286
    %1290 = vadd.xlane.f32.xlu0 %v1289
    %v1291 = vpop.xlane.xlu0 %1290
    %v1292 = vsub.f32 %v1288, %v1291
    %v1293 = vrsqrt.pop %v1292
    %s1294 = scalar_lea.vmem [#allocation0], 8
    %v1295 = vld [vmem:[%s1294] sm:$0xff]
    %s1296 = scalar_lea.vmem [#allocation1], 8
    %v1297 = vld [vmem:[%s1296] sm:$0xff]
    %v1298 = vmul.f32 %v1297, %v1286
    %1299 = vadd.xlane.f32.xlu0 %v1298
    %v1300 = vpop.xlane.xlu0 %1299
    %v1301 = vsub.f32 %v1295, %v1300
    %v1302 = vmul.f32 %v1301, %v1293
    %vm1303 = vcmask 1047555
    %vm1304 = vmand %vm1284, %vm1303
    %v1305 = vsel %vm1304, %v1302, 0.0
    %v1306 = vadd.f32 %v1297, %v1305
    %s1307 = scalar_lea.vmem [#allocation1], 8
    %1308 = vst [vmem:[%s1307] sm:$0xff] %v1306
    %s1309 = scalar_lea.vmem [#allocation0], 16
    %v1310 = vld [vmem:[%s1309] sm:$0xff]
    %s1311 = scalar_lea.vmem [#allocation1], 16
    %v1312 = vld [vmem:[%s1311] sm:$0xff]
    %v1313 = vmul.f32 %v1312, %v1286
    %1314 = vadd.xlane.f32.xlu0 %v1313
    %v1315 = vpop.xlane.xlu0 %1314
    %v1316 = vsub.f32 %v1310, %v1315
    %v1317 = vmul.f32 %v1316, %v1293
    %v1318 = vsel %vm1284, %v1317, 0.0
    %v1319 = vadd.f32 %v1312, %v1318
    %s1320 = scalar_lea.vmem [#allocation1], 16
    %1321 = vst [vmem:[%s1320] sm:$0xff] %v1319
    %s1322 = scalar_lea.vmem [#allocation0], 24
    %v1323 = vld [vmem:[%s1322] sm:$0xff]
    %s1324 = scalar_lea.vmem [#allocation1], 24
    %v1325 = vld [vmem:[%s1324] sm:$0xff]
    %v1326 = vmul.f32 %v1325, %v1286
    %1327 = vadd.xlane.f32.xlu0 %v1326
    %v1328 = vpop.xlane.xlu0 %1327
    %v1329 = vsub.f32 %v1323, %v1328
    %v1330 = vmul.f32 %v1329, %v1293
    %v1331 = vsel %vm1284, %v1330, 0.0
    %v1332 = vadd.f32 %v1325, %v1331
    %s1333 = scalar_lea.vmem [#allocation1], 24
    %1334 = vst [vmem:[%s1333] sm:$0xff] %v1332
    %s1335 = scalar_lea.vmem [#allocation0], 32
    %v1336 = vld [vmem:[%s1335] sm:$0xff]
    %s1337 = scalar_lea.vmem [#allocation1], 32
    %v1338 = vld [vmem:[%s1337] sm:$0xff]
    %v1339 = vmul.f32 %v1338, %v1286
    %1340 = vadd.xlane.f32.xlu0 %v1339
    %v1341 = vpop.xlane.xlu0 %1340
    %v1342 = vsub.f32 %v1336, %v1341
    %v1343 = vmul.f32 %v1342, %v1293
    %v1344 = vsel %vm1284, %v1343, 0.0
    %v1345 = vadd.f32 %v1338, %v1344
    %s1346 = scalar_lea.vmem [#allocation1], 32
    %1347 = vst [vmem:[%s1346] sm:$0xff] %v1345
    %s1348 = scalar_lea.vmem [#allocation0], 40
    %v1349 = vld [vmem:[%s1348] sm:$0xff]
    %s1350 = scalar_lea.vmem [#allocation1], 40
    %v1351 = vld [vmem:[%s1350] sm:$0xff]
    %v1352 = vmul.f32 %v1351, %v1286
    %1353 = vadd.xlane.f32.xlu0 %v1352
    %v1354 = vpop.xlane.xlu0 %1353
    %v1355 = vsub.f32 %v1349, %v1354
    %v1356 = vmul.f32 %v1355, %v1293
    %v1357 = vsel %vm1284, %v1356, 0.0
    %v1358 = vadd.f32 %v1351, %v1357
    %s1359 = scalar_lea.vmem [#allocation1], 40
    %1360 = vst [vmem:[%s1359] sm:$0xff] %v1358
    %s1361 = scalar_lea.vmem [#allocation0], 48
    %v1362 = vld [vmem:[%s1361] sm:$0xff]
    %s1363 = scalar_lea.vmem [#allocation1], 48
    %v1364 = vld [vmem:[%s1363] sm:$0xff]
    %v1365 = vmul.f32 %v1364, %v1286
    %1366 = vadd.xlane.f32.xlu0 %v1365
    %v1367 = vpop.xlane.xlu0 %1366
    %v1368 = vsub.f32 %v1362, %v1367
    %v1369 = vmul.f32 %v1368, %v1293
    %v1370 = vsel %vm1284, %v1369, 0.0
    %v1371 = vadd.f32 %v1364, %v1370
    %s1372 = scalar_lea.vmem [#allocation1], 48
    %1373 = vst [vmem:[%s1372] sm:$0xff] %v1371
    %s1374 = scalar_lea.vmem [#allocation0], 56
    %v1375 = vld [vmem:[%s1374] sm:$0xff]
    %s1376 = scalar_lea.vmem [#allocation1], 56
    %v1377 = vld [vmem:[%s1376] sm:$0xff]
    %v1378 = vmul.f32 %v1377, %v1286
    %1379 = vadd.xlane.f32.xlu0 %v1378
    %v1380 = vpop.xlane.xlu0 %1379
    %v1381 = vsub.f32 %v1375, %v1380
    %v1382 = vmul.f32 %v1381, %v1293
    %v1383 = vsel %vm1284, %v1382, 0.0
    %v1384 = vadd.f32 %v1377, %v1383
    %s1385 = scalar_lea.vmem [#allocation1], 56
    %1386 = vst [vmem:[%s1385] sm:$0xff] %v1384
    %vm1387 = vcmask 105568
    %s1388 = scalar_lea.vmem [#allocation1], 12
    %v1389 = vld [vmem:[%s1388] ss:$0 sm:$0xff]
    %s1390 = scalar_lea.vmem [#allocation0], 12
    %v1391 = vld [vmem:[%s1390] ss:$0 sm:$0xff]
    %v1392 = vmul.f32 %v1389, %v1389
    %1393 = vadd.xlane.f32.xlu0 %v1392
    %v1394 = vpop.xlane.xlu0 %1393
    %v1395 = vsub.f32 %v1391, %v1394
    %v1396 = vrsqrt.pop %v1395
    %s1397 = scalar_lea.vmem [#allocation0], 8
    %v1398 = vld [vmem:[%s1397] sm:$0xff]
    %s1399 = scalar_lea.vmem [#allocation1], 8
    %v1400 = vld [vmem:[%s1399] sm:$0xff]
    %v1401 = vmul.f32 %v1400, %v1389
    %1402 = vadd.xlane.f32.xlu0 %v1401
    %v1403 = vpop.xlane.xlu0 %1402
    %v1404 = vsub.f32 %v1398, %v1403
    %v1405 = vmul.f32 %v1404, %v1396
    %vm1406 = vcmask 1047556
    %vm1407 = vmand %vm1387, %vm1406
    %v1408 = vsel %vm1407, %v1405, 0.0
    %v1409 = vadd.f32 %v1400, %v1408
    %s1410 = scalar_lea.vmem [#allocation1], 8
    %1411 = vst [vmem:[%s1410] sm:$0xff] %v1409
    %s1412 = scalar_lea.vmem [#allocation0], 16
    %v1413 = vld [vmem:[%s1412] sm:$0xff]
    %s1414 = scalar_lea.vmem [#allocation1], 16
    %v1415 = vld [vmem:[%s1414] sm:$0xff]
    %v1416 = vmul.f32 %v1415, %v1389
    %1417 = vadd.xlane.f32.xlu0 %v1416
    %v1418 = vpop.xlane.xlu0 %1417
    %v1419 = vsub.f32 %v1413, %v1418
    %v1420 = vmul.f32 %v1419, %v1396
    %v1421 = vsel %vm1387, %v1420, 0.0
    %v1422 = vadd.f32 %v1415, %v1421
    %s1423 = scalar_lea.vmem [#allocation1], 16
    %1424 = vst [vmem:[%s1423] sm:$0xff] %v1422
    %s1425 = scalar_lea.vmem [#allocation0], 24
    %v1426 = vld [vmem:[%s1425] sm:$0xff]
    %s1427 = scalar_lea.vmem [#allocation1], 24
    %v1428 = vld [vmem:[%s1427] sm:$0xff]
    %v1429 = vmul.f32 %v1428, %v1389
    %1430 = vadd.xlane.f32.xlu0 %v1429
    %v1431 = vpop.xlane.xlu0 %1430
    %v1432 = vsub.f32 %v1426, %v1431
    %v1433 = vmul.f32 %v1432, %v1396
    %v1434 = vsel %vm1387, %v1433, 0.0
    %v1435 = vadd.f32 %v1428, %v1434
    %s1436 = scalar_lea.vmem [#allocation1], 24
    %1437 = vst [vmem:[%s1436] sm:$0xff] %v1435
    %s1438 = scalar_lea.vmem [#allocation0], 32
    %v1439 = vld [vmem:[%s1438] sm:$0xff]
    %s1440 = scalar_lea.vmem [#allocation1], 32
    %v1441 = vld [vmem:[%s1440] sm:$0xff]
    %v1442 = vmul.f32 %v1441, %v1389
    %1443 = vadd.xlane.f32.xlu0 %v1442
    %v1444 = vpop.xlane.xlu0 %1443
    %v1445 = vsub.f32 %v1439, %v1444
    %v1446 = vmul.f32 %v1445, %v1396
    %v1447 = vsel %vm1387, %v1446, 0.0
    %v1448 = vadd.f32 %v1441, %v1447
    %s1449 = scalar_lea.vmem [#allocation1], 32
    %1450 = vst [vmem:[%s1449] sm:$0xff] %v1448
    %s1451 = scalar_lea.vmem [#allocation0], 40
    %v1452 = vld [vmem:[%s1451] sm:$0xff]
    %s1453 = scalar_lea.vmem [#allocation1], 40
    %v1454 = vld [vmem:[%s1453] sm:$0xff]
    %v1455 = vmul.f32 %v1454, %v1389
    %1456 = vadd.xlane.f32.xlu0 %v1455
    %v1457 = vpop.xlane.xlu0 %1456
    %v1458 = vsub.f32 %v1452, %v1457
    %v1459 = vmul.f32 %v1458, %v1396
    %v1460 = vsel %vm1387, %v1459, 0.0
    %v1461 = vadd.f32 %v1454, %v1460
    %s1462 = scalar_lea.vmem [#allocation1], 40
    %1463 = vst [vmem:[%s1462] sm:$0xff] %v1461
    %s1464 = scalar_lea.vmem [#allocation0], 48
    %v1465 = vld [vmem:[%s1464] sm:$0xff]
    %s1466 = scalar_lea.vmem [#allocation1], 48
    %v1467 = vld [vmem:[%s1466] sm:$0xff]
    %v1468 = vmul.f32 %v1467, %v1389
    %1469 = vadd.xlane.f32.xlu0 %v1468
    %v1470 = vpop.xlane.xlu0 %1469
    %v1471 = vsub.f32 %v1465, %v1470
    %v1472 = vmul.f32 %v1471, %v1396
    %v1473 = vsel %vm1387, %v1472, 0.0
    %v1474 = vadd.f32 %v1467, %v1473
    %s1475 = scalar_lea.vmem [#allocation1], 48
    %1476 = vst [vmem:[%s1475] sm:$0xff] %v1474
    %s1477 = scalar_lea.vmem [#allocation0], 56
    %v1478 = vld [vmem:[%s1477] sm:$0xff]
    %s1479 = scalar_lea.vmem [#allocation1], 56
    %v1480 = vld [vmem:[%s1479] sm:$0xff]
    %v1481 = vmul.f32 %v1480, %v1389
    %1482 = vadd.xlane.f32.xlu0 %v1481
    %v1483 = vpop.xlane.xlu0 %1482
    %v1484 = vsub.f32 %v1478, %v1483
    %v1485 = vmul.f32 %v1484, %v1396
    %v1486 = vsel %vm1387, %v1485, 0.0
    %v1487 = vadd.f32 %v1480, %v1486
    %s1488 = scalar_lea.vmem [#allocation1], 56
    %1489 = vst [vmem:[%s1488] sm:$0xff] %v1487
    %vm1490 = vcmask 113768
    %s1491 = scalar_lea.vmem [#allocation1], 13
    %v1492 = vld [vmem:[%s1491] ss:$0 sm:$0xff]
    %s1493 = scalar_lea.vmem [#allocation0], 13
    %v1494 = vld [vmem:[%s1493] ss:$0 sm:$0xff]
    %v1495 = vmul.f32 %v1492, %v1492
    %1496 = vadd.xlane.f32.xlu0 %v1495
    %v1497 = vpop.xlane.xlu0 %1496
    %v1498 = vsub.f32 %v1494, %v1497
    %v1499 = vrsqrt.pop %v1498
    %s1500 = scalar_lea.vmem [#allocation0], 8
    %v1501 = vld [vmem:[%s1500] sm:$0xff]
    %s1502 = scalar_lea.vmem [#allocation1], 8
    %v1503 = vld [vmem:[%s1502] sm:$0xff]
    %v1504 = vmul.f32 %v1503, %v1492
    %1505 = vadd.xlane.f32.xlu0 %v1504
    %v1506 = vpop.xlane.xlu0 %1505
    %v1507 = vsub.f32 %v1501, %v1506
    %v1508 = vmul.f32 %v1507, %v1499
    %vm1509 = vcmask 1047557
    %vm1510 = vmand %vm1490, %vm1509
    %v1511 = vsel %vm1510, %v1508, 0.0
    %v1512 = vadd.f32 %v1503, %v1511
    %s1513 = scalar_lea.vmem [#allocation1], 8
    %1514 = vst [vmem:[%s1513] sm:$0xff] %v1512
    %s1515 = scalar_lea.vmem [#allocation0], 16
    %v1516 = vld [vmem:[%s1515] sm:$0xff]
    %s1517 = scalar_lea.vmem [#allocation1], 16
    %v1518 = vld [vmem:[%s1517] sm:$0xff]
    %v1519 = vmul.f32 %v1518, %v1492
    %1520 = vadd.xlane.f32.xlu0 %v1519
    %v1521 = vpop.xlane.xlu0 %1520
    %v1522 = vsub.f32 %v1516, %v1521
    %v1523 = vmul.f32 %v1522, %v1499
    %v1524 = vsel %vm1490, %v1523, 0.0
    %v1525 = vadd.f32 %v1518, %v1524
    %s1526 = scalar_lea.vmem [#allocation1], 16
    %1527 = vst [vmem:[%s1526] sm:$0xff] %v1525
    %s1528 = scalar_lea.vmem [#allocation0], 24
    %v1529 = vld [vmem:[%s1528] sm:$0xff]
    %s1530 = scalar_lea.vmem [#allocation1], 24
    %v1531 = vld [vmem:[%s1530] sm:$0xff]
    %v1532 = vmul.f32 %v1531, %v1492
    %1533 = vadd.xlane.f32.xlu0 %v1532
    %v1534 = vpop.xlane.xlu0 %1533
    %v1535 = vsub.f32 %v1529, %v1534
    %v1536 = vmul.f32 %v1535, %v1499
    %v1537 = vsel %vm1490, %v1536, 0.0
    %v1538 = vadd.f32 %v1531, %v1537
    %s1539 = scalar_lea.vmem [#allocation1], 24
    %1540 = vst [vmem:[%s1539] sm:$0xff] %v1538
    %s1541 = scalar_lea.vmem [#allocation0], 32
    %v1542 = vld [vmem:[%s1541] sm:$0xff]
    %s1543 = scalar_lea.vmem [#allocation1], 32
    %v1544 = vld [vmem:[%s1543] sm:$0xff]
    %v1545 = vmul.f32 %v1544, %v1492
    %1546 = vadd.xlane.f32.xlu0 %v1545
    %v1547 = vpop.xlane.xlu0 %1546
    %v1548 = vsub.f32 %v1542, %v1547
    %v1549 = vmul.f32 %v1548, %v1499
    %v1550 = vsel %vm1490, %v1549, 0.0
    %v1551 = vadd.f32 %v1544, %v1550
    %s1552 = scalar_lea.vmem [#allocation1], 32
    %1553 = vst [vmem:[%s1552] sm:$0xff] %v1551
    %s1554 = scalar_lea.vmem [#allocation0], 40
    %v1555 = vld [vmem:[%s1554] sm:$0xff]
    %s1556 = scalar_lea.vmem [#allocation1], 40
    %v1557 = vld [vmem:[%s1556] sm:$0xff]
    %v1558 = vmul.f32 %v1557, %v1492
    %1559 = vadd.xlane.f32.xlu0 %v1558
    %v1560 = vpop.xlane.xlu0 %1559
    %v1561 = vsub.f32 %v1555, %v1560
    %v1562 = vmul.f32 %v1561, %v1499
    %v1563 = vsel %vm1490, %v1562, 0.0
    %v1564 = vadd.f32 %v1557, %v1563
    %s1565 = scalar_lea.vmem [#allocation1], 40
    %1566 = vst [vmem:[%s1565] sm:$0xff] %v1564
    %s1567 = scalar_lea.vmem [#allocation0], 48
    %v1568 = vld [vmem:[%s1567] sm:$0xff]
    %s1569 = scalar_lea.vmem [#allocation1], 48
    %v1570 = vld [vmem:[%s1569] sm:$0xff]
    %v1571 = vmul.f32 %v1570, %v1492
    %1572 = vadd.xlane.f32.xlu0 %v1571
    %v1573 = vpop.xlane.xlu0 %1572
    %v1574 = vsub.f32 %v1568, %v1573
    %v1575 = vmul.f32 %v1574, %v1499
    %v1576 = vsel %vm1490, %v1575, 0.0
    %v1577 = vadd.f32 %v1570, %v1576
    %s1578 = scalar_lea.vmem [#allocation1], 48
    %1579 = vst [vmem:[%s1578] sm:$0xff] %v1577
    %s1580 = scalar_lea.vmem [#allocation0], 56
    %v1581 = vld [vmem:[%s1580] sm:$0xff]
    %s1582 = scalar_lea.vmem [#allocation1], 56
    %v1583 = vld [vmem:[%s1582] sm:$0xff]
    %v1584 = vmul.f32 %v1583, %v1492
    %1585 = vadd.xlane.f32.xlu0 %v1584
    %v1586 = vpop.xlane.xlu0 %1585
    %v1587 = vsub.f32 %v1581, %v1586
    %v1588 = vmul.f32 %v1587, %v1499
    %v1589 = vsel %vm1490, %v1588, 0.0
    %v1590 = vadd.f32 %v1583, %v1589
    %s1591 = scalar_lea.vmem [#allocation1], 56
    %1592 = vst [vmem:[%s1591] sm:$0xff] %v1590
    %vm1593 = vcmask 121968
    %s1594 = scalar_lea.vmem [#allocation1], 14
    %v1595 = vld [vmem:[%s1594] ss:$0 sm:$0xff]
    %s1596 = scalar_lea.vmem [#allocation0], 14
    %v1597 = vld [vmem:[%s1596] ss:$0 sm:$0xff]
    %v1598 = vmul.f32 %v1595, %v1595
    %1599 = vadd.xlane.f32.xlu0 %v1598
    %v1600 = vpop.xlane.xlu0 %1599
    %v1601 = vsub.f32 %v1597, %v1600
    %v1602 = vrsqrt.pop %v1601
    %s1603 = scalar_lea.vmem [#allocation0], 8
    %v1604 = vld [vmem:[%s1603] sm:$0xff]
    %s1605 = scalar_lea.vmem [#allocation1], 8
    %v1606 = vld [vmem:[%s1605] sm:$0xff]
    %v1607 = vmul.f32 %v1606, %v1595
    %1608 = vadd.xlane.f32.xlu0 %v1607
    %v1609 = vpop.xlane.xlu0 %1608
    %v1610 = vsub.f32 %v1604, %v1609
    %v1611 = vmul.f32 %v1610, %v1602
    %vm1612 = vcmask 1047558
    %vm1613 = vmand %vm1593, %vm1612
    %v1614 = vsel %vm1613, %v1611, 0.0
    %v1615 = vadd.f32 %v1606, %v1614
    %s1616 = scalar_lea.vmem [#allocation1], 8
    %1617 = vst [vmem:[%s1616] sm:$0xff] %v1615
    %s1618 = scalar_lea.vmem [#allocation0], 16
    %v1619 = vld [vmem:[%s1618] sm:$0xff]
    %s1620 = scalar_lea.vmem [#allocation1], 16
    %v1621 = vld [vmem:[%s1620] sm:$0xff]
    %v1622 = vmul.f32 %v1621, %v1595
    %1623 = vadd.xlane.f32.xlu0 %v1622
    %v1624 = vpop.xlane.xlu0 %1623
    %v1625 = vsub.f32 %v1619, %v1624
    %v1626 = vmul.f32 %v1625, %v1602
    %v1627 = vsel %vm1593, %v1626, 0.0
    %v1628 = vadd.f32 %v1621, %v1627
    %s1629 = scalar_lea.vmem [#allocation1], 16
    %1630 = vst [vmem:[%s1629] sm:$0xff] %v1628
    %s1631 = scalar_lea.vmem [#allocation0], 24
    %v1632 = vld [vmem:[%s1631] sm:$0xff]
    %s1633 = scalar_lea.vmem [#allocation1], 24
    %v1634 = vld [vmem:[%s1633] sm:$0xff]
    %v1635 = vmul.f32 %v1634, %v1595
    %1636 = vadd.xlane.f32.xlu0 %v1635
    %v1637 = vpop.xlane.xlu0 %1636
    %v1638 = vsub.f32 %v1632, %v1637
    %v1639 = vmul.f32 %v1638, %v1602
    %v1640 = vsel %vm1593, %v1639, 0.0
    %v1641 = vadd.f32 %v1634, %v1640
    %s1642 = scalar_lea.vmem [#allocation1], 24
    %1643 = vst [vmem:[%s1642] sm:$0xff] %v1641
    %s1644 = scalar_lea.vmem [#allocation0], 32
    %v1645 = vld [vmem:[%s1644] sm:$0xff]
    %s1646 = scalar_lea.vmem [#allocation1], 32
    %v1647 = vld [vmem:[%s1646] sm:$0xff]
    %v1648 = vmul.f32 %v1647, %v1595
    %1649 = vadd.xlane.f32.xlu0 %v1648
    %v1650 = vpop.xlane.xlu0 %1649
    %v1651 = vsub.f32 %v1645, %v1650
    %v1652 = vmul.f32 %v1651, %v1602
    %v1653 = vsel %vm1593, %v1652, 0.0
    %v1654 = vadd.f32 %v1647, %v1653
    %s1655 = scalar_lea.vmem [#allocation1], 32
    %1656 = vst [vmem:[%s1655] sm:$0xff] %v1654
    %s1657 = scalar_lea.vmem [#allocation0], 40
    %v1658 = vld [vmem:[%s1657] sm:$0xff]
    %s1659 = scalar_lea.vmem [#allocation1], 40
    %v1660 = vld [vmem:[%s1659] sm:$0xff]
    %v1661 = vmul.f32 %v1660, %v1595
    %1662 = vadd.xlane.f32.xlu0 %v1661
    %v1663 = vpop.xlane.xlu0 %1662
    %v1664 = vsub.f32 %v1658, %v1663
    %v1665 = vmul.f32 %v1664, %v1602
    %v1666 = vsel %vm1593, %v1665, 0.0
    %v1667 = vadd.f32 %v1660, %v1666
    %s1668 = scalar_lea.vmem [#allocation1], 40
    %1669 = vst [vmem:[%s1668] sm:$0xff] %v1667
    %s1670 = scalar_lea.vmem [#allocation0], 48
    %v1671 = vld [vmem:[%s1670] sm:$0xff]
    %s1672 = scalar_lea.vmem [#allocation1], 48
    %v1673 = vld [vmem:[%s1672] sm:$0xff]
    %v1674 = vmul.f32 %v1673, %v1595
    %1675 = vadd.xlane.f32.xlu0 %v1674
    %v1676 = vpop.xlane.xlu0 %1675
    %v1677 = vsub.f32 %v1671, %v1676
    %v1678 = vmul.f32 %v1677, %v1602
    %v1679 = vsel %vm1593, %v1678, 0.0
    %v1680 = vadd.f32 %v1673, %v1679
    %s1681 = scalar_lea.vmem [#allocation1], 48
    %1682 = vst [vmem:[%s1681] sm:$0xff] %v1680
    %s1683 = scalar_lea.vmem [#allocation0], 56
    %v1684 = vld [vmem:[%s1683] sm:$0xff]
    %s1685 = scalar_lea.vmem [#allocation1], 56
    %v1686 = vld [vmem:[%s1685] sm:$0xff]
    %v1687 = vmul.f32 %v1686, %v1595
    %1688 = vadd.xlane.f32.xlu0 %v1687
    %v1689 = vpop.xlane.xlu0 %1688
    %v1690 = vsub.f32 %v1684, %v1689
    %v1691 = vmul.f32 %v1690, %v1602
    %v1692 = vsel %vm1593, %v1691, 0.0
    %v1693 = vadd.f32 %v1686, %v1692
    %s1694 = scalar_lea.vmem [#allocation1], 56
    %1695 = vst [vmem:[%s1694] sm:$0xff] %v1693
    %vm1696 = vcmask 130168
    %s1697 = scalar_lea.vmem [#allocation1], 15
    %v1698 = vld [vmem:[%s1697] ss:$0 sm:$0xff]
    %s1699 = scalar_lea.vmem [#allocation0], 15
    %v1700 = vld [vmem:[%s1699] ss:$0 sm:$0xff]
    %v1701 = vmul.f32 %v1698, %v1698
    %1702 = vadd.xlane.f32.xlu0 %v1701
    %v1703 = vpop.xlane.xlu0 %1702
    %v1704 = vsub.f32 %v1700, %v1703
    %v1705 = vrsqrt.pop %v1704
    %s1706 = scalar_lea.vmem [#allocation0], 8
    %v1707 = vld [vmem:[%s1706] sm:$0xff]
    %s1708 = scalar_lea.vmem [#allocation1], 8
    %v1709 = vld [vmem:[%s1708] sm:$0xff]
    %v1710 = vmul.f32 %v1709, %v1698
    %1711 = vadd.xlane.f32.xlu0 %v1710
    %v1712 = vpop.xlane.xlu0 %1711
    %v1713 = vsub.f32 %v1707, %v1712
    %v1714 = vmul.f32 %v1713, %v1705
    %vm1715 = vcmask 1047559
    %vm1716 = vmand %vm1696, %vm1715
    %v1717 = vsel %vm1716, %v1714, 0.0
    %v1718 = vadd.f32 %v1709, %v1717
    %s1719 = scalar_lea.vmem [#allocation1], 8
    %1720 = vst [vmem:[%s1719] sm:$0xff] %v1718
    %s1721 = scalar_lea.vmem [#allocation0], 16
    %v1722 = vld [vmem:[%s1721] sm:$0xff]
    %s1723 = scalar_lea.vmem [#allocation1], 16
    %v1724 = vld [vmem:[%s1723] sm:$0xff]
    %v1725 = vmul.f32 %v1724, %v1698
    %1726 = vadd.xlane.f32.xlu0 %v1725
    %v1727 = vpop.xlane.xlu0 %1726
    %v1728 = vsub.f32 %v1722, %v1727
    %v1729 = vmul.f32 %v1728, %v1705
    %v1730 = vsel %vm1696, %v1729, 0.0
    %v1731 = vadd.f32 %v1724, %v1730
    %s1732 = scalar_lea.vmem [#allocation1], 16
    %1733 = vst [vmem:[%s1732] sm:$0xff] %v1731
    %s1734 = scalar_lea.vmem [#allocation0], 24
    %v1735 = vld [vmem:[%s1734] sm:$0xff]
    %s1736 = scalar_lea.vmem [#allocation1], 24
    %v1737 = vld [vmem:[%s1736] sm:$0xff]
    %v1738 = vmul.f32 %v1737, %v1698
    %1739 = vadd.xlane.f32.xlu0 %v1738
    %v1740 = vpop.xlane.xlu0 %1739
    %v1741 = vsub.f32 %v1735, %v1740
    %v1742 = vmul.f32 %v1741, %v1705
    %v1743 = vsel %vm1696, %v1742, 0.0
    %v1744 = vadd.f32 %v1737, %v1743
    %s1745 = scalar_lea.vmem [#allocation1], 24
    %1746 = vst [vmem:[%s1745] sm:$0xff] %v1744
    %s1747 = scalar_lea.vmem [#allocation0], 32
    %v1748 = vld [vmem:[%s1747] sm:$0xff]
    %s1749 = scalar_lea.vmem [#allocation1], 32
    %v1750 = vld [vmem:[%s1749] sm:$0xff]
    %v1751 = vmul.f32 %v1750, %v1698
    %1752 = vadd.xlane.f32.xlu0 %v1751
    %v1753 = vpop.xlane.xlu0 %1752
    %v1754 = vsub.f32 %v1748, %v1753
    %v1755 = vmul.f32 %v1754, %v1705
    %v1756 = vsel %vm1696, %v1755, 0.0
    %v1757 = vadd.f32 %v1750, %v1756
    %s1758 = scalar_lea.vmem [#allocation1], 32
    %1759 = vst [vmem:[%s1758] sm:$0xff] %v1757
    %s1760 = scalar_lea.vmem [#allocation0], 40
    %v1761 = vld [vmem:[%s1760] sm:$0xff]
    %s1762 = scalar_lea.vmem [#allocation1], 40
    %v1763 = vld [vmem:[%s1762] sm:$0xff]
    %v1764 = vmul.f32 %v1763, %v1698
    %1765 = vadd.xlane.f32.xlu0 %v1764
    %v1766 = vpop.xlane.xlu0 %1765
    %v1767 = vsub.f32 %v1761, %v1766
    %v1768 = vmul.f32 %v1767, %v1705
    %v1769 = vsel %vm1696, %v1768, 0.0
    %v1770 = vadd.f32 %v1763, %v1769
    %s1771 = scalar_lea.vmem [#allocation1], 40
    %1772 = vst [vmem:[%s1771] sm:$0xff] %v1770
    %s1773 = scalar_lea.vmem [#allocation0], 48
    %v1774 = vld [vmem:[%s1773] sm:$0xff]
    %s1775 = scalar_lea.vmem [#allocation1], 48
    %v1776 = vld [vmem:[%s1775] sm:$0xff]
    %v1777 = vmul.f32 %v1776, %v1698
    %1778 = vadd.xlane.f32.xlu0 %v1777
    %v1779 = vpop.xlane.xlu0 %1778
    %v1780 = vsub.f32 %v1774, %v1779
    %v1781 = vmul.f32 %v1780, %v1705
    %v1782 = vsel %vm1696, %v1781, 0.0
    %v1783 = vadd.f32 %v1776, %v1782
    %s1784 = scalar_lea.vmem [#allocation1], 48
    %1785 = vst [vmem:[%s1784] sm:$0xff] %v1783
    %s1786 = scalar_lea.vmem [#allocation0], 56
    %v1787 = vld [vmem:[%s1786] sm:$0xff]
    %s1788 = scalar_lea.vmem [#allocation1], 56
    %v1789 = vld [vmem:[%s1788] sm:$0xff]
    %v1790 = vmul.f32 %v1789, %v1698
    %1791 = vadd.xlane.f32.xlu0 %v1790
    %v1792 = vpop.xlane.xlu0 %1791
    %v1793 = vsub.f32 %v1787, %v1792
    %v1794 = vmul.f32 %v1793, %v1705
    %v1795 = vsel %vm1696, %v1794, 0.0
    %v1796 = vadd.f32 %v1789, %v1795
    %s1797 = scalar_lea.vmem [#allocation1], 56
    %1798 = vst [vmem:[%s1797] sm:$0xff] %v1796
    %vm1799 = vcmask 138368
    %s1800 = scalar_lea.vmem [#allocation1], 16
    %v1801 = vld [vmem:[%s1800] ss:$0 sm:$0xff]
    %s1802 = scalar_lea.vmem [#allocation0], 16
    %v1803 = vld [vmem:[%s1802] ss:$0 sm:$0xff]
    %v1804 = vmul.f32 %v1801, %v1801
    %1805 = vadd.xlane.f32.xlu0 %v1804
    %v1806 = vpop.xlane.xlu0 %1805
    %v1807 = vsub.f32 %v1803, %v1806
    %v1808 = vrsqrt.pop %v1807
    %s1809 = scalar_lea.vmem [#allocation0], 16
    %v1810 = vld [vmem:[%s1809] sm:$0xff]
    %s1811 = scalar_lea.vmem [#allocation1], 16
    %v1812 = vld [vmem:[%s1811] sm:$0xff]
    %v1813 = vmul.f32 %v1812, %v1801
    %1814 = vadd.xlane.f32.xlu0 %v1813
    %v1815 = vpop.xlane.xlu0 %1814
    %v1816 = vsub.f32 %v1810, %v1815
    %v1817 = vmul.f32 %v1816, %v1808
    %v1818 = vsel %vm1799, %v1817, 0.0
    %v1819 = vadd.f32 %v1812, %v1818
    %s1820 = scalar_lea.vmem [#allocation1], 16
    %1821 = vst [vmem:[%s1820] sm:$0xff] %v1819
    %s1822 = scalar_lea.vmem [#allocation0], 24
    %v1823 = vld [vmem:[%s1822] sm:$0xff]
    %s1824 = scalar_lea.vmem [#allocation1], 24
    %v1825 = vld [vmem:[%s1824] sm:$0xff]
    %v1826 = vmul.f32 %v1825, %v1801
    %1827 = vadd.xlane.f32.xlu0 %v1826
    %v1828 = vpop.xlane.xlu0 %1827
    %v1829 = vsub.f32 %v1823, %v1828
    %v1830 = vmul.f32 %v1829, %v1808
    %v1831 = vsel %vm1799, %v1830, 0.0
    %v1832 = vadd.f32 %v1825, %v1831
    %s1833 = scalar_lea.vmem [#allocation1], 24
    %1834 = vst [vmem:[%s1833] sm:$0xff] %v1832
    %s1835 = scalar_lea.vmem [#allocation0], 32
    %v1836 = vld [vmem:[%s1835] sm:$0xff]
    %s1837 = scalar_lea.vmem [#allocation1], 32
    %v1838 = vld [vmem:[%s1837] sm:$0xff]
    %v1839 = vmul.f32 %v1838, %v1801
    %1840 = vadd.xlane.f32.xlu0 %v1839
    %v1841 = vpop.xlane.xlu0 %1840
    %v1842 = vsub.f32 %v1836, %v1841
    %v1843 = vmul.f32 %v1842, %v1808
    %v1844 = vsel %vm1799, %v1843, 0.0
    %v1845 = vadd.f32 %v1838, %v1844
    %s1846 = scalar_lea.vmem [#allocation1], 32
    %1847 = vst [vmem:[%s1846] sm:$0xff] %v1845
    %s1848 = scalar_lea.vmem [#allocation0], 40
    %v1849 = vld [vmem:[%s1848] sm:$0xff]
    %s1850 = scalar_lea.vmem [#allocation1], 40
    %v1851 = vld [vmem:[%s1850] sm:$0xff]
    %v1852 = vmul.f32 %v1851, %v1801
    %1853 = vadd.xlane.f32.xlu0 %v1852
    %v1854 = vpop.xlane.xlu0 %1853
    %v1855 = vsub.f32 %v1849, %v1854
    %v1856 = vmul.f32 %v1855, %v1808
    %v1857 = vsel %vm1799, %v1856, 0.0
    %v1858 = vadd.f32 %v1851, %v1857
    %s1859 = scalar_lea.vmem [#allocation1], 40
    %1860 = vst [vmem:[%s1859] sm:$0xff] %v1858
    %s1861 = scalar_lea.vmem [#allocation0], 48
    %v1862 = vld [vmem:[%s1861] sm:$0xff]
    %s1863 = scalar_lea.vmem [#allocation1], 48
    %v1864 = vld [vmem:[%s1863] sm:$0xff]
    %v1865 = vmul.f32 %v1864, %v1801
    %1866 = vadd.xlane.f32.xlu0 %v1865
    %v1867 = vpop.xlane.xlu0 %1866
    %v1868 = vsub.f32 %v1862, %v1867
    %v1869 = vmul.f32 %v1868, %v1808
    %v1870 = vsel %vm1799, %v1869, 0.0
    %v1871 = vadd.f32 %v1864, %v1870
    %s1872 = scalar_lea.vmem [#allocation1], 48
    %1873 = vst [vmem:[%s1872] sm:$0xff] %v1871
    %s1874 = scalar_lea.vmem [#allocation0], 56
    %v1875 = vld [vmem:[%s1874] sm:$0xff]
    %s1876 = scalar_lea.vmem [#allocation1], 56
    %v1877 = vld [vmem:[%s1876] sm:$0xff]
    %v1878 = vmul.f32 %v1877, %v1801
    %1879 = vadd.xlane.f32.xlu0 %v1878
    %v1880 = vpop.xlane.xlu0 %1879
    %v1881 = vsub.f32 %v1875, %v1880
    %v1882 = vmul.f32 %v1881, %v1808
    %v1883 = vsel %vm1799, %v1882, 0.0
    %v1884 = vadd.f32 %v1877, %v1883
    %s1885 = scalar_lea.vmem [#allocation1], 56
    %1886 = vst [vmem:[%s1885] sm:$0xff] %v1884
    %vm1887 = vcmask 146568
    %s1888 = scalar_lea.vmem [#allocation1], 17
    %v1889 = vld [vmem:[%s1888] ss:$0 sm:$0xff]
    %s1890 = scalar_lea.vmem [#allocation0], 17
    %v1891 = vld [vmem:[%s1890] ss:$0 sm:$0xff]
    %v1892 = vmul.f32 %v1889, %v1889
    %1893 = vadd.xlane.f32.xlu0 %v1892
    %v1894 = vpop.xlane.xlu0 %1893
    %v1895 = vsub.f32 %v1891, %v1894
    %v1896 = vrsqrt.pop %v1895
    %s1897 = scalar_lea.vmem [#allocation0], 16
    %v1898 = vld [vmem:[%s1897] sm:$0xff]
    %s1899 = scalar_lea.vmem [#allocation1], 16
    %v1900 = vld [vmem:[%s1899] sm:$0xff]
    %v1901 = vmul.f32 %v1900, %v1889
    %1902 = vadd.xlane.f32.xlu0 %v1901
    %v1903 = vpop.xlane.xlu0 %1902
    %v1904 = vsub.f32 %v1898, %v1903
    %v1905 = vmul.f32 %v1904, %v1896
    %vm1906 = vcmask 1047553
    %vm1907 = vmand %vm1887, %vm1906
    %v1908 = vsel %vm1907, %v1905, 0.0
    %v1909 = vadd.f32 %v1900, %v1908
    %s1910 = scalar_lea.vmem [#allocation1], 16
    %1911 = vst [vmem:[%s1910] sm:$0xff] %v1909
    %s1912 = scalar_lea.vmem [#allocation0], 24
    %v1913 = vld [vmem:[%s1912] sm:$0xff]
    %s1914 = scalar_lea.vmem [#allocation1], 24
    %v1915 = vld [vmem:[%s1914] sm:$0xff]
    %v1916 = vmul.f32 %v1915, %v1889
    %1917 = vadd.xlane.f32.xlu0 %v1916
    %v1918 = vpop.xlane.xlu0 %1917
    %v1919 = vsub.f32 %v1913, %v1918
    %v1920 = vmul.f32 %v1919, %v1896
    %v1921 = vsel %vm1887, %v1920, 0.0
    %v1922 = vadd.f32 %v1915, %v1921
    %s1923 = scalar_lea.vmem [#allocation1], 24
    %1924 = vst [vmem:[%s1923] sm:$0xff] %v1922
    %s1925 = scalar_lea.vmem [#allocation0], 32
    %v1926 = vld [vmem:[%s1925] sm:$0xff]
    %s1927 = scalar_lea.vmem [#allocation1], 32
    %v1928 = vld [vmem:[%s1927] sm:$0xff]
    %v1929 = vmul.f32 %v1928, %v1889
    %1930 = vadd.xlane.f32.xlu0 %v1929
    %v1931 = vpop.xlane.xlu0 %1930
    %v1932 = vsub.f32 %v1926, %v1931
    %v1933 = vmul.f32 %v1932, %v1896
    %v1934 = vsel %vm1887, %v1933, 0.0
    %v1935 = vadd.f32 %v1928, %v1934
    %s1936 = scalar_lea.vmem [#allocation1], 32
    %1937 = vst [vmem:[%s1936] sm:$0xff] %v1935
    %s1938 = scalar_lea.vmem [#allocation0], 40
    %v1939 = vld [vmem:[%s1938] sm:$0xff]
    %s1940 = scalar_lea.vmem [#allocation1], 40
    %v1941 = vld [vmem:[%s1940] sm:$0xff]
    %v1942 = vmul.f32 %v1941, %v1889
    %1943 = vadd.xlane.f32.xlu0 %v1942
    %v1944 = vpop.xlane.xlu0 %1943
    %v1945 = vsub.f32 %v1939, %v1944
    %v1946 = vmul.f32 %v1945, %v1896
    %v1947 = vsel %vm1887, %v1946, 0.0
    %v1948 = vadd.f32 %v1941, %v1947
    %s1949 = scalar_lea.vmem [#allocation1], 40
    %1950 = vst [vmem:[%s1949] sm:$0xff] %v1948
    %s1951 = scalar_lea.vmem [#allocation0], 48
    %v1952 = vld [vmem:[%s1951] sm:$0xff]
    %s1953 = scalar_lea.vmem [#allocation1], 48
    %v1954 = vld [vmem:[%s1953] sm:$0xff]
    %v1955 = vmul.f32 %v1954, %v1889
    %1956 = vadd.xlane.f32.xlu0 %v1955
    %v1957 = vpop.xlane.xlu0 %1956
    %v1958 = vsub.f32 %v1952, %v1957
    %v1959 = vmul.f32 %v1958, %v1896
    %v1960 = vsel %vm1887, %v1959, 0.0
    %v1961 = vadd.f32 %v1954, %v1960
    %s1962 = scalar_lea.vmem [#allocation1], 48
    %1963 = vst [vmem:[%s1962] sm:$0xff] %v1961
    %s1964 = scalar_lea.vmem [#allocation0], 56
    %v1965 = vld [vmem:[%s1964] sm:$0xff]
    %s1966 = scalar_lea.vmem [#allocation1], 56
    %v1967 = vld [vmem:[%s1966] sm:$0xff]
    %v1968 = vmul.f32 %v1967, %v1889
    %1969 = vadd.xlane.f32.xlu0 %v1968
    %v1970 = vpop.xlane.xlu0 %1969
    %v1971 = vsub.f32 %v1965, %v1970
    %v1972 = vmul.f32 %v1971, %v1896
    %v1973 = vsel %vm1887, %v1972, 0.0
    %v1974 = vadd.f32 %v1967, %v1973
    %s1975 = scalar_lea.vmem [#allocation1], 56
    %1976 = vst [vmem:[%s1975] sm:$0xff] %v1974
    %vm1977 = vcmask 154768
    %s1978 = scalar_lea.vmem [#allocation1], 18
    %v1979 = vld [vmem:[%s1978] ss:$0 sm:$0xff]
    %s1980 = scalar_lea.vmem [#allocation0], 18
    %v1981 = vld [vmem:[%s1980] ss:$0 sm:$0xff]
    %v1982 = vmul.f32 %v1979, %v1979
    %1983 = vadd.xlane.f32.xlu0 %v1982
    %v1984 = vpop.xlane.xlu0 %1983
    %v1985 = vsub.f32 %v1981, %v1984
    %v1986 = vrsqrt.pop %v1985
    %s1987 = scalar_lea.vmem [#allocation0], 16
    %v1988 = vld [vmem:[%s1987] sm:$0xff]
    %s1989 = scalar_lea.vmem [#allocation1], 16
    %v1990 = vld [vmem:[%s1989] sm:$0xff]
    %v1991 = vmul.f32 %v1990, %v1979
    %1992 = vadd.xlane.f32.xlu0 %v1991
    %v1993 = vpop.xlane.xlu0 %1992
    %v1994 = vsub.f32 %v1988, %v1993
    %v1995 = vmul.f32 %v1994, %v1986
    %vm1996 = vcmask 1047554
    %vm1997 = vmand %vm1977, %vm1996
    %v1998 = vsel %vm1997, %v1995, 0.0
    %v1999 = vadd.f32 %v1990, %v1998
    %s2000 = scalar_lea.vmem [#allocation1], 16
    %2001 = vst [vmem:[%s2000] sm:$0xff] %v1999
    %s2002 = scalar_lea.vmem [#allocation0], 24
    %v2003 = vld [vmem:[%s2002] sm:$0xff]
    %s2004 = scalar_lea.vmem [#allocation1], 24
    %v2005 = vld [vmem:[%s2004] sm:$0xff]
    %v2006 = vmul.f32 %v2005, %v1979
    %2007 = vadd.xlane.f32.xlu0 %v2006
    %v2008 = vpop.xlane.xlu0 %2007
    %v2009 = vsub.f32 %v2003, %v2008
    %v2010 = vmul.f32 %v2009, %v1986
    %v2011 = vsel %vm1977, %v2010, 0.0
    %v2012 = vadd.f32 %v2005, %v2011
    %s2013 = scalar_lea.vmem [#allocation1], 24
    %2014 = vst [vmem:[%s2013] sm:$0xff] %v2012
    %s2015 = scalar_lea.vmem [#allocation0], 32
    %v2016 = vld [vmem:[%s2015] sm:$0xff]
    %s2017 = scalar_lea.vmem [#allocation1], 32
    %v2018 = vld [vmem:[%s2017] sm:$0xff]
    %v2019 = vmul.f32 %v2018, %v1979
    %2020 = vadd.xlane.f32.xlu0 %v2019
    %v2021 = vpop.xlane.xlu0 %2020
    %v2022 = vsub.f32 %v2016, %v2021
    %v2023 = vmul.f32 %v2022, %v1986
    %v2024 = vsel %vm1977, %v2023, 0.0
    %v2025 = vadd.f32 %v2018, %v2024
    %s2026 = scalar_lea.vmem [#allocation1], 32
    %2027 = vst [vmem:[%s2026] sm:$0xff] %v2025
    %s2028 = scalar_lea.vmem [#allocation0], 40
    %v2029 = vld [vmem:[%s2028] sm:$0xff]
    %s2030 = scalar_lea.vmem [#allocation1], 40
    %v2031 = vld [vmem:[%s2030] sm:$0xff]
    %v2032 = vmul.f32 %v2031, %v1979
    %2033 = vadd.xlane.f32.xlu0 %v2032
    %v2034 = vpop.xlane.xlu0 %2033
    %v2035 = vsub.f32 %v2029, %v2034
    %v2036 = vmul.f32 %v2035, %v1986
    %v2037 = vsel %vm1977, %v2036, 0.0
    %v2038 = vadd.f32 %v2031, %v2037
    %s2039 = scalar_lea.vmem [#allocation1], 40
    %2040 = vst [vmem:[%s2039] sm:$0xff] %v2038
    %s2041 = scalar_lea.vmem [#allocation0], 48
    %v2042 = vld [vmem:[%s2041] sm:$0xff]
    %s2043 = scalar_lea.vmem [#allocation1], 48
    %v2044 = vld [vmem:[%s2043] sm:$0xff]
    %v2045 = vmul.f32 %v2044, %v1979
    %2046 = vadd.xlane.f32.xlu0 %v2045
    %v2047 = vpop.xlane.xlu0 %2046
    %v2048 = vsub.f32 %v2042, %v2047
    %v2049 = vmul.f32 %v2048, %v1986
    %v2050 = vsel %vm1977, %v2049, 0.0
    %v2051 = vadd.f32 %v2044, %v2050
    %s2052 = scalar_lea.vmem [#allocation1], 48
    %2053 = vst [vmem:[%s2052] sm:$0xff] %v2051
    %s2054 = scalar_lea.vmem [#allocation0], 56
    %v2055 = vld [vmem:[%s2054] sm:$0xff]
    %s2056 = scalar_lea.vmem [#allocation1], 56
    %v2057 = vld [vmem:[%s2056] sm:$0xff]
    %v2058 = vmul.f32 %v2057, %v1979
    %2059 = vadd.xlane.f32.xlu0 %v2058
    %v2060 = vpop.xlane.xlu0 %2059
    %v2061 = vsub.f32 %v2055, %v2060
    %v2062 = vmul.f32 %v2061, %v1986
    %v2063 = vsel %vm1977, %v2062, 0.0
    %v2064 = vadd.f32 %v2057, %v2063
    %s2065 = scalar_lea.vmem [#allocation1], 56
    %2066 = vst [vmem:[%s2065] sm:$0xff] %v2064
    %vm2067 = vcmask 162968
    %s2068 = scalar_lea.vmem [#allocation1], 19
    %v2069 = vld [vmem:[%s2068] ss:$0 sm:$0xff]
    %s2070 = scalar_lea.vmem [#allocation0], 19
    %v2071 = vld [vmem:[%s2070] ss:$0 sm:$0xff]
    %v2072 = vmul.f32 %v2069, %v2069
    %2073 = vadd.xlane.f32.xlu0 %v2072
    %v2074 = vpop.xlane.xlu0 %2073
    %v2075 = vsub.f32 %v2071, %v2074
    %v2076 = vrsqrt.pop %v2075
    %s2077 = scalar_lea.vmem [#allocation0], 16
    %v2078 = vld [vmem:[%s2077] sm:$0xff]
    %s2079 = scalar_lea.vmem [#allocation1], 16
    %v2080 = vld [vmem:[%s2079] sm:$0xff]
    %v2081 = vmul.f32 %v2080, %v2069
    %2082 = vadd.xlane.f32.xlu0 %v2081
    %v2083 = vpop.xlane.xlu0 %2082
    %v2084 = vsub.f32 %v2078, %v2083
    %v2085 = vmul.f32 %v2084, %v2076
    %vm2086 = vcmask 1047555
    %vm2087 = vmand %vm2067, %vm2086
    %v2088 = vsel %vm2087, %v2085, 0.0
    %v2089 = vadd.f32 %v2080, %v2088
    %s2090 = scalar_lea.vmem [#allocation1], 16
    %2091 = vst [vmem:[%s2090] sm:$0xff] %v2089
    %s2092 = scalar_lea.vmem [#allocation0], 24
    %v2093 = vld [vmem:[%s2092] sm:$0xff]
    %s2094 = scalar_lea.vmem [#allocation1], 24
    %v2095 = vld [vmem:[%s2094] sm:$0xff]
    %v2096 = vmul.f32 %v2095, %v2069
    %2097 = vadd.xlane.f32.xlu0 %v2096
    %v2098 = vpop.xlane.xlu0 %2097
    %v2099 = vsub.f32 %v2093, %v2098
    %v2100 = vmul.f32 %v2099, %v2076
    %v2101 = vsel %vm2067, %v2100, 0.0
    %v2102 = vadd.f32 %v2095, %v2101
    %s2103 = scalar_lea.vmem [#allocation1], 24
    %2104 = vst [vmem:[%s2103] sm:$0xff] %v2102
    %s2105 = scalar_lea.vmem [#allocation0], 32
    %v2106 = vld [vmem:[%s2105] sm:$0xff]
    %s2107 = scalar_lea.vmem [#allocation1], 32
    %v2108 = vld [vmem:[%s2107] sm:$0xff]
    %v2109 = vmul.f32 %v2108, %v2069
    %2110 = vadd.xlane.f32.xlu0 %v2109
    %v2111 = vpop.xlane.xlu0 %2110
    %v2112 = vsub.f32 %v2106, %v2111
    %v2113 = vmul.f32 %v2112, %v2076
    %v2114 = vsel %vm2067, %v2113, 0.0
    %v2115 = vadd.f32 %v2108, %v2114
    %s2116 = scalar_lea.vmem [#allocation1], 32
    %2117 = vst [vmem:[%s2116] sm:$0xff] %v2115
    %s2118 = scalar_lea.vmem [#allocation0], 40
    %v2119 = vld [vmem:[%s2118] sm:$0xff]
    %s2120 = scalar_lea.vmem [#allocation1], 40
    %v2121 = vld [vmem:[%s2120] sm:$0xff]
    %v2122 = vmul.f32 %v2121, %v2069
    %2123 = vadd.xlane.f32.xlu0 %v2122
    %v2124 = vpop.xlane.xlu0 %2123
    %v2125 = vsub.f32 %v2119, %v2124
    %v2126 = vmul.f32 %v2125, %v2076
    %v2127 = vsel %vm2067, %v2126, 0.0
    %v2128 = vadd.f32 %v2121, %v2127
    %s2129 = scalar_lea.vmem [#allocation1], 40
    %2130 = vst [vmem:[%s2129] sm:$0xff] %v2128
    %s2131 = scalar_lea.vmem [#allocation0], 48
    %v2132 = vld [vmem:[%s2131] sm:$0xff]
    %s2133 = scalar_lea.vmem [#allocation1], 48
    %v2134 = vld [vmem:[%s2133] sm:$0xff]
    %v2135 = vmul.f32 %v2134, %v2069
    %2136 = vadd.xlane.f32.xlu0 %v2135
    %v2137 = vpop.xlane.xlu0 %2136
    %v2138 = vsub.f32 %v2132, %v2137
    %v2139 = vmul.f32 %v2138, %v2076
    %v2140 = vsel %vm2067, %v2139, 0.0
    %v2141 = vadd.f32 %v2134, %v2140
    %s2142 = scalar_lea.vmem [#allocation1], 48
    %2143 = vst [vmem:[%s2142] sm:$0xff] %v2141
    %s2144 = scalar_lea.vmem [#allocation0], 56
    %v2145 = vld [vmem:[%s2144] sm:$0xff]
    %s2146 = scalar_lea.vmem [#allocation1], 56
    %v2147 = vld [vmem:[%s2146] sm:$0xff]
    %v2148 = vmul.f32 %v2147, %v2069
    %2149 = vadd.xlane.f32.xlu0 %v2148
    %v2150 = vpop.xlane.xlu0 %2149
    %v2151 = vsub.f32 %v2145, %v2150
    %v2152 = vmul.f32 %v2151, %v2076
    %v2153 = vsel %vm2067, %v2152, 0.0
    %v2154 = vadd.f32 %v2147, %v2153
    %s2155 = scalar_lea.vmem [#allocation1], 56
    %2156 = vst [vmem:[%s2155] sm:$0xff] %v2154
    %vm2157 = vcmask 171168
    %s2158 = scalar_lea.vmem [#allocation1], 20
    %v2159 = vld [vmem:[%s2158] ss:$0 sm:$0xff]
    %s2160 = scalar_lea.vmem [#allocation0], 20
    %v2161 = vld [vmem:[%s2160] ss:$0 sm:$0xff]
    %v2162 = vmul.f32 %v2159, %v2159
    %2163 = vadd.xlane.f32.xlu0 %v2162
    %v2164 = vpop.xlane.xlu0 %2163
    %v2165 = vsub.f32 %v2161, %v2164
    %v2166 = vrsqrt.pop %v2165
    %s2167 = scalar_lea.vmem [#allocation0], 16
    %v2168 = vld [vmem:[%s2167] sm:$0xff]
    %s2169 = scalar_lea.vmem [#allocation1], 16
    %v2170 = vld [vmem:[%s2169] sm:$0xff]
    %v2171 = vmul.f32 %v2170, %v2159
    %2172 = vadd.xlane.f32.xlu0 %v2171
    %v2173 = vpop.xlane.xlu0 %2172
    %v2174 = vsub.f32 %v2168, %v2173
    %v2175 = vmul.f32 %v2174, %v2166
    %vm2176 = vcmask 1047556
    %vm2177 = vmand %vm2157, %vm2176
    %v2178 = vsel %vm2177, %v2175, 0.0
    %v2179 = vadd.f32 %v2170, %v2178
    %s2180 = scalar_lea.vmem [#allocation1], 16
    %2181 = vst [vmem:[%s2180] sm:$0xff] %v2179
    %s2182 = scalar_lea.vmem [#allocation0], 24
    %v2183 = vld [vmem:[%s2182] sm:$0xff]
    %s2184 = scalar_lea.vmem [#allocation1], 24
    %v2185 = vld [vmem:[%s2184] sm:$0xff]
    %v2186 = vmul.f32 %v2185, %v2159
    %2187 = vadd.xlane.f32.xlu0 %v2186
    %v2188 = vpop.xlane.xlu0 %2187
    %v2189 = vsub.f32 %v2183, %v2188
    %v2190 = vmul.f32 %v2189, %v2166
    %v2191 = vsel %vm2157, %v2190, 0.0
    %v2192 = vadd.f32 %v2185, %v2191
    %s2193 = scalar_lea.vmem [#allocation1], 24
    %2194 = vst [vmem:[%s2193] sm:$0xff] %v2192
    %s2195 = scalar_lea.vmem [#allocation0], 32
    %v2196 = vld [vmem:[%s2195] sm:$0xff]
    %s2197 = scalar_lea.vmem [#allocation1], 32
    %v2198 = vld [vmem:[%s2197] sm:$0xff]
    %v2199 = vmul.f32 %v2198, %v2159
    %2200 = vadd.xlane.f32.xlu0 %v2199
    %v2201 = vpop.xlane.xlu0 %2200
    %v2202 = vsub.f32 %v2196, %v2201
    %v2203 = vmul.f32 %v2202, %v2166
    %v2204 = vsel %vm2157, %v2203, 0.0
    %v2205 = vadd.f32 %v2198, %v2204
    %s2206 = scalar_lea.vmem [#allocation1], 32
    %2207 = vst [vmem:[%s2206] sm:$0xff] %v2205
    %s2208 = scalar_lea.vmem [#allocation0], 40
    %v2209 = vld [vmem:[%s2208] sm:$0xff]
    %s2210 = scalar_lea.vmem [#allocation1], 40
    %v2211 = vld [vmem:[%s2210] sm:$0xff]
    %v2212 = vmul.f32 %v2211, %v2159
    %2213 = vadd.xlane.f32.xlu0 %v2212
    %v2214 = vpop.xlane.xlu0 %2213
    %v2215 = vsub.f32 %v2209, %v2214
    %v2216 = vmul.f32 %v2215, %v2166
    %v2217 = vsel %vm2157, %v2216, 0.0
    %v2218 = vadd.f32 %v2211, %v2217
    %s2219 = scalar_lea.vmem [#allocation1], 40
    %2220 = vst [vmem:[%s2219] sm:$0xff] %v2218
    %s2221 = scalar_lea.vmem [#allocation0], 48
    %v2222 = vld [vmem:[%s2221] sm:$0xff]
    %s2223 = scalar_lea.vmem [#allocation1], 48
    %v2224 = vld [vmem:[%s2223] sm:$0xff]
    %v2225 = vmul.f32 %v2224, %v2159
    %2226 = vadd.xlane.f32.xlu0 %v2225
    %v2227 = vpop.xlane.xlu0 %2226
    %v2228 = vsub.f32 %v2222, %v2227
    %v2229 = vmul.f32 %v2228, %v2166
    %v2230 = vsel %vm2157, %v2229, 0.0
    %v2231 = vadd.f32 %v2224, %v2230
    %s2232 = scalar_lea.vmem [#allocation1], 48
    %2233 = vst [vmem:[%s2232] sm:$0xff] %v2231
    %s2234 = scalar_lea.vmem [#allocation0], 56
    %v2235 = vld [vmem:[%s2234] sm:$0xff]
    %s2236 = scalar_lea.vmem [#allocation1], 56
    %v2237 = vld [vmem:[%s2236] sm:$0xff]
    %v2238 = vmul.f32 %v2237, %v2159
    %2239 = vadd.xlane.f32.xlu0 %v2238
    %v2240 = vpop.xlane.xlu0 %2239
    %v2241 = vsub.f32 %v2235, %v2240
    %v2242 = vmul.f32 %v2241, %v2166
    %v2243 = vsel %vm2157, %v2242, 0.0
    %v2244 = vadd.f32 %v2237, %v2243
    %s2245 = scalar_lea.vmem [#allocation1], 56
    %2246 = vst [vmem:[%s2245] sm:$0xff] %v2244
    %vm2247 = vcmask 179368
    %s2248 = scalar_lea.vmem [#allocation1], 21
    %v2249 = vld [vmem:[%s2248] ss:$0 sm:$0xff]
    %s2250 = scalar_lea.vmem [#allocation0], 21
    %v2251 = vld [vmem:[%s2250] ss:$0 sm:$0xff]
    %v2252 = vmul.f32 %v2249, %v2249
    %2253 = vadd.xlane.f32.xlu0 %v2252
    %v2254 = vpop.xlane.xlu0 %2253
    %v2255 = vsub.f32 %v2251, %v2254
    %v2256 = vrsqrt.pop %v2255
    %s2257 = scalar_lea.vmem [#allocation0], 16
    %v2258 = vld [vmem:[%s2257] sm:$0xff]
    %s2259 = scalar_lea.vmem [#allocation1], 16
    %v2260 = vld [vmem:[%s2259] sm:$0xff]
    %v2261 = vmul.f32 %v2260, %v2249
    %2262 = vadd.xlane.f32.xlu0 %v2261
    %v2263 = vpop.xlane.xlu0 %2262
    %v2264 = vsub.f32 %v2258, %v2263
    %v2265 = vmul.f32 %v2264, %v2256
    %vm2266 = vcmask 1047557
    %vm2267 = vmand %vm2247, %vm2266
    %v2268 = vsel %vm2267, %v2265, 0.0
    %v2269 = vadd.f32 %v2260, %v2268
    %s2270 = scalar_lea.vmem [#allocation1], 16
    %2271 = vst [vmem:[%s2270] sm:$0xff] %v2269
    %s2272 = scalar_lea.vmem [#allocation0], 24
    %v2273 = vld [vmem:[%s2272] sm:$0xff]
    %s2274 = scalar_lea.vmem [#allocation1], 24
    %v2275 = vld [vmem:[%s2274] sm:$0xff]
    %v2276 = vmul.f32 %v2275, %v2249
    %2277 = vadd.xlane.f32.xlu0 %v2276
    %v2278 = vpop.xlane.xlu0 %2277
    %v2279 = vsub.f32 %v2273, %v2278
    %v2280 = vmul.f32 %v2279, %v2256
    %v2281 = vsel %vm2247, %v2280, 0.0
    %v2282 = vadd.f32 %v2275, %v2281
    %s2283 = scalar_lea.vmem [#allocation1], 24
    %2284 = vst [vmem:[%s2283] sm:$0xff] %v2282
    %s2285 = scalar_lea.vmem [#allocation0], 32
    %v2286 = vld [vmem:[%s2285] sm:$0xff]
    %s2287 = scalar_lea.vmem [#allocation1], 32
    %v2288 = vld [vmem:[%s2287] sm:$0xff]
    %v2289 = vmul.f32 %v2288, %v2249
    %2290 = vadd.xlane.f32.xlu0 %v2289
    %v2291 = vpop.xlane.xlu0 %2290
    %v2292 = vsub.f32 %v2286, %v2291
    %v2293 = vmul.f32 %v2292, %v2256
    %v2294 = vsel %vm2247, %v2293, 0.0
    %v2295 = vadd.f32 %v2288, %v2294
    %s2296 = scalar_lea.vmem [#allocation1], 32
    %2297 = vst [vmem:[%s2296] sm:$0xff] %v2295
    %s2298 = scalar_lea.vmem [#allocation0], 40
    %v2299 = vld [vmem:[%s2298] sm:$0xff]
    %s2300 = scalar_lea.vmem [#allocation1], 40
    %v2301 = vld [vmem:[%s2300] sm:$0xff]
    %v2302 = vmul.f32 %v2301, %v2249
    %2303 = vadd.xlane.f32.xlu0 %v2302
    %v2304 = vpop.xlane.xlu0 %2303
    %v2305 = vsub.f32 %v2299, %v2304
    %v2306 = vmul.f32 %v2305, %v2256
    %v2307 = vsel %vm2247, %v2306, 0.0
    %v2308 = vadd.f32 %v2301, %v2307
    %s2309 = scalar_lea.vmem [#allocation1], 40
    %2310 = vst [vmem:[%s2309] sm:$0xff] %v2308
    %s2311 = scalar_lea.vmem [#allocation0], 48
    %v2312 = vld [vmem:[%s2311] sm:$0xff]
    %s2313 = scalar_lea.vmem [#allocation1], 48
    %v2314 = vld [vmem:[%s2313] sm:$0xff]
    %v2315 = vmul.f32 %v2314, %v2249
    %2316 = vadd.xlane.f32.xlu0 %v2315
    %v2317 = vpop.xlane.xlu0 %2316
    %v2318 = vsub.f32 %v2312, %v2317
    %v2319 = vmul.f32 %v2318, %v2256
    %v2320 = vsel %vm2247, %v2319, 0.0
    %v2321 = vadd.f32 %v2314, %v2320
    %s2322 = scalar_lea.vmem [#allocation1], 48
    %2323 = vst [vmem:[%s2322] sm:$0xff] %v2321
    %s2324 = scalar_lea.vmem [#allocation0], 56
    %v2325 = vld [vmem:[%s2324] sm:$0xff]
    %s2326 = scalar_lea.vmem [#allocation1], 56
    %v2327 = vld [vmem:[%s2326] sm:$0xff]
    %v2328 = vmul.f32 %v2327, %v2249
    %2329 = vadd.xlane.f32.xlu0 %v2328
    %v2330 = vpop.xlane.xlu0 %2329
    %v2331 = vsub.f32 %v2325, %v2330
    %v2332 = vmul.f32 %v2331, %v2256
    %v2333 = vsel %vm2247, %v2332, 0.0
    %v2334 = vadd.f32 %v2327, %v2333
    %s2335 = scalar_lea.vmem [#allocation1], 56
    %2336 = vst [vmem:[%s2335] sm:$0xff] %v2334
    %vm2337 = vcmask 187568
    %s2338 = scalar_lea.vmem [#allocation1], 22
    %v2339 = vld [vmem:[%s2338] ss:$0 sm:$0xff]
    %s2340 = scalar_lea.vmem [#allocation0], 22
    %v2341 = vld [vmem:[%s2340] ss:$0 sm:$0xff]
    %v2342 = vmul.f32 %v2339, %v2339
    %2343 = vadd.xlane.f32.xlu0 %v2342
    %v2344 = vpop.xlane.xlu0 %2343
    %v2345 = vsub.f32 %v2341, %v2344
    %v2346 = vrsqrt.pop %v2345
    %s2347 = scalar_lea.vmem [#allocation0], 16
    %v2348 = vld [vmem:[%s2347] sm:$0xff]
    %s2349 = scalar_lea.vmem [#allocation1], 16
    %v2350 = vld [vmem:[%s2349] sm:$0xff]
    %v2351 = vmul.f32 %v2350, %v2339
    %2352 = vadd.xlane.f32.xlu0 %v2351
    %v2353 = vpop.xlane.xlu0 %2352
    %v2354 = vsub.f32 %v2348, %v2353
    %v2355 = vmul.f32 %v2354, %v2346
    %vm2356 = vcmask 1047558
    %vm2357 = vmand %vm2337, %vm2356
    %v2358 = vsel %vm2357, %v2355, 0.0
    %v2359 = vadd.f32 %v2350, %v2358
    %s2360 = scalar_lea.vmem [#allocation1], 16
    %2361 = vst [vmem:[%s2360] sm:$0xff] %v2359
    %s2362 = scalar_lea.vmem [#allocation0], 24
    %v2363 = vld [vmem:[%s2362] sm:$0xff]
    %s2364 = scalar_lea.vmem [#allocation1], 24
    %v2365 = vld [vmem:[%s2364] sm:$0xff]
    %v2366 = vmul.f32 %v2365, %v2339
    %2367 = vadd.xlane.f32.xlu0 %v2366
    %v2368 = vpop.xlane.xlu0 %2367
    %v2369 = vsub.f32 %v2363, %v2368
    %v2370 = vmul.f32 %v2369, %v2346
    %v2371 = vsel %vm2337, %v2370, 0.0
    %v2372 = vadd.f32 %v2365, %v2371
    %s2373 = scalar_lea.vmem [#allocation1], 24
    %2374 = vst [vmem:[%s2373] sm:$0xff] %v2372
    %s2375 = scalar_lea.vmem [#allocation0], 32
    %v2376 = vld [vmem:[%s2375] sm:$0xff]
    %s2377 = scalar_lea.vmem [#allocation1], 32
    %v2378 = vld [vmem:[%s2377] sm:$0xff]
    %v2379 = vmul.f32 %v2378, %v2339
    %2380 = vadd.xlane.f32.xlu0 %v2379
    %v2381 = vpop.xlane.xlu0 %2380
    %v2382 = vsub.f32 %v2376, %v2381
    %v2383 = vmul.f32 %v2382, %v2346
    %v2384 = vsel %vm2337, %v2383, 0.0
    %v2385 = vadd.f32 %v2378, %v2384
    %s2386 = scalar_lea.vmem [#allocation1], 32
    %2387 = vst [vmem:[%s2386] sm:$0xff] %v2385
    %s2388 = scalar_lea.vmem [#allocation0], 40
    %v2389 = vld [vmem:[%s2388] sm:$0xff]
    %s2390 = scalar_lea.vmem [#allocation1], 40
    %v2391 = vld [vmem:[%s2390] sm:$0xff]
    %v2392 = vmul.f32 %v2391, %v2339
    %2393 = vadd.xlane.f32.xlu0 %v2392
    %v2394 = vpop.xlane.xlu0 %2393
    %v2395 = vsub.f32 %v2389, %v2394
    %v2396 = vmul.f32 %v2395, %v2346
    %v2397 = vsel %vm2337, %v2396, 0.0
    %v2398 = vadd.f32 %v2391, %v2397
    %s2399 = scalar_lea.vmem [#allocation1], 40
    %2400 = vst [vmem:[%s2399] sm:$0xff] %v2398
    %s2401 = scalar_lea.vmem [#allocation0], 48
    %v2402 = vld [vmem:[%s2401] sm:$0xff]
    %s2403 = scalar_lea.vmem [#allocation1], 48
    %v2404 = vld [vmem:[%s2403] sm:$0xff]
    %v2405 = vmul.f32 %v2404, %v2339
    %2406 = vadd.xlane.f32.xlu0 %v2405
    %v2407 = vpop.xlane.xlu0 %2406
    %v2408 = vsub.f32 %v2402, %v2407
    %v2409 = vmul.f32 %v2408, %v2346
    %v2410 = vsel %vm2337, %v2409, 0.0
    %v2411 = vadd.f32 %v2404, %v2410
    %s2412 = scalar_lea.vmem [#allocation1], 48
    %2413 = vst [vmem:[%s2412] sm:$0xff] %v2411
    %s2414 = scalar_lea.vmem [#allocation0], 56
    %v2415 = vld [vmem:[%s2414] sm:$0xff]
    %s2416 = scalar_lea.vmem [#allocation1], 56
    %v2417 = vld [vmem:[%s2416] sm:$0xff]
    %v2418 = vmul.f32 %v2417, %v2339
    %2419 = vadd.xlane.f32.xlu0 %v2418
    %v2420 = vpop.xlane.xlu0 %2419
    %v2421 = vsub.f32 %v2415, %v2420
    %v2422 = vmul.f32 %v2421, %v2346
    %v2423 = vsel %vm2337, %v2422, 0.0
    %v2424 = vadd.f32 %v2417, %v2423
    %s2425 = scalar_lea.vmem [#allocation1], 56
    %2426 = vst [vmem:[%s2425] sm:$0xff] %v2424
    %vm2427 = vcmask 195768
    %s2428 = scalar_lea.vmem [#allocation1], 23
    %v2429 = vld [vmem:[%s2428] ss:$0 sm:$0xff]
    %s2430 = scalar_lea.vmem [#allocation0], 23
    %v2431 = vld [vmem:[%s2430] ss:$0 sm:$0xff]
    %v2432 = vmul.f32 %v2429, %v2429
    %2433 = vadd.xlane.f32.xlu0 %v2432
    %v2434 = vpop.xlane.xlu0 %2433
    %v2435 = vsub.f32 %v2431, %v2434
    %v2436 = vrsqrt.pop %v2435
    %s2437 = scalar_lea.vmem [#allocation0], 16
    %v2438 = vld [vmem:[%s2437] sm:$0xff]
    %s2439 = scalar_lea.vmem [#allocation1], 16
    %v2440 = vld [vmem:[%s2439] sm:$0xff]
    %v2441 = vmul.f32 %v2440, %v2429
    %2442 = vadd.xlane.f32.xlu0 %v2441
    %v2443 = vpop.xlane.xlu0 %2442
    %v2444 = vsub.f32 %v2438, %v2443
    %v2445 = vmul.f32 %v2444, %v2436
    %vm2446 = vcmask 1047559
    %vm2447 = vmand %vm2427, %vm2446
    %v2448 = vsel %vm2447, %v2445, 0.0
    %v2449 = vadd.f32 %v2440, %v2448
    %s2450 = scalar_lea.vmem [#allocation1], 16
    %2451 = vst [vmem:[%s2450] sm:$0xff] %v2449
    %s2452 = scalar_lea.vmem [#allocation0], 24
    %v2453 = vld [vmem:[%s2452] sm:$0xff]
    %s2454 = scalar_lea.vmem [#allocation1], 24
    %v2455 = vld [vmem:[%s2454] sm:$0xff]
    %v2456 = vmul.f32 %v2455, %v2429
    %2457 = vadd.xlane.f32.xlu0 %v2456
    %v2458 = vpop.xlane.xlu0 %2457
    %v2459 = vsub.f32 %v2453, %v2458
    %v2460 = vmul.f32 %v2459, %v2436
    %v2461 = vsel %vm2427, %v2460, 0.0
    %v2462 = vadd.f32 %v2455, %v2461
    %s2463 = scalar_lea.vmem [#allocation1], 24
    %2464 = vst [vmem:[%s2463] sm:$0xff] %v2462
    %s2465 = scalar_lea.vmem [#allocation0], 32
    %v2466 = vld [vmem:[%s2465] sm:$0xff]
    %s2467 = scalar_lea.vmem [#allocation1], 32
    %v2468 = vld [vmem:[%s2467] sm:$0xff]
    %v2469 = vmul.f32 %v2468, %v2429
    %2470 = vadd.xlane.f32.xlu0 %v2469
    %v2471 = vpop.xlane.xlu0 %2470
    %v2472 = vsub.f32 %v2466, %v2471
    %v2473 = vmul.f32 %v2472, %v2436
    %v2474 = vsel %vm2427, %v2473, 0.0
    %v2475 = vadd.f32 %v2468, %v2474
    %s2476 = scalar_lea.vmem [#allocation1], 32
    %2477 = vst [vmem:[%s2476] sm:$0xff] %v2475
    %s2478 = scalar_lea.vmem [#allocation0], 40
    %v2479 = vld [vmem:[%s2478] sm:$0xff]
    %s2480 = scalar_lea.vmem [#allocation1], 40
    %v2481 = vld [vmem:[%s2480] sm:$0xff]
    %v2482 = vmul.f32 %v2481, %v2429
    %2483 = vadd.xlane.f32.xlu0 %v2482
    %v2484 = vpop.xlane.xlu0 %2483
    %v2485 = vsub.f32 %v2479, %v2484
    %v2486 = vmul.f32 %v2485, %v2436
    %v2487 = vsel %vm2427, %v2486, 0.0
    %v2488 = vadd.f32 %v2481, %v2487
    %s2489 = scalar_lea.vmem [#allocation1], 40
    %2490 = vst [vmem:[%s2489] sm:$0xff] %v2488
    %s2491 = scalar_lea.vmem [#allocation0], 48
    %v2492 = vld [vmem:[%s2491] sm:$0xff]
    %s2493 = scalar_lea.vmem [#allocation1], 48
    %v2494 = vld [vmem:[%s2493] sm:$0xff]
    %v2495 = vmul.f32 %v2494, %v2429
    %2496 = vadd.xlane.f32.xlu0 %v2495
    %v2497 = vpop.xlane.xlu0 %2496
    %v2498 = vsub.f32 %v2492, %v2497
    %v2499 = vmul.f32 %v2498, %v2436
    %v2500 = vsel %vm2427, %v2499, 0.0
    %v2501 = vadd.f32 %v2494, %v2500
    %s2502 = scalar_lea.vmem [#allocation1], 48
    %2503 = vst [vmem:[%s2502] sm:$0xff] %v2501
    %s2504 = scalar_lea.vmem [#allocation0], 56
    %v2505 = vld [vmem:[%s2504] sm:$0xff]
    %s2506 = scalar_lea.vmem [#allocation1], 56
    %v2507 = vld [vmem:[%s2506] sm:$0xff]
    %v2508 = vmul.f32 %v2507, %v2429
    %2509 = vadd.xlane.f32.xlu0 %v2508
    %v2510 = vpop.xlane.xlu0 %2509
    %v2511 = vsub.f32 %v2505, %v2510
    %v2512 = vmul.f32 %v2511, %v2436
    %v2513 = vsel %vm2427, %v2512, 0.0
    %v2514 = vadd.f32 %v2507, %v2513
    %s2515 = scalar_lea.vmem [#allocation1], 56
    %2516 = vst [vmem:[%s2515] sm:$0xff] %v2514
    %vm2517 = vcmask 203968
    %s2518 = scalar_lea.vmem [#allocation1], 24
    %v2519 = vld [vmem:[%s2518] ss:$0 sm:$0xff]
    %s2520 = scalar_lea.vmem [#allocation0], 24
    %v2521 = vld [vmem:[%s2520] ss:$0 sm:$0xff]
    %v2522 = vmul.f32 %v2519, %v2519
    %2523 = vadd.xlane.f32.xlu0 %v2522
    %v2524 = vpop.xlane.xlu0 %2523
    %v2525 = vsub.f32 %v2521, %v2524
    %v2526 = vrsqrt.pop %v2525
    %s2527 = scalar_lea.vmem [#allocation0], 24
    %v2528 = vld [vmem:[%s2527] sm:$0xff]
    %s2529 = scalar_lea.vmem [#allocation1], 24
    %v2530 = vld [vmem:[%s2529] sm:$0xff]
    %v2531 = vmul.f32 %v2530, %v2519
    %2532 = vadd.xlane.f32.xlu0 %v2531
    %v2533 = vpop.xlane.xlu0 %2532
    %v2534 = vsub.f32 %v2528, %v2533
    %v2535 = vmul.f32 %v2534, %v2526
    %v2536 = vsel %vm2517, %v2535, 0.0
    %v2537 = vadd.f32 %v2530, %v2536
    %s2538 = scalar_lea.vmem [#allocation1], 24
    %2539 = vst [vmem:[%s2538] sm:$0xff] %v2537
    %s2540 = scalar_lea.vmem [#allocation0], 32
    %v2541 = vld [vmem:[%s2540] sm:$0xff]
    %s2542 = scalar_lea.vmem [#allocation1], 32
    %v2543 = vld [vmem:[%s2542] sm:$0xff]
    %v2544 = vmul.f32 %v2543, %v2519
    %2545 = vadd.xlane.f32.xlu0 %v2544
    %v2546 = vpop.xlane.xlu0 %2545
    %v2547 = vsub.f32 %v2541, %v2546
    %v2548 = vmul.f32 %v2547, %v2526
    %v2549 = vsel %vm2517, %v2548, 0.0
    %v2550 = vadd.f32 %v2543, %v2549
    %s2551 = scalar_lea.vmem [#allocation1], 32
    %2552 = vst [vmem:[%s2551] sm:$0xff] %v2550
    %s2553 = scalar_lea.vmem [#allocation0], 40
    %v2554 = vld [vmem:[%s2553] sm:$0xff]
    %s2555 = scalar_lea.vmem [#allocation1], 40
    %v2556 = vld [vmem:[%s2555] sm:$0xff]
    %v2557 = vmul.f32 %v2556, %v2519
    %2558 = vadd.xlane.f32.xlu0 %v2557
    %v2559 = vpop.xlane.xlu0 %2558
    %v2560 = vsub.f32 %v2554, %v2559
    %v2561 = vmul.f32 %v2560, %v2526
    %v2562 = vsel %vm2517, %v2561, 0.0
    %v2563 = vadd.f32 %v2556, %v2562
    %s2564 = scalar_lea.vmem [#allocation1], 40
    %2565 = vst [vmem:[%s2564] sm:$0xff] %v2563
    %s2566 = scalar_lea.vmem [#allocation0], 48
    %v2567 = vld [vmem:[%s2566] sm:$0xff]
    %s2568 = scalar_lea.vmem [#allocation1], 48
    %v2569 = vld [vmem:[%s2568] sm:$0xff]
    %v2570 = vmul.f32 %v2569, %v2519
    %2571 = vadd.xlane.f32.xlu0 %v2570
    %v2572 = vpop.xlane.xlu0 %2571
    %v2573 = vsub.f32 %v2567, %v2572
    %v2574 = vmul.f32 %v2573, %v2526
    %v2575 = vsel %vm2517, %v2574, 0.0
    %v2576 = vadd.f32 %v2569, %v2575
    %s2577 = scalar_lea.vmem [#allocation1], 48
    %2578 = vst [vmem:[%s2577] sm:$0xff] %v2576
    %s2579 = scalar_lea.vmem [#allocation0], 56
    %v2580 = vld [vmem:[%s2579] sm:$0xff]
    %s2581 = scalar_lea.vmem [#allocation1], 56
    %v2582 = vld [vmem:[%s2581] sm:$0xff]
    %v2583 = vmul.f32 %v2582, %v2519
    %2584 = vadd.xlane.f32.xlu0 %v2583
    %v2585 = vpop.xlane.xlu0 %2584
    %v2586 = vsub.f32 %v2580, %v2585
    %v2587 = vmul.f32 %v2586, %v2526
    %v2588 = vsel %vm2517, %v2587, 0.0
    %v2589 = vadd.f32 %v2582, %v2588
    %s2590 = scalar_lea.vmem [#allocation1], 56
    %2591 = vst [vmem:[%s2590] sm:$0xff] %v2589
    %vm2592 = vcmask 212168
    %s2593 = scalar_lea.vmem [#allocation1], 25
    %v2594 = vld [vmem:[%s2593] ss:$0 sm:$0xff]
    %s2595 = scalar_lea.vmem [#allocation0], 25
    %v2596 = vld [vmem:[%s2595] ss:$0 sm:$0xff]
    %v2597 = vmul.f32 %v2594, %v2594
    %2598 = vadd.xlane.f32.xlu0 %v2597
    %v2599 = vpop.xlane.xlu0 %2598
    %v2600 = vsub.f32 %v2596, %v2599
    %v2601 = vrsqrt.pop %v2600
    %s2602 = scalar_lea.vmem [#allocation0], 24
    %v2603 = vld [vmem:[%s2602] sm:$0xff]
    %s2604 = scalar_lea.vmem [#allocation1], 24
    %v2605 = vld [vmem:[%s2604] sm:$0xff]
    %v2606 = vmul.f32 %v2605, %v2594
    %2607 = vadd.xlane.f32.xlu0 %v2606
    %v2608 = vpop.xlane.xlu0 %2607
    %v2609 = vsub.f32 %v2603, %v2608
    %v2610 = vmul.f32 %v2609, %v2601
    %vm2611 = vcmask 1047553
    %vm2612 = vmand %vm2592, %vm2611
    %v2613 = vsel %vm2612, %v2610, 0.0
    %v2614 = vadd.f32 %v2605, %v2613
    %s2615 = scalar_lea.vmem [#allocation1], 24
    %2616 = vst [vmem:[%s2615] sm:$0xff] %v2614
    %s2617 = scalar_lea.vmem [#allocation0], 32
    %v2618 = vld [vmem:[%s2617] sm:$0xff]
    %s2619 = scalar_lea.vmem [#allocation1], 32
    %v2620 = vld [vmem:[%s2619] sm:$0xff]
    %v2621 = vmul.f32 %v2620, %v2594
    %2622 = vadd.xlane.f32.xlu0 %v2621
    %v2623 = vpop.xlane.xlu0 %2622
    %v2624 = vsub.f32 %v2618, %v2623
    %v2625 = vmul.f32 %v2624, %v2601
    %v2626 = vsel %vm2592, %v2625, 0.0
    %v2627 = vadd.f32 %v2620, %v2626
    %s2628 = scalar_lea.vmem [#allocation1], 32
    %2629 = vst [vmem:[%s2628] sm:$0xff] %v2627
    %s2630 = scalar_lea.vmem [#allocation0], 40
    %v2631 = vld [vmem:[%s2630] sm:$0xff]
    %s2632 = scalar_lea.vmem [#allocation1], 40
    %v2633 = vld [vmem:[%s2632] sm:$0xff]
    %v2634 = vmul.f32 %v2633, %v2594
    %2635 = vadd.xlane.f32.xlu0 %v2634
    %v2636 = vpop.xlane.xlu0 %2635
    %v2637 = vsub.f32 %v2631, %v2636
    %v2638 = vmul.f32 %v2637, %v2601
    %v2639 = vsel %vm2592, %v2638, 0.0
    %v2640 = vadd.f32 %v2633, %v2639
    %s2641 = scalar_lea.vmem [#allocation1], 40
    %2642 = vst [vmem:[%s2641] sm:$0xff] %v2640
    %s2643 = scalar_lea.vmem [#allocation0], 48
    %v2644 = vld [vmem:[%s2643] sm:$0xff]
    %s2645 = scalar_lea.vmem [#allocation1], 48
    %v2646 = vld [vmem:[%s2645] sm:$0xff]
    %v2647 = vmul.f32 %v2646, %v2594
    %2648 = vadd.xlane.f32.xlu0 %v2647
    %v2649 = vpop.xlane.xlu0 %2648
    %v2650 = vsub.f32 %v2644, %v2649
    %v2651 = vmul.f32 %v2650, %v2601
    %v2652 = vsel %vm2592, %v2651, 0.0
    %v2653 = vadd.f32 %v2646, %v2652
    %s2654 = scalar_lea.vmem [#allocation1], 48
    %2655 = vst [vmem:[%s2654] sm:$0xff] %v2653
    %s2656 = scalar_lea.vmem [#allocation0], 56
    %v2657 = vld [vmem:[%s2656] sm:$0xff]
    %s2658 = scalar_lea.vmem [#allocation1], 56
    %v2659 = vld [vmem:[%s2658] sm:$0xff]
    %v2660 = vmul.f32 %v2659, %v2594
    %2661 = vadd.xlane.f32.xlu0 %v2660
    %v2662 = vpop.xlane.xlu0 %2661
    %v2663 = vsub.f32 %v2657, %v2662
    %v2664 = vmul.f32 %v2663, %v2601
    %v2665 = vsel %vm2592, %v2664, 0.0
    %v2666 = vadd.f32 %v2659, %v2665
    %s2667 = scalar_lea.vmem [#allocation1], 56
    %2668 = vst [vmem:[%s2667] sm:$0xff] %v2666
    %vm2669 = vcmask 220368
    %s2670 = scalar_lea.vmem [#allocation1], 26
    %v2671 = vld [vmem:[%s2670] ss:$0 sm:$0xff]
    %s2672 = scalar_lea.vmem [#allocation0], 26
    %v2673 = vld [vmem:[%s2672] ss:$0 sm:$0xff]
    %v2674 = vmul.f32 %v2671, %v2671
    %2675 = vadd.xlane.f32.xlu0 %v2674
    %v2676 = vpop.xlane.xlu0 %2675
    %v2677 = vsub.f32 %v2673, %v2676
    %v2678 = vrsqrt.pop %v2677
    %s2679 = scalar_lea.vmem [#allocation0], 24
    %v2680 = vld [vmem:[%s2679] sm:$0xff]
    %s2681 = scalar_lea.vmem [#allocation1], 24
    %v2682 = vld [vmem:[%s2681] sm:$0xff]
    %v2683 = vmul.f32 %v2682, %v2671
    %2684 = vadd.xlane.f32.xlu0 %v2683
    %v2685 = vpop.xlane.xlu0 %2684
    %v2686 = vsub.f32 %v2680, %v2685
    %v2687 = vmul.f32 %v2686, %v2678
    %vm2688 = vcmask 1047554
    %vm2689 = vmand %vm2669, %vm2688
    %v2690 = vsel %vm2689, %v2687, 0.0
    %v2691 = vadd.f32 %v2682, %v2690
    %s2692 = scalar_lea.vmem [#allocation1], 24
    %2693 = vst [vmem:[%s2692] sm:$0xff] %v2691
    %s2694 = scalar_lea.vmem [#allocation0], 32
    %v2695 = vld [vmem:[%s2694] sm:$0xff]
    %s2696 = scalar_lea.vmem [#allocation1], 32
    %v2697 = vld [vmem:[%s2696] sm:$0xff]
    %v2698 = vmul.f32 %v2697, %v2671
    %2699 = vadd.xlane.f32.xlu0 %v2698
    %v2700 = vpop.xlane.xlu0 %2699
    %v2701 = vsub.f32 %v2695, %v2700
    %v2702 = vmul.f32 %v2701, %v2678
    %v2703 = vsel %vm2669, %v2702, 0.0
    %v2704 = vadd.f32 %v2697, %v2703
    %s2705 = scalar_lea.vmem [#allocation1], 32
    %2706 = vst [vmem:[%s2705] sm:$0xff] %v2704
    %s2707 = scalar_lea.vmem [#allocation0], 40
    %v2708 = vld [vmem:[%s2707] sm:$0xff]
    %s2709 = scalar_lea.vmem [#allocation1], 40
    %v2710 = vld [vmem:[%s2709] sm:$0xff]
    %v2711 = vmul.f32 %v2710, %v2671
    %2712 = vadd.xlane.f32.xlu0 %v2711
    %v2713 = vpop.xlane.xlu0 %2712
    %v2714 = vsub.f32 %v2708, %v2713
    %v2715 = vmul.f32 %v2714, %v2678
    %v2716 = vsel %vm2669, %v2715, 0.0
    %v2717 = vadd.f32 %v2710, %v2716
    %s2718 = scalar_lea.vmem [#allocation1], 40
    %2719 = vst [vmem:[%s2718] sm:$0xff] %v2717
    %s2720 = scalar_lea.vmem [#allocation0], 48
    %v2721 = vld [vmem:[%s2720] sm:$0xff]
    %s2722 = scalar_lea.vmem [#allocation1], 48
    %v2723 = vld [vmem:[%s2722] sm:$0xff]
    %v2724 = vmul.f32 %v2723, %v2671
    %2725 = vadd.xlane.f32.xlu0 %v2724
    %v2726 = vpop.xlane.xlu0 %2725
    %v2727 = vsub.f32 %v2721, %v2726
    %v2728 = vmul.f32 %v2727, %v2678
    %v2729 = vsel %vm2669, %v2728, 0.0
    %v2730 = vadd.f32 %v2723, %v2729
    %s2731 = scalar_lea.vmem [#allocation1], 48
    %2732 = vst [vmem:[%s2731] sm:$0xff] %v2730
    %s2733 = scalar_lea.vmem [#allocation0], 56
    %v2734 = vld [vmem:[%s2733] sm:$0xff]
    %s2735 = scalar_lea.vmem [#allocation1], 56
    %v2736 = vld [vmem:[%s2735] sm:$0xff]
    %v2737 = vmul.f32 %v2736, %v2671
    %2738 = vadd.xlane.f32.xlu0 %v2737
    %v2739 = vpop.xlane.xlu0 %2738
    %v2740 = vsub.f32 %v2734, %v2739
    %v2741 = vmul.f32 %v2740, %v2678
    %v2742 = vsel %vm2669, %v2741, 0.0
    %v2743 = vadd.f32 %v2736, %v2742
    %s2744 = scalar_lea.vmem [#allocation1], 56
    %2745 = vst [vmem:[%s2744] sm:$0xff] %v2743
    %vm2746 = vcmask 228568
    %s2747 = scalar_lea.vmem [#allocation1], 27
    %v2748 = vld [vmem:[%s2747] ss:$0 sm:$0xff]
    %s2749 = scalar_lea.vmem [#allocation0], 27
    %v2750 = vld [vmem:[%s2749] ss:$0 sm:$0xff]
    %v2751 = vmul.f32 %v2748, %v2748
    %2752 = vadd.xlane.f32.xlu0 %v2751
    %v2753 = vpop.xlane.xlu0 %2752
    %v2754 = vsub.f32 %v2750, %v2753
    %v2755 = vrsqrt.pop %v2754
    %s2756 = scalar_lea.vmem [#allocation0], 24
    %v2757 = vld [vmem:[%s2756] sm:$0xff]
    %s2758 = scalar_lea.vmem [#allocation1], 24
    %v2759 = vld [vmem:[%s2758] sm:$0xff]
    %v2760 = vmul.f32 %v2759, %v2748
    %2761 = vadd.xlane.f32.xlu0 %v2760
    %v2762 = vpop.xlane.xlu0 %2761
    %v2763 = vsub.f32 %v2757, %v2762
    %v2764 = vmul.f32 %v2763, %v2755
    %vm2765 = vcmask 1047555
    %vm2766 = vmand %vm2746, %vm2765
    %v2767 = vsel %vm2766, %v2764, 0.0
    %v2768 = vadd.f32 %v2759, %v2767
    %s2769 = scalar_lea.vmem [#allocation1], 24
    %2770 = vst [vmem:[%s2769] sm:$0xff] %v2768
    %s2771 = scalar_lea.vmem [#allocation0], 32
    %v2772 = vld [vmem:[%s2771] sm:$0xff]
    %s2773 = scalar_lea.vmem [#allocation1], 32
    %v2774 = vld [vmem:[%s2773] sm:$0xff]
    %v2775 = vmul.f32 %v2774, %v2748
    %2776 = vadd.xlane.f32.xlu0 %v2775
    %v2777 = vpop.xlane.xlu0 %2776
    %v2778 = vsub.f32 %v2772, %v2777
    %v2779 = vmul.f32 %v2778, %v2755
    %v2780 = vsel %vm2746, %v2779, 0.0
    %v2781 = vadd.f32 %v2774, %v2780
    %s2782 = scalar_lea.vmem [#allocation1], 32
    %2783 = vst [vmem:[%s2782] sm:$0xff] %v2781
    %s2784 = scalar_lea.vmem [#allocation0], 40
    %v2785 = vld [vmem:[%s2784] sm:$0xff]
    %s2786 = scalar_lea.vmem [#allocation1], 40
    %v2787 = vld [vmem:[%s2786] sm:$0xff]
    %v2788 = vmul.f32 %v2787, %v2748
    %2789 = vadd.xlane.f32.xlu0 %v2788
    %v2790 = vpop.xlane.xlu0 %2789
    %v2791 = vsub.f32 %v2785, %v2790
    %v2792 = vmul.f32 %v2791, %v2755
    %v2793 = vsel %vm2746, %v2792, 0.0
    %v2794 = vadd.f32 %v2787, %v2793
    %s2795 = scalar_lea.vmem [#allocation1], 40
    %2796 = vst [vmem:[%s2795] sm:$0xff] %v2794
    %s2797 = scalar_lea.vmem [#allocation0], 48
    %v2798 = vld [vmem:[%s2797] sm:$0xff]
    %s2799 = scalar_lea.vmem [#allocation1], 48
    %v2800 = vld [vmem:[%s2799] sm:$0xff]
    %v2801 = vmul.f32 %v2800, %v2748
    %2802 = vadd.xlane.f32.xlu0 %v2801
    %v2803 = vpop.xlane.xlu0 %2802
    %v2804 = vsub.f32 %v2798, %v2803
    %v2805 = vmul.f32 %v2804, %v2755
    %v2806 = vsel %vm2746, %v2805, 0.0
    %v2807 = vadd.f32 %v2800, %v2806
    %s2808 = scalar_lea.vmem [#allocation1], 48
    %2809 = vst [vmem:[%s2808] sm:$0xff] %v2807
    %s2810 = scalar_lea.vmem [#allocation0], 56
    %v2811 = vld [vmem:[%s2810] sm:$0xff]
    %s2812 = scalar_lea.vmem [#allocation1], 56
    %v2813 = vld [vmem:[%s2812] sm:$0xff]
    %v2814 = vmul.f32 %v2813, %v2748
    %2815 = vadd.xlane.f32.xlu0 %v2814
    %v2816 = vpop.xlane.xlu0 %2815
    %v2817 = vsub.f32 %v2811, %v2816
    %v2818 = vmul.f32 %v2817, %v2755
    %v2819 = vsel %vm2746, %v2818, 0.0
    %v2820 = vadd.f32 %v2813, %v2819
    %s2821 = scalar_lea.vmem [#allocation1], 56
    %2822 = vst [vmem:[%s2821] sm:$0xff] %v2820
    %vm2823 = vcmask 236768
    %s2824 = scalar_lea.vmem [#allocation1], 28
    %v2825 = vld [vmem:[%s2824] ss:$0 sm:$0xff]
    %s2826 = scalar_lea.vmem [#allocation0], 28
    %v2827 = vld [vmem:[%s2826] ss:$0 sm:$0xff]
    %v2828 = vmul.f32 %v2825, %v2825
    %2829 = vadd.xlane.f32.xlu0 %v2828
    %v2830 = vpop.xlane.xlu0 %2829
    %v2831 = vsub.f32 %v2827, %v2830
    %v2832 = vrsqrt.pop %v2831
    %s2833 = scalar_lea.vmem [#allocation0], 24
    %v2834 = vld [vmem:[%s2833] sm:$0xff]
    %s2835 = scalar_lea.vmem [#allocation1], 24
    %v2836 = vld [vmem:[%s2835] sm:$0xff]
    %v2837 = vmul.f32 %v2836, %v2825
    %2838 = vadd.xlane.f32.xlu0 %v2837
    %v2839 = vpop.xlane.xlu0 %2838
    %v2840 = vsub.f32 %v2834, %v2839
    %v2841 = vmul.f32 %v2840, %v2832
    %vm2842 = vcmask 1047556
    %vm2843 = vmand %vm2823, %vm2842
    %v2844 = vsel %vm2843, %v2841, 0.0
    %v2845 = vadd.f32 %v2836, %v2844
    %s2846 = scalar_lea.vmem [#allocation1], 24
    %2847 = vst [vmem:[%s2846] sm:$0xff] %v2845
    %s2848 = scalar_lea.vmem [#allocation0], 32
    %v2849 = vld [vmem:[%s2848] sm:$0xff]
    %s2850 = scalar_lea.vmem [#allocation1], 32
    %v2851 = vld [vmem:[%s2850] sm:$0xff]
    %v2852 = vmul.f32 %v2851, %v2825
    %2853 = vadd.xlane.f32.xlu0 %v2852
    %v2854 = vpop.xlane.xlu0 %2853
    %v2855 = vsub.f32 %v2849, %v2854
    %v2856 = vmul.f32 %v2855, %v2832
    %v2857 = vsel %vm2823, %v2856, 0.0
    %v2858 = vadd.f32 %v2851, %v2857
    %s2859 = scalar_lea.vmem [#allocation1], 32
    %2860 = vst [vmem:[%s2859] sm:$0xff] %v2858
    %s2861 = scalar_lea.vmem [#allocation0], 40
    %v2862 = vld [vmem:[%s2861] sm:$0xff]
    %s2863 = scalar_lea.vmem [#allocation1], 40
    %v2864 = vld [vmem:[%s2863] sm:$0xff]
    %v2865 = vmul.f32 %v2864, %v2825
    %2866 = vadd.xlane.f32.xlu0 %v2865
    %v2867 = vpop.xlane.xlu0 %2866
    %v2868 = vsub.f32 %v2862, %v2867
    %v2869 = vmul.f32 %v2868, %v2832
    %v2870 = vsel %vm2823, %v2869, 0.0
    %v2871 = vadd.f32 %v2864, %v2870
    %s2872 = scalar_lea.vmem [#allocation1], 40
    %2873 = vst [vmem:[%s2872] sm:$0xff] %v2871
    %s2874 = scalar_lea.vmem [#allocation0], 48
    %v2875 = vld [vmem:[%s2874] sm:$0xff]
    %s2876 = scalar_lea.vmem [#allocation1], 48
    %v2877 = vld [vmem:[%s2876] sm:$0xff]
    %v2878 = vmul.f32 %v2877, %v2825
    %2879 = vadd.xlane.f32.xlu0 %v2878
    %v2880 = vpop.xlane.xlu0 %2879
    %v2881 = vsub.f32 %v2875, %v2880
    %v2882 = vmul.f32 %v2881, %v2832
    %v2883 = vsel %vm2823, %v2882, 0.0
    %v2884 = vadd.f32 %v2877, %v2883
    %s2885 = scalar_lea.vmem [#allocation1], 48
    %2886 = vst [vmem:[%s2885] sm:$0xff] %v2884
    %s2887 = scalar_lea.vmem [#allocation0], 56
    %v2888 = vld [vmem:[%s2887] sm:$0xff]
    %s2889 = scalar_lea.vmem [#allocation1], 56
    %v2890 = vld [vmem:[%s2889] sm:$0xff]
    %v2891 = vmul.f32 %v2890, %v2825
    %2892 = vadd.xlane.f32.xlu0 %v2891
    %v2893 = vpop.xlane.xlu0 %2892
    %v2894 = vsub.f32 %v2888, %v2893
    %v2895 = vmul.f32 %v2894, %v2832
    %v2896 = vsel %vm2823, %v2895, 0.0
    %v2897 = vadd.f32 %v2890, %v2896
    %s2898 = scalar_lea.vmem [#allocation1], 56
    %2899 = vst [vmem:[%s2898] sm:$0xff] %v2897
    %vm2900 = vcmask 244968
    %s2901 = scalar_lea.vmem [#allocation1], 29
    %v2902 = vld [vmem:[%s2901] ss:$0 sm:$0xff]
    %s2903 = scalar_lea.vmem [#allocation0], 29
    %v2904 = vld [vmem:[%s2903] ss:$0 sm:$0xff]
    %v2905 = vmul.f32 %v2902, %v2902
    %2906 = vadd.xlane.f32.xlu0 %v2905
    %v2907 = vpop.xlane.xlu0 %2906
    %v2908 = vsub.f32 %v2904, %v2907
    %v2909 = vrsqrt.pop %v2908
    %s2910 = scalar_lea.vmem [#allocation0], 24
    %v2911 = vld [vmem:[%s2910] sm:$0xff]
    %s2912 = scalar_lea.vmem [#allocation1], 24
    %v2913 = vld [vmem:[%s2912] sm:$0xff]
    %v2914 = vmul.f32 %v2913, %v2902
    %2915 = vadd.xlane.f32.xlu0 %v2914
    %v2916 = vpop.xlane.xlu0 %2915
    %v2917 = vsub.f32 %v2911, %v2916
    %v2918 = vmul.f32 %v2917, %v2909
    %vm2919 = vcmask 1047557
    %vm2920 = vmand %vm2900, %vm2919
    %v2921 = vsel %vm2920, %v2918, 0.0
    %v2922 = vadd.f32 %v2913, %v2921
    %s2923 = scalar_lea.vmem [#allocation1], 24
    %2924 = vst [vmem:[%s2923] sm:$0xff] %v2922
    %s2925 = scalar_lea.vmem [#allocation0], 32
    %v2926 = vld [vmem:[%s2925] sm:$0xff]
    %s2927 = scalar_lea.vmem [#allocation1], 32
    %v2928 = vld [vmem:[%s2927] sm:$0xff]
    %v2929 = vmul.f32 %v2928, %v2902
    %2930 = vadd.xlane.f32.xlu0 %v2929
    %v2931 = vpop.xlane.xlu0 %2930
    %v2932 = vsub.f32 %v2926, %v2931
    %v2933 = vmul.f32 %v2932, %v2909
    %v2934 = vsel %vm2900, %v2933, 0.0
    %v2935 = vadd.f32 %v2928, %v2934
    %s2936 = scalar_lea.vmem [#allocation1], 32
    %2937 = vst [vmem:[%s2936] sm:$0xff] %v2935
    %s2938 = scalar_lea.vmem [#allocation0], 40
    %v2939 = vld [vmem:[%s2938] sm:$0xff]
    %s2940 = scalar_lea.vmem [#allocation1], 40
    %v2941 = vld [vmem:[%s2940] sm:$0xff]
    %v2942 = vmul.f32 %v2941, %v2902
    %2943 = vadd.xlane.f32.xlu0 %v2942
    %v2944 = vpop.xlane.xlu0 %2943
    %v2945 = vsub.f32 %v2939, %v2944
    %v2946 = vmul.f32 %v2945, %v2909
    %v2947 = vsel %vm2900, %v2946, 0.0
    %v2948 = vadd.f32 %v2941, %v2947
    %s2949 = scalar_lea.vmem [#allocation1], 40
    %2950 = vst [vmem:[%s2949] sm:$0xff] %v2948
    %s2951 = scalar_lea.vmem [#allocation0], 48
    %v2952 = vld [vmem:[%s2951] sm:$0xff]
    %s2953 = scalar_lea.vmem [#allocation1], 48
    %v2954 = vld [vmem:[%s2953] sm:$0xff]
    %v2955 = vmul.f32 %v2954, %v2902
    %2956 = vadd.xlane.f32.xlu0 %v2955
    %v2957 = vpop.xlane.xlu0 %2956
    %v2958 = vsub.f32 %v2952, %v2957
    %v2959 = vmul.f32 %v2958, %v2909
    %v2960 = vsel %vm2900, %v2959, 0.0
    %v2961 = vadd.f32 %v2954, %v2960
    %s2962 = scalar_lea.vmem [#allocation1], 48
    %2963 = vst [vmem:[%s2962] sm:$0xff] %v2961
    %s2964 = scalar_lea.vmem [#allocation0], 56
    %v2965 = vld [vmem:[%s2964] sm:$0xff]
    %s2966 = scalar_lea.vmem [#allocation1], 56
    %v2967 = vld [vmem:[%s2966] sm:$0xff]
    %v2968 = vmul.f32 %v2967, %v2902
    %2969 = vadd.xlane.f32.xlu0 %v2968
    %v2970 = vpop.xlane.xlu0 %2969
    %v2971 = vsub.f32 %v2965, %v2970
    %v2972 = vmul.f32 %v2971, %v2909
    %v2973 = vsel %vm2900, %v2972, 0.0
    %v2974 = vadd.f32 %v2967, %v2973
    %s2975 = scalar_lea.vmem [#allocation1], 56
    %2976 = vst [vmem:[%s2975] sm:$0xff] %v2974
    %vm2977 = vcmask 253168
    %s2978 = scalar_lea.vmem [#allocation1], 30
    %v2979 = vld [vmem:[%s2978] ss:$0 sm:$0xff]
    %s2980 = scalar_lea.vmem [#allocation0], 30
    %v2981 = vld [vmem:[%s2980] ss:$0 sm:$0xff]
    %v2982 = vmul.f32 %v2979, %v2979
    %2983 = vadd.xlane.f32.xlu0 %v2982
    %v2984 = vpop.xlane.xlu0 %2983
    %v2985 = vsub.f32 %v2981, %v2984
    %v2986 = vrsqrt.pop %v2985
    %s2987 = scalar_lea.vmem [#allocation0], 24
    %v2988 = vld [vmem:[%s2987] sm:$0xff]
    %s2989 = scalar_lea.vmem [#allocation1], 24
    %v2990 = vld [vmem:[%s2989] sm:$0xff]
    %v2991 = vmul.f32 %v2990, %v2979
    %2992 = vadd.xlane.f32.xlu0 %v2991
    %v2993 = vpop.xlane.xlu0 %2992
    %v2994 = vsub.f32 %v2988, %v2993
    %v2995 = vmul.f32 %v2994, %v2986
    %vm2996 = vcmask 1047558
    %vm2997 = vmand %vm2977, %vm2996
    %v2998 = vsel %vm2997, %v2995, 0.0
    %v2999 = vadd.f32 %v2990, %v2998
    %s3000 = scalar_lea.vmem [#allocation1], 24
    %3001 = vst [vmem:[%s3000] sm:$0xff] %v2999
    %s3002 = scalar_lea.vmem [#allocation0], 32
    %v3003 = vld [vmem:[%s3002] sm:$0xff]
    %s3004 = scalar_lea.vmem [#allocation1], 32
    %v3005 = vld [vmem:[%s3004] sm:$0xff]
    %v3006 = vmul.f32 %v3005, %v2979
    %3007 = vadd.xlane.f32.xlu0 %v3006
    %v3008 = vpop.xlane.xlu0 %3007
    %v3009 = vsub.f32 %v3003, %v3008
    %v3010 = vmul.f32 %v3009, %v2986
    %v3011 = vsel %vm2977, %v3010, 0.0
    %v3012 = vadd.f32 %v3005, %v3011
    %s3013 = scalar_lea.vmem [#allocation1], 32
    %3014 = vst [vmem:[%s3013] sm:$0xff] %v3012
    %s3015 = scalar_lea.vmem [#allocation0], 40
    %v3016 = vld [vmem:[%s3015] sm:$0xff]
    %s3017 = scalar_lea.vmem [#allocation1], 40
    %v3018 = vld [vmem:[%s3017] sm:$0xff]
    %v3019 = vmul.f32 %v3018, %v2979
    %3020 = vadd.xlane.f32.xlu0 %v3019
    %v3021 = vpop.xlane.xlu0 %3020
    %v3022 = vsub.f32 %v3016, %v3021
    %v3023 = vmul.f32 %v3022, %v2986
    %v3024 = vsel %vm2977, %v3023, 0.0
    %v3025 = vadd.f32 %v3018, %v3024
    %s3026 = scalar_lea.vmem [#allocation1], 40
    %3027 = vst [vmem:[%s3026] sm:$0xff] %v3025
    %s3028 = scalar_lea.vmem [#allocation0], 48
    %v3029 = vld [vmem:[%s3028] sm:$0xff]
    %s3030 = scalar_lea.vmem [#allocation1], 48
    %v3031 = vld [vmem:[%s3030] sm:$0xff]
    %v3032 = vmul.f32 %v3031, %v2979
    %3033 = vadd.xlane.f32.xlu0 %v3032
    %v3034 = vpop.xlane.xlu0 %3033
    %v3035 = vsub.f32 %v3029, %v3034
    %v3036 = vmul.f32 %v3035, %v2986
    %v3037 = vsel %vm2977, %v3036, 0.0
    %v3038 = vadd.f32 %v3031, %v3037
    %s3039 = scalar_lea.vmem [#allocation1], 48
    %3040 = vst [vmem:[%s3039] sm:$0xff] %v3038
    %s3041 = scalar_lea.vmem [#allocation0], 56
    %v3042 = vld [vmem:[%s3041] sm:$0xff]
    %s3043 = scalar_lea.vmem [#allocation1], 56
    %v3044 = vld [vmem:[%s3043] sm:$0xff]
    %v3045 = vmul.f32 %v3044, %v2979
    %3046 = vadd.xlane.f32.xlu0 %v3045
    %v3047 = vpop.xlane.xlu0 %3046
    %v3048 = vsub.f32 %v3042, %v3047
    %v3049 = vmul.f32 %v3048, %v2986
    %v3050 = vsel %vm2977, %v3049, 0.0
    %v3051 = vadd.f32 %v3044, %v3050
    %s3052 = scalar_lea.vmem [#allocation1], 56
    %3053 = vst [vmem:[%s3052] sm:$0xff] %v3051
    %vm3054 = vcmask 261368
    %s3055 = scalar_lea.vmem [#allocation1], 31
    %v3056 = vld [vmem:[%s3055] ss:$0 sm:$0xff]
    %s3057 = scalar_lea.vmem [#allocation0], 31
    %v3058 = vld [vmem:[%s3057] ss:$0 sm:$0xff]
    %v3059 = vmul.f32 %v3056, %v3056
    %3060 = vadd.xlane.f32.xlu0 %v3059
    %v3061 = vpop.xlane.xlu0 %3060
    %v3062 = vsub.f32 %v3058, %v3061
    %v3063 = vrsqrt.pop %v3062
    %s3064 = scalar_lea.vmem [#allocation0], 24
    %v3065 = vld [vmem:[%s3064] sm:$0xff]
    %s3066 = scalar_lea.vmem [#allocation1], 24
    %v3067 = vld [vmem:[%s3066] sm:$0xff]
    %v3068 = vmul.f32 %v3067, %v3056
    %3069 = vadd.xlane.f32.xlu0 %v3068
    %v3070 = vpop.xlane.xlu0 %3069
    %v3071 = vsub.f32 %v3065, %v3070
    %v3072 = vmul.f32 %v3071, %v3063
    %vm3073 = vcmask 1047559
    %vm3074 = vmand %vm3054, %vm3073
    %v3075 = vsel %vm3074, %v3072, 0.0
    %v3076 = vadd.f32 %v3067, %v3075
    %s3077 = scalar_lea.vmem [#allocation1], 24
    %3078 = vst [vmem:[%s3077] sm:$0xff] %v3076
    %s3079 = scalar_lea.vmem [#allocation0], 32
    %v3080 = vld [vmem:[%s3079] sm:$0xff]
    %s3081 = scalar_lea.vmem [#allocation1], 32
    %v3082 = vld [vmem:[%s3081] sm:$0xff]
    %v3083 = vmul.f32 %v3082, %v3056
    %3084 = vadd.xlane.f32.xlu0 %v3083
    %v3085 = vpop.xlane.xlu0 %3084
    %v3086 = vsub.f32 %v3080, %v3085
    %v3087 = vmul.f32 %v3086, %v3063
    %v3088 = vsel %vm3054, %v3087, 0.0
    %v3089 = vadd.f32 %v3082, %v3088
    %s3090 = scalar_lea.vmem [#allocation1], 32
    %3091 = vst [vmem:[%s3090] sm:$0xff] %v3089
    %s3092 = scalar_lea.vmem [#allocation0], 40
    %v3093 = vld [vmem:[%s3092] sm:$0xff]
    %s3094 = scalar_lea.vmem [#allocation1], 40
    %v3095 = vld [vmem:[%s3094] sm:$0xff]
    %v3096 = vmul.f32 %v3095, %v3056
    %3097 = vadd.xlane.f32.xlu0 %v3096
    %v3098 = vpop.xlane.xlu0 %3097
    %v3099 = vsub.f32 %v3093, %v3098
    %v3100 = vmul.f32 %v3099, %v3063
    %v3101 = vsel %vm3054, %v3100, 0.0
    %v3102 = vadd.f32 %v3095, %v3101
    %s3103 = scalar_lea.vmem [#allocation1], 40
    %3104 = vst [vmem:[%s3103] sm:$0xff] %v3102
    %s3105 = scalar_lea.vmem [#allocation0], 48
    %v3106 = vld [vmem:[%s3105] sm:$0xff]
    %s3107 = scalar_lea.vmem [#allocation1], 48
    %v3108 = vld [vmem:[%s3107] sm:$0xff]
    %v3109 = vmul.f32 %v3108, %v3056
    %3110 = vadd.xlane.f32.xlu0 %v3109
    %v3111 = vpop.xlane.xlu0 %3110
    %v3112 = vsub.f32 %v3106, %v3111
    %v3113 = vmul.f32 %v3112, %v3063
    %v3114 = vsel %vm3054, %v3113, 0.0
    %v3115 = vadd.f32 %v3108, %v3114
    %s3116 = scalar_lea.vmem [#allocation1], 48
    %3117 = vst [vmem:[%s3116] sm:$0xff] %v3115
    %s3118 = scalar_lea.vmem [#allocation0], 56
    %v3119 = vld [vmem:[%s3118] sm:$0xff]
    %s3120 = scalar_lea.vmem [#allocation1], 56
    %v3121 = vld [vmem:[%s3120] sm:$0xff]
    %v3122 = vmul.f32 %v3121, %v3056
    %3123 = vadd.xlane.f32.xlu0 %v3122
    %v3124 = vpop.xlane.xlu0 %3123
    %v3125 = vsub.f32 %v3119, %v3124
    %v3126 = vmul.f32 %v3125, %v3063
    %v3127 = vsel %vm3054, %v3126, 0.0
    %v3128 = vadd.f32 %v3121, %v3127
    %s3129 = scalar_lea.vmem [#allocation1], 56
    %3130 = vst [vmem:[%s3129] sm:$0xff] %v3128
    %vm3131 = vcmask 269568
    %s3132 = scalar_lea.vmem [#allocation1], 32
    %v3133 = vld [vmem:[%s3132] ss:$0 sm:$0xff]
    %s3134 = scalar_lea.vmem [#allocation0], 32
    %v3135 = vld [vmem:[%s3134] ss:$0 sm:$0xff]
    %v3136 = vmul.f32 %v3133, %v3133
    %3137 = vadd.xlane.f32.xlu0 %v3136
    %v3138 = vpop.xlane.xlu0 %3137
    %v3139 = vsub.f32 %v3135, %v3138
    %v3140 = vrsqrt.pop %v3139
    %s3141 = scalar_lea.vmem [#allocation0], 32
    %v3142 = vld [vmem:[%s3141] sm:$0xff]
    %s3143 = scalar_lea.vmem [#allocation1], 32
    %v3144 = vld [vmem:[%s3143] sm:$0xff]
    %v3145 = vmul.f32 %v3144, %v3133
    %3146 = vadd.xlane.f32.xlu0 %v3145
    %v3147 = vpop.xlane.xlu0 %3146
    %v3148 = vsub.f32 %v3142, %v3147
    %v3149 = vmul.f32 %v3148, %v3140
    %v3150 = vsel %vm3131, %v3149, 0.0
    %v3151 = vadd.f32 %v3144, %v3150
    %s3152 = scalar_lea.vmem [#allocation1], 32
    %3153 = vst [vmem:[%s3152] sm:$0xff] %v3151
    %s3154 = scalar_lea.vmem [#allocation0], 40
    %v3155 = vld [vmem:[%s3154] sm:$0xff]
    %s3156 = scalar_lea.vmem [#allocation1], 40
    %v3157 = vld [vmem:[%s3156] sm:$0xff]
    %v3158 = vmul.f32 %v3157, %v3133
    %3159 = vadd.xlane.f32.xlu0 %v3158
    %v3160 = vpop.xlane.xlu0 %3159
    %v3161 = vsub.f32 %v3155, %v3160
    %v3162 = vmul.f32 %v3161, %v3140
    %v3163 = vsel %vm3131, %v3162, 0.0
    %v3164 = vadd.f32 %v3157, %v3163
    %s3165 = scalar_lea.vmem [#allocation1], 40
    %3166 = vst [vmem:[%s3165] sm:$0xff] %v3164
    %s3167 = scalar_lea.vmem [#allocation0], 48
    %v3168 = vld [vmem:[%s3167] sm:$0xff]
    %s3169 = scalar_lea.vmem [#allocation1], 48
    %v3170 = vld [vmem:[%s3169] sm:$0xff]
    %v3171 = vmul.f32 %v3170, %v3133
    %3172 = vadd.xlane.f32.xlu0 %v3171
    %v3173 = vpop.xlane.xlu0 %3172
    %v3174 = vsub.f32 %v3168, %v3173
    %v3175 = vmul.f32 %v3174, %v3140
    %v3176 = vsel %vm3131, %v3175, 0.0
    %v3177 = vadd.f32 %v3170, %v3176
    %s3178 = scalar_lea.vmem [#allocation1], 48
    %3179 = vst [vmem:[%s3178] sm:$0xff] %v3177
    %s3180 = scalar_lea.vmem [#allocation0], 56
    %v3181 = vld [vmem:[%s3180] sm:$0xff]
    %s3182 = scalar_lea.vmem [#allocation1], 56
    %v3183 = vld [vmem:[%s3182] sm:$0xff]
    %v3184 = vmul.f32 %v3183, %v3133
    %3185 = vadd.xlane.f32.xlu0 %v3184
    %v3186 = vpop.xlane.xlu0 %3185
    %v3187 = vsub.f32 %v3181, %v3186
    %v3188 = vmul.f32 %v3187, %v3140
    %v3189 = vsel %vm3131, %v3188, 0.0
    %v3190 = vadd.f32 %v3183, %v3189
    %s3191 = scalar_lea.vmem [#allocation1], 56
    %3192 = vst [vmem:[%s3191] sm:$0xff] %v3190
    %vm3193 = vcmask 277768
    %s3194 = scalar_lea.vmem [#allocation1], 33
    %v3195 = vld [vmem:[%s3194] ss:$0 sm:$0xff]
    %s3196 = scalar_lea.vmem [#allocation0], 33
    %v3197 = vld [vmem:[%s3196] ss:$0 sm:$0xff]
    %v3198 = vmul.f32 %v3195, %v3195
    %3199 = vadd.xlane.f32.xlu0 %v3198
    %v3200 = vpop.xlane.xlu0 %3199
    %v3201 = vsub.f32 %v3197, %v3200
    %v3202 = vrsqrt.pop %v3201
    %s3203 = scalar_lea.vmem [#allocation0], 32
    %v3204 = vld [vmem:[%s3203] sm:$0xff]
    %s3205 = scalar_lea.vmem [#allocation1], 32
    %v3206 = vld [vmem:[%s3205] sm:$0xff]
    %v3207 = vmul.f32 %v3206, %v3195
    %3208 = vadd.xlane.f32.xlu0 %v3207
    %v3209 = vpop.xlane.xlu0 %3208
    %v3210 = vsub.f32 %v3204, %v3209
    %v3211 = vmul.f32 %v3210, %v3202
    %vm3212 = vcmask 1047553
    %vm3213 = vmand %vm3193, %vm3212
    %v3214 = vsel %vm3213, %v3211, 0.0
    %v3215 = vadd.f32 %v3206, %v3214
    %s3216 = scalar_lea.vmem [#allocation1], 32
    %3217 = vst [vmem:[%s3216] sm:$0xff] %v3215
    %s3218 = scalar_lea.vmem [#allocation0], 40
    %v3219 = vld [vmem:[%s3218] sm:$0xff]
    %s3220 = scalar_lea.vmem [#allocation1], 40
    %v3221 = vld [vmem:[%s3220] sm:$0xff]
    %v3222 = vmul.f32 %v3221, %v3195
    %3223 = vadd.xlane.f32.xlu0 %v3222
    %v3224 = vpop.xlane.xlu0 %3223
    %v3225 = vsub.f32 %v3219, %v3224
    %v3226 = vmul.f32 %v3225, %v3202
    %v3227 = vsel %vm3193, %v3226, 0.0
    %v3228 = vadd.f32 %v3221, %v3227
    %s3229 = scalar_lea.vmem [#allocation1], 40
    %3230 = vst [vmem:[%s3229] sm:$0xff] %v3228
    %s3231 = scalar_lea.vmem [#allocation0], 48
    %v3232 = vld [vmem:[%s3231] sm:$0xff]
    %s3233 = scalar_lea.vmem [#allocation1], 48
    %v3234 = vld [vmem:[%s3233] sm:$0xff]
    %v3235 = vmul.f32 %v3234, %v3195
    %3236 = vadd.xlane.f32.xlu0 %v3235
    %v3237 = vpop.xlane.xlu0 %3236
    %v3238 = vsub.f32 %v3232, %v3237
    %v3239 = vmul.f32 %v3238, %v3202
    %v3240 = vsel %vm3193, %v3239, 0.0
    %v3241 = vadd.f32 %v3234, %v3240
    %s3242 = scalar_lea.vmem [#allocation1], 48
    %3243 = vst [vmem:[%s3242] sm:$0xff] %v3241
    %s3244 = scalar_lea.vmem [#allocation0], 56
    %v3245 = vld [vmem:[%s3244] sm:$0xff]
    %s3246 = scalar_lea.vmem [#allocation1], 56
    %v3247 = vld [vmem:[%s3246] sm:$0xff]
    %v3248 = vmul.f32 %v3247, %v3195
    %3249 = vadd.xlane.f32.xlu0 %v3248
    %v3250 = vpop.xlane.xlu0 %3249
    %v3251 = vsub.f32 %v3245, %v3250
    %v3252 = vmul.f32 %v3251, %v3202
    %v3253 = vsel %vm3193, %v3252, 0.0
    %v3254 = vadd.f32 %v3247, %v3253
    %s3255 = scalar_lea.vmem [#allocation1], 56
    %3256 = vst [vmem:[%s3255] sm:$0xff] %v3254
    %vm3257 = vcmask 285968
    %s3258 = scalar_lea.vmem [#allocation1], 34
    %v3259 = vld [vmem:[%s3258] ss:$0 sm:$0xff]
    %s3260 = scalar_lea.vmem [#allocation0], 34
    %v3261 = vld [vmem:[%s3260] ss:$0 sm:$0xff]
    %v3262 = vmul.f32 %v3259, %v3259
    %3263 = vadd.xlane.f32.xlu0 %v3262
    %v3264 = vpop.xlane.xlu0 %3263
    %v3265 = vsub.f32 %v3261, %v3264
    %v3266 = vrsqrt.pop %v3265
    %s3267 = scalar_lea.vmem [#allocation0], 32
    %v3268 = vld [vmem:[%s3267] sm:$0xff]
    %s3269 = scalar_lea.vmem [#allocation1], 32
    %v3270 = vld [vmem:[%s3269] sm:$0xff]
    %v3271 = vmul.f32 %v3270, %v3259
    %3272 = vadd.xlane.f32.xlu0 %v3271
    %v3273 = vpop.xlane.xlu0 %3272
    %v3274 = vsub.f32 %v3268, %v3273
    %v3275 = vmul.f32 %v3274, %v3266
    %vm3276 = vcmask 1047554
    %vm3277 = vmand %vm3257, %vm3276
    %v3278 = vsel %vm3277, %v3275, 0.0
    %v3279 = vadd.f32 %v3270, %v3278
    %s3280 = scalar_lea.vmem [#allocation1], 32
    %3281 = vst [vmem:[%s3280] sm:$0xff] %v3279
    %s3282 = scalar_lea.vmem [#allocation0], 40
    %v3283 = vld [vmem:[%s3282] sm:$0xff]
    %s3284 = scalar_lea.vmem [#allocation1], 40
    %v3285 = vld [vmem:[%s3284] sm:$0xff]
    %v3286 = vmul.f32 %v3285, %v3259
    %3287 = vadd.xlane.f32.xlu0 %v3286
    %v3288 = vpop.xlane.xlu0 %3287
    %v3289 = vsub.f32 %v3283, %v3288
    %v3290 = vmul.f32 %v3289, %v3266
    %v3291 = vsel %vm3257, %v3290, 0.0
    %v3292 = vadd.f32 %v3285, %v3291
    %s3293 = scalar_lea.vmem [#allocation1], 40
    %3294 = vst [vmem:[%s3293] sm:$0xff] %v3292
    %s3295 = scalar_lea.vmem [#allocation0], 48
    %v3296 = vld [vmem:[%s3295] sm:$0xff]
    %s3297 = scalar_lea.vmem [#allocation1], 48
    %v3298 = vld [vmem:[%s3297] sm:$0xff]
    %v3299 = vmul.f32 %v3298, %v3259
    %3300 = vadd.xlane.f32.xlu0 %v3299
    %v3301 = vpop.xlane.xlu0 %3300
    %v3302 = vsub.f32 %v3296, %v3301
    %v3303 = vmul.f32 %v3302, %v3266
    %v3304 = vsel %vm3257, %v3303, 0.0
    %v3305 = vadd.f32 %v3298, %v3304
    %s3306 = scalar_lea.vmem [#allocation1], 48
    %3307 = vst [vmem:[%s3306] sm:$0xff] %v3305
    %s3308 = scalar_lea.vmem [#allocation0], 56
    %v3309 = vld [vmem:[%s3308] sm:$0xff]
    %s3310 = scalar_lea.vmem [#allocation1], 56
    %v3311 = vld [vmem:[%s3310] sm:$0xff]
    %v3312 = vmul.f32 %v3311, %v3259
    %3313 = vadd.xlane.f32.xlu0 %v3312
    %v3314 = vpop.xlane.xlu0 %3313
    %v3315 = vsub.f32 %v3309, %v3314
    %v3316 = vmul.f32 %v3315, %v3266
    %v3317 = vsel %vm3257, %v3316, 0.0
    %v3318 = vadd.f32 %v3311, %v3317
    %s3319 = scalar_lea.vmem [#allocation1], 56
    %3320 = vst [vmem:[%s3319] sm:$0xff] %v3318
    %vm3321 = vcmask 294168
    %s3322 = scalar_lea.vmem [#allocation1], 35
    %v3323 = vld [vmem:[%s3322] ss:$0 sm:$0xff]
    %s3324 = scalar_lea.vmem [#allocation0], 35
    %v3325 = vld [vmem:[%s3324] ss:$0 sm:$0xff]
    %v3326 = vmul.f32 %v3323, %v3323
    %3327 = vadd.xlane.f32.xlu0 %v3326
    %v3328 = vpop.xlane.xlu0 %3327
    %v3329 = vsub.f32 %v3325, %v3328
    %v3330 = vrsqrt.pop %v3329
    %s3331 = scalar_lea.vmem [#allocation0], 32
    %v3332 = vld [vmem:[%s3331] sm:$0xff]
    %s3333 = scalar_lea.vmem [#allocation1], 32
    %v3334 = vld [vmem:[%s3333] sm:$0xff]
    %v3335 = vmul.f32 %v3334, %v3323
    %3336 = vadd.xlane.f32.xlu0 %v3335
    %v3337 = vpop.xlane.xlu0 %3336
    %v3338 = vsub.f32 %v3332, %v3337
    %v3339 = vmul.f32 %v3338, %v3330
    %vm3340 = vcmask 1047555
    %vm3341 = vmand %vm3321, %vm3340
    %v3342 = vsel %vm3341, %v3339, 0.0
    %v3343 = vadd.f32 %v3334, %v3342
    %s3344 = scalar_lea.vmem [#allocation1], 32
    %3345 = vst [vmem:[%s3344] sm:$0xff] %v3343
    %s3346 = scalar_lea.vmem [#allocation0], 40
    %v3347 = vld [vmem:[%s3346] sm:$0xff]
    %s3348 = scalar_lea.vmem [#allocation1], 40
    %v3349 = vld [vmem:[%s3348] sm:$0xff]
    %v3350 = vmul.f32 %v3349, %v3323
    %3351 = vadd.xlane.f32.xlu0 %v3350
    %v3352 = vpop.xlane.xlu0 %3351
    %v3353 = vsub.f32 %v3347, %v3352
    %v3354 = vmul.f32 %v3353, %v3330
    %v3355 = vsel %vm3321, %v3354, 0.0
    %v3356 = vadd.f32 %v3349, %v3355
    %s3357 = scalar_lea.vmem [#allocation1], 40
    %3358 = vst [vmem:[%s3357] sm:$0xff] %v3356
    %s3359 = scalar_lea.vmem [#allocation0], 48
    %v3360 = vld [vmem:[%s3359] sm:$0xff]
    %s3361 = scalar_lea.vmem [#allocation1], 48
    %v3362 = vld [vmem:[%s3361] sm:$0xff]
    %v3363 = vmul.f32 %v3362, %v3323
    %3364 = vadd.xlane.f32.xlu0 %v3363
    %v3365 = vpop.xlane.xlu0 %3364
    %v3366 = vsub.f32 %v3360, %v3365
    %v3367 = vmul.f32 %v3366, %v3330
    %v3368 = vsel %vm3321, %v3367, 0.0
    %v3369 = vadd.f32 %v3362, %v3368
    %s3370 = scalar_lea.vmem [#allocation1], 48
    %3371 = vst [vmem:[%s3370] sm:$0xff] %v3369
    %s3372 = scalar_lea.vmem [#allocation0], 56
    %v3373 = vld [vmem:[%s3372] sm:$0xff]
    %s3374 = scalar_lea.vmem [#allocation1], 56
    %v3375 = vld [vmem:[%s3374] sm:$0xff]
    %v3376 = vmul.f32 %v3375, %v3323
    %3377 = vadd.xlane.f32.xlu0 %v3376
    %v3378 = vpop.xlane.xlu0 %3377
    %v3379 = vsub.f32 %v3373, %v3378
    %v3380 = vmul.f32 %v3379, %v3330
    %v3381 = vsel %vm3321, %v3380, 0.0
    %v3382 = vadd.f32 %v3375, %v3381
    %s3383 = scalar_lea.vmem [#allocation1], 56
    %3384 = vst [vmem:[%s3383] sm:$0xff] %v3382
    %vm3385 = vcmask 302368
    %s3386 = scalar_lea.vmem [#allocation1], 36
    %v3387 = vld [vmem:[%s3386] ss:$0 sm:$0xff]
    %s3388 = scalar_lea.vmem [#allocation0], 36
    %v3389 = vld [vmem:[%s3388] ss:$0 sm:$0xff]
    %v3390 = vmul.f32 %v3387, %v3387
    %3391 = vadd.xlane.f32.xlu0 %v3390
    %v3392 = vpop.xlane.xlu0 %3391
    %v3393 = vsub.f32 %v3389, %v3392
    %v3394 = vrsqrt.pop %v3393
    %s3395 = scalar_lea.vmem [#allocation0], 32
    %v3396 = vld [vmem:[%s3395] sm:$0xff]
    %s3397 = scalar_lea.vmem [#allocation1], 32
    %v3398 = vld [vmem:[%s3397] sm:$0xff]
    %v3399 = vmul.f32 %v3398, %v3387
    %3400 = vadd.xlane.f32.xlu0 %v3399
    %v3401 = vpop.xlane.xlu0 %3400
    %v3402 = vsub.f32 %v3396, %v3401
    %v3403 = vmul.f32 %v3402, %v3394
    %vm3404 = vcmask 1047556
    %vm3405 = vmand %vm3385, %vm3404
    %v3406 = vsel %vm3405, %v3403, 0.0
    %v3407 = vadd.f32 %v3398, %v3406
    %s3408 = scalar_lea.vmem [#allocation1], 32
    %3409 = vst [vmem:[%s3408] sm:$0xff] %v3407
    %s3410 = scalar_lea.vmem [#allocation0], 40
    %v3411 = vld [vmem:[%s3410] sm:$0xff]
    %s3412 = scalar_lea.vmem [#allocation1], 40
    %v3413 = vld [vmem:[%s3412] sm:$0xff]
    %v3414 = vmul.f32 %v3413, %v3387
    %3415 = vadd.xlane.f32.xlu0 %v3414
    %v3416 = vpop.xlane.xlu0 %3415
    %v3417 = vsub.f32 %v3411, %v3416
    %v3418 = vmul.f32 %v3417, %v3394
    %v3419 = vsel %vm3385, %v3418, 0.0
    %v3420 = vadd.f32 %v3413, %v3419
    %s3421 = scalar_lea.vmem [#allocation1], 40
    %3422 = vst [vmem:[%s3421] sm:$0xff] %v3420
    %s3423 = scalar_lea.vmem [#allocation0], 48
    %v3424 = vld [vmem:[%s3423] sm:$0xff]
    %s3425 = scalar_lea.vmem [#allocation1], 48
    %v3426 = vld [vmem:[%s3425] sm:$0xff]
    %v3427 = vmul.f32 %v3426, %v3387
    %3428 = vadd.xlane.f32.xlu0 %v3427
    %v3429 = vpop.xlane.xlu0 %3428
    %v3430 = vsub.f32 %v3424, %v3429
    %v3431 = vmul.f32 %v3430, %v3394
    %v3432 = vsel %vm3385, %v3431, 0.0
    %v3433 = vadd.f32 %v3426, %v3432
    %s3434 = scalar_lea.vmem [#allocation1], 48
    %3435 = vst [vmem:[%s3434] sm:$0xff] %v3433
    %s3436 = scalar_lea.vmem [#allocation0], 56
    %v3437 = vld [vmem:[%s3436] sm:$0xff]
    %s3438 = scalar_lea.vmem [#allocation1], 56
    %v3439 = vld [vmem:[%s3438] sm:$0xff]
    %v3440 = vmul.f32 %v3439, %v3387
    %3441 = vadd.xlane.f32.xlu0 %v3440
    %v3442 = vpop.xlane.xlu0 %3441
    %v3443 = vsub.f32 %v3437, %v3442
    %v3444 = vmul.f32 %v3443, %v3394
    %v3445 = vsel %vm3385, %v3444, 0.0
    %v3446 = vadd.f32 %v3439, %v3445
    %s3447 = scalar_lea.vmem [#allocation1], 56
    %3448 = vst [vmem:[%s3447] sm:$0xff] %v3446
    %vm3449 = vcmask 310568
    %s3450 = scalar_lea.vmem [#allocation1], 37
    %v3451 = vld [vmem:[%s3450] ss:$0 sm:$0xff]
    %s3452 = scalar_lea.vmem [#allocation0], 37
    %v3453 = vld [vmem:[%s3452] ss:$0 sm:$0xff]
    %v3454 = vmul.f32 %v3451, %v3451
    %3455 = vadd.xlane.f32.xlu0 %v3454
    %v3456 = vpop.xlane.xlu0 %3455
    %v3457 = vsub.f32 %v3453, %v3456
    %v3458 = vrsqrt.pop %v3457
    %s3459 = scalar_lea.vmem [#allocation0], 32
    %v3460 = vld [vmem:[%s3459] sm:$0xff]
    %s3461 = scalar_lea.vmem [#allocation1], 32
    %v3462 = vld [vmem:[%s3461] sm:$0xff]
    %v3463 = vmul.f32 %v3462, %v3451
    %3464 = vadd.xlane.f32.xlu0 %v3463
    %v3465 = vpop.xlane.xlu0 %3464
    %v3466 = vsub.f32 %v3460, %v3465
    %v3467 = vmul.f32 %v3466, %v3458
    %vm3468 = vcmask 1047557
    %vm3469 = vmand %vm3449, %vm3468
    %v3470 = vsel %vm3469, %v3467, 0.0
    %v3471 = vadd.f32 %v3462, %v3470
    %s3472 = scalar_lea.vmem [#allocation1], 32
    %3473 = vst [vmem:[%s3472] sm:$0xff] %v3471
    %s3474 = scalar_lea.vmem [#allocation0], 40
    %v3475 = vld [vmem:[%s3474] sm:$0xff]
    %s3476 = scalar_lea.vmem [#allocation1], 40
    %v3477 = vld [vmem:[%s3476] sm:$0xff]
    %v3478 = vmul.f32 %v3477, %v3451
    %3479 = vadd.xlane.f32.xlu0 %v3478
    %v3480 = vpop.xlane.xlu0 %3479
    %v3481 = vsub.f32 %v3475, %v3480
    %v3482 = vmul.f32 %v3481, %v3458
    %v3483 = vsel %vm3449, %v3482, 0.0
    %v3484 = vadd.f32 %v3477, %v3483
    %s3485 = scalar_lea.vmem [#allocation1], 40
    %3486 = vst [vmem:[%s3485] sm:$0xff] %v3484
    %s3487 = scalar_lea.vmem [#allocation0], 48
    %v3488 = vld [vmem:[%s3487] sm:$0xff]
    %s3489 = scalar_lea.vmem [#allocation1], 48
    %v3490 = vld [vmem:[%s3489] sm:$0xff]
    %v3491 = vmul.f32 %v3490, %v3451
    %3492 = vadd.xlane.f32.xlu0 %v3491
    %v3493 = vpop.xlane.xlu0 %3492
    %v3494 = vsub.f32 %v3488, %v3493
    %v3495 = vmul.f32 %v3494, %v3458
    %v3496 = vsel %vm3449, %v3495, 0.0
    %v3497 = vadd.f32 %v3490, %v3496
    %s3498 = scalar_lea.vmem [#allocation1], 48
    %3499 = vst [vmem:[%s3498] sm:$0xff] %v3497
    %s3500 = scalar_lea.vmem [#allocation0], 56
    %v3501 = vld [vmem:[%s3500] sm:$0xff]
    %s3502 = scalar_lea.vmem [#allocation1], 56
    %v3503 = vld [vmem:[%s3502] sm:$0xff]
    %v3504 = vmul.f32 %v3503, %v3451
    %3505 = vadd.xlane.f32.xlu0 %v3504
    %v3506 = vpop.xlane.xlu0 %3505
    %v3507 = vsub.f32 %v3501, %v3506
    %v3508 = vmul.f32 %v3507, %v3458
    %v3509 = vsel %vm3449, %v3508, 0.0
    %v3510 = vadd.f32 %v3503, %v3509
    %s3511 = scalar_lea.vmem [#allocation1], 56
    %3512 = vst [vmem:[%s3511] sm:$0xff] %v3510
    %vm3513 = vcmask 318768
    %s3514 = scalar_lea.vmem [#allocation1], 38
    %v3515 = vld [vmem:[%s3514] ss:$0 sm:$0xff]
    %s3516 = scalar_lea.vmem [#allocation0], 38
    %v3517 = vld [vmem:[%s3516] ss:$0 sm:$0xff]
    %v3518 = vmul.f32 %v3515, %v3515
    %3519 = vadd.xlane.f32.xlu0 %v3518
    %v3520 = vpop.xlane.xlu0 %3519
    %v3521 = vsub.f32 %v3517, %v3520
    %v3522 = vrsqrt.pop %v3521
    %s3523 = scalar_lea.vmem [#allocation0], 32
    %v3524 = vld [vmem:[%s3523] sm:$0xff]
    %s3525 = scalar_lea.vmem [#allocation1], 32
    %v3526 = vld [vmem:[%s3525] sm:$0xff]
    %v3527 = vmul.f32 %v3526, %v3515
    %3528 = vadd.xlane.f32.xlu0 %v3527
    %v3529 = vpop.xlane.xlu0 %3528
    %v3530 = vsub.f32 %v3524, %v3529
    %v3531 = vmul.f32 %v3530, %v3522
    %vm3532 = vcmask 1047558
    %vm3533 = vmand %vm3513, %vm3532
    %v3534 = vsel %vm3533, %v3531, 0.0
    %v3535 = vadd.f32 %v3526, %v3534
    %s3536 = scalar_lea.vmem [#allocation1], 32
    %3537 = vst [vmem:[%s3536] sm:$0xff] %v3535
    %s3538 = scalar_lea.vmem [#allocation0], 40
    %v3539 = vld [vmem:[%s3538] sm:$0xff]
    %s3540 = scalar_lea.vmem [#allocation1], 40
    %v3541 = vld [vmem:[%s3540] sm:$0xff]
    %v3542 = vmul.f32 %v3541, %v3515
    %3543 = vadd.xlane.f32.xlu0 %v3542
    %v3544 = vpop.xlane.xlu0 %3543
    %v3545 = vsub.f32 %v3539, %v3544
    %v3546 = vmul.f32 %v3545, %v3522
    %v3547 = vsel %vm3513, %v3546, 0.0
    %v3548 = vadd.f32 %v3541, %v3547
    %s3549 = scalar_lea.vmem [#allocation1], 40
    %3550 = vst [vmem:[%s3549] sm:$0xff] %v3548
    %s3551 = scalar_lea.vmem [#allocation0], 48
    %v3552 = vld [vmem:[%s3551] sm:$0xff]
    %s3553 = scalar_lea.vmem [#allocation1], 48
    %v3554 = vld [vmem:[%s3553] sm:$0xff]
    %v3555 = vmul.f32 %v3554, %v3515
    %3556 = vadd.xlane.f32.xlu0 %v3555
    %v3557 = vpop.xlane.xlu0 %3556
    %v3558 = vsub.f32 %v3552, %v3557
    %v3559 = vmul.f32 %v3558, %v3522
    %v3560 = vsel %vm3513, %v3559, 0.0
    %v3561 = vadd.f32 %v3554, %v3560
    %s3562 = scalar_lea.vmem [#allocation1], 48
    %3563 = vst [vmem:[%s3562] sm:$0xff] %v3561
    %s3564 = scalar_lea.vmem [#allocation0], 56
    %v3565 = vld [vmem:[%s3564] sm:$0xff]
    %s3566 = scalar_lea.vmem [#allocation1], 56
    %v3567 = vld [vmem:[%s3566] sm:$0xff]
    %v3568 = vmul.f32 %v3567, %v3515
    %3569 = vadd.xlane.f32.xlu0 %v3568
    %v3570 = vpop.xlane.xlu0 %3569
    %v3571 = vsub.f32 %v3565, %v3570
    %v3572 = vmul.f32 %v3571, %v3522
    %v3573 = vsel %vm3513, %v3572, 0.0
    %v3574 = vadd.f32 %v3567, %v3573
    %s3575 = scalar_lea.vmem [#allocation1], 56
    %3576 = vst [vmem:[%s3575] sm:$0xff] %v3574
    %vm3577 = vcmask 326968
    %s3578 = scalar_lea.vmem [#allocation1], 39
    %v3579 = vld [vmem:[%s3578] ss:$0 sm:$0xff]
    %s3580 = scalar_lea.vmem [#allocation0], 39
    %v3581 = vld [vmem:[%s3580] ss:$0 sm:$0xff]
    %v3582 = vmul.f32 %v3579, %v3579
    %3583 = vadd.xlane.f32.xlu0 %v3582
    %v3584 = vpop.xlane.xlu0 %3583
    %v3585 = vsub.f32 %v3581, %v3584
    %v3586 = vrsqrt.pop %v3585
    %s3587 = scalar_lea.vmem [#allocation0], 32
    %v3588 = vld [vmem:[%s3587] sm:$0xff]
    %s3589 = scalar_lea.vmem [#allocation1], 32
    %v3590 = vld [vmem:[%s3589] sm:$0xff]
    %v3591 = vmul.f32 %v3590, %v3579
    %3592 = vadd.xlane.f32.xlu0 %v3591
    %v3593 = vpop.xlane.xlu0 %3592
    %v3594 = vsub.f32 %v3588, %v3593
    %v3595 = vmul.f32 %v3594, %v3586
    %vm3596 = vcmask 1047559
    %vm3597 = vmand %vm3577, %vm3596
    %v3598 = vsel %vm3597, %v3595, 0.0
    %v3599 = vadd.f32 %v3590, %v3598
    %s3600 = scalar_lea.vmem [#allocation1], 32
    %3601 = vst [vmem:[%s3600] sm:$0xff] %v3599
    %s3602 = scalar_lea.vmem [#allocation0], 40
    %v3603 = vld [vmem:[%s3602] sm:$0xff]
    %s3604 = scalar_lea.vmem [#allocation1], 40
    %v3605 = vld [vmem:[%s3604] sm:$0xff]
    %v3606 = vmul.f32 %v3605, %v3579
    %3607 = vadd.xlane.f32.xlu0 %v3606
    %v3608 = vpop.xlane.xlu0 %3607
    %v3609 = vsub.f32 %v3603, %v3608
    %v3610 = vmul.f32 %v3609, %v3586
    %v3611 = vsel %vm3577, %v3610, 0.0
    %v3612 = vadd.f32 %v3605, %v3611
    %s3613 = scalar_lea.vmem [#allocation1], 40
    %3614 = vst [vmem:[%s3613] sm:$0xff] %v3612
    %s3615 = scalar_lea.vmem [#allocation0], 48
    %v3616 = vld [vmem:[%s3615] sm:$0xff]
    %s3617 = scalar_lea.vmem [#allocation1], 48
    %v3618 = vld [vmem:[%s3617] sm:$0xff]
    %v3619 = vmul.f32 %v3618, %v3579
    %3620 = vadd.xlane.f32.xlu0 %v3619
    %v3621 = vpop.xlane.xlu0 %3620
    %v3622 = vsub.f32 %v3616, %v3621
    %v3623 = vmul.f32 %v3622, %v3586
    %v3624 = vsel %vm3577, %v3623, 0.0
    %v3625 = vadd.f32 %v3618, %v3624
    %s3626 = scalar_lea.vmem [#allocation1], 48
    %3627 = vst [vmem:[%s3626] sm:$0xff] %v3625
    %s3628 = scalar_lea.vmem [#allocation0], 56
    %v3629 = vld [vmem:[%s3628] sm:$0xff]
    %s3630 = scalar_lea.vmem [#allocation1], 56
    %v3631 = vld [vmem:[%s3630] sm:$0xff]
    %v3632 = vmul.f32 %v3631, %v3579
    %3633 = vadd.xlane.f32.xlu0 %v3632
    %v3634 = vpop.xlane.xlu0 %3633
    %v3635 = vsub.f32 %v3629, %v3634
    %v3636 = vmul.f32 %v3635, %v3586
    %v3637 = vsel %vm3577, %v3636, 0.0
    %v3638 = vadd.f32 %v3631, %v3637
    %s3639 = scalar_lea.vmem [#allocation1], 56
    %3640 = vst [vmem:[%s3639] sm:$0xff] %v3638
    %vm3641 = vcmask 335168
    %s3642 = scalar_lea.vmem [#allocation1], 40
    %v3643 = vld [vmem:[%s3642] ss:$0 sm:$0xff]
    %s3644 = scalar_lea.vmem [#allocation0], 40
    %v3645 = vld [vmem:[%s3644] ss:$0 sm:$0xff]
    %v3646 = vmul.f32 %v3643, %v3643
    %3647 = vadd.xlane.f32.xlu0 %v3646
    %v3648 = vpop.xlane.xlu0 %3647
    %v3649 = vsub.f32 %v3645, %v3648
    %v3650 = vrsqrt.pop %v3649
    %s3651 = scalar_lea.vmem [#allocation0], 40
    %v3652 = vld [vmem:[%s3651] sm:$0xff]
    %s3653 = scalar_lea.vmem [#allocation1], 40
    %v3654 = vld [vmem:[%s3653] sm:$0xff]
    %v3655 = vmul.f32 %v3654, %v3643
    %3656 = vadd.xlane.f32.xlu0 %v3655
    %v3657 = vpop.xlane.xlu0 %3656
    %v3658 = vsub.f32 %v3652, %v3657
    %v3659 = vmul.f32 %v3658, %v3650
    %v3660 = vsel %vm3641, %v3659, 0.0
    %v3661 = vadd.f32 %v3654, %v3660
    %s3662 = scalar_lea.vmem [#allocation1], 40
    %3663 = vst [vmem:[%s3662] sm:$0xff] %v3661
    %s3664 = scalar_lea.vmem [#allocation0], 48
    %v3665 = vld [vmem:[%s3664] sm:$0xff]
    %s3666 = scalar_lea.vmem [#allocation1], 48
    %v3667 = vld [vmem:[%s3666] sm:$0xff]
    %v3668 = vmul.f32 %v3667, %v3643
    %3669 = vadd.xlane.f32.xlu0 %v3668
    %v3670 = vpop.xlane.xlu0 %3669
    %v3671 = vsub.f32 %v3665, %v3670
    %v3672 = vmul.f32 %v3671, %v3650
    %v3673 = vsel %vm3641, %v3672, 0.0
    %v3674 = vadd.f32 %v3667, %v3673
    %s3675 = scalar_lea.vmem [#allocation1], 48
    %3676 = vst [vmem:[%s3675] sm:$0xff] %v3674
    %s3677 = scalar_lea.vmem [#allocation0], 56
    %v3678 = vld [vmem:[%s3677] sm:$0xff]
    %s3679 = scalar_lea.vmem [#allocation1], 56
    %v3680 = vld [vmem:[%s3679] sm:$0xff]
    %v3681 = vmul.f32 %v3680, %v3643
    %3682 = vadd.xlane.f32.xlu0 %v3681
    %v3683 = vpop.xlane.xlu0 %3682
    %v3684 = vsub.f32 %v3678, %v3683
    %v3685 = vmul.f32 %v3684, %v3650
    %v3686 = vsel %vm3641, %v3685, 0.0
    %v3687 = vadd.f32 %v3680, %v3686
    %s3688 = scalar_lea.vmem [#allocation1], 56
    %3689 = vst [vmem:[%s3688] sm:$0xff] %v3687
    %vm3690 = vcmask 343368
    %s3691 = scalar_lea.vmem [#allocation1], 41
    %v3692 = vld [vmem:[%s3691] ss:$0 sm:$0xff]
    %s3693 = scalar_lea.vmem [#allocation0], 41
    %v3694 = vld [vmem:[%s3693] ss:$0 sm:$0xff]
    %v3695 = vmul.f32 %v3692, %v3692
    %3696 = vadd.xlane.f32.xlu0 %v3695
    %v3697 = vpop.xlane.xlu0 %3696
    %v3698 = vsub.f32 %v3694, %v3697
    %v3699 = vrsqrt.pop %v3698
    %s3700 = scalar_lea.vmem [#allocation0], 40
    %v3701 = vld [vmem:[%s3700] sm:$0xff]
    %s3702 = scalar_lea.vmem [#allocation1], 40
    %v3703 = vld [vmem:[%s3702] sm:$0xff]
    %v3704 = vmul.f32 %v3703, %v3692
    %3705 = vadd.xlane.f32.xlu0 %v3704
    %v3706 = vpop.xlane.xlu0 %3705
    %v3707 = vsub.f32 %v3701, %v3706
    %v3708 = vmul.f32 %v3707, %v3699
    %vm3709 = vcmask 1047553
    %vm3710 = vmand %vm3690, %vm3709
    %v3711 = vsel %vm3710, %v3708, 0.0
    %v3712 = vadd.f32 %v3703, %v3711
    %s3713 = scalar_lea.vmem [#allocation1], 40
    %3714 = vst [vmem:[%s3713] sm:$0xff] %v3712
    %s3715 = scalar_lea.vmem [#allocation0], 48
    %v3716 = vld [vmem:[%s3715] sm:$0xff]
    %s3717 = scalar_lea.vmem [#allocation1], 48
    %v3718 = vld [vmem:[%s3717] sm:$0xff]
    %v3719 = vmul.f32 %v3718, %v3692
    %3720 = vadd.xlane.f32.xlu0 %v3719
    %v3721 = vpop.xlane.xlu0 %3720
    %v3722 = vsub.f32 %v3716, %v3721
    %v3723 = vmul.f32 %v3722, %v3699
    %v3724 = vsel %vm3690, %v3723, 0.0
    %v3725 = vadd.f32 %v3718, %v3724
    %s3726 = scalar_lea.vmem [#allocation1], 48
    %3727 = vst [vmem:[%s3726] sm:$0xff] %v3725
    %s3728 = scalar_lea.vmem [#allocation0], 56
    %v3729 = vld [vmem:[%s3728] sm:$0xff]
    %s3730 = scalar_lea.vmem [#allocation1], 56
    %v3731 = vld [vmem:[%s3730] sm:$0xff]
    %v3732 = vmul.f32 %v3731, %v3692
    %3733 = vadd.xlane.f32.xlu0 %v3732
    %v3734 = vpop.xlane.xlu0 %3733
    %v3735 = vsub.f32 %v3729, %v3734
    %v3736 = vmul.f32 %v3735, %v3699
    %v3737 = vsel %vm3690, %v3736, 0.0
    %v3738 = vadd.f32 %v3731, %v3737
    %s3739 = scalar_lea.vmem [#allocation1], 56
    %3740 = vst [vmem:[%s3739] sm:$0xff] %v3738
    %vm3741 = vcmask 351568
    %s3742 = scalar_lea.vmem [#allocation1], 42
    %v3743 = vld [vmem:[%s3742] ss:$0 sm:$0xff]
    %s3744 = scalar_lea.vmem [#allocation0], 42
    %v3745 = vld [vmem:[%s3744] ss:$0 sm:$0xff]
    %v3746 = vmul.f32 %v3743, %v3743
    %3747 = vadd.xlane.f32.xlu0 %v3746
    %v3748 = vpop.xlane.xlu0 %3747
    %v3749 = vsub.f32 %v3745, %v3748
    %v3750 = vrsqrt.pop %v3749
    %s3751 = scalar_lea.vmem [#allocation0], 40
    %v3752 = vld [vmem:[%s3751] sm:$0xff]
    %s3753 = scalar_lea.vmem [#allocation1], 40
    %v3754 = vld [vmem:[%s3753] sm:$0xff]
    %v3755 = vmul.f32 %v3754, %v3743
    %3756 = vadd.xlane.f32.xlu0 %v3755
    %v3757 = vpop.xlane.xlu0 %3756
    %v3758 = vsub.f32 %v3752, %v3757
    %v3759 = vmul.f32 %v3758, %v3750
    %vm3760 = vcmask 1047554
    %vm3761 = vmand %vm3741, %vm3760
    %v3762 = vsel %vm3761, %v3759, 0.0
    %v3763 = vadd.f32 %v3754, %v3762
    %s3764 = scalar_lea.vmem [#allocation1], 40
    %3765 = vst [vmem:[%s3764] sm:$0xff] %v3763
    %s3766 = scalar_lea.vmem [#allocation0], 48
    %v3767 = vld [vmem:[%s3766] sm:$0xff]
    %s3768 = scalar_lea.vmem [#allocation1], 48
    %v3769 = vld [vmem:[%s3768] sm:$0xff]
    %v3770 = vmul.f32 %v3769, %v3743
    %3771 = vadd.xlane.f32.xlu0 %v3770
    %v3772 = vpop.xlane.xlu0 %3771
    %v3773 = vsub.f32 %v3767, %v3772
    %v3774 = vmul.f32 %v3773, %v3750
    %v3775 = vsel %vm3741, %v3774, 0.0
    %v3776 = vadd.f32 %v3769, %v3775
    %s3777 = scalar_lea.vmem [#allocation1], 48
    %3778 = vst [vmem:[%s3777] sm:$0xff] %v3776
    %s3779 = scalar_lea.vmem [#allocation0], 56
    %v3780 = vld [vmem:[%s3779] sm:$0xff]
    %s3781 = scalar_lea.vmem [#allocation1], 56
    %v3782 = vld [vmem:[%s3781] sm:$0xff]
    %v3783 = vmul.f32 %v3782, %v3743
    %3784 = vadd.xlane.f32.xlu0 %v3783
    %v3785 = vpop.xlane.xlu0 %3784
    %v3786 = vsub.f32 %v3780, %v3785
    %v3787 = vmul.f32 %v3786, %v3750
    %v3788 = vsel %vm3741, %v3787, 0.0
    %v3789 = vadd.f32 %v3782, %v3788
    %s3790 = scalar_lea.vmem [#allocation1], 56
    %3791 = vst [vmem:[%s3790] sm:$0xff] %v3789
    %vm3792 = vcmask 359768
    %s3793 = scalar_lea.vmem [#allocation1], 43
    %v3794 = vld [vmem:[%s3793] ss:$0 sm:$0xff]
    %s3795 = scalar_lea.vmem [#allocation0], 43
    %v3796 = vld [vmem:[%s3795] ss:$0 sm:$0xff]
    %v3797 = vmul.f32 %v3794, %v3794
    %3798 = vadd.xlane.f32.xlu0 %v3797
    %v3799 = vpop.xlane.xlu0 %3798
    %v3800 = vsub.f32 %v3796, %v3799
    %v3801 = vrsqrt.pop %v3800
    %s3802 = scalar_lea.vmem [#allocation0], 40
    %v3803 = vld [vmem:[%s3802] sm:$0xff]
    %s3804 = scalar_lea.vmem [#allocation1], 40
    %v3805 = vld [vmem:[%s3804] sm:$0xff]
    %v3806 = vmul.f32 %v3805, %v3794
    %3807 = vadd.xlane.f32.xlu0 %v3806
    %v3808 = vpop.xlane.xlu0 %3807
    %v3809 = vsub.f32 %v3803, %v3808
    %v3810 = vmul.f32 %v3809, %v3801
    %vm3811 = vcmask 1047555
    %vm3812 = vmand %vm3792, %vm3811
    %v3813 = vsel %vm3812, %v3810, 0.0
    %v3814 = vadd.f32 %v3805, %v3813
    %s3815 = scalar_lea.vmem [#allocation1], 40
    %3816 = vst [vmem:[%s3815] sm:$0xff] %v3814
    %s3817 = scalar_lea.vmem [#allocation0], 48
    %v3818 = vld [vmem:[%s3817] sm:$0xff]
    %s3819 = scalar_lea.vmem [#allocation1], 48
    %v3820 = vld [vmem:[%s3819] sm:$0xff]
    %v3821 = vmul.f32 %v3820, %v3794
    %3822 = vadd.xlane.f32.xlu0 %v3821
    %v3823 = vpop.xlane.xlu0 %3822
    %v3824 = vsub.f32 %v3818, %v3823
    %v3825 = vmul.f32 %v3824, %v3801
    %v3826 = vsel %vm3792, %v3825, 0.0
    %v3827 = vadd.f32 %v3820, %v3826
    %s3828 = scalar_lea.vmem [#allocation1], 48
    %3829 = vst [vmem:[%s3828] sm:$0xff] %v3827
    %s3830 = scalar_lea.vmem [#allocation0], 56
    %v3831 = vld [vmem:[%s3830] sm:$0xff]
    %s3832 = scalar_lea.vmem [#allocation1], 56
    %v3833 = vld [vmem:[%s3832] sm:$0xff]
    %v3834 = vmul.f32 %v3833, %v3794
    %3835 = vadd.xlane.f32.xlu0 %v3834
    %v3836 = vpop.xlane.xlu0 %3835
    %v3837 = vsub.f32 %v3831, %v3836
    %v3838 = vmul.f32 %v3837, %v3801
    %v3839 = vsel %vm3792, %v3838, 0.0
    %v3840 = vadd.f32 %v3833, %v3839
    %s3841 = scalar_lea.vmem [#allocation1], 56
    %3842 = vst [vmem:[%s3841] sm:$0xff] %v3840
    %vm3843 = vcmask 367968
    %s3844 = scalar_lea.vmem [#allocation1], 44
    %v3845 = vld [vmem:[%s3844] ss:$0 sm:$0xff]
    %s3846 = scalar_lea.vmem [#allocation0], 44
    %v3847 = vld [vmem:[%s3846] ss:$0 sm:$0xff]
    %v3848 = vmul.f32 %v3845, %v3845
    %3849 = vadd.xlane.f32.xlu0 %v3848
    %v3850 = vpop.xlane.xlu0 %3849
    %v3851 = vsub.f32 %v3847, %v3850
    %v3852 = vrsqrt.pop %v3851
    %s3853 = scalar_lea.vmem [#allocation0], 40
    %v3854 = vld [vmem:[%s3853] sm:$0xff]
    %s3855 = scalar_lea.vmem [#allocation1], 40
    %v3856 = vld [vmem:[%s3855] sm:$0xff]
    %v3857 = vmul.f32 %v3856, %v3845
    %3858 = vadd.xlane.f32.xlu0 %v3857
    %v3859 = vpop.xlane.xlu0 %3858
    %v3860 = vsub.f32 %v3854, %v3859
    %v3861 = vmul.f32 %v3860, %v3852
    %vm3862 = vcmask 1047556
    %vm3863 = vmand %vm3843, %vm3862
    %v3864 = vsel %vm3863, %v3861, 0.0
    %v3865 = vadd.f32 %v3856, %v3864
    %s3866 = scalar_lea.vmem [#allocation1], 40
    %3867 = vst [vmem:[%s3866] sm:$0xff] %v3865
    %s3868 = scalar_lea.vmem [#allocation0], 48
    %v3869 = vld [vmem:[%s3868] sm:$0xff]
    %s3870 = scalar_lea.vmem [#allocation1], 48
    %v3871 = vld [vmem:[%s3870] sm:$0xff]
    %v3872 = vmul.f32 %v3871, %v3845
    %3873 = vadd.xlane.f32.xlu0 %v3872
    %v3874 = vpop.xlane.xlu0 %3873
    %v3875 = vsub.f32 %v3869, %v3874
    %v3876 = vmul.f32 %v3875, %v3852
    %v3877 = vsel %vm3843, %v3876, 0.0
    %v3878 = vadd.f32 %v3871, %v3877
    %s3879 = scalar_lea.vmem [#allocation1], 48
    %3880 = vst [vmem:[%s3879] sm:$0xff] %v3878
    %s3881 = scalar_lea.vmem [#allocation0], 56
    %v3882 = vld [vmem:[%s3881] sm:$0xff]
    %s3883 = scalar_lea.vmem [#allocation1], 56
    %v3884 = vld [vmem:[%s3883] sm:$0xff]
    %v3885 = vmul.f32 %v3884, %v3845
    %3886 = vadd.xlane.f32.xlu0 %v3885
    %v3887 = vpop.xlane.xlu0 %3886
    %v3888 = vsub.f32 %v3882, %v3887
    %v3889 = vmul.f32 %v3888, %v3852
    %v3890 = vsel %vm3843, %v3889, 0.0
    %v3891 = vadd.f32 %v3884, %v3890
    %s3892 = scalar_lea.vmem [#allocation1], 56
    %3893 = vst [vmem:[%s3892] sm:$0xff] %v3891
    %vm3894 = vcmask 376168
    %s3895 = scalar_lea.vmem [#allocation1], 45
    %v3896 = vld [vmem:[%s3895] ss:$0 sm:$0xff]
    %s3897 = scalar_lea.vmem [#allocation0], 45
    %v3898 = vld [vmem:[%s3897] ss:$0 sm:$0xff]
    %v3899 = vmul.f32 %v3896, %v3896
    %3900 = vadd.xlane.f32.xlu0 %v3899
    %v3901 = vpop.xlane.xlu0 %3900
    %v3902 = vsub.f32 %v3898, %v3901
    %v3903 = vrsqrt.pop %v3902
    %s3904 = scalar_lea.vmem [#allocation0], 40
    %v3905 = vld [vmem:[%s3904] sm:$0xff]
    %s3906 = scalar_lea.vmem [#allocation1], 40
    %v3907 = vld [vmem:[%s3906] sm:$0xff]
    %v3908 = vmul.f32 %v3907, %v3896
    %3909 = vadd.xlane.f32.xlu0 %v3908
    %v3910 = vpop.xlane.xlu0 %3909
    %v3911 = vsub.f32 %v3905, %v3910
    %v3912 = vmul.f32 %v3911, %v3903
    %vm3913 = vcmask 1047557
    %vm3914 = vmand %vm3894, %vm3913
    %v3915 = vsel %vm3914, %v3912, 0.0
    %v3916 = vadd.f32 %v3907, %v3915
    %s3917 = scalar_lea.vmem [#allocation1], 40
    %3918 = vst [vmem:[%s3917] sm:$0xff] %v3916
    %s3919 = scalar_lea.vmem [#allocation0], 48
    %v3920 = vld [vmem:[%s3919] sm:$0xff]
    %s3921 = scalar_lea.vmem [#allocation1], 48
    %v3922 = vld [vmem:[%s3921] sm:$0xff]
    %v3923 = vmul.f32 %v3922, %v3896
    %3924 = vadd.xlane.f32.xlu0 %v3923
    %v3925 = vpop.xlane.xlu0 %3924
    %v3926 = vsub.f32 %v3920, %v3925
    %v3927 = vmul.f32 %v3926, %v3903
    %v3928 = vsel %vm3894, %v3927, 0.0
    %v3929 = vadd.f32 %v3922, %v3928
    %s3930 = scalar_lea.vmem [#allocation1], 48
    %3931 = vst [vmem:[%s3930] sm:$0xff] %v3929
    %s3932 = scalar_lea.vmem [#allocation0], 56
    %v3933 = vld [vmem:[%s3932] sm:$0xff]
    %s3934 = scalar_lea.vmem [#allocation1], 56
    %v3935 = vld [vmem:[%s3934] sm:$0xff]
    %v3936 = vmul.f32 %v3935, %v3896
    %3937 = vadd.xlane.f32.xlu0 %v3936
    %v3938 = vpop.xlane.xlu0 %3937
    %v3939 = vsub.f32 %v3933, %v3938
    %v3940 = vmul.f32 %v3939, %v3903
    %v3941 = vsel %vm3894, %v3940, 0.0
    %v3942 = vadd.f32 %v3935, %v3941
    %s3943 = scalar_lea.vmem [#allocation1], 56
    %3944 = vst [vmem:[%s3943] sm:$0xff] %v3942
    %vm3945 = vcmask 384368
    %s3946 = scalar_lea.vmem [#allocation1], 46
    %v3947 = vld [vmem:[%s3946] ss:$0 sm:$0xff]
    %s3948 = scalar_lea.vmem [#allocation0], 46
    %v3949 = vld [vmem:[%s3948] ss:$0 sm:$0xff]
    %v3950 = vmul.f32 %v3947, %v3947
    %3951 = vadd.xlane.f32.xlu0 %v3950
    %v3952 = vpop.xlane.xlu0 %3951
    %v3953 = vsub.f32 %v3949, %v3952
    %v3954 = vrsqrt.pop %v3953
    %s3955 = scalar_lea.vmem [#allocation0], 40
    %v3956 = vld [vmem:[%s3955] sm:$0xff]
    %s3957 = scalar_lea.vmem [#allocation1], 40
    %v3958 = vld [vmem:[%s3957] sm:$0xff]
    %v3959 = vmul.f32 %v3958, %v3947
    %3960 = vadd.xlane.f32.xlu0 %v3959
    %v3961 = vpop.xlane.xlu0 %3960
    %v3962 = vsub.f32 %v3956, %v3961
    %v3963 = vmul.f32 %v3962, %v3954
    %vm3964 = vcmask 1047558
    %vm3965 = vmand %vm3945, %vm3964
    %v3966 = vsel %vm3965, %v3963, 0.0
    %v3967 = vadd.f32 %v3958, %v3966
    %s3968 = scalar_lea.vmem [#allocation1], 40
    %3969 = vst [vmem:[%s3968] sm:$0xff] %v3967
    %s3970 = scalar_lea.vmem [#allocation0], 48
    %v3971 = vld [vmem:[%s3970] sm:$0xff]
    %s3972 = scalar_lea.vmem [#allocation1], 48
    %v3973 = vld [vmem:[%s3972] sm:$0xff]
    %v3974 = vmul.f32 %v3973, %v3947
    %3975 = vadd.xlane.f32.xlu0 %v3974
    %v3976 = vpop.xlane.xlu0 %3975
    %v3977 = vsub.f32 %v3971, %v3976
    %v3978 = vmul.f32 %v3977, %v3954
    %v3979 = vsel %vm3945, %v3978, 0.0
    %v3980 = vadd.f32 %v3973, %v3979
    %s3981 = scalar_lea.vmem [#allocation1], 48
    %3982 = vst [vmem:[%s3981] sm:$0xff] %v3980
    %s3983 = scalar_lea.vmem [#allocation0], 56
    %v3984 = vld [vmem:[%s3983] sm:$0xff]
    %s3985 = scalar_lea.vmem [#allocation1], 56
    %v3986 = vld [vmem:[%s3985] sm:$0xff]
    %v3987 = vmul.f32 %v3986, %v3947
    %3988 = vadd.xlane.f32.xlu0 %v3987
    %v3989 = vpop.xlane.xlu0 %3988
    %v3990 = vsub.f32 %v3984, %v3989
    %v3991 = vmul.f32 %v3990, %v3954
    %v3992 = vsel %vm3945, %v3991, 0.0
    %v3993 = vadd.f32 %v3986, %v3992
    %s3994 = scalar_lea.vmem [#allocation1], 56
    %3995 = vst [vmem:[%s3994] sm:$0xff] %v3993
    %vm3996 = vcmask 392568
    %s3997 = scalar_lea.vmem [#allocation1], 47
    %v3998 = vld [vmem:[%s3997] ss:$0 sm:$0xff]
    %s3999 = scalar_lea.vmem [#allocation0], 47
    %v4000 = vld [vmem:[%s3999] ss:$0 sm:$0xff]
    %v4001 = vmul.f32 %v3998, %v3998
    %4002 = vadd.xlane.f32.xlu0 %v4001
    %v4003 = vpop.xlane.xlu0 %4002
    %v4004 = vsub.f32 %v4000, %v4003
    %v4005 = vrsqrt.pop %v4004
    %s4006 = scalar_lea.vmem [#allocation0], 40
    %v4007 = vld [vmem:[%s4006] sm:$0xff]
    %s4008 = scalar_lea.vmem [#allocation1], 40
    %v4009 = vld [vmem:[%s4008] sm:$0xff]
    %v4010 = vmul.f32 %v4009, %v3998
    %4011 = vadd.xlane.f32.xlu0 %v4010
    %v4012 = vpop.xlane.xlu0 %4011
    %v4013 = vsub.f32 %v4007, %v4012
    %v4014 = vmul.f32 %v4013, %v4005
    %vm4015 = vcmask 1047559
    %vm4016 = vmand %vm3996, %vm4015
    %v4017 = vsel %vm4016, %v4014, 0.0
    %v4018 = vadd.f32 %v4009, %v4017
    %s4019 = scalar_lea.vmem [#allocation1], 40
    %4020 = vst [vmem:[%s4019] sm:$0xff] %v4018
    %s4021 = scalar_lea.vmem [#allocation0], 48
    %v4022 = vld [vmem:[%s4021] sm:$0xff]
    %s4023 = scalar_lea.vmem [#allocation1], 48
    %v4024 = vld [vmem:[%s4023] sm:$0xff]
    %v4025 = vmul.f32 %v4024, %v3998
    %4026 = vadd.xlane.f32.xlu0 %v4025
    %v4027 = vpop.xlane.xlu0 %4026
    %v4028 = vsub.f32 %v4022, %v4027
    %v4029 = vmul.f32 %v4028, %v4005
    %v4030 = vsel %vm3996, %v4029, 0.0
    %v4031 = vadd.f32 %v4024, %v4030
    %s4032 = scalar_lea.vmem [#allocation1], 48
    %4033 = vst [vmem:[%s4032] sm:$0xff] %v4031
    %s4034 = scalar_lea.vmem [#allocation0], 56
    %v4035 = vld [vmem:[%s4034] sm:$0xff]
    %s4036 = scalar_lea.vmem [#allocation1], 56
    %v4037 = vld [vmem:[%s4036] sm:$0xff]
    %v4038 = vmul.f32 %v4037, %v3998
    %4039 = vadd.xlane.f32.xlu0 %v4038
    %v4040 = vpop.xlane.xlu0 %4039
    %v4041 = vsub.f32 %v4035, %v4040
    %v4042 = vmul.f32 %v4041, %v4005
    %v4043 = vsel %vm3996, %v4042, 0.0
    %v4044 = vadd.f32 %v4037, %v4043
    %s4045 = scalar_lea.vmem [#allocation1], 56
    %4046 = vst [vmem:[%s4045] sm:$0xff] %v4044
    %vm4047 = vcmask 400768
    %s4048 = scalar_lea.vmem [#allocation1], 48
    %v4049 = vld [vmem:[%s4048] ss:$0 sm:$0xff]
    %s4050 = scalar_lea.vmem [#allocation0], 48
    %v4051 = vld [vmem:[%s4050] ss:$0 sm:$0xff]
    %v4052 = vmul.f32 %v4049, %v4049
    %4053 = vadd.xlane.f32.xlu0 %v4052
    %v4054 = vpop.xlane.xlu0 %4053
    %v4055 = vsub.f32 %v4051, %v4054
    %v4056 = vrsqrt.pop %v4055
    %s4057 = scalar_lea.vmem [#allocation0], 48
    %v4058 = vld [vmem:[%s4057] sm:$0xff]
    %s4059 = scalar_lea.vmem [#allocation1], 48
    %v4060 = vld [vmem:[%s4059] sm:$0xff]
    %v4061 = vmul.f32 %v4060, %v4049
    %4062 = vadd.xlane.f32.xlu0 %v4061
    %v4063 = vpop.xlane.xlu0 %4062
    %v4064 = vsub.f32 %v4058, %v4063
    %v4065 = vmul.f32 %v4064, %v4056
    %v4066 = vsel %vm4047, %v4065, 0.0
    %v4067 = vadd.f32 %v4060, %v4066
    %s4068 = scalar_lea.vmem [#allocation1], 48
    %4069 = vst [vmem:[%s4068] sm:$0xff] %v4067
    %s4070 = scalar_lea.vmem [#allocation0], 56
    %v4071 = vld [vmem:[%s4070] sm:$0xff]
    %s4072 = scalar_lea.vmem [#allocation1], 56
    %v4073 = vld [vmem:[%s4072] sm:$0xff]
    %v4074 = vmul.f32 %v4073, %v4049
    %4075 = vadd.xlane.f32.xlu0 %v4074
    %v4076 = vpop.xlane.xlu0 %4075
    %v4077 = vsub.f32 %v4071, %v4076
    %v4078 = vmul.f32 %v4077, %v4056
    %v4079 = vsel %vm4047, %v4078, 0.0
    %v4080 = vadd.f32 %v4073, %v4079
    %s4081 = scalar_lea.vmem [#allocation1], 56
    %4082 = vst [vmem:[%s4081] sm:$0xff] %v4080
    %vm4083 = vcmask 408968
    %s4084 = scalar_lea.vmem [#allocation1], 49
    %v4085 = vld [vmem:[%s4084] ss:$0 sm:$0xff]
    %s4086 = scalar_lea.vmem [#allocation0], 49
    %v4087 = vld [vmem:[%s4086] ss:$0 sm:$0xff]
    %v4088 = vmul.f32 %v4085, %v4085
    %4089 = vadd.xlane.f32.xlu0 %v4088
    %v4090 = vpop.xlane.xlu0 %4089
    %v4091 = vsub.f32 %v4087, %v4090
    %v4092 = vrsqrt.pop %v4091
    %s4093 = scalar_lea.vmem [#allocation0], 48
    %v4094 = vld [vmem:[%s4093] sm:$0xff]
    %s4095 = scalar_lea.vmem [#allocation1], 48
    %v4096 = vld [vmem:[%s4095] sm:$0xff]
    %v4097 = vmul.f32 %v4096, %v4085
    %4098 = vadd.xlane.f32.xlu0 %v4097
    %v4099 = vpop.xlane.xlu0 %4098
    %v4100 = vsub.f32 %v4094, %v4099
    %v4101 = vmul.f32 %v4100, %v4092
    %vm4102 = vcmask 1047553
    %vm4103 = vmand %vm4083, %vm4102
    %v4104 = vsel %vm4103, %v4101, 0.0
    %v4105 = vadd.f32 %v4096, %v4104
    %s4106 = scalar_lea.vmem [#allocation1], 48
    %4107 = vst [vmem:[%s4106] sm:$0xff] %v4105
    %s4108 = scalar_lea.vmem [#allocation0], 56
    %v4109 = vld [vmem:[%s4108] sm:$0xff]
    %s4110 = scalar_lea.vmem [#allocation1], 56
    %v4111 = vld [vmem:[%s4110] sm:$0xff]
    %v4112 = vmul.f32 %v4111, %v4085
    %4113 = vadd.xlane.f32.xlu0 %v4112
    %v4114 = vpop.xlane.xlu0 %4113
    %v4115 = vsub.f32 %v4109, %v4114
    %v4116 = vmul.f32 %v4115, %v4092
    %v4117 = vsel %vm4083, %v4116, 0.0
    %v4118 = vadd.f32 %v4111, %v4117
    %s4119 = scalar_lea.vmem [#allocation1], 56
    %4120 = vst [vmem:[%s4119] sm:$0xff] %v4118
    %vm4121 = vcmask 417168
    %s4122 = scalar_lea.vmem [#allocation1], 50
    %v4123 = vld [vmem:[%s4122] ss:$0 sm:$0xff]
    %s4124 = scalar_lea.vmem [#allocation0], 50
    %v4125 = vld [vmem:[%s4124] ss:$0 sm:$0xff]
    %v4126 = vmul.f32 %v4123, %v4123
    %4127 = vadd.xlane.f32.xlu0 %v4126
    %v4128 = vpop.xlane.xlu0 %4127
    %v4129 = vsub.f32 %v4125, %v4128
    %v4130 = vrsqrt.pop %v4129
    %s4131 = scalar_lea.vmem [#allocation0], 48
    %v4132 = vld [vmem:[%s4131] sm:$0xff]
    %s4133 = scalar_lea.vmem [#allocation1], 48
    %v4134 = vld [vmem:[%s4133] sm:$0xff]
    %v4135 = vmul.f32 %v4134, %v4123
    %4136 = vadd.xlane.f32.xlu0 %v4135
    %v4137 = vpop.xlane.xlu0 %4136
    %v4138 = vsub.f32 %v4132, %v4137
    %v4139 = vmul.f32 %v4138, %v4130
    %vm4140 = vcmask 1047554
    %vm4141 = vmand %vm4121, %vm4140
    %v4142 = vsel %vm4141, %v4139, 0.0
    %v4143 = vadd.f32 %v4134, %v4142
    %s4144 = scalar_lea.vmem [#allocation1], 48
    %4145 = vst [vmem:[%s4144] sm:$0xff] %v4143
    %s4146 = scalar_lea.vmem [#allocation0], 56
    %v4147 = vld [vmem:[%s4146] sm:$0xff]
    %s4148 = scalar_lea.vmem [#allocation1], 56
    %v4149 = vld [vmem:[%s4148] sm:$0xff]
    %v4150 = vmul.f32 %v4149, %v4123
    %4151 = vadd.xlane.f32.xlu0 %v4150
    %v4152 = vpop.xlane.xlu0 %4151
    %v4153 = vsub.f32 %v4147, %v4152
    %v4154 = vmul.f32 %v4153, %v4130
    %v4155 = vsel %vm4121, %v4154, 0.0
    %v4156 = vadd.f32 %v4149, %v4155
    %s4157 = scalar_lea.vmem [#allocation1], 56
    %4158 = vst [vmem:[%s4157] sm:$0xff] %v4156
    %vm4159 = vcmask 425368
    %s4160 = scalar_lea.vmem [#allocation1], 51
    %v4161 = vld [vmem:[%s4160] ss:$0 sm:$0xff]
    %s4162 = scalar_lea.vmem [#allocation0], 51
    %v4163 = vld [vmem:[%s4162] ss:$0 sm:$0xff]
    %v4164 = vmul.f32 %v4161, %v4161
    %4165 = vadd.xlane.f32.xlu0 %v4164
    %v4166 = vpop.xlane.xlu0 %4165
    %v4167 = vsub.f32 %v4163, %v4166
    %v4168 = vrsqrt.pop %v4167
    %s4169 = scalar_lea.vmem [#allocation0], 48
    %v4170 = vld [vmem:[%s4169] sm:$0xff]
    %s4171 = scalar_lea.vmem [#allocation1], 48
    %v4172 = vld [vmem:[%s4171] sm:$0xff]
    %v4173 = vmul.f32 %v4172, %v4161
    %4174 = vadd.xlane.f32.xlu0 %v4173
    %v4175 = vpop.xlane.xlu0 %4174
    %v4176 = vsub.f32 %v4170, %v4175
    %v4177 = vmul.f32 %v4176, %v4168
    %vm4178 = vcmask 1047555
    %vm4179 = vmand %vm4159, %vm4178
    %v4180 = vsel %vm4179, %v4177, 0.0
    %v4181 = vadd.f32 %v4172, %v4180
    %s4182 = scalar_lea.vmem [#allocation1], 48
    %4183 = vst [vmem:[%s4182] sm:$0xff] %v4181
    %s4184 = scalar_lea.vmem [#allocation0], 56
    %v4185 = vld [vmem:[%s4184] sm:$0xff]
    %s4186 = scalar_lea.vmem [#allocation1], 56
    %v4187 = vld [vmem:[%s4186] sm:$0xff]
    %v4188 = vmul.f32 %v4187, %v4161
    %4189 = vadd.xlane.f32.xlu0 %v4188
    %v4190 = vpop.xlane.xlu0 %4189
    %v4191 = vsub.f32 %v4185, %v4190
    %v4192 = vmul.f32 %v4191, %v4168
    %v4193 = vsel %vm4159, %v4192, 0.0
    %v4194 = vadd.f32 %v4187, %v4193
    %s4195 = scalar_lea.vmem [#allocation1], 56
    %4196 = vst [vmem:[%s4195] sm:$0xff] %v4194
    %vm4197 = vcmask 433568
    %s4198 = scalar_lea.vmem [#allocation1], 52
    %v4199 = vld [vmem:[%s4198] ss:$0 sm:$0xff]
    %s4200 = scalar_lea.vmem [#allocation0], 52
    %v4201 = vld [vmem:[%s4200] ss:$0 sm:$0xff]
    %v4202 = vmul.f32 %v4199, %v4199
    %4203 = vadd.xlane.f32.xlu0 %v4202
    %v4204 = vpop.xlane.xlu0 %4203
    %v4205 = vsub.f32 %v4201, %v4204
    %v4206 = vrsqrt.pop %v4205
    %s4207 = scalar_lea.vmem [#allocation0], 48
    %v4208 = vld [vmem:[%s4207] sm:$0xff]
    %s4209 = scalar_lea.vmem [#allocation1], 48
    %v4210 = vld [vmem:[%s4209] sm:$0xff]
    %v4211 = vmul.f32 %v4210, %v4199
    %4212 = vadd.xlane.f32.xlu0 %v4211
    %v4213 = vpop.xlane.xlu0 %4212
    %v4214 = vsub.f32 %v4208, %v4213
    %v4215 = vmul.f32 %v4214, %v4206
    %vm4216 = vcmask 1047556
    %vm4217 = vmand %vm4197, %vm4216
    %v4218 = vsel %vm4217, %v4215, 0.0
    %v4219 = vadd.f32 %v4210, %v4218
    %s4220 = scalar_lea.vmem [#allocation1], 48
    %4221 = vst [vmem:[%s4220] sm:$0xff] %v4219
    %s4222 = scalar_lea.vmem [#allocation0], 56
    %v4223 = vld [vmem:[%s4222] sm:$0xff]
    %s4224 = scalar_lea.vmem [#allocation1], 56
    %v4225 = vld [vmem:[%s4224] sm:$0xff]
    %v4226 = vmul.f32 %v4225, %v4199
    %4227 = vadd.xlane.f32.xlu0 %v4226
    %v4228 = vpop.xlane.xlu0 %4227
    %v4229 = vsub.f32 %v4223, %v4228
    %v4230 = vmul.f32 %v4229, %v4206
    %v4231 = vsel %vm4197, %v4230, 0.0
    %v4232 = vadd.f32 %v4225, %v4231
    %s4233 = scalar_lea.vmem [#allocation1], 56
    %4234 = vst [vmem:[%s4233] sm:$0xff] %v4232
    %vm4235 = vcmask 441768
    %s4236 = scalar_lea.vmem [#allocation1], 53
    %v4237 = vld [vmem:[%s4236] ss:$0 sm:$0xff]
    %s4238 = scalar_lea.vmem [#allocation0], 53
    %v4239 = vld [vmem:[%s4238] ss:$0 sm:$0xff]
    %v4240 = vmul.f32 %v4237, %v4237
    %4241 = vadd.xlane.f32.xlu0 %v4240
    %v4242 = vpop.xlane.xlu0 %4241
    %v4243 = vsub.f32 %v4239, %v4242
    %v4244 = vrsqrt.pop %v4243
    %s4245 = scalar_lea.vmem [#allocation0], 48
    %v4246 = vld [vmem:[%s4245] sm:$0xff]
    %s4247 = scalar_lea.vmem [#allocation1], 48
    %v4248 = vld [vmem:[%s4247] sm:$0xff]
    %v4249 = vmul.f32 %v4248, %v4237
    %4250 = vadd.xlane.f32.xlu0 %v4249
    %v4251 = vpop.xlane.xlu0 %4250
    %v4252 = vsub.f32 %v4246, %v4251
    %v4253 = vmul.f32 %v4252, %v4244
    %vm4254 = vcmask 1047557
    %vm4255 = vmand %vm4235, %vm4254
    %v4256 = vsel %vm4255, %v4253, 0.0
    %v4257 = vadd.f32 %v4248, %v4256
    %s4258 = scalar_lea.vmem [#allocation1], 48
    %4259 = vst [vmem:[%s4258] sm:$0xff] %v4257
    %s4260 = scalar_lea.vmem [#allocation0], 56
    %v4261 = vld [vmem:[%s4260] sm:$0xff]
    %s4262 = scalar_lea.vmem [#allocation1], 56
    %v4263 = vld [vmem:[%s4262] sm:$0xff]
    %v4264 = vmul.f32 %v4263, %v4237
    %4265 = vadd.xlane.f32.xlu0 %v4264
    %v4266 = vpop.xlane.xlu0 %4265
    %v4267 = vsub.f32 %v4261, %v4266
    %v4268 = vmul.f32 %v4267, %v4244
    %v4269 = vsel %vm4235, %v4268, 0.0
    %v4270 = vadd.f32 %v4263, %v4269
    %s4271 = scalar_lea.vmem [#allocation1], 56
    %4272 = vst [vmem:[%s4271] sm:$0xff] %v4270
    %vm4273 = vcmask 449968
    %s4274 = scalar_lea.vmem [#allocation1], 54
    %v4275 = vld [vmem:[%s4274] ss:$0 sm:$0xff]
    %s4276 = scalar_lea.vmem [#allocation0], 54
    %v4277 = vld [vmem:[%s4276] ss:$0 sm:$0xff]
    %v4278 = vmul.f32 %v4275, %v4275
    %4279 = vadd.xlane.f32.xlu0 %v4278
    %v4280 = vpop.xlane.xlu0 %4279
    %v4281 = vsub.f32 %v4277, %v4280
    %v4282 = vrsqrt.pop %v4281
    %s4283 = scalar_lea.vmem [#allocation0], 48
    %v4284 = vld [vmem:[%s4283] sm:$0xff]
    %s4285 = scalar_lea.vmem [#allocation1], 48
    %v4286 = vld [vmem:[%s4285] sm:$0xff]
    %v4287 = vmul.f32 %v4286, %v4275
    %4288 = vadd.xlane.f32.xlu0 %v4287
    %v4289 = vpop.xlane.xlu0 %4288
    %v4290 = vsub.f32 %v4284, %v4289
    %v4291 = vmul.f32 %v4290, %v4282
    %vm4292 = vcmask 1047558
    %vm4293 = vmand %vm4273, %vm4292
    %v4294 = vsel %vm4293, %v4291, 0.0
    %v4295 = vadd.f32 %v4286, %v4294
    %s4296 = scalar_lea.vmem [#allocation1], 48
    %4297 = vst [vmem:[%s4296] sm:$0xff] %v4295
    %s4298 = scalar_lea.vmem [#allocation0], 56
    %v4299 = vld [vmem:[%s4298] sm:$0xff]
    %s4300 = scalar_lea.vmem [#allocation1], 56
    %v4301 = vld [vmem:[%s4300] sm:$0xff]
    %v4302 = vmul.f32 %v4301, %v4275
    %4303 = vadd.xlane.f32.xlu0 %v4302
    %v4304 = vpop.xlane.xlu0 %4303
    %v4305 = vsub.f32 %v4299, %v4304
    %v4306 = vmul.f32 %v4305, %v4282
    %v4307 = vsel %vm4273, %v4306, 0.0
    %v4308 = vadd.f32 %v4301, %v4307
    %s4309 = scalar_lea.vmem [#allocation1], 56
    %4310 = vst [vmem:[%s4309] sm:$0xff] %v4308
    %vm4311 = vcmask 458168
    %s4312 = scalar_lea.vmem [#allocation1], 55
    %v4313 = vld [vmem:[%s4312] ss:$0 sm:$0xff]
    %s4314 = scalar_lea.vmem [#allocation0], 55
    %v4315 = vld [vmem:[%s4314] ss:$0 sm:$0xff]
    %v4316 = vmul.f32 %v4313, %v4313
    %4317 = vadd.xlane.f32.xlu0 %v4316
    %v4318 = vpop.xlane.xlu0 %4317
    %v4319 = vsub.f32 %v4315, %v4318
    %v4320 = vrsqrt.pop %v4319
    %s4321 = scalar_lea.vmem [#allocation0], 48
    %v4322 = vld [vmem:[%s4321] sm:$0xff]
    %s4323 = scalar_lea.vmem [#allocation1], 48
    %v4324 = vld [vmem:[%s4323] sm:$0xff]
    %v4325 = vmul.f32 %v4324, %v4313
    %4326 = vadd.xlane.f32.xlu0 %v4325
    %v4327 = vpop.xlane.xlu0 %4326
    %v4328 = vsub.f32 %v4322, %v4327
    %v4329 = vmul.f32 %v4328, %v4320
    %vm4330 = vcmask 1047559
    %vm4331 = vmand %vm4311, %vm4330
    %v4332 = vsel %vm4331, %v4329, 0.0
    %v4333 = vadd.f32 %v4324, %v4332
    %s4334 = scalar_lea.vmem [#allocation1], 48
    %4335 = vst [vmem:[%s4334] sm:$0xff] %v4333
    %s4336 = scalar_lea.vmem [#allocation0], 56
    %v4337 = vld [vmem:[%s4336] sm:$0xff]
    %s4338 = scalar_lea.vmem [#allocation1], 56
    %v4339 = vld [vmem:[%s4338] sm:$0xff]
    %v4340 = vmul.f32 %v4339, %v4313
    %4341 = vadd.xlane.f32.xlu0 %v4340
    %v4342 = vpop.xlane.xlu0 %4341
    %v4343 = vsub.f32 %v4337, %v4342
    %v4344 = vmul.f32 %v4343, %v4320
    %v4345 = vsel %vm4311, %v4344, 0.0
    %v4346 = vadd.f32 %v4339, %v4345
    %s4347 = scalar_lea.vmem [#allocation1], 56
    %4348 = vst [vmem:[%s4347] sm:$0xff] %v4346
    %vm4349 = vcmask 466368
    %s4350 = scalar_lea.vmem [#allocation1], 56
    %v4351 = vld [vmem:[%s4350] ss:$0 sm:$0xff]
    %s4352 = scalar_lea.vmem [#allocation0], 56
    %v4353 = vld [vmem:[%s4352] ss:$0 sm:$0xff]
    %v4354 = vmul.f32 %v4351, %v4351
    %4355 = vadd.xlane.f32.xlu0 %v4354
    %v4356 = vpop.xlane.xlu0 %4355
    %v4357 = vsub.f32 %v4353, %v4356
    %v4358 = vrsqrt.pop %v4357
    %s4359 = scalar_lea.vmem [#allocation0], 56
    %v4360 = vld [vmem:[%s4359] sm:$0xff]
    %s4361 = scalar_lea.vmem [#allocation1], 56
    %v4362 = vld [vmem:[%s4361] sm:$0xff]
    %v4363 = vmul.f32 %v4362, %v4351
    %4364 = vadd.xlane.f32.xlu0 %v4363
    %v4365 = vpop.xlane.xlu0 %4364
    %v4366 = vsub.f32 %v4360, %v4365
    %v4367 = vmul.f32 %v4366, %v4358
    %v4368 = vsel %vm4349, %v4367, 0.0
    %v4369 = vadd.f32 %v4362, %v4368
    %s4370 = scalar_lea.vmem [#allocation1], 56
    %4371 = vst [vmem:[%s4370] sm:$0xff] %v4369
    %vm4372 = vcmask 474568
    %s4373 = scalar_lea.vmem [#allocation1], 57
    %v4374 = vld [vmem:[%s4373] ss:$0 sm:$0xff]
    %s4375 = scalar_lea.vmem [#allocation0], 57
    %v4376 = vld [vmem:[%s4375] ss:$0 sm:$0xff]
    %v4377 = vmul.f32 %v4374, %v4374
    %4378 = vadd.xlane.f32.xlu0 %v4377
    %v4379 = vpop.xlane.xlu0 %4378
    %v4380 = vsub.f32 %v4376, %v4379
    %v4381 = vrsqrt.pop %v4380
    %s4382 = scalar_lea.vmem [#allocation0], 56
    %v4383 = vld [vmem:[%s4382] sm:$0xff]
    %s4384 = scalar_lea.vmem [#allocation1], 56
    %v4385 = vld [vmem:[%s4384] sm:$0xff]
    %v4386 = vmul.f32 %v4385, %v4374
    %4387 = vadd.xlane.f32.xlu0 %v4386
    %v4388 = vpop.xlane.xlu0 %4387
    %v4389 = vsub.f32 %v4383, %v4388
    %v4390 = vmul.f32 %v4389, %v4381
    %vm4391 = vcmask 1047553
    %vm4392 = vmand %vm4372, %vm4391
    %v4393 = vsel %vm4392, %v4390, 0.0
    %v4394 = vadd.f32 %v4385, %v4393
    %s4395 = scalar_lea.vmem [#allocation1], 56
    %4396 = vst [vmem:[%s4395] sm:$0xff] %v4394
    %vm4397 = vcmask 482768
    %s4398 = scalar_lea.vmem [#allocation1], 58
    %v4399 = vld [vmem:[%s4398] ss:$0 sm:$0xff]
    %s4400 = scalar_lea.vmem [#allocation0], 58
    %v4401 = vld [vmem:[%s4400] ss:$0 sm:$0xff]
    %v4402 = vmul.f32 %v4399, %v4399
    %4403 = vadd.xlane.f32.xlu0 %v4402
    %v4404 = vpop.xlane.xlu0 %4403
    %v4405 = vsub.f32 %v4401, %v4404
    %v4406 = vrsqrt.pop %v4405
    %s4407 = scalar_lea.vmem [#allocation0], 56
    %v4408 = vld [vmem:[%s4407] sm:$0xff]
    %s4409 = scalar_lea.vmem [#allocation1], 56
    %v4410 = vld [vmem:[%s4409] sm:$0xff]
    %v4411 = vmul.f32 %v4410, %v4399
    %4412 = vadd.xlane.f32.xlu0 %v4411
    %v4413 = vpop.xlane.xlu0 %4412
    %v4414 = vsub.f32 %v4408, %v4413
    %v4415 = vmul.f32 %v4414, %v4406
    %vm4416 = vcmask 1047554
    %vm4417 = vmand %vm4397, %vm4416
    %v4418 = vsel %vm4417, %v4415, 0.0
    %v4419 = vadd.f32 %v4410, %v4418
    %s4420 = scalar_lea.vmem [#allocation1], 56
    %4421 = vst [vmem:[%s4420] sm:$0xff] %v4419
    %vm4422 = vcmask 490968
    %s4423 = scalar_lea.vmem [#allocation1], 59
    %v4424 = vld [vmem:[%s4423] ss:$0 sm:$0xff]
    %s4425 = scalar_lea.vmem [#allocation0], 59
    %v4426 = vld [vmem:[%s4425] ss:$0 sm:$0xff]
    %v4427 = vmul.f32 %v4424, %v4424
    %4428 = vadd.xlane.f32.xlu0 %v4427
    %v4429 = vpop.xlane.xlu0 %4428
    %v4430 = vsub.f32 %v4426, %v4429
    %v4431 = vrsqrt.pop %v4430
    %s4432 = scalar_lea.vmem [#allocation0], 56
    %v4433 = vld [vmem:[%s4432] sm:$0xff]
    %s4434 = scalar_lea.vmem [#allocation1], 56
    %v4435 = vld [vmem:[%s4434] sm:$0xff]
    %v4436 = vmul.f32 %v4435, %v4424
    %4437 = vadd.xlane.f32.xlu0 %v4436
    %v4438 = vpop.xlane.xlu0 %4437
    %v4439 = vsub.f32 %v4433, %v4438
    %v4440 = vmul.f32 %v4439, %v4431
    %vm4441 = vcmask 1047555
    %vm4442 = vmand %vm4422, %vm4441
    %v4443 = vsel %vm4442, %v4440, 0.0
    %v4444 = vadd.f32 %v4435, %v4443
    %s4445 = scalar_lea.vmem [#allocation1], 56
    %4446 = vst [vmem:[%s4445] sm:$0xff] %v4444
    %vm4447 = vcmask 499168
    %s4448 = scalar_lea.vmem [#allocation1], 60
    %v4449 = vld [vmem:[%s4448] ss:$0 sm:$0xff]
    %s4450 = scalar_lea.vmem [#allocation0], 60
    %v4451 = vld [vmem:[%s4450] ss:$0 sm:$0xff]
    %v4452 = vmul.f32 %v4449, %v4449
    %4453 = vadd.xlane.f32.xlu0 %v4452
    %v4454 = vpop.xlane.xlu0 %4453
    %v4455 = vsub.f32 %v4451, %v4454
    %v4456 = vrsqrt.pop %v4455
    %s4457 = scalar_lea.vmem [#allocation0], 56
    %v4458 = vld [vmem:[%s4457] sm:$0xff]
    %s4459 = scalar_lea.vmem [#allocation1], 56
    %v4460 = vld [vmem:[%s4459] sm:$0xff]
    %v4461 = vmul.f32 %v4460, %v4449
    %4462 = vadd.xlane.f32.xlu0 %v4461
    %v4463 = vpop.xlane.xlu0 %4462
    %v4464 = vsub.f32 %v4458, %v4463
    %v4465 = vmul.f32 %v4464, %v4456
    %vm4466 = vcmask 1047556
    %vm4467 = vmand %vm4447, %vm4466
    %v4468 = vsel %vm4467, %v4465, 0.0
    %v4469 = vadd.f32 %v4460, %v4468
    %s4470 = scalar_lea.vmem [#allocation1], 56
    %4471 = vst [vmem:[%s4470] sm:$0xff] %v4469
    %vm4472 = vcmask 507368
    %s4473 = scalar_lea.vmem [#allocation1], 61
    %v4474 = vld [vmem:[%s4473] ss:$0 sm:$0xff]
    %s4475 = scalar_lea.vmem [#allocation0], 61
    %v4476 = vld [vmem:[%s4475] ss:$0 sm:$0xff]
    %v4477 = vmul.f32 %v4474, %v4474
    %4478 = vadd.xlane.f32.xlu0 %v4477
    %v4479 = vpop.xlane.xlu0 %4478
    %v4480 = vsub.f32 %v4476, %v4479
    %v4481 = vrsqrt.pop %v4480
    %s4482 = scalar_lea.vmem [#allocation0], 56
    %v4483 = vld [vmem:[%s4482] sm:$0xff]
    %s4484 = scalar_lea.vmem [#allocation1], 56
    %v4485 = vld [vmem:[%s4484] sm:$0xff]
    %v4486 = vmul.f32 %v4485, %v4474
    %4487 = vadd.xlane.f32.xlu0 %v4486
    %v4488 = vpop.xlane.xlu0 %4487
    %v4489 = vsub.f32 %v4483, %v4488
    %v4490 = vmul.f32 %v4489, %v4481
    %vm4491 = vcmask 1047557
    %vm4492 = vmand %vm4472, %vm4491
    %v4493 = vsel %vm4492, %v4490, 0.0
    %v4494 = vadd.f32 %v4485, %v4493
    %s4495 = scalar_lea.vmem [#allocation1], 56
    %4496 = vst [vmem:[%s4495] sm:$0xff] %v4494
    %vm4497 = vcmask 515568
    %s4498 = scalar_lea.vmem [#allocation1], 62
    %v4499 = vld [vmem:[%s4498] ss:$0 sm:$0xff]
    %s4500 = scalar_lea.vmem [#allocation0], 62
    %v4501 = vld [vmem:[%s4500] ss:$0 sm:$0xff]
    %v4502 = vmul.f32 %v4499, %v4499
    %4503 = vadd.xlane.f32.xlu0 %v4502
    %v4504 = vpop.xlane.xlu0 %4503
    %v4505 = vsub.f32 %v4501, %v4504
    %v4506 = vrsqrt.pop %v4505
    %s4507 = scalar_lea.vmem [#allocation0], 56
    %v4508 = vld [vmem:[%s4507] sm:$0xff]
    %s4509 = scalar_lea.vmem [#allocation1], 56
    %v4510 = vld [vmem:[%s4509] sm:$0xff]
    %v4511 = vmul.f32 %v4510, %v4499
    %4512 = vadd.xlane.f32.xlu0 %v4511
    %v4513 = vpop.xlane.xlu0 %4512
    %v4514 = vsub.f32 %v4508, %v4513
    %v4515 = vmul.f32 %v4514, %v4506
    %vm4516 = vcmask 1047558
    %vm4517 = vmand %vm4497, %vm4516
    %v4518 = vsel %vm4517, %v4515, 0.0
    %v4519 = vadd.f32 %v4510, %v4518
    %s4520 = scalar_lea.vmem [#allocation1], 56
    %4521 = vst [vmem:[%s4520] sm:$0xff] %v4519
    %vm4522 = vcmask 523768
    %s4523 = scalar_lea.vmem [#allocation1], 63
    %v4524 = vld [vmem:[%s4523] ss:$0 sm:$0xff]
    %s4525 = scalar_lea.vmem [#allocation0], 63
    %v4526 = vld [vmem:[%s4525] ss:$0 sm:$0xff]
    %v4527 = vmul.f32 %v4524, %v4524
    %4528 = vadd.xlane.f32.xlu0 %v4527
    %v4529 = vpop.xlane.xlu0 %4528
    %v4530 = vsub.f32 %v4526, %v4529
    %v4531 = vrsqrt.pop %v4530
    %s4532 = scalar_lea.vmem [#allocation0], 56
    %v4533 = vld [vmem:[%s4532] sm:$0xff]
    %s4534 = scalar_lea.vmem [#allocation1], 56
    %v4535 = vld [vmem:[%s4534] sm:$0xff]
    %v4536 = vmul.f32 %v4535, %v4524
    %4537 = vadd.xlane.f32.xlu0 %v4536
    %v4538 = vpop.xlane.xlu0 %4537
    %v4539 = vsub.f32 %v4533, %v4538
    %v4540 = vmul.f32 %v4539, %v4531
    %vm4541 = vcmask 1047559
    %vm4542 = vmand %vm4522, %vm4541
    %v4543 = vsel %vm4542, %v4540, 0.0
    %v4544 = vadd.f32 %v4535, %v4543
    %s4545 = scalar_lea.vmem [#allocation1], 56
    %4546 = vst [vmem:[%s4545] sm:$0xff] %v4544
    // Predicated region
    $region36: #{custom-call.6} parent=1 // pred_check
      _
    $region37: #{custom-call.6} parent=1 // pred_check_branch
      %4548 = sbr.rel (0) target = $region39
    $region38: #{custom-call.6} parent=1 // pred_region
      // Predicated region
      $region40: #{custom-call.6} parent=38 // pred_check
        _
      $region41: #{custom-call.6} parent=38 // pred_check_branch
        %4550 = sbr.rel (0) target = $region43
      $region42: #{custom-call.6} parent=38 // pred_region
        // Predicated region
        $region55: #{custom-call.6} parent=42 // pred_check
          _
        $region56: #{custom-call.6} parent=42 // pred_check_branch
          %4579 = sbr.rel (0) target = $region58
        $region57: #{custom-call.6} parent=42 // pred_region
          loop: start=0, step=1, limit=1
          $region59: #{custom-call.6} parent=57 // loop_pre_header
            _
          $region60: #{custom-call.6} parent=57 // loop_header
            %s4581 = sphi 0, %s4585
            %p4582 = scmp.ge.s32.totalorder %s4581, 1
            %s4586 = sphi [#allocation1], [#allocation1]
            %s4587 = sphi %s1, %s1
          $region61: #{custom-call.6} parent=57 // loop_header_branch
            %4584 = sbr.rel (%p4582) target = $region65
          $region62: #{custom-call.6} parent=57 // loop_body
            %v4588 = vld [vmem:[%s4586] sm:$0xff]
            %4589 = vst [vmem:[%s4587] sm:$0xff] %v4588
            %v4590 = vld [vmem:[%s4586 + $0x8] sm:$0xff]
            %4591 = vst [vmem:[%s4587 + $0x8] sm:$0xff] %v4590
            %v4592 = vld [vmem:[%s4586 + $0x10] sm:$0xff]
            %4593 = vst [vmem:[%s4587 + $0x10] sm:$0xff] %v4592
            %v4594 = vld [vmem:[%s4586 + $0x18] sm:$0xff]
            %4595 = vst [vmem:[%s4587 + $0x18] sm:$0xff] %v4594
            %v4596 = vld [vmem:[%s4586 + $0x20] sm:$0xff]
            %4597 = vst [vmem:[%s4587 + $0x20] sm:$0xff] %v4596
            %v4598 = vld [vmem:[%s4586 + $0x28] sm:$0xff]
            %4599 = vst [vmem:[%s4587 + $0x28] sm:$0xff] %v4598
            %v4600 = vld [vmem:[%s4586 + $0x30] sm:$0xff]
            %4601 = vst [vmem:[%s4587 + $0x30] sm:$0xff] %v4600
            %v4602 = vld [vmem:[%s4586 + $0x38] sm:$0xff]
            %4603 = vst [vmem:[%s4587 + $0x38] sm:$0xff] %v4602
          $region63: #{custom-call.6} parent=57 // loop_footer
            %s4585 = sadd.s32 1, %s4581
          $region64: #{custom-call.6} parent=57 // loop_footer_branch
            %4580 = sbr.rel target = $region60
          $region65: #{custom-call.6} parent=57 // loop_exit
            _
        $region58: #{custom-call.6} parent=42 // pred_fallthru
          _
        // Predicated region
        $region66: #{custom-call.6} parent=42 // pred_check
          _
        $region67: #{custom-call.6} parent=42 // pred_check_branch
          %4605 = sbr.rel target = $region69
        $region68: #{custom-call.6} parent=42 // pred_region
          _
        $region69: #{custom-call.6} parent=42 // pred_fallthru
          _
      $region43: #{custom-call.6} parent=38 // pred_fallthru
        _
      // Predicated region
      $region44: #{custom-call.6} parent=38 // pred_check
        _
      $region45: #{custom-call.6} parent=38 // pred_check_branch
        %4552 = sbr.rel target = $region47
      $region46: #{custom-call.6} parent=38 // pred_region
        loop: start=0, step=1, limit=1
        $region48: #{custom-call.6} parent=46 // loop_pre_header
          _
        $region49: #{custom-call.6} parent=46 // loop_header
          %s4555 = sphi 0, %s4559
          %p4556 = scmp.ge.s32.totalorder %s4555, 1
          %s4560 = sphi [#allocation1], [#allocation1]
          %s4561 = sphi %s1, %s1
        $region50: #{custom-call.6} parent=46 // loop_header_branch
          %4558 = sbr.rel (%p4556) target = $region54
        $region51: #{custom-call.6} parent=46 // loop_body
          %v4562 = vld [vmem:[%s4560] sm:$0xff]
          %4563 = vst [vmem:[%s4561] sm:$0xff] %v4562
          %v4564 = vld [vmem:[%s4560 + $0x8] sm:$0xff]
          %4565 = vst [vmem:[%s4561 + $0x8] sm:$0xff] %v4564
          %v4566 = vld [vmem:[%s4560 + $0x10] sm:$0xff]
          %4567 = vst [vmem:[%s4561 + $0x10] sm:$0xff] %v4566
          %v4568 = vld [vmem:[%s4560 + $0x18] sm:$0xff]
          %4569 = vst [vmem:[%s4561 + $0x18] sm:$0xff] %v4568
          %v4570 = vld [vmem:[%s4560 + $0x20] sm:$0xff]
          %4571 = vst [vmem:[%s4561 + $0x20] sm:$0xff] %v4570
          %v4572 = vld [vmem:[%s4560 + $0x28] sm:$0xff]
          %4573 = vst [vmem:[%s4561 + $0x28] sm:$0xff] %v4572
          %v4574 = vld [vmem:[%s4560 + $0x30] sm:$0xff]
          %4575 = vst [vmem:[%s4561 + $0x30] sm:$0xff] %v4574
          %v4576 = vld [vmem:[%s4560 + $0x38] sm:$0xff]
          %4577 = vst [vmem:[%s4561 + $0x38] sm:$0xff] %v4576
        $region52: #{custom-call.6} parent=46 // loop_footer
          %s4559 = sadd.s32 1, %s4555
        $region53: #{custom-call.6} parent=46 // loop_footer_branch
          %4554 = sbr.rel target = $region49
        $region54: #{custom-call.6} parent=46 // loop_exit
          _
      $region47: #{custom-call.6} parent=38 // pred_fallthru
        _
    $region39: #{custom-call.6} parent=1 // pred_fallthru
      _
    %4606 = vnop

// kernel: custom-call.7
$region0: #{custom-call.7}
  %s0 = inlined_call_operand.vmem [shape: f32[1,64,64], index: 0, kind: input, shape index: {}]
  %s1 = inlined_call_operand.vmem [shape: f32[1,64,64], index: 1, kind: output, shape index: {}]
  $region1: #{custom-call.7} parent=0
    #allocation0 [shape = 'u8[32768]{0}', space=vmem, size = 0x8000, scoped, tag = 'operand span for operand 0']
    #allocation1 [shape = 'u8[32768]{0}', space=vmem, size = 0x8000, scoped, tag = 'operand span for operand 1']
    #allocation2 [shape = 'f32[64,64]{1,0}', space=vmem, size = 0x8000, scoped, tag = 'rescaled input a']
    // Predicated region
    $region2: #{custom-call.7} parent=1 // pred_check
      _
    $region3: #{custom-call.7} parent=1 // pred_check_branch
      %3 = sbr.rel (0) target = $region5
    $region4: #{custom-call.7} parent=1 // pred_region
      // Predicated region
      $region6: #{custom-call.7} parent=4 // pred_check
        _
      $region7: #{custom-call.7} parent=4 // pred_check_branch
        %5 = sbr.rel (0) target = $region9
      $region8: #{custom-call.7} parent=4 // pred_region
        // Predicated region
        $region21: #{custom-call.7} parent=8 // pred_check
          _
        $region22: #{custom-call.7} parent=8 // pred_check_branch
          %34 = sbr.rel (0) target = $region24
        $region23: #{custom-call.7} parent=8 // pred_region
          loop: start=0, step=1, limit=1
          $region25: #{custom-call.7} parent=23 // loop_pre_header
            _
          $region26: #{custom-call.7} parent=23 // loop_header
            %s36 = sphi 0, %s40
            %p37 = scmp.ge.s32.totalorder %s36, 1
            %s41 = sphi %s0, %s0
            %s42 = sphi [#allocation0], [#allocation0]
          $region27: #{custom-call.7} parent=23 // loop_header_branch
            %39 = sbr.rel (%p37) target = $region31
          $region28: #{custom-call.7} parent=23 // loop_body
            %v43 = vld [vmem:[%s41] sm:$0xff]
            %44 = vst [vmem:[%s42] sm:$0xff] %v43
            %v45 = vld [vmem:[%s41 + $0x8] sm:$0xff]
            %46 = vst [vmem:[%s42 + $0x8] sm:$0xff] %v45
            %v47 = vld [vmem:[%s41 + $0x10] sm:$0xff]
            %48 = vst [vmem:[%s42 + $0x10] sm:$0xff] %v47
            %v49 = vld [vmem:[%s41 + $0x18] sm:$0xff]
            %50 = vst [vmem:[%s42 + $0x18] sm:$0xff] %v49
            %v51 = vld [vmem:[%s41 + $0x20] sm:$0xff]
            %52 = vst [vmem:[%s42 + $0x20] sm:$0xff] %v51
            %v53 = vld [vmem:[%s41 + $0x28] sm:$0xff]
            %54 = vst [vmem:[%s42 + $0x28] sm:$0xff] %v53
            %v55 = vld [vmem:[%s41 + $0x30] sm:$0xff]
            %56 = vst [vmem:[%s42 + $0x30] sm:$0xff] %v55
            %v57 = vld [vmem:[%s41 + $0x38] sm:$0xff]
            %58 = vst [vmem:[%s42 + $0x38] sm:$0xff] %v57
          $region29: #{custom-call.7} parent=23 // loop_footer
            %s40 = sadd.s32 1, %s36
          $region30: #{custom-call.7} parent=23 // loop_footer_branch
            %35 = sbr.rel target = $region26
          $region31: #{custom-call.7} parent=23 // loop_exit
            _
        $region24: #{custom-call.7} parent=8 // pred_fallthru
          _
        // Predicated region
        $region32: #{custom-call.7} parent=8 // pred_check
          _
        $region33: #{custom-call.7} parent=8 // pred_check_branch
          %60 = sbr.rel target = $region35
        $region34: #{custom-call.7} parent=8 // pred_region
          _
        $region35: #{custom-call.7} parent=8 // pred_fallthru
          _
      $region9: #{custom-call.7} parent=4 // pred_fallthru
        _
      // Predicated region
      $region10: #{custom-call.7} parent=4 // pred_check
        _
      $region11: #{custom-call.7} parent=4 // pred_check_branch
        %7 = sbr.rel target = $region13
      $region12: #{custom-call.7} parent=4 // pred_region
        loop: start=0, step=1, limit=1
        $region14: #{custom-call.7} parent=12 // loop_pre_header
          _
        $region15: #{custom-call.7} parent=12 // loop_header
          %s10 = sphi 0, %s14
          %p11 = scmp.ge.s32.totalorder %s10, 1
          %s15 = sphi %s0, %s0
          %s16 = sphi [#allocation0], [#allocation0]
        $region16: #{custom-call.7} parent=12 // loop_header_branch
          %13 = sbr.rel (%p11) target = $region20
        $region17: #{custom-call.7} parent=12 // loop_body
          %v17 = vld [vmem:[%s15] sm:$0xff]
          %18 = vst [vmem:[%s16] sm:$0xff] %v17
          %v19 = vld [vmem:[%s15 + $0x8] sm:$0xff]
          %20 = vst [vmem:[%s16 + $0x8] sm:$0xff] %v19
          %v21 = vld [vmem:[%s15 + $0x10] sm:$0xff]
          %22 = vst [vmem:[%s16 + $0x10] sm:$0xff] %v21
          %v23 = vld [vmem:[%s15 + $0x18] sm:$0xff]
          %24 = vst [vmem:[%s16 + $0x18] sm:$0xff] %v23
          %v25 = vld [vmem:[%s15 + $0x20] sm:$0xff]
          %26 = vst [vmem:[%s16 + $0x20] sm:$0xff] %v25
          %v27 = vld [vmem:[%s15 + $0x28] sm:$0xff]
          %28 = vst [vmem:[%s16 + $0x28] sm:$0xff] %v27
          %v29 = vld [vmem:[%s15 + $0x30] sm:$0xff]
          %30 = vst [vmem:[%s16 + $0x30] sm:$0xff] %v29
          %v31 = vld [vmem:[%s15 + $0x38] sm:$0xff]
          %32 = vst [vmem:[%s16 + $0x38] sm:$0xff] %v31
        $region18: #{custom-call.7} parent=12 // loop_footer
          %s14 = sadd.s32 1, %s10
        $region19: #{custom-call.7} parent=12 // loop_footer_branch
          %9 = sbr.rel target = $region15
        $region20: #{custom-call.7} parent=12 // loop_exit
          _
      $region13: #{custom-call.7} parent=4 // pred_fallthru
        _
    $region5: #{custom-call.7} parent=1 // pred_fallthru
      _
    %61 = vnop
    %v62 = vlaneseq
    %v63 = vand.u32 %v62, 127
    %vm64 = vcmp.lt.s32.totalorder %v63, 64
    %v65 = vlaneseq
    %v66 = vshrl.u32 %v65, 7
    %vm68 = vcmp.eq.s32.totalorder %v66, %v63
    %v69 = vld [vmem:[#allocation0] sm:$0xff]
    %v70 = vsel %vm68, %v69, 0.0
    %71 = vadd.xlane.f32.xlu0 %v70
    %v72 = vpop.xlane.xlu0 %71
    %vm73 = vcmp.ge.s32.totalorder %v66, %v63
    %vm74 = vmand %vm73, %vm64
    %v75 = vsel %vm74, %v69, 0.0
    %v76 = vrcp.pop %v72
    %v77 = vmul.f32 %v75, %v76
    %78 = vst [vmem:[#allocation2] sm:$0xff] %v77
    %s79 = scalar_lea.vmem [#allocation0], 8
    %s80 = scalar_lea.vmem [#allocation2], 8
    %v81 = vlaneseq
    %v82 = vshrl.u32 %v81, 7
    %v83 = vadd.s32 %v82, 8
    %vm84 = vcmp.eq.s32.totalorder %v83, %v63
    %v85 = vld [vmem:[%s79] sm:$0xff]
    %v86 = vsel %vm84, %v85, 0.0
    %87 = vadd.xlane.f32.xlu0 %v86
    %v88 = vpop.xlane.xlu0 %87
    %vm89 = vcmp.ge.s32.totalorder %v83, %v63
    %vm90 = vmand %vm89, %vm64
    %v91 = vsel %vm90, %v85, 0.0
    %v92 = vrcp.pop %v88
    %v93 = vmul.f32 %v91, %v92
    %94 = vst [vmem:[%s80] sm:$0xff] %v93
    %s95 = scalar_lea.vmem [#allocation0], 16
    %s96 = scalar_lea.vmem [#allocation2], 16
    %v97 = vlaneseq
    %v98 = vshrl.u32 %v97, 7
    %v99 = vadd.s32 %v98, 16
    %vm100 = vcmp.eq.s32.totalorder %v99, %v63
    %v101 = vld [vmem:[%s95] sm:$0xff]
    %v102 = vsel %vm100, %v101, 0.0
    %103 = vadd.xlane.f32.xlu0 %v102
    %v104 = vpop.xlane.xlu0 %103
    %vm105 = vcmp.ge.s32.totalorder %v99, %v63
    %vm106 = vmand %vm105, %vm64
    %v107 = vsel %vm106, %v101, 0.0
    %v108 = vrcp.pop %v104
    %v109 = vmul.f32 %v107, %v108
    %110 = vst [vmem:[%s96] sm:$0xff] %v109
    %s111 = scalar_lea.vmem [#allocation0], 24
    %s112 = scalar_lea.vmem [#allocation2], 24
    %v113 = vlaneseq
    %v114 = vshrl.u32 %v113, 7
    %v115 = vadd.s32 %v114, 24
    %vm116 = vcmp.eq.s32.totalorder %v115, %v63
    %v117 = vld [vmem:[%s111] sm:$0xff]
    %v118 = vsel %vm116, %v117, 0.0
    %119 = vadd.xlane.f32.xlu0 %v118
    %v120 = vpop.xlane.xlu0 %119
    %vm121 = vcmp.ge.s32.totalorder %v115, %v63
    %vm122 = vmand %vm121, %vm64
    %v123 = vsel %vm122, %v117, 0.0
    %v124 = vrcp.pop %v120
    %v125 = vmul.f32 %v123, %v124
    %126 = vst [vmem:[%s112] sm:$0xff] %v125
    %s127 = scalar_lea.vmem [#allocation0], 32
    %s128 = scalar_lea.vmem [#allocation2], 32
    %v129 = vlaneseq
    %v130 = vshrl.u32 %v129, 7
    %v131 = vadd.s32 %v130, 32
    %vm132 = vcmp.eq.s32.totalorder %v131, %v63
    %v133 = vld [vmem:[%s127] sm:$0xff]
    %v134 = vsel %vm132, %v133, 0.0
    %135 = vadd.xlane.f32.xlu0 %v134
    %v136 = vpop.xlane.xlu0 %135
    %vm137 = vcmp.ge.s32.totalorder %v131, %v63
    %vm138 = vmand %vm137, %vm64
    %v139 = vsel %vm138, %v133, 0.0
    %v140 = vrcp.pop %v136
    %v141 = vmul.f32 %v139, %v140
    %142 = vst [vmem:[%s128] sm:$0xff] %v141
    %s143 = scalar_lea.vmem [#allocation0], 40
    %s144 = scalar_lea.vmem [#allocation2], 40
    %v145 = vlaneseq
    %v146 = vshrl.u32 %v145, 7
    %v147 = vadd.s32 %v146, 40
    %vm148 = vcmp.eq.s32.totalorder %v147, %v63
    %v149 = vld [vmem:[%s143] sm:$0xff]
    %v150 = vsel %vm148, %v149, 0.0
    %151 = vadd.xlane.f32.xlu0 %v150
    %v152 = vpop.xlane.xlu0 %151
    %vm153 = vcmp.ge.s32.totalorder %v147, %v63
    %vm154 = vmand %vm153, %vm64
    %v155 = vsel %vm154, %v149, 0.0
    %v156 = vrcp.pop %v152
    %v157 = vmul.f32 %v155, %v156
    %158 = vst [vmem:[%s144] sm:$0xff] %v157
    %s159 = scalar_lea.vmem [#allocation0], 48
    %s160 = scalar_lea.vmem [#allocation2], 48
    %v161 = vlaneseq
    %v162 = vshrl.u32 %v161, 7
    %v163 = vadd.s32 %v162, 48
    %vm164 = vcmp.eq.s32.totalorder %v163, %v63
    %v165 = vld [vmem:[%s159] sm:$0xff]
    %v166 = vsel %vm164, %v165, 0.0
    %167 = vadd.xlane.f32.xlu0 %v166
    %v168 = vpop.xlane.xlu0 %167
    %vm169 = vcmp.ge.s32.totalorder %v163, %v63
    %vm170 = vmand %vm169, %vm64
    %v171 = vsel %vm170, %v165, 0.0
    %v172 = vrcp.pop %v168
    %v173 = vmul.f32 %v171, %v172
    %174 = vst [vmem:[%s160] sm:$0xff] %v173
    %s175 = scalar_lea.vmem [#allocation0], 56
    %s176 = scalar_lea.vmem [#allocation2], 56
    %v177 = vlaneseq
    %v178 = vshrl.u32 %v177, 7
    %v179 = vadd.s32 %v178, 56
    %vm180 = vcmp.eq.s32.totalorder %v179, %v63
    %v181 = vld [vmem:[%s175] sm:$0xff]
    %v182 = vsel %vm180, %v181, 0.0
    %183 = vadd.xlane.f32.xlu0 %v182
    %v184 = vpop.xlane.xlu0 %183
    %vm185 = vcmp.ge.s32.totalorder %v179, %v63
    %vm186 = vmand %vm185, %vm64
    %v187 = vsel %vm186, %v181, 0.0
    %v188 = vrcp.pop %v184
    %v189 = vmul.f32 %v187, %v188
    %190 = vst [vmem:[%s176] sm:$0xff] %v189
    %v191 = vlaneseq
    %v192 = vand.u32 %v191, 127
    %v193 = vlaneseq
    %v194 = vshrl.u32 %v193, 7
    %vm196 = vcmp.eq.s32.totalorder %v192, %v194
    %v197 = vlaneseq
    %v198 = vand.u32 %v197, 127
    %vm199 = vcmp.eq.s32.totalorder %v198, 0
    %v200 = vsel %vm199, 1.0, -1.0
    %v201 = vsel %vm196, %v200, 0.0
    %v202 = vlaneseq
    %v203 = vand.u32 %v202, 127
    %v204 = vlaneseq
    %v205 = vshrl.u32 %v204, 7
    %v206 = vadd.s32 %v205, 8
    %vm207 = vcmp.eq.s32.totalorder %v203, %v206
    %v208 = vsel %vm207, -1.0, 0.0
    %v209 = vlaneseq
    %v210 = vand.u32 %v209, 127
    %v211 = vlaneseq
    %v212 = vshrl.u32 %v211, 7
    %v213 = vadd.s32 %v212, 16
    %vm214 = vcmp.eq.s32.totalorder %v210, %v213
    %v215 = vsel %vm214, -1.0, 0.0
    %v216 = vlaneseq
    %v217 = vand.u32 %v216, 127
    %v218 = vlaneseq
    %v219 = vshrl.u32 %v218, 7
    %v220 = vadd.s32 %v219, 24
    %vm221 = vcmp.eq.s32.totalorder %v217, %v220
    %v222 = vsel %vm221, -1.0, 0.0
    %v223 = vlaneseq
    %v224 = vand.u32 %v223, 127
    %v225 = vlaneseq
    %v226 = vshrl.u32 %v225, 7
    %v227 = vadd.s32 %v226, 32
    %vm228 = vcmp.eq.s32.totalorder %v224, %v227
    %v229 = vsel %vm228, -1.0, 0.0
    %v230 = vlaneseq
    %v231 = vand.u32 %v230, 127
    %v232 = vlaneseq
    %v233 = vshrl.u32 %v232, 7
    %v234 = vadd.s32 %v233, 40
    %vm235 = vcmp.eq.s32.totalorder %v231, %v234
    %v236 = vsel %vm235, -1.0, 0.0
    %v237 = vlaneseq
    %v238 = vand.u32 %v237, 127
    %v239 = vlaneseq
    %v240 = vshrl.u32 %v239, 7
    %v241 = vadd.s32 %v240, 48
    %vm242 = vcmp.eq.s32.totalorder %v238, %v241
    %v243 = vsel %vm242, -1.0, 0.0
    %v244 = vlaneseq
    %v245 = vand.u32 %v244, 127
    %v246 = vlaneseq
    %v247 = vshrl.u32 %v246, 7
    %v248 = vadd.s32 %v247, 56
    %vm249 = vcmp.eq.s32.totalorder %v245, %v248
    %v250 = vsel %vm249, -1.0, 0.0
    %s251 = scalar_lea.vmem [#allocation2], 1
    %v252 = vld [vmem:[%s251] ss:$0 sm:$0xff]
    %v253 = vxor.u32 %v252, 2147483648
    %v254 = vlaneseq
    %v255 = vand.u32 %v254, 127
    %vm256 = vcmp.eq.s32.totalorder %v255, 1
    %v257 = vmul.f32 %v253, %v201
    %258 = vadd.xlane.f32.xlu0 %v257
    %v259 = vpop.xlane.xlu0 %258
    %v260 = vsel %vm256, %v259, %v201
    %s261 = scalar_lea.vmem [#allocation2], 2
    %v262 = vld [vmem:[%s261] ss:$0 sm:$0xff]
    %v263 = vxor.u32 %v262, 2147483648
    %v264 = vlaneseq
    %v265 = vand.u32 %v264, 127
    %vm266 = vcmp.eq.s32.totalorder %v265, 2
    %v267 = vmul.f32 %v263, %v260
    %268 = vadd.xlane.f32.xlu0 %v267
    %v269 = vpop.xlane.xlu0 %268
    %v270 = vsel %vm266, %v269, %v260
    %s271 = scalar_lea.vmem [#allocation2], 3
    %v272 = vld [vmem:[%s271] ss:$0 sm:$0xff]
    %v273 = vxor.u32 %v272, 2147483648
    %v274 = vlaneseq
    %v275 = vand.u32 %v274, 127
    %vm276 = vcmp.eq.s32.totalorder %v275, 3
    %v277 = vmul.f32 %v273, %v270
    %278 = vadd.xlane.f32.xlu0 %v277
    %v279 = vpop.xlane.xlu0 %278
    %v280 = vsel %vm276, %v279, %v270
    %s281 = scalar_lea.vmem [#allocation2], 4
    %v282 = vld [vmem:[%s281] ss:$0 sm:$0xff]
    %v283 = vxor.u32 %v282, 2147483648
    %v284 = vlaneseq
    %v285 = vand.u32 %v284, 127
    %vm286 = vcmp.eq.s32.totalorder %v285, 4
    %v287 = vmul.f32 %v283, %v280
    %288 = vadd.xlane.f32.xlu0 %v287
    %v289 = vpop.xlane.xlu0 %288
    %v290 = vsel %vm286, %v289, %v280
    %s291 = scalar_lea.vmem [#allocation2], 5
    %v292 = vld [vmem:[%s291] ss:$0 sm:$0xff]
    %v293 = vxor.u32 %v292, 2147483648
    %v294 = vlaneseq
    %v295 = vand.u32 %v294, 127
    %vm296 = vcmp.eq.s32.totalorder %v295, 5
    %v297 = vmul.f32 %v293, %v290
    %298 = vadd.xlane.f32.xlu0 %v297
    %v299 = vpop.xlane.xlu0 %298
    %v300 = vsel %vm296, %v299, %v290
    %s301 = scalar_lea.vmem [#allocation2], 6
    %v302 = vld [vmem:[%s301] ss:$0 sm:$0xff]
    %v303 = vxor.u32 %v302, 2147483648
    %v304 = vlaneseq
    %v305 = vand.u32 %v304, 127
    %vm306 = vcmp.eq.s32.totalorder %v305, 6
    %v307 = vmul.f32 %v303, %v300
    %308 = vadd.xlane.f32.xlu0 %v307
    %v309 = vpop.xlane.xlu0 %308
    %v310 = vsel %vm306, %v309, %v300
    %s311 = scalar_lea.vmem [#allocation2], 7
    %v312 = vld [vmem:[%s311] ss:$0 sm:$0xff]
    %v313 = vxor.u32 %v312, 2147483648
    %v314 = vlaneseq
    %v315 = vand.u32 %v314, 127
    %vm316 = vcmp.eq.s32.totalorder %v315, 7
    %v317 = vmul.f32 %v313, %v310
    %318 = vadd.xlane.f32.xlu0 %v317
    %v319 = vpop.xlane.xlu0 %318
    %v320 = vsel %vm316, %v319, %v310
    %s321 = scalar_lea.vmem [#allocation2], 8
    %v322 = vld [vmem:[%s321] ss:$0 sm:$0xff]
    %v323 = vxor.u32 %v322, 2147483648
    %v324 = vlaneseq
    %v325 = vand.u32 %v324, 127
    %vm326 = vcmp.eq.s32.totalorder %v325, 8
    %v327 = vmul.f32 %v323, %v320
    %328 = vadd.xlane.f32.xlu0 %v327
    %v329 = vpop.xlane.xlu0 %328
    %v330 = vsel %vm326, %v329, %v320
    %v331 = vmul.f32 %v323, %v208
    %332 = vadd.xlane.f32.xlu0 %v331
    %v333 = vpop.xlane.xlu0 %332
    %v334 = vsel %vm326, %v333, %v208
    %s335 = scalar_lea.vmem [#allocation2], 9
    %v336 = vld [vmem:[%s335] ss:$0 sm:$0xff]
    %v337 = vxor.u32 %v336, 2147483648
    %v338 = vlaneseq
    %v339 = vand.u32 %v338, 127
    %vm340 = vcmp.eq.s32.totalorder %v339, 9
    %v341 = vmul.f32 %v337, %v330
    %342 = vadd.xlane.f32.xlu0 %v341
    %v343 = vpop.xlane.xlu0 %342
    %v344 = vsel %vm340, %v343, %v330
    %v345 = vmul.f32 %v337, %v334
    %346 = vadd.xlane.f32.xlu0 %v345
    %v347 = vpop.xlane.xlu0 %346
    %v348 = vsel %vm340, %v347, %v334
    %s349 = scalar_lea.vmem [#allocation2], 10
    %v350 = vld [vmem:[%s349] ss:$0 sm:$0xff]
    %v351 = vxor.u32 %v350, 2147483648
    %v352 = vlaneseq
    %v353 = vand.u32 %v352, 127
    %vm354 = vcmp.eq.s32.totalorder %v353, 10
    %v355 = vmul.f32 %v351, %v344
    %356 = vadd.xlane.f32.xlu0 %v355
    %v357 = vpop.xlane.xlu0 %356
    %v358 = vsel %vm354, %v357, %v344
    %v359 = vmul.f32 %v351, %v348
    %360 = vadd.xlane.f32.xlu0 %v359
    %v361 = vpop.xlane.xlu0 %360
    %v362 = vsel %vm354, %v361, %v348
    %s363 = scalar_lea.vmem [#allocation2], 11
    %v364 = vld [vmem:[%s363] ss:$0 sm:$0xff]
    %v365 = vxor.u32 %v364, 2147483648
    %v366 = vlaneseq
    %v367 = vand.u32 %v366, 127
    %vm368 = vcmp.eq.s32.totalorder %v367, 11
    %v369 = vmul.f32 %v365, %v358
    %370 = vadd.xlane.f32.xlu0 %v369
    %v371 = vpop.xlane.xlu0 %370
    %v372 = vsel %vm368, %v371, %v358
    %v373 = vmul.f32 %v365, %v362
    %374 = vadd.xlane.f32.xlu0 %v373
    %v375 = vpop.xlane.xlu0 %374
    %v376 = vsel %vm368, %v375, %v362
    %s377 = scalar_lea.vmem [#allocation2], 12
    %v378 = vld [vmem:[%s377] ss:$0 sm:$0xff]
    %v379 = vxor.u32 %v378, 2147483648
    %v380 = vlaneseq
    %v381 = vand.u32 %v380, 127
    %vm382 = vcmp.eq.s32.totalorder %v381, 12
    %v383 = vmul.f32 %v379, %v372
    %384 = vadd.xlane.f32.xlu0 %v383
    %v385 = vpop.xlane.xlu0 %384
    %v386 = vsel %vm382, %v385, %v372
    %v387 = vmul.f32 %v379, %v376
    %388 = vadd.xlane.f32.xlu0 %v387
    %v389 = vpop.xlane.xlu0 %388
    %v390 = vsel %vm382, %v389, %v376
    %s391 = scalar_lea.vmem [#allocation2], 13
    %v392 = vld [vmem:[%s391] ss:$0 sm:$0xff]
    %v393 = vxor.u32 %v392, 2147483648
    %v394 = vlaneseq
    %v395 = vand.u32 %v394, 127
    %vm396 = vcmp.eq.s32.totalorder %v395, 13
    %v397 = vmul.f32 %v393, %v386
    %398 = vadd.xlane.f32.xlu0 %v397
    %v399 = vpop.xlane.xlu0 %398
    %v400 = vsel %vm396, %v399, %v386
    %v401 = vmul.f32 %v393, %v390
    %402 = vadd.xlane.f32.xlu0 %v401
    %v403 = vpop.xlane.xlu0 %402
    %v404 = vsel %vm396, %v403, %v390
    %s405 = scalar_lea.vmem [#allocation2], 14
    %v406 = vld [vmem:[%s405] ss:$0 sm:$0xff]
    %v407 = vxor.u32 %v406, 2147483648
    %v408 = vlaneseq
    %v409 = vand.u32 %v408, 127
    %vm410 = vcmp.eq.s32.totalorder %v409, 14
    %v411 = vmul.f32 %v407, %v400
    %412 = vadd.xlane.f32.xlu0 %v411
    %v413 = vpop.xlane.xlu0 %412
    %v414 = vsel %vm410, %v413, %v400
    %v415 = vmul.f32 %v407, %v404
    %416 = vadd.xlane.f32.xlu0 %v415
    %v417 = vpop.xlane.xlu0 %416
    %v418 = vsel %vm410, %v417, %v404
    %s419 = scalar_lea.vmem [#allocation2], 15
    %v420 = vld [vmem:[%s419] ss:$0 sm:$0xff]
    %v421 = vxor.u32 %v420, 2147483648
    %v422 = vlaneseq
    %v423 = vand.u32 %v422, 127
    %vm424 = vcmp.eq.s32.totalorder %v423, 15
    %v425 = vmul.f32 %v421, %v414
    %426 = vadd.xlane.f32.xlu0 %v425
    %v427 = vpop.xlane.xlu0 %426
    %v428 = vsel %vm424, %v427, %v414
    %v429 = vmul.f32 %v421, %v418
    %430 = vadd.xlane.f32.xlu0 %v429
    %v431 = vpop.xlane.xlu0 %430
    %v432 = vsel %vm424, %v431, %v418
    %s433 = scalar_lea.vmem [#allocation2], 16
    %v434 = vld [vmem:[%s433] ss:$0 sm:$0xff]
    %v435 = vxor.u32 %v434, 2147483648
    %v436 = vlaneseq
    %v437 = vand.u32 %v436, 127
    %vm438 = vcmp.eq.s32.totalorder %v437, 16
    %v439 = vmul.f32 %v435, %v428
    %440 = vadd.xlane.f32.xlu0 %v439
    %v441 = vpop.xlane.xlu0 %440
    %v442 = vsel %vm438, %v441, %v428
    %v443 = vmul.f32 %v435, %v432
    %444 = vadd.xlane.f32.xlu0 %v443
    %v445 = vpop.xlane.xlu0 %444
    %v446 = vsel %vm438, %v445, %v432
    %v447 = vmul.f32 %v435, %v215
    %448 = vadd.xlane.f32.xlu0 %v447
    %v449 = vpop.xlane.xlu0 %448
    %v450 = vsel %vm438, %v449, %v215
    %s451 = scalar_lea.vmem [#allocation2], 17
    %v452 = vld [vmem:[%s451] ss:$0 sm:$0xff]
    %v453 = vxor.u32 %v452, 2147483648
    %v454 = vlaneseq
    %v455 = vand.u32 %v454, 127
    %vm456 = vcmp.eq.s32.totalorder %v455, 17
    %v457 = vmul.f32 %v453, %v442
    %458 = vadd.xlane.f32.xlu0 %v457
    %v459 = vpop.xlane.xlu0 %458
    %v460 = vsel %vm456, %v459, %v442
    %v461 = vmul.f32 %v453, %v446
    %462 = vadd.xlane.f32.xlu0 %v461
    %v463 = vpop.xlane.xlu0 %462
    %v464 = vsel %vm456, %v463, %v446
    %v465 = vmul.f32 %v453, %v450
    %466 = vadd.xlane.f32.xlu0 %v465
    %v467 = vpop.xlane.xlu0 %466
    %v468 = vsel %vm456, %v467, %v450
    %s469 = scalar_lea.vmem [#allocation2], 18
    %v470 = vld [vmem:[%s469] ss:$0 sm:$0xff]
    %v471 = vxor.u32 %v470, 2147483648
    %v472 = vlaneseq
    %v473 = vand.u32 %v472, 127
    %vm474 = vcmp.eq.s32.totalorder %v473, 18
    %v475 = vmul.f32 %v471, %v460
    %476 = vadd.xlane.f32.xlu0 %v475
    %v477 = vpop.xlane.xlu0 %476
    %v478 = vsel %vm474, %v477, %v460
    %v479 = vmul.f32 %v471, %v464
    %480 = vadd.xlane.f32.xlu0 %v479
    %v481 = vpop.xlane.xlu0 %480
    %v482 = vsel %vm474, %v481, %v464
    %v483 = vmul.f32 %v471, %v468
    %484 = vadd.xlane.f32.xlu0 %v483
    %v485 = vpop.xlane.xlu0 %484
    %v486 = vsel %vm474, %v485, %v468
    %s487 = scalar_lea.vmem [#allocation2], 19
    %v488 = vld [vmem:[%s487] ss:$0 sm:$0xff]
    %v489 = vxor.u32 %v488, 2147483648
    %v490 = vlaneseq
    %v491 = vand.u32 %v490, 127
    %vm492 = vcmp.eq.s32.totalorder %v491, 19
    %v493 = vmul.f32 %v489, %v478
    %494 = vadd.xlane.f32.xlu0 %v493
    %v495 = vpop.xlane.xlu0 %494
    %v496 = vsel %vm492, %v495, %v478
    %v497 = vmul.f32 %v489, %v482
    %498 = vadd.xlane.f32.xlu0 %v497
    %v499 = vpop.xlane.xlu0 %498
    %v500 = vsel %vm492, %v499, %v482
    %v501 = vmul.f32 %v489, %v486
    %502 = vadd.xlane.f32.xlu0 %v501
    %v503 = vpop.xlane.xlu0 %502
    %v504 = vsel %vm492, %v503, %v486
    %s505 = scalar_lea.vmem [#allocation2], 20
    %v506 = vld [vmem:[%s505] ss:$0 sm:$0xff]
    %v507 = vxor.u32 %v506, 2147483648
    %v508 = vlaneseq
    %v509 = vand.u32 %v508, 127
    %vm510 = vcmp.eq.s32.totalorder %v509, 20
    %v511 = vmul.f32 %v507, %v496
    %512 = vadd.xlane.f32.xlu0 %v511
    %v513 = vpop.xlane.xlu0 %512
    %v514 = vsel %vm510, %v513, %v496
    %v515 = vmul.f32 %v507, %v500
    %516 = vadd.xlane.f32.xlu0 %v515
    %v517 = vpop.xlane.xlu0 %516
    %v518 = vsel %vm510, %v517, %v500
    %v519 = vmul.f32 %v507, %v504
    %520 = vadd.xlane.f32.xlu0 %v519
    %v521 = vpop.xlane.xlu0 %520
    %v522 = vsel %vm510, %v521, %v504
    %s523 = scalar_lea.vmem [#allocation2], 21
    %v524 = vld [vmem:[%s523] ss:$0 sm:$0xff]
    %v525 = vxor.u32 %v524, 2147483648
    %v526 = vlaneseq
    %v527 = vand.u32 %v526, 127
    %vm528 = vcmp.eq.s32.totalorder %v527, 21
    %v529 = vmul.f32 %v525, %v514
    %530 = vadd.xlane.f32.xlu0 %v529
    %v531 = vpop.xlane.xlu0 %530
    %v532 = vsel %vm528, %v531, %v514
    %v533 = vmul.f32 %v525, %v518
    %534 = vadd.xlane.f32.xlu0 %v533
    %v535 = vpop.xlane.xlu0 %534
    %v536 = vsel %vm528, %v535, %v518
    %v537 = vmul.f32 %v525, %v522
    %538 = vadd.xlane.f32.xlu0 %v537
    %v539 = vpop.xlane.xlu0 %538
    %v540 = vsel %vm528, %v539, %v522
    %s541 = scalar_lea.vmem [#allocation2], 22
    %v542 = vld [vmem:[%s541] ss:$0 sm:$0xff]
    %v543 = vxor.u32 %v542, 2147483648
    %v544 = vlaneseq
    %v545 = vand.u32 %v544, 127
    %vm546 = vcmp.eq.s32.totalorder %v545, 22
    %v547 = vmul.f32 %v543, %v532
    %548 = vadd.xlane.f32.xlu0 %v547
    %v549 = vpop.xlane.xlu0 %548
    %v550 = vsel %vm546, %v549, %v532
    %v551 = vmul.f32 %v543, %v536
    %552 = vadd.xlane.f32.xlu0 %v551
    %v553 = vpop.xlane.xlu0 %552
    %v554 = vsel %vm546, %v553, %v536
    %v555 = vmul.f32 %v543, %v540
    %556 = vadd.xlane.f32.xlu0 %v555
    %v557 = vpop.xlane.xlu0 %556
    %v558 = vsel %vm546, %v557, %v540
    %s559 = scalar_lea.vmem [#allocation2], 23
    %v560 = vld [vmem:[%s559] ss:$0 sm:$0xff]
    %v561 = vxor.u32 %v560, 2147483648
    %v562 = vlaneseq
    %v563 = vand.u32 %v562, 127
    %vm564 = vcmp.eq.s32.totalorder %v563, 23
    %v565 = vmul.f32 %v561, %v550
    %566 = vadd.xlane.f32.xlu0 %v565
    %v567 = vpop.xlane.xlu0 %566
    %v568 = vsel %vm564, %v567, %v550
    %v569 = vmul.f32 %v561, %v554
    %570 = vadd.xlane.f32.xlu0 %v569
    %v571 = vpop.xlane.xlu0 %570
    %v572 = vsel %vm564, %v571, %v554
    %v573 = vmul.f32 %v561, %v558
    %574 = vadd.xlane.f32.xlu0 %v573
    %v575 = vpop.xlane.xlu0 %574
    %v576 = vsel %vm564, %v575, %v558
    %s577 = scalar_lea.vmem [#allocation2], 24
    %v578 = vld [vmem:[%s577] ss:$0 sm:$0xff]
    %v579 = vxor.u32 %v578, 2147483648
    %v580 = vlaneseq
    %v581 = vand.u32 %v580, 127
    %vm582 = vcmp.eq.s32.totalorder %v581, 24
    %v583 = vmul.f32 %v579, %v568
    %584 = vadd.xlane.f32.xlu0 %v583
    %v585 = vpop.xlane.xlu0 %584
    %v586 = vsel %vm582, %v585, %v568
    %v587 = vmul.f32 %v579, %v572
    %588 = vadd.xlane.f32.xlu0 %v587
    %v589 = vpop.xlane.xlu0 %588
    %v590 = vsel %vm582, %v589, %v572
    %v591 = vmul.f32 %v579, %v576
    %592 = vadd.xlane.f32.xlu0 %v591
    %v593 = vpop.xlane.xlu0 %592
    %v594 = vsel %vm582, %v593, %v576
    %v595 = vmul.f32 %v579, %v222
    %596 = vadd.xlane.f32.xlu0 %v595
    %v597 = vpop.xlane.xlu0 %596
    %v598 = vsel %vm582, %v597, %v222
    %s599 = scalar_lea.vmem [#allocation2], 25
    %v600 = vld [vmem:[%s599] ss:$0 sm:$0xff]
    %v601 = vxor.u32 %v600, 2147483648
    %v602 = vlaneseq
    %v603 = vand.u32 %v602, 127
    %vm604 = vcmp.eq.s32.totalorder %v603, 25
    %v605 = vmul.f32 %v601, %v586
    %606 = vadd.xlane.f32.xlu0 %v605
    %v607 = vpop.xlane.xlu0 %606
    %v608 = vsel %vm604, %v607, %v586
    %v609 = vmul.f32 %v601, %v590
    %610 = vadd.xlane.f32.xlu0 %v609
    %v611 = vpop.xlane.xlu0 %610
    %v612 = vsel %vm604, %v611, %v590
    %v613 = vmul.f32 %v601, %v594
    %614 = vadd.xlane.f32.xlu0 %v613
    %v615 = vpop.xlane.xlu0 %614
    %v616 = vsel %vm604, %v615, %v594
    %v617 = vmul.f32 %v601, %v598
    %618 = vadd.xlane.f32.xlu0 %v617
    %v619 = vpop.xlane.xlu0 %618
    %v620 = vsel %vm604, %v619, %v598
    %s621 = scalar_lea.vmem [#allocation2], 26
    %v622 = vld [vmem:[%s621] ss:$0 sm:$0xff]
    %v623 = vxor.u32 %v622, 2147483648
    %v624 = vlaneseq
    %v625 = vand.u32 %v624, 127
    %vm626 = vcmp.eq.s32.totalorder %v625, 26
    %v627 = vmul.f32 %v623, %v608
    %628 = vadd.xlane.f32.xlu0 %v627
    %v629 = vpop.xlane.xlu0 %628
    %v630 = vsel %vm626, %v629, %v608
    %v631 = vmul.f32 %v623, %v612
    %632 = vadd.xlane.f32.xlu0 %v631
    %v633 = vpop.xlane.xlu0 %632
    %v634 = vsel %vm626, %v633, %v612
    %v635 = vmul.f32 %v623, %v616
    %636 = vadd.xlane.f32.xlu0 %v635
    %v637 = vpop.xlane.xlu0 %636
    %v638 = vsel %vm626, %v637, %v616
    %v639 = vmul.f32 %v623, %v620
    %640 = vadd.xlane.f32.xlu0 %v639
    %v641 = vpop.xlane.xlu0 %640
    %v642 = vsel %vm626, %v641, %v620
    %s643 = scalar_lea.vmem [#allocation2], 27
    %v644 = vld [vmem:[%s643] ss:$0 sm:$0xff]
    %v645 = vxor.u32 %v644, 2147483648
    %v646 = vlaneseq
    %v647 = vand.u32 %v646, 127
    %vm648 = vcmp.eq.s32.totalorder %v647, 27
    %v649 = vmul.f32 %v645, %v630
    %650 = vadd.xlane.f32.xlu0 %v649
    %v651 = vpop.xlane.xlu0 %650
    %v652 = vsel %vm648, %v651, %v630
    %v653 = vmul.f32 %v645, %v634
    %654 = vadd.xlane.f32.xlu0 %v653
    %v655 = vpop.xlane.xlu0 %654
    %v656 = vsel %vm648, %v655, %v634
    %v657 = vmul.f32 %v645, %v638
    %658 = vadd.xlane.f32.xlu0 %v657
    %v659 = vpop.xlane.xlu0 %658
    %v660 = vsel %vm648, %v659, %v638
    %v661 = vmul.f32 %v645, %v642
    %662 = vadd.xlane.f32.xlu0 %v661
    %v663 = vpop.xlane.xlu0 %662
    %v664 = vsel %vm648, %v663, %v642
    %s665 = scalar_lea.vmem [#allocation2], 28
    %v666 = vld [vmem:[%s665] ss:$0 sm:$0xff]
    %v667 = vxor.u32 %v666, 2147483648
    %v668 = vlaneseq
    %v669 = vand.u32 %v668, 127
    %vm670 = vcmp.eq.s32.totalorder %v669, 28
    %v671 = vmul.f32 %v667, %v652
    %672 = vadd.xlane.f32.xlu0 %v671
    %v673 = vpop.xlane.xlu0 %672
    %v674 = vsel %vm670, %v673, %v652
    %v675 = vmul.f32 %v667, %v656
    %676 = vadd.xlane.f32.xlu0 %v675
    %v677 = vpop.xlane.xlu0 %676
    %v678 = vsel %vm670, %v677, %v656
    %v679 = vmul.f32 %v667, %v660
    %680 = vadd.xlane.f32.xlu0 %v679
    %v681 = vpop.xlane.xlu0 %680
    %v682 = vsel %vm670, %v681, %v660
    %v683 = vmul.f32 %v667, %v664
    %684 = vadd.xlane.f32.xlu0 %v683
    %v685 = vpop.xlane.xlu0 %684
    %v686 = vsel %vm670, %v685, %v664
    %s687 = scalar_lea.vmem [#allocation2], 29
    %v688 = vld [vmem:[%s687] ss:$0 sm:$0xff]
    %v689 = vxor.u32 %v688, 2147483648
    %v690 = vlaneseq
    %v691 = vand.u32 %v690, 127
    %vm692 = vcmp.eq.s32.totalorder %v691, 29
    %v693 = vmul.f32 %v689, %v674
    %694 = vadd.xlane.f32.xlu0 %v693
    %v695 = vpop.xlane.xlu0 %694
    %v696 = vsel %vm692, %v695, %v674
    %v697 = vmul.f32 %v689, %v678
    %698 = vadd.xlane.f32.xlu0 %v697
    %v699 = vpop.xlane.xlu0 %698
    %v700 = vsel %vm692, %v699, %v678
    %v701 = vmul.f32 %v689, %v682
    %702 = vadd.xlane.f32.xlu0 %v701
    %v703 = vpop.xlane.xlu0 %702
    %v704 = vsel %vm692, %v703, %v682
    %v705 = vmul.f32 %v689, %v686
    %706 = vadd.xlane.f32.xlu0 %v705
    %v707 = vpop.xlane.xlu0 %706
    %v708 = vsel %vm692, %v707, %v686
    %s709 = scalar_lea.vmem [#allocation2], 30
    %v710 = vld [vmem:[%s709] ss:$0 sm:$0xff]
    %v711 = vxor.u32 %v710, 2147483648
    %v712 = vlaneseq
    %v713 = vand.u32 %v712, 127
    %vm714 = vcmp.eq.s32.totalorder %v713, 30
    %v715 = vmul.f32 %v711, %v696
    %716 = vadd.xlane.f32.xlu0 %v715
    %v717 = vpop.xlane.xlu0 %716
    %v718 = vsel %vm714, %v717, %v696
    %v719 = vmul.f32 %v711, %v700
    %720 = vadd.xlane.f32.xlu0 %v719
    %v721 = vpop.xlane.xlu0 %720
    %v722 = vsel %vm714, %v721, %v700
    %v723 = vmul.f32 %v711, %v704
    %724 = vadd.xlane.f32.xlu0 %v723
    %v725 = vpop.xlane.xlu0 %724
    %v726 = vsel %vm714, %v725, %v704
    %v727 = vmul.f32 %v711, %v708
    %728 = vadd.xlane.f32.xlu0 %v727
    %v729 = vpop.xlane.xlu0 %728
    %v730 = vsel %vm714, %v729, %v708
    %s731 = scalar_lea.vmem [#allocation2], 31
    %v732 = vld [vmem:[%s731] ss:$0 sm:$0xff]
    %v733 = vxor.u32 %v732, 2147483648
    %v734 = vlaneseq
    %v735 = vand.u32 %v734, 127
    %vm736 = vcmp.eq.s32.totalorder %v735, 31
    %v737 = vmul.f32 %v733, %v718
    %738 = vadd.xlane.f32.xlu0 %v737
    %v739 = vpop.xlane.xlu0 %738
    %v740 = vsel %vm736, %v739, %v718
    %v741 = vmul.f32 %v733, %v722
    %742 = vadd.xlane.f32.xlu0 %v741
    %v743 = vpop.xlane.xlu0 %742
    %v744 = vsel %vm736, %v743, %v722
    %v745 = vmul.f32 %v733, %v726
    %746 = vadd.xlane.f32.xlu0 %v745
    %v747 = vpop.xlane.xlu0 %746
    %v748 = vsel %vm736, %v747, %v726
    %v749 = vmul.f32 %v733, %v730
    %750 = vadd.xlane.f32.xlu0 %v749
    %v751 = vpop.xlane.xlu0 %750
    %v752 = vsel %vm736, %v751, %v730
    %s753 = scalar_lea.vmem [#allocation2], 32
    %v754 = vld [vmem:[%s753] ss:$0 sm:$0xff]
    %v755 = vxor.u32 %v754, 2147483648
    %v756 = vlaneseq
    %v757 = vand.u32 %v756, 127
    %vm758 = vcmp.eq.s32.totalorder %v757, 32
    %v759 = vmul.f32 %v755, %v740
    %760 = vadd.xlane.f32.xlu0 %v759
    %v761 = vpop.xlane.xlu0 %760
    %v762 = vsel %vm758, %v761, %v740
    %v763 = vmul.f32 %v755, %v744
    %764 = vadd.xlane.f32.xlu0 %v763
    %v765 = vpop.xlane.xlu0 %764
    %v766 = vsel %vm758, %v765, %v744
    %v767 = vmul.f32 %v755, %v748
    %768 = vadd.xlane.f32.xlu0 %v767
    %v769 = vpop.xlane.xlu0 %768
    %v770 = vsel %vm758, %v769, %v748
    %v771 = vmul.f32 %v755, %v752
    %772 = vadd.xlane.f32.xlu0 %v771
    %v773 = vpop.xlane.xlu0 %772
    %v774 = vsel %vm758, %v773, %v752
    %v775 = vmul.f32 %v755, %v229
    %776 = vadd.xlane.f32.xlu0 %v775
    %v777 = vpop.xlane.xlu0 %776
    %v778 = vsel %vm758, %v777, %v229
    %s779 = scalar_lea.vmem [#allocation2], 33
    %v780 = vld [vmem:[%s779] ss:$0 sm:$0xff]
    %v781 = vxor.u32 %v780, 2147483648
    %v782 = vlaneseq
    %v783 = vand.u32 %v782, 127
    %vm784 = vcmp.eq.s32.totalorder %v783, 33
    %v785 = vmul.f32 %v781, %v762
    %786 = vadd.xlane.f32.xlu0 %v785
    %v787 = vpop.xlane.xlu0 %786
    %v788 = vsel %vm784, %v787, %v762
    %v789 = vmul.f32 %v781, %v766
    %790 = vadd.xlane.f32.xlu0 %v789
    %v791 = vpop.xlane.xlu0 %790
    %v792 = vsel %vm784, %v791, %v766
    %v793 = vmul.f32 %v781, %v770
    %794 = vadd.xlane.f32.xlu0 %v793
    %v795 = vpop.xlane.xlu0 %794
    %v796 = vsel %vm784, %v795, %v770
    %v797 = vmul.f32 %v781, %v774
    %798 = vadd.xlane.f32.xlu0 %v797
    %v799 = vpop.xlane.xlu0 %798
    %v800 = vsel %vm784, %v799, %v774
    %v801 = vmul.f32 %v781, %v778
    %802 = vadd.xlane.f32.xlu0 %v801
    %v803 = vpop.xlane.xlu0 %802
    %v804 = vsel %vm784, %v803, %v778
    %s805 = scalar_lea.vmem [#allocation2], 34
    %v806 = vld [vmem:[%s805] ss:$0 sm:$0xff]
    %v807 = vxor.u32 %v806, 2147483648
    %v808 = vlaneseq
    %v809 = vand.u32 %v808, 127
    %vm810 = vcmp.eq.s32.totalorder %v809, 34
    %v811 = vmul.f32 %v807, %v788
    %812 = vadd.xlane.f32.xlu0 %v811
    %v813 = vpop.xlane.xlu0 %812
    %v814 = vsel %vm810, %v813, %v788
    %v815 = vmul.f32 %v807, %v792
    %816 = vadd.xlane.f32.xlu0 %v815
    %v817 = vpop.xlane.xlu0 %816
    %v818 = vsel %vm810, %v817, %v792
    %v819 = vmul.f32 %v807, %v796
    %820 = vadd.xlane.f32.xlu0 %v819
    %v821 = vpop.xlane.xlu0 %820
    %v822 = vsel %vm810, %v821, %v796
    %v823 = vmul.f32 %v807, %v800
    %824 = vadd.xlane.f32.xlu0 %v823
    %v825 = vpop.xlane.xlu0 %824
    %v826 = vsel %vm810, %v825, %v800
    %v827 = vmul.f32 %v807, %v804
    %828 = vadd.xlane.f32.xlu0 %v827
    %v829 = vpop.xlane.xlu0 %828
    %v830 = vsel %vm810, %v829, %v804
    %s831 = scalar_lea.vmem [#allocation2], 35
    %v832 = vld [vmem:[%s831] ss:$0 sm:$0xff]
    %v833 = vxor.u32 %v832, 2147483648
    %v834 = vlaneseq
    %v835 = vand.u32 %v834, 127
    %vm836 = vcmp.eq.s32.totalorder %v835, 35
    %v837 = vmul.f32 %v833, %v814
    %838 = vadd.xlane.f32.xlu0 %v837
    %v839 = vpop.xlane.xlu0 %838
    %v840 = vsel %vm836, %v839, %v814
    %v841 = vmul.f32 %v833, %v818
    %842 = vadd.xlane.f32.xlu0 %v841
    %v843 = vpop.xlane.xlu0 %842
    %v844 = vsel %vm836, %v843, %v818
    %v845 = vmul.f32 %v833, %v822
    %846 = vadd.xlane.f32.xlu0 %v845
    %v847 = vpop.xlane.xlu0 %846
    %v848 = vsel %vm836, %v847, %v822
    %v849 = vmul.f32 %v833, %v826
    %850 = vadd.xlane.f32.xlu0 %v849
    %v851 = vpop.xlane.xlu0 %850
    %v852 = vsel %vm836, %v851, %v826
    %v853 = vmul.f32 %v833, %v830
    %854 = vadd.xlane.f32.xlu0 %v853
    %v855 = vpop.xlane.xlu0 %854
    %v856 = vsel %vm836, %v855, %v830
    %s857 = scalar_lea.vmem [#allocation2], 36
    %v858 = vld [vmem:[%s857] ss:$0 sm:$0xff]
    %v859 = vxor.u32 %v858, 2147483648
    %v860 = vlaneseq
    %v861 = vand.u32 %v860, 127
    %vm862 = vcmp.eq.s32.totalorder %v861, 36
    %v863 = vmul.f32 %v859, %v840
    %864 = vadd.xlane.f32.xlu0 %v863
    %v865 = vpop.xlane.xlu0 %864
    %v866 = vsel %vm862, %v865, %v840
    %v867 = vmul.f32 %v859, %v844
    %868 = vadd.xlane.f32.xlu0 %v867
    %v869 = vpop.xlane.xlu0 %868
    %v870 = vsel %vm862, %v869, %v844
    %v871 = vmul.f32 %v859, %v848
    %872 = vadd.xlane.f32.xlu0 %v871
    %v873 = vpop.xlane.xlu0 %872
    %v874 = vsel %vm862, %v873, %v848
    %v875 = vmul.f32 %v859, %v852
    %876 = vadd.xlane.f32.xlu0 %v875
    %v877 = vpop.xlane.xlu0 %876
    %v878 = vsel %vm862, %v877, %v852
    %v879 = vmul.f32 %v859, %v856
    %880 = vadd.xlane.f32.xlu0 %v879
    %v881 = vpop.xlane.xlu0 %880
    %v882 = vsel %vm862, %v881, %v856
    %s883 = scalar_lea.vmem [#allocation2], 37
    %v884 = vld [vmem:[%s883] ss:$0 sm:$0xff]
    %v885 = vxor.u32 %v884, 2147483648
    %v886 = vlaneseq
    %v887 = vand.u32 %v886, 127
    %vm888 = vcmp.eq.s32.totalorder %v887, 37
    %v889 = vmul.f32 %v885, %v866
    %890 = vadd.xlane.f32.xlu0 %v889
    %v891 = vpop.xlane.xlu0 %890
    %v892 = vsel %vm888, %v891, %v866
    %v893 = vmul.f32 %v885, %v870
    %894 = vadd.xlane.f32.xlu0 %v893
    %v895 = vpop.xlane.xlu0 %894
    %v896 = vsel %vm888, %v895, %v870
    %v897 = vmul.f32 %v885, %v874
    %898 = vadd.xlane.f32.xlu0 %v897
    %v899 = vpop.xlane.xlu0 %898
    %v900 = vsel %vm888, %v899, %v874
    %v901 = vmul.f32 %v885, %v878
    %902 = vadd.xlane.f32.xlu0 %v901
    %v903 = vpop.xlane.xlu0 %902
    %v904 = vsel %vm888, %v903, %v878
    %v905 = vmul.f32 %v885, %v882
    %906 = vadd.xlane.f32.xlu0 %v905
    %v907 = vpop.xlane.xlu0 %906
    %v908 = vsel %vm888, %v907, %v882
    %s909 = scalar_lea.vmem [#allocation2], 38
    %v910 = vld [vmem:[%s909] ss:$0 sm:$0xff]
    %v911 = vxor.u32 %v910, 2147483648
    %v912 = vlaneseq
    %v913 = vand.u32 %v912, 127
    %vm914 = vcmp.eq.s32.totalorder %v913, 38
    %v915 = vmul.f32 %v911, %v892
    %916 = vadd.xlane.f32.xlu0 %v915
    %v917 = vpop.xlane.xlu0 %916
    %v918 = vsel %vm914, %v917, %v892
    %v919 = vmul.f32 %v911, %v896
    %920 = vadd.xlane.f32.xlu0 %v919
    %v921 = vpop.xlane.xlu0 %920
    %v922 = vsel %vm914, %v921, %v896
    %v923 = vmul.f32 %v911, %v900
    %924 = vadd.xlane.f32.xlu0 %v923
    %v925 = vpop.xlane.xlu0 %924
    %v926 = vsel %vm914, %v925, %v900
    %v927 = vmul.f32 %v911, %v904
    %928 = vadd.xlane.f32.xlu0 %v927
    %v929 = vpop.xlane.xlu0 %928
    %v930 = vsel %vm914, %v929, %v904
    %v931 = vmul.f32 %v911, %v908
    %932 = vadd.xlane.f32.xlu0 %v931
    %v933 = vpop.xlane.xlu0 %932
    %v934 = vsel %vm914, %v933, %v908
    %s935 = scalar_lea.vmem [#allocation2], 39
    %v936 = vld [vmem:[%s935] ss:$0 sm:$0xff]
    %v937 = vxor.u32 %v936, 2147483648
    %v938 = vlaneseq
    %v939 = vand.u32 %v938, 127
    %vm940 = vcmp.eq.s32.totalorder %v939, 39
    %v941 = vmul.f32 %v937, %v918
    %942 = vadd.xlane.f32.xlu0 %v941
    %v943 = vpop.xlane.xlu0 %942
    %v944 = vsel %vm940, %v943, %v918
    %v945 = vmul.f32 %v937, %v922
    %946 = vadd.xlane.f32.xlu0 %v945
    %v947 = vpop.xlane.xlu0 %946
    %v948 = vsel %vm940, %v947, %v922
    %v949 = vmul.f32 %v937, %v926
    %950 = vadd.xlane.f32.xlu0 %v949
    %v951 = vpop.xlane.xlu0 %950
    %v952 = vsel %vm940, %v951, %v926
    %v953 = vmul.f32 %v937, %v930
    %954 = vadd.xlane.f32.xlu0 %v953
    %v955 = vpop.xlane.xlu0 %954
    %v956 = vsel %vm940, %v955, %v930
    %v957 = vmul.f32 %v937, %v934
    %958 = vadd.xlane.f32.xlu0 %v957
    %v959 = vpop.xlane.xlu0 %958
    %v960 = vsel %vm940, %v959, %v934
    %s961 = scalar_lea.vmem [#allocation2], 40
    %v962 = vld [vmem:[%s961] ss:$0 sm:$0xff]
    %v963 = vxor.u32 %v962, 2147483648
    %v964 = vlaneseq
    %v965 = vand.u32 %v964, 127
    %vm966 = vcmp.eq.s32.totalorder %v965, 40
    %v967 = vmul.f32 %v963, %v944
    %968 = vadd.xlane.f32.xlu0 %v967
    %v969 = vpop.xlane.xlu0 %968
    %v970 = vsel %vm966, %v969, %v944
    %v971 = vmul.f32 %v963, %v948
    %972 = vadd.xlane.f32.xlu0 %v971
    %v973 = vpop.xlane.xlu0 %972
    %v974 = vsel %vm966, %v973, %v948
    %v975 = vmul.f32 %v963, %v952
    %976 = vadd.xlane.f32.xlu0 %v975
    %v977 = vpop.xlane.xlu0 %976
    %v978 = vsel %vm966, %v977, %v952
    %v979 = vmul.f32 %v963, %v956
    %980 = vadd.xlane.f32.xlu0 %v979
    %v981 = vpop.xlane.xlu0 %980
    %v982 = vsel %vm966, %v981, %v956
    %v983 = vmul.f32 %v963, %v960
    %984 = vadd.xlane.f32.xlu0 %v983
    %v985 = vpop.xlane.xlu0 %984
    %v986 = vsel %vm966, %v985, %v960
    %v987 = vmul.f32 %v963, %v236
    %988 = vadd.xlane.f32.xlu0 %v987
    %v989 = vpop.xlane.xlu0 %988
    %v990 = vsel %vm966, %v989, %v236
    %s991 = scalar_lea.vmem [#allocation2], 41
    %v992 = vld [vmem:[%s991] ss:$0 sm:$0xff]
    %v993 = vxor.u32 %v992, 2147483648
    %v994 = vlaneseq
    %v995 = vand.u32 %v994, 127
    %vm996 = vcmp.eq.s32.totalorder %v995, 41
    %v997 = vmul.f32 %v993, %v970
    %998 = vadd.xlane.f32.xlu0 %v997
    %v999 = vpop.xlane.xlu0 %998
    %v1000 = vsel %vm996, %v999, %v970
    %v1001 = vmul.f32 %v993, %v974
    %1002 = vadd.xlane.f32.xlu0 %v1001
    %v1003 = vpop.xlane.xlu0 %1002
    %v1004 = vsel %vm996, %v1003, %v974
    %v1005 = vmul.f32 %v993, %v978
    %1006 = vadd.xlane.f32.xlu0 %v1005
    %v1007 = vpop.xlane.xlu0 %1006
    %v1008 = vsel %vm996, %v1007, %v978
    %v1009 = vmul.f32 %v993, %v982
    %1010 = vadd.xlane.f32.xlu0 %v1009
    %v1011 = vpop.xlane.xlu0 %1010
    %v1012 = vsel %vm996, %v1011, %v982
    %v1013 = vmul.f32 %v993, %v986
    %1014 = vadd.xlane.f32.xlu0 %v1013
    %v1015 = vpop.xlane.xlu0 %1014
    %v1016 = vsel %vm996, %v1015, %v986
    %v1017 = vmul.f32 %v993, %v990
    %1018 = vadd.xlane.f32.xlu0 %v1017
    %v1019 = vpop.xlane.xlu0 %1018
    %v1020 = vsel %vm996, %v1019, %v990
    %s1021 = scalar_lea.vmem [#allocation2], 42
    %v1022 = vld [vmem:[%s1021] ss:$0 sm:$0xff]
    %v1023 = vxor.u32 %v1022, 2147483648
    %v1024 = vlaneseq
    %v1025 = vand.u32 %v1024, 127
    %vm1026 = vcmp.eq.s32.totalorder %v1025, 42
    %v1027 = vmul.f32 %v1023, %v1000
    %1028 = vadd.xlane.f32.xlu0 %v1027
    %v1029 = vpop.xlane.xlu0 %1028
    %v1030 = vsel %vm1026, %v1029, %v1000
    %v1031 = vmul.f32 %v1023, %v1004
    %1032 = vadd.xlane.f32.xlu0 %v1031
    %v1033 = vpop.xlane.xlu0 %1032
    %v1034 = vsel %vm1026, %v1033, %v1004
    %v1035 = vmul.f32 %v1023, %v1008
    %1036 = vadd.xlane.f32.xlu0 %v1035
    %v1037 = vpop.xlane.xlu0 %1036
    %v1038 = vsel %vm1026, %v1037, %v1008
    %v1039 = vmul.f32 %v1023, %v1012
    %1040 = vadd.xlane.f32.xlu0 %v1039
    %v1041 = vpop.xlane.xlu0 %1040
    %v1042 = vsel %vm1026, %v1041, %v1012
    %v1043 = vmul.f32 %v1023, %v1016
    %1044 = vadd.xlane.f32.xlu0 %v1043
    %v1045 = vpop.xlane.xlu0 %1044
    %v1046 = vsel %vm1026, %v1045, %v1016
    %v1047 = vmul.f32 %v1023, %v1020
    %1048 = vadd.xlane.f32.xlu0 %v1047
    %v1049 = vpop.xlane.xlu0 %1048
    %v1050 = vsel %vm1026, %v1049, %v1020
    %s1051 = scalar_lea.vmem [#allocation2], 43
    %v1052 = vld [vmem:[%s1051] ss:$0 sm:$0xff]
    %v1053 = vxor.u32 %v1052, 2147483648
    %v1054 = vlaneseq
    %v1055 = vand.u32 %v1054, 127
    %vm1056 = vcmp.eq.s32.totalorder %v1055, 43
    %v1057 = vmul.f32 %v1053, %v1030
    %1058 = vadd.xlane.f32.xlu0 %v1057
    %v1059 = vpop.xlane.xlu0 %1058
    %v1060 = vsel %vm1056, %v1059, %v1030
    %v1061 = vmul.f32 %v1053, %v1034
    %1062 = vadd.xlane.f32.xlu0 %v1061
    %v1063 = vpop.xlane.xlu0 %1062
    %v1064 = vsel %vm1056, %v1063, %v1034
    %v1065 = vmul.f32 %v1053, %v1038
    %1066 = vadd.xlane.f32.xlu0 %v1065
    %v1067 = vpop.xlane.xlu0 %1066
    %v1068 = vsel %vm1056, %v1067, %v1038
    %v1069 = vmul.f32 %v1053, %v1042
    %1070 = vadd.xlane.f32.xlu0 %v1069
    %v1071 = vpop.xlane.xlu0 %1070
    %v1072 = vsel %vm1056, %v1071, %v1042
    %v1073 = vmul.f32 %v1053, %v1046
    %1074 = vadd.xlane.f32.xlu0 %v1073
    %v1075 = vpop.xlane.xlu0 %1074
    %v1076 = vsel %vm1056, %v1075, %v1046
    %v1077 = vmul.f32 %v1053, %v1050
    %1078 = vadd.xlane.f32.xlu0 %v1077
    %v1079 = vpop.xlane.xlu0 %1078
    %v1080 = vsel %vm1056, %v1079, %v1050
    %s1081 = scalar_lea.vmem [#allocation2], 44
    %v1082 = vld [vmem:[%s1081] ss:$0 sm:$0xff]
    %v1083 = vxor.u32 %v1082, 2147483648
    %v1084 = vlaneseq
    %v1085 = vand.u32 %v1084, 127
    %vm1086 = vcmp.eq.s32.totalorder %v1085, 44
    %v1087 = vmul.f32 %v1083, %v1060
    %1088 = vadd.xlane.f32.xlu0 %v1087
    %v1089 = vpop.xlane.xlu0 %1088
    %v1090 = vsel %vm1086, %v1089, %v1060
    %v1091 = vmul.f32 %v1083, %v1064
    %1092 = vadd.xlane.f32.xlu0 %v1091
    %v1093 = vpop.xlane.xlu0 %1092
    %v1094 = vsel %vm1086, %v1093, %v1064
    %v1095 = vmul.f32 %v1083, %v1068
    %1096 = vadd.xlane.f32.xlu0 %v1095
    %v1097 = vpop.xlane.xlu0 %1096
    %v1098 = vsel %vm1086, %v1097, %v1068
    %v1099 = vmul.f32 %v1083, %v1072
    %1100 = vadd.xlane.f32.xlu0 %v1099
    %v1101 = vpop.xlane.xlu0 %1100
    %v1102 = vsel %vm1086, %v1101, %v1072
    %v1103 = vmul.f32 %v1083, %v1076
    %1104 = vadd.xlane.f32.xlu0 %v1103
    %v1105 = vpop.xlane.xlu0 %1104
    %v1106 = vsel %vm1086, %v1105, %v1076
    %v1107 = vmul.f32 %v1083, %v1080
    %1108 = vadd.xlane.f32.xlu0 %v1107
    %v1109 = vpop.xlane.xlu0 %1108
    %v1110 = vsel %vm1086, %v1109, %v1080
    %s1111 = scalar_lea.vmem [#allocation2], 45
    %v1112 = vld [vmem:[%s1111] ss:$0 sm:$0xff]
    %v1113 = vxor.u32 %v1112, 2147483648
    %v1114 = vlaneseq
    %v1115 = vand.u32 %v1114, 127
    %vm1116 = vcmp.eq.s32.totalorder %v1115, 45
    %v1117 = vmul.f32 %v1113, %v1090
    %1118 = vadd.xlane.f32.xlu0 %v1117
    %v1119 = vpop.xlane.xlu0 %1118
    %v1120 = vsel %vm1116, %v1119, %v1090
    %v1121 = vmul.f32 %v1113, %v1094
    %1122 = vadd.xlane.f32.xlu0 %v1121
    %v1123 = vpop.xlane.xlu0 %1122
    %v1124 = vsel %vm1116, %v1123, %v1094
    %v1125 = vmul.f32 %v1113, %v1098
    %1126 = vadd.xlane.f32.xlu0 %v1125
    %v1127 = vpop.xlane.xlu0 %1126
    %v1128 = vsel %vm1116, %v1127, %v1098
    %v1129 = vmul.f32 %v1113, %v1102
    %1130 = vadd.xlane.f32.xlu0 %v1129
    %v1131 = vpop.xlane.xlu0 %1130
    %v1132 = vsel %vm1116, %v1131, %v1102
    %v1133 = vmul.f32 %v1113, %v1106
    %1134 = vadd.xlane.f32.xlu0 %v1133
    %v1135 = vpop.xlane.xlu0 %1134
    %v1136 = vsel %vm1116, %v1135, %v1106
    %v1137 = vmul.f32 %v1113, %v1110
    %1138 = vadd.xlane.f32.xlu0 %v1137
    %v1139 = vpop.xlane.xlu0 %1138
    %v1140 = vsel %vm1116, %v1139, %v1110
    %s1141 = scalar_lea.vmem [#allocation2], 46
    %v1142 = vld [vmem:[%s1141] ss:$0 sm:$0xff]
    %v1143 = vxor.u32 %v1142, 2147483648
    %v1144 = vlaneseq
    %v1145 = vand.u32 %v1144, 127
    %vm1146 = vcmp.eq.s32.totalorder %v1145, 46
    %v1147 = vmul.f32 %v1143, %v1120
    %1148 = vadd.xlane.f32.xlu0 %v1147
    %v1149 = vpop.xlane.xlu0 %1148
    %v1150 = vsel %vm1146, %v1149, %v1120
    %v1151 = vmul.f32 %v1143, %v1124
    %1152 = vadd.xlane.f32.xlu0 %v1151
    %v1153 = vpop.xlane.xlu0 %1152
    %v1154 = vsel %vm1146, %v1153, %v1124
    %v1155 = vmul.f32 %v1143, %v1128
    %1156 = vadd.xlane.f32.xlu0 %v1155
    %v1157 = vpop.xlane.xlu0 %1156
    %v1158 = vsel %vm1146, %v1157, %v1128
    %v1159 = vmul.f32 %v1143, %v1132
    %1160 = vadd.xlane.f32.xlu0 %v1159
    %v1161 = vpop.xlane.xlu0 %1160
    %v1162 = vsel %vm1146, %v1161, %v1132
    %v1163 = vmul.f32 %v1143, %v1136
    %1164 = vadd.xlane.f32.xlu0 %v1163
    %v1165 = vpop.xlane.xlu0 %1164
    %v1166 = vsel %vm1146, %v1165, %v1136
    %v1167 = vmul.f32 %v1143, %v1140
    %1168 = vadd.xlane.f32.xlu0 %v1167
    %v1169 = vpop.xlane.xlu0 %1168
    %v1170 = vsel %vm1146, %v1169, %v1140
    %s1171 = scalar_lea.vmem [#allocation2], 47
    %v1172 = vld [vmem:[%s1171] ss:$0 sm:$0xff]
    %v1173 = vxor.u32 %v1172, 2147483648
    %v1174 = vlaneseq
    %v1175 = vand.u32 %v1174, 127
    %vm1176 = vcmp.eq.s32.totalorder %v1175, 47
    %v1177 = vmul.f32 %v1173, %v1150
    %1178 = vadd.xlane.f32.xlu0 %v1177
    %v1179 = vpop.xlane.xlu0 %1178
    %v1180 = vsel %vm1176, %v1179, %v1150
    %v1181 = vmul.f32 %v1173, %v1154
    %1182 = vadd.xlane.f32.xlu0 %v1181
    %v1183 = vpop.xlane.xlu0 %1182
    %v1184 = vsel %vm1176, %v1183, %v1154
    %v1185 = vmul.f32 %v1173, %v1158
    %1186 = vadd.xlane.f32.xlu0 %v1185
    %v1187 = vpop.xlane.xlu0 %1186
    %v1188 = vsel %vm1176, %v1187, %v1158
    %v1189 = vmul.f32 %v1173, %v1162
    %1190 = vadd.xlane.f32.xlu0 %v1189
    %v1191 = vpop.xlane.xlu0 %1190
    %v1192 = vsel %vm1176, %v1191, %v1162
    %v1193 = vmul.f32 %v1173, %v1166
    %1194 = vadd.xlane.f32.xlu0 %v1193
    %v1195 = vpop.xlane.xlu0 %1194
    %v1196 = vsel %vm1176, %v1195, %v1166
    %v1197 = vmul.f32 %v1173, %v1170
    %1198 = vadd.xlane.f32.xlu0 %v1197
    %v1199 = vpop.xlane.xlu0 %1198
    %v1200 = vsel %vm1176, %v1199, %v1170
    %s1201 = scalar_lea.vmem [#allocation2], 48
    %v1202 = vld [vmem:[%s1201] ss:$0 sm:$0xff]
    %v1203 = vxor.u32 %v1202, 2147483648
    %v1204 = vlaneseq
    %v1205 = vand.u32 %v1204, 127
    %vm1206 = vcmp.eq.s32.totalorder %v1205, 48
    %v1207 = vmul.f32 %v1203, %v1180
    %1208 = vadd.xlane.f32.xlu0 %v1207
    %v1209 = vpop.xlane.xlu0 %1208
    %v1210 = vsel %vm1206, %v1209, %v1180
    %v1211 = vmul.f32 %v1203, %v1184
    %1212 = vadd.xlane.f32.xlu0 %v1211
    %v1213 = vpop.xlane.xlu0 %1212
    %v1214 = vsel %vm1206, %v1213, %v1184
    %v1215 = vmul.f32 %v1203, %v1188
    %1216 = vadd.xlane.f32.xlu0 %v1215
    %v1217 = vpop.xlane.xlu0 %1216
    %v1218 = vsel %vm1206, %v1217, %v1188
    %v1219 = vmul.f32 %v1203, %v1192
    %1220 = vadd.xlane.f32.xlu0 %v1219
    %v1221 = vpop.xlane.xlu0 %1220
    %v1222 = vsel %vm1206, %v1221, %v1192
    %v1223 = vmul.f32 %v1203, %v1196
    %1224 = vadd.xlane.f32.xlu0 %v1223
    %v1225 = vpop.xlane.xlu0 %1224
    %v1226 = vsel %vm1206, %v1225, %v1196
    %v1227 = vmul.f32 %v1203, %v1200
    %1228 = vadd.xlane.f32.xlu0 %v1227
    %v1229 = vpop.xlane.xlu0 %1228
    %v1230 = vsel %vm1206, %v1229, %v1200
    %v1231 = vmul.f32 %v1203, %v243
    %1232 = vadd.xlane.f32.xlu0 %v1231
    %v1233 = vpop.xlane.xlu0 %1232
    %v1234 = vsel %vm1206, %v1233, %v243
    %s1235 = scalar_lea.vmem [#allocation2], 49
    %v1236 = vld [vmem:[%s1235] ss:$0 sm:$0xff]
    %v1237 = vxor.u32 %v1236, 2147483648
    %v1238 = vlaneseq
    %v1239 = vand.u32 %v1238, 127
    %vm1240 = vcmp.eq.s32.totalorder %v1239, 49
    %v1241 = vmul.f32 %v1237, %v1210
    %1242 = vadd.xlane.f32.xlu0 %v1241
    %v1243 = vpop.xlane.xlu0 %1242
    %v1244 = vsel %vm1240, %v1243, %v1210
    %v1245 = vmul.f32 %v1237, %v1214
    %1246 = vadd.xlane.f32.xlu0 %v1245
    %v1247 = vpop.xlane.xlu0 %1246
    %v1248 = vsel %vm1240, %v1247, %v1214
    %v1249 = vmul.f32 %v1237, %v1218
    %1250 = vadd.xlane.f32.xlu0 %v1249
    %v1251 = vpop.xlane.xlu0 %1250
    %v1252 = vsel %vm1240, %v1251, %v1218
    %v1253 = vmul.f32 %v1237, %v1222
    %1254 = vadd.xlane.f32.xlu0 %v1253
    %v1255 = vpop.xlane.xlu0 %1254
    %v1256 = vsel %vm1240, %v1255, %v1222
    %v1257 = vmul.f32 %v1237, %v1226
    %1258 = vadd.xlane.f32.xlu0 %v1257
    %v1259 = vpop.xlane.xlu0 %1258
    %v1260 = vsel %vm1240, %v1259, %v1226
    %v1261 = vmul.f32 %v1237, %v1230
    %1262 = vadd.xlane.f32.xlu0 %v1261
    %v1263 = vpop.xlane.xlu0 %1262
    %v1264 = vsel %vm1240, %v1263, %v1230
    %v1265 = vmul.f32 %v1237, %v1234
    %1266 = vadd.xlane.f32.xlu0 %v1265
    %v1267 = vpop.xlane.xlu0 %1266
    %v1268 = vsel %vm1240, %v1267, %v1234
    %s1269 = scalar_lea.vmem [#allocation2], 50
    %v1270 = vld [vmem:[%s1269] ss:$0 sm:$0xff]
    %v1271 = vxor.u32 %v1270, 2147483648
    %v1272 = vlaneseq
    %v1273 = vand.u32 %v1272, 127
    %vm1274 = vcmp.eq.s32.totalorder %v1273, 50
    %v1275 = vmul.f32 %v1271, %v1244
    %1276 = vadd.xlane.f32.xlu0 %v1275
    %v1277 = vpop.xlane.xlu0 %1276
    %v1278 = vsel %vm1274, %v1277, %v1244
    %v1279 = vmul.f32 %v1271, %v1248
    %1280 = vadd.xlane.f32.xlu0 %v1279
    %v1281 = vpop.xlane.xlu0 %1280
    %v1282 = vsel %vm1274, %v1281, %v1248
    %v1283 = vmul.f32 %v1271, %v1252
    %1284 = vadd.xlane.f32.xlu0 %v1283
    %v1285 = vpop.xlane.xlu0 %1284
    %v1286 = vsel %vm1274, %v1285, %v1252
    %v1287 = vmul.f32 %v1271, %v1256
    %1288 = vadd.xlane.f32.xlu0 %v1287
    %v1289 = vpop.xlane.xlu0 %1288
    %v1290 = vsel %vm1274, %v1289, %v1256
    %v1291 = vmul.f32 %v1271, %v1260
    %1292 = vadd.xlane.f32.xlu0 %v1291
    %v1293 = vpop.xlane.xlu0 %1292
    %v1294 = vsel %vm1274, %v1293, %v1260
    %v1295 = vmul.f32 %v1271, %v1264
    %1296 = vadd.xlane.f32.xlu0 %v1295
    %v1297 = vpop.xlane.xlu0 %1296
    %v1298 = vsel %vm1274, %v1297, %v1264
    %v1299 = vmul.f32 %v1271, %v1268
    %1300 = vadd.xlane.f32.xlu0 %v1299
    %v1301 = vpop.xlane.xlu0 %1300
    %v1302 = vsel %vm1274, %v1301, %v1268
    %s1303 = scalar_lea.vmem [#allocation2], 51
    %v1304 = vld [vmem:[%s1303] ss:$0 sm:$0xff]
    %v1305 = vxor.u32 %v1304, 2147483648
    %v1306 = vlaneseq
    %v1307 = vand.u32 %v1306, 127
    %vm1308 = vcmp.eq.s32.totalorder %v1307, 51
    %v1309 = vmul.f32 %v1305, %v1278
    %1310 = vadd.xlane.f32.xlu0 %v1309
    %v1311 = vpop.xlane.xlu0 %1310
    %v1312 = vsel %vm1308, %v1311, %v1278
    %v1313 = vmul.f32 %v1305, %v1282
    %1314 = vadd.xlane.f32.xlu0 %v1313
    %v1315 = vpop.xlane.xlu0 %1314
    %v1316 = vsel %vm1308, %v1315, %v1282
    %v1317 = vmul.f32 %v1305, %v1286
    %1318 = vadd.xlane.f32.xlu0 %v1317
    %v1319 = vpop.xlane.xlu0 %1318
    %v1320 = vsel %vm1308, %v1319, %v1286
    %v1321 = vmul.f32 %v1305, %v1290
    %1322 = vadd.xlane.f32.xlu0 %v1321
    %v1323 = vpop.xlane.xlu0 %1322
    %v1324 = vsel %vm1308, %v1323, %v1290
    %v1325 = vmul.f32 %v1305, %v1294
    %1326 = vadd.xlane.f32.xlu0 %v1325
    %v1327 = vpop.xlane.xlu0 %1326
    %v1328 = vsel %vm1308, %v1327, %v1294
    %v1329 = vmul.f32 %v1305, %v1298
    %1330 = vadd.xlane.f32.xlu0 %v1329
    %v1331 = vpop.xlane.xlu0 %1330
    %v1332 = vsel %vm1308, %v1331, %v1298
    %v1333 = vmul.f32 %v1305, %v1302
    %1334 = vadd.xlane.f32.xlu0 %v1333
    %v1335 = vpop.xlane.xlu0 %1334
    %v1336 = vsel %vm1308, %v1335, %v1302
    %s1337 = scalar_lea.vmem [#allocation2], 52
    %v1338 = vld [vmem:[%s1337] ss:$0 sm:$0xff]
    %v1339 = vxor.u32 %v1338, 2147483648
    %v1340 = vlaneseq
    %v1341 = vand.u32 %v1340, 127
    %vm1342 = vcmp.eq.s32.totalorder %v1341, 52
    %v1343 = vmul.f32 %v1339, %v1312
    %1344 = vadd.xlane.f32.xlu0 %v1343
    %v1345 = vpop.xlane.xlu0 %1344
    %v1346 = vsel %vm1342, %v1345, %v1312
    %v1347 = vmul.f32 %v1339, %v1316
    %1348 = vadd.xlane.f32.xlu0 %v1347
    %v1349 = vpop.xlane.xlu0 %1348
    %v1350 = vsel %vm1342, %v1349, %v1316
    %v1351 = vmul.f32 %v1339, %v1320
    %1352 = vadd.xlane.f32.xlu0 %v1351
    %v1353 = vpop.xlane.xlu0 %1352
    %v1354 = vsel %vm1342, %v1353, %v1320
    %v1355 = vmul.f32 %v1339, %v1324
    %1356 = vadd.xlane.f32.xlu0 %v1355
    %v1357 = vpop.xlane.xlu0 %1356
    %v1358 = vsel %vm1342, %v1357, %v1324
    %v1359 = vmul.f32 %v1339, %v1328
    %1360 = vadd.xlane.f32.xlu0 %v1359
    %v1361 = vpop.xlane.xlu0 %1360
    %v1362 = vsel %vm1342, %v1361, %v1328
    %v1363 = vmul.f32 %v1339, %v1332
    %1364 = vadd.xlane.f32.xlu0 %v1363
    %v1365 = vpop.xlane.xlu0 %1364
    %v1366 = vsel %vm1342, %v1365, %v1332
    %v1367 = vmul.f32 %v1339, %v1336
    %1368 = vadd.xlane.f32.xlu0 %v1367
    %v1369 = vpop.xlane.xlu0 %1368
    %v1370 = vsel %vm1342, %v1369, %v1336
    %s1371 = scalar_lea.vmem [#allocation2], 53
    %v1372 = vld [vmem:[%s1371] ss:$0 sm:$0xff]
    %v1373 = vxor.u32 %v1372, 2147483648
    %v1374 = vlaneseq
    %v1375 = vand.u32 %v1374, 127
    %vm1376 = vcmp.eq.s32.totalorder %v1375, 53
    %v1377 = vmul.f32 %v1373, %v1346
    %1378 = vadd.xlane.f32.xlu0 %v1377
    %v1379 = vpop.xlane.xlu0 %1378
    %v1380 = vsel %vm1376, %v1379, %v1346
    %v1381 = vmul.f32 %v1373, %v1350
    %1382 = vadd.xlane.f32.xlu0 %v1381
    %v1383 = vpop.xlane.xlu0 %1382
    %v1384 = vsel %vm1376, %v1383, %v1350
    %v1385 = vmul.f32 %v1373, %v1354
    %1386 = vadd.xlane.f32.xlu0 %v1385
    %v1387 = vpop.xlane.xlu0 %1386
    %v1388 = vsel %vm1376, %v1387, %v1354
    %v1389 = vmul.f32 %v1373, %v1358
    %1390 = vadd.xlane.f32.xlu0 %v1389
    %v1391 = vpop.xlane.xlu0 %1390
    %v1392 = vsel %vm1376, %v1391, %v1358
    %v1393 = vmul.f32 %v1373, %v1362
    %1394 = vadd.xlane.f32.xlu0 %v1393
    %v1395 = vpop.xlane.xlu0 %1394
    %v1396 = vsel %vm1376, %v1395, %v1362
    %v1397 = vmul.f32 %v1373, %v1366
    %1398 = vadd.xlane.f32.xlu0 %v1397
    %v1399 = vpop.xlane.xlu0 %1398
    %v1400 = vsel %vm1376, %v1399, %v1366
    %v1401 = vmul.f32 %v1373, %v1370
    %1402 = vadd.xlane.f32.xlu0 %v1401
    %v1403 = vpop.xlane.xlu0 %1402
    %v1404 = vsel %vm1376, %v1403, %v1370
    %s1405 = scalar_lea.vmem [#allocation2], 54
    %v1406 = vld [vmem:[%s1405] ss:$0 sm:$0xff]
    %v1407 = vxor.u32 %v1406, 2147483648
    %v1408 = vlaneseq
    %v1409 = vand.u32 %v1408, 127
    %vm1410 = vcmp.eq.s32.totalorder %v1409, 54
    %v1411 = vmul.f32 %v1407, %v1380
    %1412 = vadd.xlane.f32.xlu0 %v1411
    %v1413 = vpop.xlane.xlu0 %1412
    %v1414 = vsel %vm1410, %v1413, %v1380
    %v1415 = vmul.f32 %v1407, %v1384
    %1416 = vadd.xlane.f32.xlu0 %v1415
    %v1417 = vpop.xlane.xlu0 %1416
    %v1418 = vsel %vm1410, %v1417, %v1384
    %v1419 = vmul.f32 %v1407, %v1388
    %1420 = vadd.xlane.f32.xlu0 %v1419
    %v1421 = vpop.xlane.xlu0 %1420
    %v1422 = vsel %vm1410, %v1421, %v1388
    %v1423 = vmul.f32 %v1407, %v1392
    %1424 = vadd.xlane.f32.xlu0 %v1423
    %v1425 = vpop.xlane.xlu0 %1424
    %v1426 = vsel %vm1410, %v1425, %v1392
    %v1427 = vmul.f32 %v1407, %v1396
    %1428 = vadd.xlane.f32.xlu0 %v1427
    %v1429 = vpop.xlane.xlu0 %1428
    %v1430 = vsel %vm1410, %v1429, %v1396
    %v1431 = vmul.f32 %v1407, %v1400
    %1432 = vadd.xlane.f32.xlu0 %v1431
    %v1433 = vpop.xlane.xlu0 %1432
    %v1434 = vsel %vm1410, %v1433, %v1400
    %v1435 = vmul.f32 %v1407, %v1404
    %1436 = vadd.xlane.f32.xlu0 %v1435
    %v1437 = vpop.xlane.xlu0 %1436
    %v1438 = vsel %vm1410, %v1437, %v1404
    %s1439 = scalar_lea.vmem [#allocation2], 55
    %v1440 = vld [vmem:[%s1439] ss:$0 sm:$0xff]
    %v1441 = vxor.u32 %v1440, 2147483648
    %v1442 = vlaneseq
    %v1443 = vand.u32 %v1442, 127
    %vm1444 = vcmp.eq.s32.totalorder %v1443, 55
    %v1445 = vmul.f32 %v1441, %v1414
    %1446 = vadd.xlane.f32.xlu0 %v1445
    %v1447 = vpop.xlane.xlu0 %1446
    %v1448 = vsel %vm1444, %v1447, %v1414
    %v1449 = vmul.f32 %v1441, %v1418
    %1450 = vadd.xlane.f32.xlu0 %v1449
    %v1451 = vpop.xlane.xlu0 %1450
    %v1452 = vsel %vm1444, %v1451, %v1418
    %v1453 = vmul.f32 %v1441, %v1422
    %1454 = vadd.xlane.f32.xlu0 %v1453
    %v1455 = vpop.xlane.xlu0 %1454
    %v1456 = vsel %vm1444, %v1455, %v1422
    %v1457 = vmul.f32 %v1441, %v1426
    %1458 = vadd.xlane.f32.xlu0 %v1457
    %v1459 = vpop.xlane.xlu0 %1458
    %v1460 = vsel %vm1444, %v1459, %v1426
    %v1461 = vmul.f32 %v1441, %v1430
    %1462 = vadd.xlane.f32.xlu0 %v1461
    %v1463 = vpop.xlane.xlu0 %1462
    %v1464 = vsel %vm1444, %v1463, %v1430
    %v1465 = vmul.f32 %v1441, %v1434
    %1466 = vadd.xlane.f32.xlu0 %v1465
    %v1467 = vpop.xlane.xlu0 %1466
    %v1468 = vsel %vm1444, %v1467, %v1434
    %v1469 = vmul.f32 %v1441, %v1438
    %1470 = vadd.xlane.f32.xlu0 %v1469
    %v1471 = vpop.xlane.xlu0 %1470
    %v1472 = vsel %vm1444, %v1471, %v1438
    %s1473 = scalar_lea.vmem [#allocation2], 56
    %v1474 = vld [vmem:[%s1473] ss:$0 sm:$0xff]
    %v1475 = vxor.u32 %v1474, 2147483648
    %v1476 = vlaneseq
    %v1477 = vand.u32 %v1476, 127
    %vm1478 = vcmp.eq.s32.totalorder %v1477, 56
    %v1479 = vmul.f32 %v1475, %v1448
    %1480 = vadd.xlane.f32.xlu0 %v1479
    %v1481 = vpop.xlane.xlu0 %1480
    %v1482 = vsel %vm1478, %v1481, %v1448
    %v1483 = vmul.f32 %v1475, %v1452
    %1484 = vadd.xlane.f32.xlu0 %v1483
    %v1485 = vpop.xlane.xlu0 %1484
    %v1486 = vsel %vm1478, %v1485, %v1452
    %v1487 = vmul.f32 %v1475, %v1456
    %1488 = vadd.xlane.f32.xlu0 %v1487
    %v1489 = vpop.xlane.xlu0 %1488
    %v1490 = vsel %vm1478, %v1489, %v1456
    %v1491 = vmul.f32 %v1475, %v1460
    %1492 = vadd.xlane.f32.xlu0 %v1491
    %v1493 = vpop.xlane.xlu0 %1492
    %v1494 = vsel %vm1478, %v1493, %v1460
    %v1495 = vmul.f32 %v1475, %v1464
    %1496 = vadd.xlane.f32.xlu0 %v1495
    %v1497 = vpop.xlane.xlu0 %1496
    %v1498 = vsel %vm1478, %v1497, %v1464
    %v1499 = vmul.f32 %v1475, %v1468
    %1500 = vadd.xlane.f32.xlu0 %v1499
    %v1501 = vpop.xlane.xlu0 %1500
    %v1502 = vsel %vm1478, %v1501, %v1468
    %v1503 = vmul.f32 %v1475, %v1472
    %1504 = vadd.xlane.f32.xlu0 %v1503
    %v1505 = vpop.xlane.xlu0 %1504
    %v1506 = vsel %vm1478, %v1505, %v1472
    %v1507 = vmul.f32 %v1475, %v250
    %1508 = vadd.xlane.f32.xlu0 %v1507
    %v1509 = vpop.xlane.xlu0 %1508
    %v1510 = vsel %vm1478, %v1509, %v250
    %s1511 = scalar_lea.vmem [#allocation2], 57
    %v1512 = vld [vmem:[%s1511] ss:$0 sm:$0xff]
    %v1513 = vxor.u32 %v1512, 2147483648
    %v1514 = vlaneseq
    %v1515 = vand.u32 %v1514, 127
    %vm1516 = vcmp.eq.s32.totalorder %v1515, 57
    %v1517 = vmul.f32 %v1513, %v1482
    %1518 = vadd.xlane.f32.xlu0 %v1517
    %v1519 = vpop.xlane.xlu0 %1518
    %v1520 = vsel %vm1516, %v1519, %v1482
    %v1521 = vmul.f32 %v1513, %v1486
    %1522 = vadd.xlane.f32.xlu0 %v1521
    %v1523 = vpop.xlane.xlu0 %1522
    %v1524 = vsel %vm1516, %v1523, %v1486
    %v1525 = vmul.f32 %v1513, %v1490
    %1526 = vadd.xlane.f32.xlu0 %v1525
    %v1527 = vpop.xlane.xlu0 %1526
    %v1528 = vsel %vm1516, %v1527, %v1490
    %v1529 = vmul.f32 %v1513, %v1494
    %1530 = vadd.xlane.f32.xlu0 %v1529
    %v1531 = vpop.xlane.xlu0 %1530
    %v1532 = vsel %vm1516, %v1531, %v1494
    %v1533 = vmul.f32 %v1513, %v1498
    %1534 = vadd.xlane.f32.xlu0 %v1533
    %v1535 = vpop.xlane.xlu0 %1534
    %v1536 = vsel %vm1516, %v1535, %v1498
    %v1537 = vmul.f32 %v1513, %v1502
    %1538 = vadd.xlane.f32.xlu0 %v1537
    %v1539 = vpop.xlane.xlu0 %1538
    %v1540 = vsel %vm1516, %v1539, %v1502
    %v1541 = vmul.f32 %v1513, %v1506
    %1542 = vadd.xlane.f32.xlu0 %v1541
    %v1543 = vpop.xlane.xlu0 %1542
    %v1544 = vsel %vm1516, %v1543, %v1506
    %v1545 = vmul.f32 %v1513, %v1510
    %1546 = vadd.xlane.f32.xlu0 %v1545
    %v1547 = vpop.xlane.xlu0 %1546
    %v1548 = vsel %vm1516, %v1547, %v1510
    %s1549 = scalar_lea.vmem [#allocation2], 58
    %v1550 = vld [vmem:[%s1549] ss:$0 sm:$0xff]
    %v1551 = vxor.u32 %v1550, 2147483648
    %v1552 = vlaneseq
    %v1553 = vand.u32 %v1552, 127
    %vm1554 = vcmp.eq.s32.totalorder %v1553, 58
    %v1555 = vmul.f32 %v1551, %v1520
    %1556 = vadd.xlane.f32.xlu0 %v1555
    %v1557 = vpop.xlane.xlu0 %1556
    %v1558 = vsel %vm1554, %v1557, %v1520
    %v1559 = vmul.f32 %v1551, %v1524
    %1560 = vadd.xlane.f32.xlu0 %v1559
    %v1561 = vpop.xlane.xlu0 %1560
    %v1562 = vsel %vm1554, %v1561, %v1524
    %v1563 = vmul.f32 %v1551, %v1528
    %1564 = vadd.xlane.f32.xlu0 %v1563
    %v1565 = vpop.xlane.xlu0 %1564
    %v1566 = vsel %vm1554, %v1565, %v1528
    %v1567 = vmul.f32 %v1551, %v1532
    %1568 = vadd.xlane.f32.xlu0 %v1567
    %v1569 = vpop.xlane.xlu0 %1568
    %v1570 = vsel %vm1554, %v1569, %v1532
    %v1571 = vmul.f32 %v1551, %v1536
    %1572 = vadd.xlane.f32.xlu0 %v1571
    %v1573 = vpop.xlane.xlu0 %1572
    %v1574 = vsel %vm1554, %v1573, %v1536
    %v1575 = vmul.f32 %v1551, %v1540
    %1576 = vadd.xlane.f32.xlu0 %v1575
    %v1577 = vpop.xlane.xlu0 %1576
    %v1578 = vsel %vm1554, %v1577, %v1540
    %v1579 = vmul.f32 %v1551, %v1544
    %1580 = vadd.xlane.f32.xlu0 %v1579
    %v1581 = vpop.xlane.xlu0 %1580
    %v1582 = vsel %vm1554, %v1581, %v1544
    %v1583 = vmul.f32 %v1551, %v1548
    %1584 = vadd.xlane.f32.xlu0 %v1583
    %v1585 = vpop.xlane.xlu0 %1584
    %v1586 = vsel %vm1554, %v1585, %v1548
    %s1587 = scalar_lea.vmem [#allocation2], 59
    %v1588 = vld [vmem:[%s1587] ss:$0 sm:$0xff]
    %v1589 = vxor.u32 %v1588, 2147483648
    %v1590 = vlaneseq
    %v1591 = vand.u32 %v1590, 127
    %vm1592 = vcmp.eq.s32.totalorder %v1591, 59
    %v1593 = vmul.f32 %v1589, %v1558
    %1594 = vadd.xlane.f32.xlu0 %v1593
    %v1595 = vpop.xlane.xlu0 %1594
    %v1596 = vsel %vm1592, %v1595, %v1558
    %v1597 = vmul.f32 %v1589, %v1562
    %1598 = vadd.xlane.f32.xlu0 %v1597
    %v1599 = vpop.xlane.xlu0 %1598
    %v1600 = vsel %vm1592, %v1599, %v1562
    %v1601 = vmul.f32 %v1589, %v1566
    %1602 = vadd.xlane.f32.xlu0 %v1601
    %v1603 = vpop.xlane.xlu0 %1602
    %v1604 = vsel %vm1592, %v1603, %v1566
    %v1605 = vmul.f32 %v1589, %v1570
    %1606 = vadd.xlane.f32.xlu0 %v1605
    %v1607 = vpop.xlane.xlu0 %1606
    %v1608 = vsel %vm1592, %v1607, %v1570
    %v1609 = vmul.f32 %v1589, %v1574
    %1610 = vadd.xlane.f32.xlu0 %v1609
    %v1611 = vpop.xlane.xlu0 %1610
    %v1612 = vsel %vm1592, %v1611, %v1574
    %v1613 = vmul.f32 %v1589, %v1578
    %1614 = vadd.xlane.f32.xlu0 %v1613
    %v1615 = vpop.xlane.xlu0 %1614
    %v1616 = vsel %vm1592, %v1615, %v1578
    %v1617 = vmul.f32 %v1589, %v1582
    %1618 = vadd.xlane.f32.xlu0 %v1617
    %v1619 = vpop.xlane.xlu0 %1618
    %v1620 = vsel %vm1592, %v1619, %v1582
    %v1621 = vmul.f32 %v1589, %v1586
    %1622 = vadd.xlane.f32.xlu0 %v1621
    %v1623 = vpop.xlane.xlu0 %1622
    %v1624 = vsel %vm1592, %v1623, %v1586
    %s1625 = scalar_lea.vmem [#allocation2], 60
    %v1626 = vld [vmem:[%s1625] ss:$0 sm:$0xff]
    %v1627 = vxor.u32 %v1626, 2147483648
    %v1628 = vlaneseq
    %v1629 = vand.u32 %v1628, 127
    %vm1630 = vcmp.eq.s32.totalorder %v1629, 60
    %v1631 = vmul.f32 %v1627, %v1596
    %1632 = vadd.xlane.f32.xlu0 %v1631
    %v1633 = vpop.xlane.xlu0 %1632
    %v1634 = vsel %vm1630, %v1633, %v1596
    %v1635 = vmul.f32 %v1627, %v1600
    %1636 = vadd.xlane.f32.xlu0 %v1635
    %v1637 = vpop.xlane.xlu0 %1636
    %v1638 = vsel %vm1630, %v1637, %v1600
    %v1639 = vmul.f32 %v1627, %v1604
    %1640 = vadd.xlane.f32.xlu0 %v1639
    %v1641 = vpop.xlane.xlu0 %1640
    %v1642 = vsel %vm1630, %v1641, %v1604
    %v1643 = vmul.f32 %v1627, %v1608
    %1644 = vadd.xlane.f32.xlu0 %v1643
    %v1645 = vpop.xlane.xlu0 %1644
    %v1646 = vsel %vm1630, %v1645, %v1608
    %v1647 = vmul.f32 %v1627, %v1612
    %1648 = vadd.xlane.f32.xlu0 %v1647
    %v1649 = vpop.xlane.xlu0 %1648
    %v1650 = vsel %vm1630, %v1649, %v1612
    %v1651 = vmul.f32 %v1627, %v1616
    %1652 = vadd.xlane.f32.xlu0 %v1651
    %v1653 = vpop.xlane.xlu0 %1652
    %v1654 = vsel %vm1630, %v1653, %v1616
    %v1655 = vmul.f32 %v1627, %v1620
    %1656 = vadd.xlane.f32.xlu0 %v1655
    %v1657 = vpop.xlane.xlu0 %1656
    %v1658 = vsel %vm1630, %v1657, %v1620
    %v1659 = vmul.f32 %v1627, %v1624
    %1660 = vadd.xlane.f32.xlu0 %v1659
    %v1661 = vpop.xlane.xlu0 %1660
    %v1662 = vsel %vm1630, %v1661, %v1624
    %s1663 = scalar_lea.vmem [#allocation2], 61
    %v1664 = vld [vmem:[%s1663] ss:$0 sm:$0xff]
    %v1665 = vxor.u32 %v1664, 2147483648
    %v1666 = vlaneseq
    %v1667 = vand.u32 %v1666, 127
    %vm1668 = vcmp.eq.s32.totalorder %v1667, 61
    %v1669 = vmul.f32 %v1665, %v1634
    %1670 = vadd.xlane.f32.xlu0 %v1669
    %v1671 = vpop.xlane.xlu0 %1670
    %v1672 = vsel %vm1668, %v1671, %v1634
    %v1673 = vmul.f32 %v1665, %v1638
    %1674 = vadd.xlane.f32.xlu0 %v1673
    %v1675 = vpop.xlane.xlu0 %1674
    %v1676 = vsel %vm1668, %v1675, %v1638
    %v1677 = vmul.f32 %v1665, %v1642
    %1678 = vadd.xlane.f32.xlu0 %v1677
    %v1679 = vpop.xlane.xlu0 %1678
    %v1680 = vsel %vm1668, %v1679, %v1642
    %v1681 = vmul.f32 %v1665, %v1646
    %1682 = vadd.xlane.f32.xlu0 %v1681
    %v1683 = vpop.xlane.xlu0 %1682
    %v1684 = vsel %vm1668, %v1683, %v1646
    %v1685 = vmul.f32 %v1665, %v1650
    %1686 = vadd.xlane.f32.xlu0 %v1685
    %v1687 = vpop.xlane.xlu0 %1686
    %v1688 = vsel %vm1668, %v1687, %v1650
    %v1689 = vmul.f32 %v1665, %v1654
    %1690 = vadd.xlane.f32.xlu0 %v1689
    %v1691 = vpop.xlane.xlu0 %1690
    %v1692 = vsel %vm1668, %v1691, %v1654
    %v1693 = vmul.f32 %v1665, %v1658
    %1694 = vadd.xlane.f32.xlu0 %v1693
    %v1695 = vpop.xlane.xlu0 %1694
    %v1696 = vsel %vm1668, %v1695, %v1658
    %v1697 = vmul.f32 %v1665, %v1662
    %1698 = vadd.xlane.f32.xlu0 %v1697
    %v1699 = vpop.xlane.xlu0 %1698
    %v1700 = vsel %vm1668, %v1699, %v1662
    %s1701 = scalar_lea.vmem [#allocation2], 62
    %v1702 = vld [vmem:[%s1701] ss:$0 sm:$0xff]
    %v1703 = vxor.u32 %v1702, 2147483648
    %v1704 = vlaneseq
    %v1705 = vand.u32 %v1704, 127
    %vm1706 = vcmp.eq.s32.totalorder %v1705, 62
    %v1707 = vmul.f32 %v1703, %v1672
    %1708 = vadd.xlane.f32.xlu0 %v1707
    %v1709 = vpop.xlane.xlu0 %1708
    %v1710 = vsel %vm1706, %v1709, %v1672
    %v1711 = vmul.f32 %v1703, %v1676
    %1712 = vadd.xlane.f32.xlu0 %v1711
    %v1713 = vpop.xlane.xlu0 %1712
    %v1714 = vsel %vm1706, %v1713, %v1676
    %v1715 = vmul.f32 %v1703, %v1680
    %1716 = vadd.xlane.f32.xlu0 %v1715
    %v1717 = vpop.xlane.xlu0 %1716
    %v1718 = vsel %vm1706, %v1717, %v1680
    %v1719 = vmul.f32 %v1703, %v1684
    %1720 = vadd.xlane.f32.xlu0 %v1719
    %v1721 = vpop.xlane.xlu0 %1720
    %v1722 = vsel %vm1706, %v1721, %v1684
    %v1723 = vmul.f32 %v1703, %v1688
    %1724 = vadd.xlane.f32.xlu0 %v1723
    %v1725 = vpop.xlane.xlu0 %1724
    %v1726 = vsel %vm1706, %v1725, %v1688
    %v1727 = vmul.f32 %v1703, %v1692
    %1728 = vadd.xlane.f32.xlu0 %v1727
    %v1729 = vpop.xlane.xlu0 %1728
    %v1730 = vsel %vm1706, %v1729, %v1692
    %v1731 = vmul.f32 %v1703, %v1696
    %1732 = vadd.xlane.f32.xlu0 %v1731
    %v1733 = vpop.xlane.xlu0 %1732
    %v1734 = vsel %vm1706, %v1733, %v1696
    %v1735 = vmul.f32 %v1703, %v1700
    %1736 = vadd.xlane.f32.xlu0 %v1735
    %v1737 = vpop.xlane.xlu0 %1736
    %v1738 = vsel %vm1706, %v1737, %v1700
    %s1739 = scalar_lea.vmem [#allocation2], 63
    %v1740 = vld [vmem:[%s1739] ss:$0 sm:$0xff]
    %v1741 = vxor.u32 %v1740, 2147483648
    %v1742 = vlaneseq
    %v1743 = vand.u32 %v1742, 127
    %vm1744 = vcmp.eq.s32.totalorder %v1743, 63
    %v1745 = vmul.f32 %v1741, %v1710
    %1746 = vadd.xlane.f32.xlu0 %v1745
    %v1747 = vpop.xlane.xlu0 %1746
    %v1748 = vsel %vm1744, %v1747, %v1710
    %v1749 = vmul.f32 %v1741, %v1714
    %1750 = vadd.xlane.f32.xlu0 %v1749
    %v1751 = vpop.xlane.xlu0 %1750
    %v1752 = vsel %vm1744, %v1751, %v1714
    %v1753 = vmul.f32 %v1741, %v1718
    %1754 = vadd.xlane.f32.xlu0 %v1753
    %v1755 = vpop.xlane.xlu0 %1754
    %v1756 = vsel %vm1744, %v1755, %v1718
    %v1757 = vmul.f32 %v1741, %v1722
    %1758 = vadd.xlane.f32.xlu0 %v1757
    %v1759 = vpop.xlane.xlu0 %1758
    %v1760 = vsel %vm1744, %v1759, %v1722
    %v1761 = vmul.f32 %v1741, %v1726
    %1762 = vadd.xlane.f32.xlu0 %v1761
    %v1763 = vpop.xlane.xlu0 %1762
    %v1764 = vsel %vm1744, %v1763, %v1726
    %v1765 = vmul.f32 %v1741, %v1730
    %1766 = vadd.xlane.f32.xlu0 %v1765
    %v1767 = vpop.xlane.xlu0 %1766
    %v1768 = vsel %vm1744, %v1767, %v1730
    %v1769 = vmul.f32 %v1741, %v1734
    %1770 = vadd.xlane.f32.xlu0 %v1769
    %v1771 = vpop.xlane.xlu0 %1770
    %v1772 = vsel %vm1744, %v1771, %v1734
    %v1773 = vmul.f32 %v1741, %v1738
    %1774 = vadd.xlane.f32.xlu0 %v1773
    %v1775 = vpop.xlane.xlu0 %1774
    %v1776 = vsel %vm1744, %v1775, %v1738
    %v1777 = vrcp.pop %v72
    %v1778 = vmul.f32 %v1748, %v1777
    %vm1779 = vweird.f32 %v72
    %v1780 = vsel %vm1779, %v1748, %v1778
    %1781 = vst [vmem:[#allocation1] sm:$0xff] %v1780
    %v1782 = vrcp.pop %v88
    %v1783 = vmul.f32 %v1752, %v1782
    %vm1784 = vweird.f32 %v88
    %v1785 = vsel %vm1784, %v1752, %v1783
    %s1786 = scalar_lea.vmem [#allocation1], 8
    %1787 = vst [vmem:[%s1786] sm:$0xff] %v1785
    %v1788 = vrcp.pop %v104
    %v1789 = vmul.f32 %v1756, %v1788
    %vm1790 = vweird.f32 %v104
    %v1791 = vsel %vm1790, %v1756, %v1789
    %s1792 = scalar_lea.vmem [#allocation1], 16
    %1793 = vst [vmem:[%s1792] sm:$0xff] %v1791
    %v1794 = vrcp.pop %v120
    %v1795 = vmul.f32 %v1760, %v1794
    %vm1796 = vweird.f32 %v120
    %v1797 = vsel %vm1796, %v1760, %v1795
    %s1798 = scalar_lea.vmem [#allocation1], 24
    %1799 = vst [vmem:[%s1798] sm:$0xff] %v1797
    %v1800 = vrcp.pop %v136
    %v1801 = vmul.f32 %v1764, %v1800
    %vm1802 = vweird.f32 %v136
    %v1803 = vsel %vm1802, %v1764, %v1801
    %s1804 = scalar_lea.vmem [#allocation1], 32
    %1805 = vst [vmem:[%s1804] sm:$0xff] %v1803
    %v1806 = vrcp.pop %v152
    %v1807 = vmul.f32 %v1768, %v1806
    %vm1808 = vweird.f32 %v152
    %v1809 = vsel %vm1808, %v1768, %v1807
    %s1810 = scalar_lea.vmem [#allocation1], 40
    %1811 = vst [vmem:[%s1810] sm:$0xff] %v1809
    %v1812 = vrcp.pop %v168
    %v1813 = vmul.f32 %v1772, %v1812
    %vm1814 = vweird.f32 %v168
    %v1815 = vsel %vm1814, %v1772, %v1813
    %s1816 = scalar_lea.vmem [#allocation1], 48
    %1817 = vst [vmem:[%s1816] sm:$0xff] %v1815
    %v1818 = vrcp.pop %v184
    %v1819 = vmul.f32 %v1776, %v1818
    %vm1820 = vweird.f32 %v184
    %v1821 = vsel %vm1820, %v1776, %v1819
    %s1822 = scalar_lea.vmem [#allocation1], 56
    %1823 = vst [vmem:[%s1822] sm:$0xff] %v1821
    // Predicated region
    $region36: #{custom-call.7} parent=1 // pred_check
      _
    $region37: #{custom-call.7} parent=1 // pred_check_branch
      %1825 = sbr.rel (0) target = $region39
    $region38: #{custom-call.7} parent=1 // pred_region
      // Predicated region
      $region40: #{custom-call.7} parent=38 // pred_check
        _
      $region41: #{custom-call.7} parent=38 // pred_check_branch
        %1827 = sbr.rel (0) target = $region43
      $region42: #{custom-call.7} parent=38 // pred_region
        // Predicated region
        $region55: #{custom-call.7} parent=42 // pred_check
          _
        $region56: #{custom-call.7} parent=42 // pred_check_branch
          %1856 = sbr.rel (0) target = $region58
        $region57: #{custom-call.7} parent=42 // pred_region
          loop: start=0, step=1, limit=1
          $region59: #{custom-call.7} parent=57 // loop_pre_header
            _
          $region60: #{custom-call.7} parent=57 // loop_header
            %s1858 = sphi 0, %s1862
            %p1859 = scmp.ge.s32.totalorder %s1858, 1
            %s1863 = sphi [#allocation1], [#allocation1]
            %s1864 = sphi %s1, %s1
          $region61: #{custom-call.7} parent=57 // loop_header_branch
            %1861 = sbr.rel (%p1859) target = $region65
          $region62: #{custom-call.7} parent=57 // loop_body
            %v1865 = vld [vmem:[%s1863] sm:$0xff]
            %1866 = vst [vmem:[%s1864] sm:$0xff] %v1865
            %v1867 = vld [vmem:[%s1863 + $0x8] sm:$0xff]
            %1868 = vst [vmem:[%s1864 + $0x8] sm:$0xff] %v1867
            %v1869 = vld [vmem:[%s1863 + $0x10] sm:$0xff]
            %1870 = vst [vmem:[%s1864 + $0x10] sm:$0xff] %v1869
            %v1871 = vld [vmem:[%s1863 + $0x18] sm:$0xff]
            %1872 = vst [vmem:[%s1864 + $0x18] sm:$0xff] %v1871
            %v1873 = vld [vmem:[%s1863 + $0x20] sm:$0xff]
            %1874 = vst [vmem:[%s1864 + $0x20] sm:$0xff] %v1873
            %v1875 = vld [vmem:[%s1863 + $0x28] sm:$0xff]
            %1876 = vst [vmem:[%s1864 + $0x28] sm:$0xff] %v1875
            %v1877 = vld [vmem:[%s1863 + $0x30] sm:$0xff]
            %1878 = vst [vmem:[%s1864 + $0x30] sm:$0xff] %v1877
            %v1879 = vld [vmem:[%s1863 + $0x38] sm:$0xff]
            %1880 = vst [vmem:[%s1864 + $0x38] sm:$0xff] %v1879
          $region63: #{custom-call.7} parent=57 // loop_footer
            %s1862 = sadd.s32 1, %s1858
          $region64: #{custom-call.7} parent=57 // loop_footer_branch
            %1857 = sbr.rel target = $region60
          $region65: #{custom-call.7} parent=57 // loop_exit
            _
        $region58: #{custom-call.7} parent=42 // pred_fallthru
          _
        // Predicated region
        $region66: #{custom-call.7} parent=42 // pred_check
          _
        $region67: #{custom-call.7} parent=42 // pred_check_branch
          %1882 = sbr.rel target = $region69
        $region68: #{custom-call.7} parent=42 // pred_region
          _
        $region69: #{custom-call.7} parent=42 // pred_fallthru
          _
      $region43: #{custom-call.7} parent=38 // pred_fallthru
        _
      // Predicated region
      $region44: #{custom-call.7} parent=38 // pred_check
        _
      $region45: #{custom-call.7} parent=38 // pred_check_branch
        %1829 = sbr.rel target = $region47
      $region46: #{custom-call.7} parent=38 // pred_region
        loop: start=0, step=1, limit=1
        $region48: #{custom-call.7} parent=46 // loop_pre_header
          _
        $region49: #{custom-call.7} parent=46 // loop_header
          %s1832 = sphi 0, %s1836
          %p1833 = scmp.ge.s32.totalorder %s1832, 1
          %s1837 = sphi [#allocation1], [#allocation1]
          %s1838 = sphi %s1, %s1
        $region50: #{custom-call.7} parent=46 // loop_header_branch
          %1835 = sbr.rel (%p1833) target = $region54
        $region51: #{custom-call.7} parent=46 // loop_body
          %v1839 = vld [vmem:[%s1837] sm:$0xff]
          %1840 = vst [vmem:[%s1838] sm:$0xff] %v1839
          %v1841 = vld [vmem:[%s1837 + $0x8] sm:$0xff]
          %1842 = vst [vmem:[%s1838 + $0x8] sm:$0xff] %v1841
          %v1843 = vld [vmem:[%s1837 + $0x10] sm:$0xff]
          %1844 = vst [vmem:[%s1838 + $0x10] sm:$0xff] %v1843
          %v1845 = vld [vmem:[%s1837 + $0x18] sm:$0xff]
          %1846 = vst [vmem:[%s1838 + $0x18] sm:$0xff] %v1845
          %v1847 = vld [vmem:[%s1837 + $0x20] sm:$0xff]
          %1848 = vst [vmem:[%s1838 + $0x20] sm:$0xff] %v1847
          %v1849 = vld [vmem:[%s1837 + $0x28] sm:$0xff]
          %1850 = vst [vmem:[%s1838 + $0x28] sm:$0xff] %v1849
          %v1851 = vld [vmem:[%s1837 + $0x30] sm:$0xff]
          %1852 = vst [vmem:[%s1838 + $0x30] sm:$0xff] %v1851
          %v1853 = vld [vmem:[%s1837 + $0x38] sm:$0xff]
          %1854 = vst [vmem:[%s1838 + $0x38] sm:$0xff] %v1853
        $region52: #{custom-call.7} parent=46 // loop_footer
          %s1836 = sadd.s32 1, %s1832
        $region53: #{custom-call.7} parent=46 // loop_footer_branch
          %1831 = sbr.rel target = $region49
        $region54: #{custom-call.7} parent=46 // loop_exit
          _
      $region47: #{custom-call.7} parent=38 // pred_fallthru
        _
    $region39: #{custom-call.7} parent=1 // pred_fallthru
      _
    %1883 = vnop

// kernel: _gp_predict_jit.2
$region0: #{_gp_predict_jit.2}
  #allocation0 [shape = 'u32[]', space=smem, size = 0x4, offset = 0x4, fixed_abs, tag = 'smem constant byte address 0x4 - core index']
  #allocation1 [shape = 'u32[144,128]{1,0:T(1,128)}', space=vmem, size = 0x12000, scoped, tag = 'internal scratch']
  %s0 = inlined_call_operand.vmem [shape: f32[64,4], index: 0, kind: input, shape index: {}]
  %s1 = inlined_call_operand.vmem [shape: f32[32,4], index: 1, kind: input, shape index: {}]
  %s2 = inlined_call_operand.vmem [shape: f32[64,64], index: 2, kind: output, shape index: {0}]
  %s3 = inlined_call_operand.vmem [shape: f32[32,64], index: 3, kind: output, shape index: {1}]
  %4 = xla_tuple %s2, %s3
  %s5 = sld [smem:[#allocation0]]
  $region26: #{_gp_predict_jit.2} parent=0
    _
  %s7 = ssub.s32 1, %s5
  %s8 = scalar_select 0, %s7, %s5
  // Predicated region
  $region2: #{_gp_predict_jit.2} parent=0 // pred_check
    _
  $region3: #{_gp_predict_jit.2} parent=0 // pred_check_branch
    %10 = sbr.rel (0) target = $region5
  $region4: #{_gp_predict_jit.2} parent=0 // pred_region
    _
  $region5: #{_gp_predict_jit.2} parent=0 // pred_fallthru
    _
  // Predicated region
  $region6: #{_gp_predict_jit.2} parent=0 // pred_check
    _
  $region7: #{_gp_predict_jit.2} parent=0 // pred_check_branch
    %12 = sbr.rel (0) target = $region9
  $region8: #{_gp_predict_jit.2} parent=0 // pred_region
    _
  $region9: #{_gp_predict_jit.2} parent=0 // pred_fallthru
    _
  %v13 = vld [vmem:[%s0] sm:$0xff]
  %v14 = vld [vmem:[%s0 + $0x8] sm:$0xff]
  %v15 = vld [vmem:[%s0 + $0x10] sm:$0xff]
  %v16 = vld [vmem:[%s0 + $0x18] sm:$0xff]
  %v17 = vld [vmem:[%s0 + $0x20] sm:$0xff]
  %v18 = vld [vmem:[%s0 + $0x28] sm:$0xff]
  %v19 = vld [vmem:[%s0 + $0x30] sm:$0xff]
  %v20 = vld [vmem:[%s0 + $0x38] sm:$0xff]
  %v21 = vld [vmem:[%s1] sm:$0xff]
  %v22 = vld [vmem:[%s1 + $0x8] sm:$0xff]
  %v23 = vld [vmem:[%s1 + $0x10] sm:$0xff]
  %v24 = vld [vmem:[%s1 + $0x18] sm:$0xff]
  %v25 = vmul.f32 %v13, %v13
  %v26 = vmul.f32 %v14, %v14
  %v27 = vmul.f32 %v15, %v15
  %v28 = vmul.f32 %v16, %v16
  %v29 = vmul.f32 %v17, %v17
  %v30 = vmul.f32 %v18, %v18
  %v31 = vmul.f32 %v19, %v19
  %v32 = vmul.f32 %v20, %v20
  %vm33 = vcmask 31744
  %v34 = vsel %vm33, %v25, 0.0
  %35 = vadd.xlane.f32.xlu0 %v34
  %v36 = vpop.xlane.xlu0 %35
  %v37 = vsel %vm33, %v26, 0.0
  %38 = vadd.xlane.f32.xlu0 %v37
  %v39 = vpop.xlane.xlu0 %38
  %v40 = vsel %vm33, %v27, 0.0
  %41 = vadd.xlane.f32.xlu0 %v40
  %v42 = vpop.xlane.xlu0 %41
  %v43 = vsel %vm33, %v28, 0.0
  %44 = vadd.xlane.f32.xlu0 %v43
  %v45 = vpop.xlane.xlu0 %44
  %v46 = vsel %vm33, %v29, 0.0
  %47 = vadd.xlane.f32.xlu0 %v46
  %v48 = vpop.xlane.xlu0 %47
  %v49 = vsel %vm33, %v30, 0.0
  %50 = vadd.xlane.f32.xlu0 %v49
  %v51 = vpop.xlane.xlu0 %50
  %v52 = vsel %vm33, %v31, 0.0
  %53 = vadd.xlane.f32.xlu0 %v52
  %v54 = vpop.xlane.xlu0 %53
  %v55 = vsel %vm33, %v32, 0.0
  %56 = vadd.xlane.f32.xlu0 %v55
  %v57 = vpop.xlane.xlu0 %56
  %v59 = vsel %vm33, 1.0, 0
  %v62 = vsel %vm33, %v25, 0
  %v65 = vsel %vm33, %v26, 0
  %v68 = vsel %vm33, %v27, 0
  %v71 = vsel %vm33, %v28, 0
  %v74 = vsel %vm33, %v29, 0
  %v77 = vsel %vm33, %v30, 0
  %v80 = vsel %vm33, %v31, 0
  %v83 = vsel %vm33, %v32, 0
  %85 = vmatprep.subr.mxu0 0.0
  %86 = vmatpush1.xpose.msra.mxu0 %v62
  %87 = vmatprep.subr.mxu0 0.0
  %88 = vmatpush1.xpose.msra.mxu0 %v65
  %89 = vmatprep.subr.mxu0 0.0
  %90 = vmatpush1.xpose.msra.mxu0 %v68
  %91 = vmatprep.subr.mxu0 0.0
  %92 = vmatpush1.xpose.msra.mxu0 %v71
  %93 = vmatprep.subr.mxu0 0.0
  %94 = vmatpush1.xpose.msra.mxu0 %v74
  %95 = vmatprep.subr.mxu0 0.0
  %96 = vmatpush1.xpose.msra.mxu0 %v77
  %97 = vmatprep.subr.mxu0 0.0
  %98 = vmatpush1.xpose.msra.mxu0 %v80
  %99 = vmatprep.subr.mxu0 0.0
  %100 = vmatpush1.xpose.msra.mxu0 %v83
  %101 = vmatprep.subr.mxu0 0.0
  %102 = vmatpush1.xpose.msra.mxu0 0.0
  %103 = vmatprep.subr.mxu0 0.0
  %104 = vmatpush1.xpose.msra.mxu0 0.0
  %105 = vmatprep.subr.mxu0 0.0
  %106 = vmatpush1.xpose.msra.mxu0 0.0
  %107 = vmatprep.subr.mxu0 0.0
  %108 = vmatpush1.xpose.msra.mxu0 0.0
  %109 = vmatprep.subr.mxu0 0.0
  %110 = vmatpush1.xpose.msra.mxu0 0.0
  %111 = vmatprep.subr.mxu0 0.0
  %112 = vmatpush1.xpose.msra.mxu0 0.0
  %113 = vmatprep.subr.mxu0 0.0
  %114 = vmatpush1.xpose.msra.mxu0 0.0
  %115 = vmatprep.subr.mxu0 0.0
  %116 = vmatpush1.xpose.msra.mxu0 0.0
  %117 = vmatprep.subr.mxu0 0.0
  %118 = vmatpush1.xpose.msra.mxu0 0.0
  %119 = vmatprep.subr.mxu0 0.0
  %120 = vmatpush1.xpose.msra.mxu0 0.0
  %121 = vmatprep.subr.mxu0 0.0
  %122 = vmatpush1.xpose.msra.mxu0 0.0
  %123 = vmatprep.subr.mxu0 0.0
  %124 = vmatpush1.xpose.msra.mxu0 0.0
  %125 = vmatprep.subr.mxu0 0.0
  %126 = vmatpush1.xpose.msra.mxu0 0.0
  %127 = vmatprep.subr.mxu0 0.0
  %128 = vmatpush1.xpose.msra.mxu0 0.0
  %129 = vmatprep.subr.mxu0 0.0
  %130 = vmatpush1.xpose.msra.mxu0 0.0
  %131 = vmatprep.subr.mxu0 0.0
  %132 = vmatpush1.xpose.msra.mxu0 0.0
  %133 = vmatprep.subr.mxu0 0.0
  %134 = vmatpush1.xpose.msra.mxu0 0.0
  %135 = vmatprep.subr.mxu0 0.0
  %136 = vmatpush1.xpose.msra.mxu0 0.0
  %137 = vmatprep.subr.mxu0 0.0
  %138 = vmatpush1.xpose.msra.mxu0 0.0
  %139 = vmatprep.subr.mxu0 0.0
  %140 = vmatpush1.xpose.msra.mxu0 0.0
  %141 = vmatprep.subr.mxu0 0.0
  %142 = vmatpush1.xpose.msra.mxu0 0.0
  %143 = vmatprep.subr.mxu0 0.0
  %144 = vmatpush1.xpose.msra.mxu0 0.0
  %145 = vmatprep.subr.mxu0 0.0
  %146 = vmatpush1.xpose.msra.mxu0 0.0
  %147 = vmatprep.subr.mxu0 0.0
  %148 = vmatpush1.xpose.msra.mxu0 0.0
  %149 = vmatprep.mubr.f32.mxu0 0.0
  %150 = vmatmul.mubr.f32.gmra.mrb[0].mxu0 %v59
  %v151 = vpop.f32.mrb[0].mxu0
  %v152 = vadd.f32 0.0, %v151
  %v153 = vpop.f32.mrb[0].mxu0
  %154 = vdwg.mxu0
  %v155 = vmul.f32 %v21, %v21
  %v156 = vmul.f32 %v22, %v22
  %v157 = vmul.f32 %v23, %v23
  %v158 = vmul.f32 %v24, %v24
  %v159 = vsel %vm33, %v155, 0.0
  %160 = vadd.xlane.f32.xlu0 %v159
  %v161 = vpop.xlane.xlu0 %160
  %v162 = vsel %vm33, %v156, 0.0
  %163 = vadd.xlane.f32.xlu0 %v162
  %v164 = vpop.xlane.xlu0 %163
  %v165 = vsel %vm33, %v157, 0.0
  %166 = vadd.xlane.f32.xlu0 %v165
  %v167 = vpop.xlane.xlu0 %166
  %v168 = vsel %vm33, %v158, 0.0
  %169 = vadd.xlane.f32.xlu0 %v168
  %v170 = vpop.xlane.xlu0 %169
  %v172 = vsel %vm33, %v13, 0
  %v175 = vsel %vm33, %v14, 0
  %v178 = vsel %vm33, %v15, 0
  %v181 = vsel %vm33, %v16, 0
  %v184 = vsel %vm33, %v17, 0
  %v187 = vsel %vm33, %v18, 0
  %v190 = vsel %vm33, %v19, 0
  %v193 = vsel %vm33, %v20, 0
  %195 = vmatprep.subr.mxu0 0.0
  %196 = vmatpush1.xpose.msra.mxu0 %v172
  %197 = vmatprep.subr.mxu0 0.0
  %198 = vmatpush1.xpose.msra.mxu0 %v175
  %199 = vmatprep.subr.mxu0 0.0
  %200 = vmatpush1.xpose.msra.mxu0 %v178
  %201 = vmatprep.subr.mxu0 0.0
  %202 = vmatpush1.xpose.msra.mxu0 %v181
  %203 = vmatprep.subr.mxu0 0.0
  %204 = vmatpush1.xpose.msra.mxu0 %v184
  %205 = vmatprep.subr.mxu0 0.0
  %206 = vmatpush1.xpose.msra.mxu0 %v187
  %207 = vmatprep.subr.mxu0 0.0
  %208 = vmatpush1.xpose.msra.mxu0 %v190
  %209 = vmatprep.subr.mxu0 0.0
  %210 = vmatpush1.xpose.msra.mxu0 %v193
  %211 = vmatprep.subr.mxu0 0.0
  %212 = vmatpush1.xpose.msra.mxu0 0.0
  %213 = vmatprep.subr.mxu0 0.0
  %214 = vmatpush1.xpose.msra.mxu0 0.0
  %215 = vmatprep.subr.mxu0 0.0
  %216 = vmatpush1.xpose.msra.mxu0 0.0
  %217 = vmatprep.subr.mxu0 0.0
  %218 = vmatpush1.xpose.msra.mxu0 0.0
  %219 = vmatprep.subr.mxu0 0.0
  %220 = vmatpush1.xpose.msra.mxu0 0.0
  %221 = vmatprep.subr.mxu0 0.0
  %222 = vmatpush1.xpose.msra.mxu0 0.0
  %223 = vmatprep.subr.mxu0 0.0
  %224 = vmatpush1.xpose.msra.mxu0 0.0
  %225 = vmatprep.subr.mxu0 0.0
  %226 = vmatpush1.xpose.msra.mxu0 0.0
  %227 = vmatprep.subr.mxu0 0.0
  %228 = vmatpush1.xpose.msra.mxu0 0.0
  %229 = vmatprep.subr.mxu0 0.0
  %230 = vmatpush1.xpose.msra.mxu0 0.0
  %231 = vmatprep.subr.mxu0 0.0
  %232 = vmatpush1.xpose.msra.mxu0 0.0
  %233 = vmatprep.subr.mxu0 0.0
  %234 = vmatpush1.xpose.msra.mxu0 0.0
  %235 = vmatprep.subr.mxu0 0.0
  %236 = vmatpush1.xpose.msra.mxu0 0.0
  %237 = vmatprep.subr.mxu0 0.0
  %238 = vmatpush1.xpose.msra.mxu0 0.0
  %239 = vmatprep.subr.mxu0 0.0
  %240 = vmatpush1.xpose.msra.mxu0 0.0
  %241 = vmatprep.subr.mxu0 0.0
  %242 = vmatpush1.xpose.msra.mxu0 0.0
  %243 = vmatprep.subr.mxu0 0.0
  %244 = vmatpush1.xpose.msra.mxu0 0.0
  %245 = vmatprep.subr.mxu0 0.0
  %246 = vmatpush1.xpose.msra.mxu0 0.0
  %247 = vmatprep.subr.mxu0 0.0
  %248 = vmatpush1.xpose.msra.mxu0 0.0
  %249 = vmatprep.subr.mxu0 0.0
  %250 = vmatpush1.xpose.msra.mxu0 0.0
  %251 = vmatprep.subr.mxu0 0.0
  %252 = vmatpush1.xpose.msra.mxu0 0.0
  %253 = vmatprep.subr.mxu0 0.0
  %254 = vmatpush1.xpose.msra.mxu0 0.0
  %255 = vmatprep.subr.mxu0 0.0
  %256 = vmatpush1.xpose.msra.mxu0 0.0
  %257 = vmatprep.subr.mxu0 0.0
  %258 = vmatpush1.xpose.msra.mxu0 0.0
  %259 = vmatprep.mubr.f32.mxu0 0.0
  %260 = vmatmul.mubr.f32.gmra.mrb[0].mxu0 %v172
  %v261 = vpop.f32.mrb[0].mxu0
  %v262 = vadd.f32 0.0, %v261
  %v263 = vpop.f32.mrb[0].mxu0
  %264 = vmatprep.mubr.f32.mxu0 0.0
  %265 = vmatmul.mubr.f32.gmra.mrb[0].mxu0 %v175
  %v266 = vpop.f32.mrb[0].mxu0
  %v267 = vadd.f32 0.0, %v266
  %v268 = vpop.f32.mrb[0].mxu0
  %269 = vmatprep.mubr.f32.mxu0 0.0
  %270 = vmatmul.mubr.f32.gmra.mrb[0].mxu0 %v178
  %v271 = vpop.f32.mrb[0].mxu0
  %v272 = vadd.f32 0.0, %v271
  %v273 = vpop.f32.mrb[0].mxu0
  %274 = vmatprep.mubr.f32.mxu0 0.0
  %275 = vmatmul.mubr.f32.gmra.mrb[0].mxu0 %v181
  %v276 = vpop.f32.mrb[0].mxu0
  %v277 = vadd.f32 0.0, %v276
  %v278 = vpop.f32.mrb[0].mxu0
  %279 = vmatprep.mubr.f32.mxu0 0.0
  %280 = vmatmul.mubr.f32.gmra.mrb[0].mxu0 %v184
  %v281 = vpop.f32.mrb[0].mxu0
  %v282 = vadd.f32 0.0, %v281
  %v283 = vpop.f32.mrb[0].mxu0
  %284 = vmatprep.mubr.f32.mxu0 0.0
  %285 = vmatmul.mubr.f32.gmra.mrb[0].mxu0 %v187
  %v286 = vpop.f32.mrb[0].mxu0
  %v287 = vadd.f32 0.0, %v286
  %v288 = vpop.f32.mrb[0].mxu0
  %289 = vmatprep.mubr.f32.mxu0 0.0
  %290 = vmatmul.mubr.f32.gmra.mrb[0].mxu0 %v190
  %v291 = vpop.f32.mrb[0].mxu0
  %v292 = vadd.f32 0.0, %v291
  %v293 = vpop.f32.mrb[0].mxu0
  %294 = vmatprep.mubr.f32.mxu0 0.0
  %295 = vmatmul.mubr.f32.gmra.mrb[0].mxu0 %v193
  %v296 = vpop.f32.mrb[0].mxu0
  %v297 = vadd.f32 0.0, %v296
  %v298 = vpop.f32.mrb[0].mxu0
  %299 = vdwg.mxu0
  %v301 = vsel %vm33, %v21, 0
  %v304 = vsel %vm33, %v22, 0
  %v307 = vsel %vm33, %v23, 0
  %v310 = vsel %vm33, %v24, 0
  %312 = vmatprep.subr.mxu0 0.0
  %313 = vmatpush1.xpose.msra.mxu0 %v172
  %314 = vmatprep.subr.mxu0 0.0
  %315 = vmatpush1.xpose.msra.mxu0 %v175
  %316 = vmatprep.subr.mxu0 0.0
  %317 = vmatpush1.xpose.msra.mxu0 %v178
  %318 = vmatprep.subr.mxu0 0.0
  %319 = vmatpush1.xpose.msra.mxu0 %v181
  %320 = vmatprep.subr.mxu0 0.0
  %321 = vmatpush1.xpose.msra.mxu0 %v184
  %322 = vmatprep.subr.mxu0 0.0
  %323 = vmatpush1.xpose.msra.mxu0 %v187
  %324 = vmatprep.subr.mxu0 0.0
  %325 = vmatpush1.xpose.msra.mxu0 %v190
  %326 = vmatprep.subr.mxu0 0.0
  %327 = vmatpush1.xpose.msra.mxu0 %v193
  %328 = vmatprep.subr.mxu0 0.0
  %329 = vmatpush1.xpose.msra.mxu0 0.0
  %330 = vmatprep.subr.mxu0 0.0
  %331 = vmatpush1.xpose.msra.mxu0 0.0
  %332 = vmatprep.subr.mxu0 0.0
  %333 = vmatpush1.xpose.msra.mxu0 0.0
  %334 = vmatprep.subr.mxu0 0.0
  %335 = vmatpush1.xpose.msra.mxu0 0.0
  %336 = vmatprep.subr.mxu0 0.0
  %337 = vmatpush1.xpose.msra.mxu0 0.0
  %338 = vmatprep.subr.mxu0 0.0
  %339 = vmatpush1.xpose.msra.mxu0 0.0
  %340 = vmatprep.subr.mxu0 0.0
  %341 = vmatpush1.xpose.msra.mxu0 0.0
  %342 = vmatprep.subr.mxu0 0.0
  %343 = vmatpush1.xpose.msra.mxu0 0.0
  %344 = vmatprep.subr.mxu0 0.0
  %345 = vmatpush1.xpose.msra.mxu0 0.0
  %346 = vmatprep.subr.mxu0 0.0
  %347 = vmatpush1.xpose.msra.mxu0 0.0
  %348 = vmatprep.subr.mxu0 0.0
  %349 = vmatpush1.xpose.msra.mxu0 0.0
  %350 = vmatprep.subr.mxu0 0.0
  %351 = vmatpush1.xpose.msra.mxu0 0.0
  %352 = vmatprep.subr.mxu0 0.0
  %353 = vmatpush1.xpose.msra.mxu0 0.0
  %354 = vmatprep.subr.mxu0 0.0
  %355 = vmatpush1.xpose.msra.mxu0 0.0
  %356 = vmatprep.subr.mxu0 0.0
  %357 = vmatpush1.xpose.msra.mxu0 0.0
  %358 = vmatprep.subr.mxu0 0.0
  %359 = vmatpush1.xpose.msra.mxu0 0.0
  %360 = vmatprep.subr.mxu0 0.0
  %361 = vmatpush1.xpose.msra.mxu0 0.0
  %362 = vmatprep.subr.mxu0 0.0
  %363 = vmatpush1.xpose.msra.mxu0 0.0
  %364 = vmatprep.subr.mxu0 0.0
  %365 = vmatpush1.xpose.msra.mxu0 0.0
  %366 = vmatprep.subr.mxu0 0.0
  %367 = vmatpush1.xpose.msra.mxu0 0.0
  %368 = vmatprep.subr.mxu0 0.0
  %369 = vmatpush1.xpose.msra.mxu0 0.0
  %370 = vmatprep.subr.mxu0 0.0
  %371 = vmatpush1.xpose.msra.mxu0 0.0
  %372 = vmatprep.subr.mxu0 0.0
  %373 = vmatpush1.xpose.msra.mxu0 0.0
  %374 = vmatprep.subr.mxu0 0.0
  %375 = vmatpush1.xpose.msra.mxu0 0.0
  %376 = vmatprep.mubr.f32.mxu0 0.0
  %377 = vmatmul.mubr.f32.gmra.mrb[0].mxu0 %v301
  %v378 = vpop.f32.mrb[0].mxu0
  %v379 = vadd.f32 0.0, %v378
  %v380 = vpop.f32.mrb[0].mxu0
  %381 = vmatprep.mubr.f32.mxu0 0.0
  %382 = vmatmul.mubr.f32.gmra.mrb[0].mxu0 %v304
  %v383 = vpop.f32.mrb[0].mxu0
  %v384 = vadd.f32 0.0, %v383
  %v385 = vpop.f32.mrb[0].mxu0
  %386 = vmatprep.mubr.f32.mxu0 0.0
  %387 = vmatmul.mubr.f32.gmra.mrb[0].mxu0 %v307
  %v388 = vpop.f32.mrb[0].mxu0
  %v389 = vadd.f32 0.0, %v388
  %v390 = vpop.f32.mrb[0].mxu0
  %391 = vmatprep.mubr.f32.mxu0 0.0
  %392 = vmatmul.mubr.f32.gmra.mrb[0].mxu0 %v310
  %v393 = vpop.f32.mrb[0].mxu0
  %v394 = vadd.f32 0.0, %v393
  %v395 = vpop.f32.mrb[0].mxu0
  %396 = vdwg.mxu0
  %v397 = vlaneseq
  %v398 = vshrl.u32 %v397, 7
  %v399 = vsub.s32 0, %v398
  %v400 = vrot.slane %v152, %v399
  %v401 = vadd.f32 %v36, %v400
  %v402 = vadd.f32 %v39, %v400
  %v403 = vadd.f32 %v42, %v400
  %v404 = vadd.f32 %v45, %v400
  %v405 = vadd.f32 %v48, %v400
  %v406 = vadd.f32 %v51, %v400
  %v407 = vadd.f32 %v54, %v400
  %v408 = vadd.f32 %v57, %v400
  %v409 = vmul.f32 %v262, 2.0
  %v410 = vmul.f32 %v267, 2.0
  %v411 = vmul.f32 %v272, 2.0
  %v412 = vmul.f32 %v277, 2.0
  %v413 = vmul.f32 %v282, 2.0
  %v414 = vmul.f32 %v287, 2.0
  %v415 = vmul.f32 %v292, 2.0
  %v416 = vmul.f32 %v297, 2.0
  %v417 = vsub.f32 %v401, %v409
  %v418 = vsub.f32 %v402, %v410
  %v419 = vsub.f32 %v403, %v411
  %v420 = vsub.f32 %v404, %v412
  %v421 = vsub.f32 %v405, %v413
  %v422 = vsub.f32 %v406, %v414
  %v423 = vsub.f32 %v407, %v415
  %v424 = vsub.f32 %v408, %v416
  %v425 = vmax.f32 %v417, 0.0
  %v426 = vmax.f32 %v418, 0.0
  %v427 = vmax.f32 %v419, 0.0
  %v428 = vmax.f32 %v420, 0.0
  %v429 = vmax.f32 %v421, 0.0
  %v430 = vmax.f32 %v422, 0.0
  %v431 = vmax.f32 %v423, 0.0
  %v432 = vmax.f32 %v424, 0.0
  %v433 = vsub.f32 0.0, %v425
  %v434 = vsub.f32 0.0, %v426
  %v435 = vsub.f32 0.0, %v427
  %v436 = vsub.f32 0.0, %v428
  %v437 = vsub.f32 0.0, %v429
  %v438 = vsub.f32 0.0, %v430
  %v439 = vsub.f32 0.0, %v431
  %v440 = vsub.f32 0.0, %v432
  %v441 = vmul.f32 %v433, 1.0204082
  %v442 = vmul.f32 %v434, 1.0204082
  %v443 = vmul.f32 %v435, 1.0204082
  %v444 = vmul.f32 %v436, 1.0204082
  %v445 = vmul.f32 %v437, 1.0204082
  %v446 = vmul.f32 %v438, 1.0204082
  %v447 = vmul.f32 %v439, 1.0204082
  %v448 = vmul.f32 %v440, 1.0204082
  %v449 = vmul.f32 %v441, 1.442695
  %v450 = vpow.pop %v449
  %v451 = vmul.f32 %v442, 1.442695
  %v452 = vpow.pop %v451
  %v453 = vmul.f32 %v443, 1.442695
  %v454 = vpow.pop %v453
  %v455 = vmul.f32 %v444, 1.442695
  %v456 = vpow.pop %v455
  %v457 = vmul.f32 %v445, 1.442695
  %v458 = vpow.pop %v457
  %v459 = vmul.f32 %v446, 1.442695
  %v460 = vpow.pop %v459
  %v461 = vmul.f32 %v447, 1.442695
  %v462 = vpow.pop %v461
  %v463 = vmul.f32 %v448, 1.442695
  %v464 = vpow.pop %v463
  %v465 = vlaneseq
  %v466 = vshrl.u32 %v465, 7
  %v467 = vadd.s32 %v466, 8
  %v468 = vadd.s32 %v466, 16
  %v469 = vadd.s32 %v466, 24
  %v470 = vadd.s32 %v466, 32
  %v471 = vadd.s32 %v466, 40
  %v472 = vadd.s32 %v466, 48
  %v473 = vadd.s32 %v466, 56
  %v474 = vlaneseq
  %v475 = vand.u32 %v474, 127
  %vm476 = vcmp.eq.s32.totalorder %v466, %v475
  %vm477 = vcmp.eq.s32.totalorder %v467, %v475
  %vm478 = vcmp.eq.s32.totalorder %v468, %v475
  %vm479 = vcmp.eq.s32.totalorder %v469, %v475
  %vm480 = vcmp.eq.s32.totalorder %v470, %v475
  %vm481 = vcmp.eq.s32.totalorder %v471, %v475
  %vm482 = vcmp.eq.s32.totalorder %v472, %v475
  %vm483 = vcmp.eq.s32.totalorder %v473, %v475
  %v484 = vadd.f32 %v450, 0.0025
  %v485 = vadd.f32 %v452, 0.0025
  %v486 = vadd.f32 %v454, 0.0025
  %v487 = vadd.f32 %v456, 0.0025
  %v488 = vadd.f32 %v458, 0.0025
  %v489 = vadd.f32 %v460, 0.0025
  %v490 = vadd.f32 %v462, 0.0025
  %v491 = vadd.f32 %v464, 0.0025
  %v492 = vsel %vm476, %v484, %v450
  %v493 = vsel %vm477, %v485, %v452
  %v494 = vsel %vm478, %v486, %v454
  %v495 = vsel %vm479, %v487, %v456
  %v496 = vsel %vm480, %v488, %v458
  %v497 = vsel %vm481, %v489, %v460
  %v498 = vsel %vm482, %v490, %v462
  %v499 = vsel %vm483, %v491, %v464
  %vm500 = vcmask 523264
  %501 = vst.msk [vmem:[%s2] sm:$0xff] %vm500, %v492
  %502 = vst.msk [vmem:[%s2 + $0x8] sm:$0xff] %vm500, %v493
  %503 = vst.msk [vmem:[%s2 + $0x10] sm:$0xff] %vm500, %v494
  %504 = vst.msk [vmem:[%s2 + $0x18] sm:$0xff] %vm500, %v495
  %505 = vst.msk [vmem:[%s2 + $0x20] sm:$0xff] %vm500, %v496
  %506 = vst.msk [vmem:[%s2 + $0x28] sm:$0xff] %vm500, %v497
  %507 = vst.msk [vmem:[%s2 + $0x30] sm:$0xff] %vm500, %v498
  %508 = vst.msk [vmem:[%s2 + $0x38] sm:$0xff] %vm500, %v499
  %v509 = vadd.f32 %v161, %v400
  %v510 = vadd.f32 %v164, %v400
  %v511 = vadd.f32 %v167, %v400
  %v512 = vadd.f32 %v170, %v400
  %v513 = vmul.f32 %v379, 2.0
  %v514 = vmul.f32 %v384, 2.0
  %v515 = vmul.f32 %v389, 2.0
  %v516 = vmul.f32 %v394, 2.0
  %v517 = vsub.f32 %v509, %v513
  %v518 = vsub.f32 %v510, %v514
  %v519 = vsub.f32 %v511, %v515
  %v520 = vsub.f32 %v512, %v516
  %v521 = vmax.f32 %v517, 0.0
  %v522 = vmax.f32 %v518, 0.0
  %v523 = vmax.f32 %v519, 0.0
  %v524 = vmax.f32 %v520, 0.0
  %v525 = vsub.f32 0.0, %v521
  %v526 = vsub.f32 0.0, %v522
  %v527 = vsub.f32 0.0, %v523
  %v528 = vsub.f32 0.0, %v524
  %v529 = vmul.f32 %v525, 1.0204082
  %v530 = vmul.f32 %v526, 1.0204082
  %v531 = vmul.f32 %v527, 1.0204082
  %v532 = vmul.f32 %v528, 1.0204082
  %v533 = vmul.f32 %v529, 1.442695
  %v534 = vpow.pop %v533
  %v535 = vmul.f32 %v530, 1.442695
  %v536 = vpow.pop %v535
  %v537 = vmul.f32 %v531, 1.442695
  %v538 = vpow.pop %v537
  %v539 = vmul.f32 %v532, 1.442695
  %v540 = vpow.pop %v539
  %541 = vst.msk [vmem:[%s3] sm:$0xff] %vm500, %v534
  %542 = vst.msk [vmem:[%s3 + $0x8] sm:$0xff] %vm500, %v536
  %543 = vst.msk [vmem:[%s3 + $0x10] sm:$0xff] %vm500, %v538
  %544 = vst.msk [vmem:[%s3 + $0x18] sm:$0xff] %vm500, %v540
  // Predicated region
  $region10: #{_gp_predict_jit.2} parent=0 // pred_check
    _
  $region11: #{_gp_predict_jit.2} parent=0 // pred_check_branch
    %546 = sbr.rel (0) target = $region13
  $region12: #{_gp_predict_jit.2} parent=0 // pred_region
    _
  $region13: #{_gp_predict_jit.2} parent=0 // pred_fallthru
    _
  // Predicated region
  $region14: #{_gp_predict_jit.2} parent=0 // pred_check
    _
  $region15: #{_gp_predict_jit.2} parent=0 // pred_check_branch
    %548 = sbr.rel (0) target = $region17
  $region16: #{_gp_predict_jit.2} parent=0 // pred_region
    _
  $region17: #{_gp_predict_jit.2} parent=0 // pred_fallthru
    _
  // Predicated region
  $region18: #{_gp_predict_jit.2} parent=0 // pred_check
    _
  $region19: #{_gp_predict_jit.2} parent=0 // pred_check_branch
    %550 = sbr.rel (0) target = $region21
  $region20: #{_gp_predict_jit.2} parent=0 // pred_region
    _
  $region21: #{_gp_predict_jit.2} parent=0 // pred_fallthru
    _
  // Predicated region
  $region22: #{_gp_predict_jit.2} parent=0 // pred_check
    _
  $region23: #{_gp_predict_jit.2} parent=0 // pred_check_branch
    %552 = sbr.rel (0) target = $region25
  $region24: #{_gp_predict_jit.2} parent=0 // pred_region
    _
  $region25: #{_gp_predict_jit.2} parent=0 // pred_fallthru
    _

// kernel: _gp_predict_jit.3
$region0: #{_gp_predict_jit.3}
  #allocation0 [shape = 'u32[]', space=smem, size = 0x4, offset = 0x4, fixed_abs, tag = 'smem constant byte address 0x4 - core index']
  #allocation1 [shape = 'u32[144,128]{1,0:T(1,128)}', space=vmem, size = 0x12000, scoped, tag = 'internal scratch']
  %s0 = inlined_call_operand.vmem [shape: f32[32,64], index: 0, kind: input, shape index: {}]
  %s1 = inlined_call_operand.vmem [shape: f32[32,4], index: 1, kind: input, shape index: {}]
  %s2 = inlined_call_operand.vmem [shape: f32[33,64], index: 2, kind: input, shape index: {}]
  %s3 = inlined_call_operand.hbm [shape: f32[1,32], index: 3, kind: output, shape index: {0}]
  %s4 = inlined_call_operand.hbm [shape: f32[32,32], index: 4, kind: output, shape index: {1}]
  %5 = xla_tuple %s3, %s4
  %s6 = sld [smem:[#allocation0]]
  $region30: #{_gp_predict_jit.3} parent=0
    _
  %s8 = ssub.s32 1, %s6
  %s9 = scalar_select 0, %s8, %s6
  $region1: #{_gp_predict_jit.3} parent=0
    #allocation2 [shape = 'u8[512]{0}', space=vmem, size = 0x400, scoped, tag = 'output window, operand 0, single buffered']
    #allocation3 [shape = 's32[1]{0}', space=sflag, size = 0x4, scoped, tag = 'scoped memory for _gp_predict_jit.3']
    #allocation4 [shape = 'u8[16384]{0}', space=vmem, size = 0x4000, scoped, tag = 'output window, operand 1, single buffered']
    #allocation5 [shape = 's32[1]{0}', space=sflag, size = 0x4, scoped, tag = 'scoped memory for _gp_predict_jit.3']
    %10 = vsyncpa [#allocation3], 0
    %11 = vsyncpa [#allocation5], 0
    // Predicated region
    $region2: #{_gp_predict_jit.3} parent=1 // pred_check
      _
    $region3: #{_gp_predict_jit.3} parent=1 // pred_check_branch
      %13 = sbr.rel (0) target = $region5
    $region4: #{_gp_predict_jit.3} parent=1 // pred_region
      _
    $region5: #{_gp_predict_jit.3} parent=1 // pred_fallthru
      _
    // Predicated region
    $region6: #{_gp_predict_jit.3} parent=1 // pred_check
      _
    $region7: #{_gp_predict_jit.3} parent=1 // pred_check_branch
      %15 = sbr.rel (0) target = $region9
    $region8: #{_gp_predict_jit.3} parent=1 // pred_region
      _
    $region9: #{_gp_predict_jit.3} parent=1 // pred_fallthru
      _
    // Predicated region
    $region10: #{_gp_predict_jit.3} parent=1 // pred_check
      _
    $region11: #{_gp_predict_jit.3} parent=1 // pred_check_branch
      %17 = sbr.rel (0) target = $region13
    $region12: #{_gp_predict_jit.3} parent=1 // pred_region
      _
    $region13: #{_gp_predict_jit.3} parent=1 // pred_fallthru
      _
    %v18 = vld [vmem:[%s0] sm:$0xff]
    %v19 = vld [vmem:[%s0 + $0x8] sm:$0xff]
    %v20 = vld [vmem:[%s0 + $0x10] sm:$0xff]
    %v21 = vld [vmem:[%s0 + $0x18] sm:$0xff]
    %v22 = vld [vmem:[%s1] sm:$0xff]
    %v23 = vld [vmem:[%s1 + $0x8] sm:$0xff]
    %v24 = vld [vmem:[%s1 + $0x10] sm:$0xff]
    %v25 = vld [vmem:[%s1 + $0x18] sm:$0xff]
    %v26 = vld [vmem:[%s2] sm:$0xff]
    %v27 = vld [vmem:[%s2 + $0x8] sm:$0xff]
    %v28 = vld [vmem:[%s2 + $0x10] sm:$0xff]
    %v29 = vld [vmem:[%s2 + $0x18] sm:$0xff]
    %v30 = vld [vmem:[%s2 + $0x20] sm:$0x1]
    %vm31 = vcmask 523264
    %v33 = vsel %vm31, %v26, 0
    %v36 = vsel %vm31, %v27, 0
    %v39 = vsel %vm31, %v28, 0
    %v42 = vsel %vm31, %v29, 0
    %v45 = vsel %vm31, %v30, 0
    %v48 = vsel %vm31, %v18, 0
    %v51 = vsel %vm31, %v19, 0
    %v54 = vsel %vm31, %v20, 0
    %v57 = vsel %vm31, %v21, 0
    %59 = vmatprep.subr.mxu0 0.0
    %60 = vmatpush1.xpose.msra.mxu0 %v48
    %61 = vmatprep.subr.mxu0 0.0
    %62 = vmatpush1.xpose.msra.mxu0 %v51
    %63 = vmatprep.subr.mxu0 0.0
    %64 = vmatpush1.xpose.msra.mxu0 %v54
    %65 = vmatprep.subr.mxu0 0.0
    %66 = vmatpush1.xpose.msra.mxu0 %v57
    %67 = vmatprep.subr.mxu0 0.0
    %68 = vmatpush1.xpose.msra.mxu0 0.0
    %69 = vmatprep.subr.mxu0 0.0
    %70 = vmatpush1.xpose.msra.mxu0 0.0
    %71 = vmatprep.subr.mxu0 0.0
    %72 = vmatpush1.xpose.msra.mxu0 0.0
    %73 = vmatprep.subr.mxu0 0.0
    %74 = vmatpush1.xpose.msra.mxu0 0.0
    %75 = vmatprep.subr.mxu0 0.0
    %76 = vmatpush1.xpose.msra.mxu0 0.0
    %77 = vmatprep.subr.mxu0 0.0
    %78 = vmatpush1.xpose.msra.mxu0 0.0
    %79 = vmatprep.subr.mxu0 0.0
    %80 = vmatpush1.xpose.msra.mxu0 0.0
    %81 = vmatprep.subr.mxu0 0.0
    %82 = vmatpush1.xpose.msra.mxu0 0.0
    %83 = vmatprep.subr.mxu0 0.0
    %84 = vmatpush1.xpose.msra.mxu0 0.0
    %85 = vmatprep.subr.mxu0 0.0
    %86 = vmatpush1.xpose.msra.mxu0 0.0
    %87 = vmatprep.subr.mxu0 0.0
    %88 = vmatpush1.xpose.msra.mxu0 0.0
    %89 = vmatprep.subr.mxu0 0.0
    %90 = vmatpush1.xpose.msra.mxu0 0.0
    %91 = vmatprep.subr.mxu0 0.0
    %92 = vmatpush1.xpose.msra.mxu0 0.0
    %93 = vmatprep.subr.mxu0 0.0
    %94 = vmatpush1.xpose.msra.mxu0 0.0
    %95 = vmatprep.subr.mxu0 0.0
    %96 = vmatpush1.xpose.msra.mxu0 0.0
    %97 = vmatprep.subr.mxu0 0.0
    %98 = vmatpush1.xpose.msra.mxu0 0.0
    %99 = vmatprep.subr.mxu0 0.0
    %100 = vmatpush1.xpose.msra.mxu0 0.0
    %101 = vmatprep.subr.mxu0 0.0
    %102 = vmatpush1.xpose.msra.mxu0 0.0
    %103 = vmatprep.subr.mxu0 0.0
    %104 = vmatpush1.xpose.msra.mxu0 0.0
    %105 = vmatprep.subr.mxu0 0.0
    %106 = vmatpush1.xpose.msra.mxu0 0.0
    %107 = vmatprep.subr.mxu0 0.0
    %108 = vmatpush1.xpose.msra.mxu0 0.0
    %109 = vmatprep.subr.mxu0 0.0
    %110 = vmatpush1.xpose.msra.mxu0 0.0
    %111 = vmatprep.subr.mxu0 0.0
    %112 = vmatpush1.xpose.msra.mxu0 0.0
    %113 = vmatprep.subr.mxu0 0.0
    %114 = vmatpush1.xpose.msra.mxu0 0.0
    %115 = vmatprep.subr.mxu0 0.0
    %116 = vmatpush1.xpose.msra.mxu0 0.0
    %117 = vmatprep.subr.mxu0 0.0
    %118 = vmatpush1.xpose.msra.mxu0 0.0
    %119 = vmatprep.subr.mxu0 0.0
    %120 = vmatpush1.xpose.msra.mxu0 0.0
    %121 = vmatprep.subr.mxu0 0.0
    %122 = vmatpush1.xpose.msra.mxu0 0.0
    %123 = vmatprep.mubr.f32.mxu0 0.0
    %124 = vmatmul.mubr.f32.gmra.mrb[0].mxu0 %v33
    %v125 = vpop.f32.mrb[0].mxu0
    %v126 = vadd.f32 0.0, %v125
    %v127 = vpop.f32.mrb[0].mxu0
    %128 = vmatprep.mubr.f32.mxu0 0.0
    %129 = vmatmul.mubr.f32.gmra.mrb[0].mxu0 %v36
    %v130 = vpop.f32.mrb[0].mxu0
    %v131 = vadd.f32 0.0, %v130
    %v132 = vpop.f32.mrb[0].mxu0
    %133 = vmatprep.mubr.f32.mxu0 0.0
    %134 = vmatmul.mubr.f32.gmra.mrb[0].mxu0 %v39
    %v135 = vpop.f32.mrb[0].mxu0
    %v136 = vadd.f32 0.0, %v135
    %v137 = vpop.f32.mrb[0].mxu0
    %138 = vmatprep.mubr.f32.mxu0 0.0
    %139 = vmatmul.mubr.f32.gmra.mrb[0].mxu0 %v42
    %v140 = vpop.f32.mrb[0].mxu0
    %v141 = vadd.f32 0.0, %v140
    %v142 = vpop.f32.mrb[0].mxu0
    %143 = vmatprep.mubr.f32.mxu0 0.0
    %144 = vmatmul.mubr.f32.gmra.mrb[0].mxu0 %v45
    %v145 = vpop.f32.mrb[0].mxu0
    %v146 = vadd.f32 0.0, %v145
    %v147 = vpop.f32.mrb[0].mxu0
    %148 = vdwg.mxu0
    %vm149 = vcmask 31744
    %v151 = vsel %vm149, %v22, 0
    %v154 = vsel %vm149, %v23, 0
    %v157 = vsel %vm149, %v24, 0
    %v160 = vsel %vm149, %v25, 0
    %162 = vmatprep.subr.mxu0 0.0
    %163 = vmatpush1.xpose.msra.mxu0 %v151
    %164 = vmatprep.subr.mxu0 0.0
    %165 = vmatpush1.xpose.msra.mxu0 %v154
    %166 = vmatprep.subr.mxu0 0.0
    %167 = vmatpush1.xpose.msra.mxu0 %v157
    %168 = vmatprep.subr.mxu0 0.0
    %169 = vmatpush1.xpose.msra.mxu0 %v160
    %170 = vmatprep.subr.mxu0 0.0
    %171 = vmatpush1.xpose.msra.mxu0 0.0
    %172 = vmatprep.subr.mxu0 0.0
    %173 = vmatpush1.xpose.msra.mxu0 0.0
    %174 = vmatprep.subr.mxu0 0.0
    %175 = vmatpush1.xpose.msra.mxu0 0.0
    %176 = vmatprep.subr.mxu0 0.0
    %177 = vmatpush1.xpose.msra.mxu0 0.0
    %178 = vmatprep.subr.mxu0 0.0
    %179 = vmatpush1.xpose.msra.mxu0 0.0
    %180 = vmatprep.subr.mxu0 0.0
    %181 = vmatpush1.xpose.msra.mxu0 0.0
    %182 = vmatprep.subr.mxu0 0.0
    %183 = vmatpush1.xpose.msra.mxu0 0.0
    %184 = vmatprep.subr.mxu0 0.0
    %185 = vmatpush1.xpose.msra.mxu0 0.0
    %186 = vmatprep.subr.mxu0 0.0
    %187 = vmatpush1.xpose.msra.mxu0 0.0
    %188 = vmatprep.subr.mxu0 0.0
    %189 = vmatpush1.xpose.msra.mxu0 0.0
    %190 = vmatprep.subr.mxu0 0.0
    %191 = vmatpush1.xpose.msra.mxu0 0.0
    %192 = vmatprep.subr.mxu0 0.0
    %193 = vmatpush1.xpose.msra.mxu0 0.0
    %194 = vmatprep.subr.mxu0 0.0
    %195 = vmatpush1.xpose.msra.mxu0 0.0
    %196 = vmatprep.subr.mxu0 0.0
    %197 = vmatpush1.xpose.msra.mxu0 0.0
    %198 = vmatprep.subr.mxu0 0.0
    %199 = vmatpush1.xpose.msra.mxu0 0.0
    %200 = vmatprep.subr.mxu0 0.0
    %201 = vmatpush1.xpose.msra.mxu0 0.0
    %202 = vmatprep.subr.mxu0 0.0
    %203 = vmatpush1.xpose.msra.mxu0 0.0
    %204 = vmatprep.subr.mxu0 0.0
    %205 = vmatpush1.xpose.msra.mxu0 0.0
    %206 = vmatprep.subr.mxu0 0.0
    %207 = vmatpush1.xpose.msra.mxu0 0.0
    %208 = vmatprep.subr.mxu0 0.0
    %209 = vmatpush1.xpose.msra.mxu0 0.0
    %210 = vmatprep.subr.mxu0 0.0
    %211 = vmatpush1.xpose.msra.mxu0 0.0
    %212 = vmatprep.subr.mxu0 0.0
    %213 = vmatpush1.xpose.msra.mxu0 0.0
    %214 = vmatprep.subr.mxu0 0.0
    %215 = vmatpush1.xpose.msra.mxu0 0.0
    %216 = vmatprep.subr.mxu0 0.0
    %217 = vmatpush1.xpose.msra.mxu0 0.0
    %218 = vmatprep.subr.mxu0 0.0
    %219 = vmatpush1.xpose.msra.mxu0 0.0
    %220 = vmatprep.subr.mxu0 0.0
    %221 = vmatpush1.xpose.msra.mxu0 0.0
    %222 = vmatprep.subr.mxu0 0.0
    %223 = vmatpush1.xpose.msra.mxu0 0.0
    %224 = vmatprep.subr.mxu0 0.0
    %225 = vmatpush1.xpose.msra.mxu0 0.0
    %226 = vmatprep.mubr.f32.mxu0 0.0
    %227 = vmatmul.mubr.f32.gmra.mrb[0].mxu0 %v151
    %v228 = vpop.f32.mrb[0].mxu0
    %v229 = vadd.f32 0.0, %v228
    %v230 = vpop.f32.mrb[0].mxu0
    %231 = vmatprep.mubr.f32.mxu0 0.0
    %232 = vmatmul.mubr.f32.gmra.mrb[0].mxu0 %v154
    %v233 = vpop.f32.mrb[0].mxu0
    %v234 = vadd.f32 0.0, %v233
    %v235 = vpop.f32.mrb[0].mxu0
    %236 = vmatprep.mubr.f32.mxu0 0.0
    %237 = vmatmul.mubr.f32.gmra.mrb[0].mxu0 %v157
    %v238 = vpop.f32.mrb[0].mxu0
    %v239 = vadd.f32 0.0, %v238
    %v240 = vpop.f32.mrb[0].mxu0
    %241 = vmatprep.mubr.f32.mxu0 0.0
    %242 = vmatmul.mubr.f32.gmra.mrb[0].mxu0 %v160
    %v243 = vpop.f32.mrb[0].mxu0
    %v244 = vadd.f32 0.0, %v243
    %v245 = vpop.f32.mrb[0].mxu0
    %246 = vdwg.mxu0
    %v247 = vmul.f32 %v22, %v22
    %v248 = vmul.f32 %v23, %v23
    %v249 = vmul.f32 %v24, %v24
    %v250 = vmul.f32 %v25, %v25
    %v251 = vsel %vm149, %v247, 0.0
    %252 = vadd.xlane.f32.xlu0 %v251
    %v253 = vpop.xlane.xlu0 %252
    %v254 = vsel %vm149, %v248, 0.0
    %255 = vadd.xlane.f32.xlu0 %v254
    %v256 = vpop.xlane.xlu0 %255
    %v257 = vsel %vm149, %v249, 0.0
    %258 = vadd.xlane.f32.xlu0 %v257
    %v259 = vpop.xlane.xlu0 %258
    %v260 = vsel %vm149, %v250, 0.0
    %261 = vadd.xlane.f32.xlu0 %v260
    %v262 = vpop.xlane.xlu0 %261
    %v264 = vsel %vm149, 1.0, 0
    %v267 = vsel %vm149, %v247, 0
    %v270 = vsel %vm149, %v248, 0
    %v273 = vsel %vm149, %v249, 0
    %v276 = vsel %vm149, %v250, 0
    %278 = vmatprep.subr.mxu0 0.0
    %279 = vmatpush1.xpose.msra.mxu0 %v267
    %280 = vmatprep.subr.mxu0 0.0
    %281 = vmatpush1.xpose.msra.mxu0 %v270
    %282 = vmatprep.subr.mxu0 0.0
    %283 = vmatpush1.xpose.msra.mxu0 %v273
    %284 = vmatprep.subr.mxu0 0.0
    %285 = vmatpush1.xpose.msra.mxu0 %v276
    %286 = vmatprep.subr.mxu0 0.0
    %287 = vmatpush1.xpose.msra.mxu0 0.0
    %288 = vmatprep.subr.mxu0 0.0
    %289 = vmatpush1.xpose.msra.mxu0 0.0
    %290 = vmatprep.subr.mxu0 0.0
    %291 = vmatpush1.xpose.msra.mxu0 0.0
    %292 = vmatprep.subr.mxu0 0.0
    %293 = vmatpush1.xpose.msra.mxu0 0.0
    %294 = vmatprep.subr.mxu0 0.0
    %295 = vmatpush1.xpose.msra.mxu0 0.0
    %296 = vmatprep.subr.mxu0 0.0
    %297 = vmatpush1.xpose.msra.mxu0 0.0
    %298 = vmatprep.subr.mxu0 0.0
    %299 = vmatpush1.xpose.msra.mxu0 0.0
    %300 = vmatprep.subr.mxu0 0.0
    %301 = vmatpush1.xpose.msra.mxu0 0.0
    %302 = vmatprep.subr.mxu0 0.0
    %303 = vmatpush1.xpose.msra.mxu0 0.0
    %304 = vmatprep.subr.mxu0 0.0
    %305 = vmatpush1.xpose.msra.mxu0 0.0
    %306 = vmatprep.subr.mxu0 0.0
    %307 = vmatpush1.xpose.msra.mxu0 0.0
    %308 = vmatprep.subr.mxu0 0.0
    %309 = vmatpush1.xpose.msra.mxu0 0.0
    %310 = vmatprep.subr.mxu0 0.0
    %311 = vmatpush1.xpose.msra.mxu0 0.0
    %312 = vmatprep.subr.mxu0 0.0
    %313 = vmatpush1.xpose.msra.mxu0 0.0
    %314 = vmatprep.subr.mxu0 0.0
    %315 = vmatpush1.xpose.msra.mxu0 0.0
    %316 = vmatprep.subr.mxu0 0.0
    %317 = vmatpush1.xpose.msra.mxu0 0.0
    %318 = vmatprep.subr.mxu0 0.0
    %319 = vmatpush1.xpose.msra.mxu0 0.0
    %320 = vmatprep.subr.mxu0 0.0
    %321 = vmatpush1.xpose.msra.mxu0 0.0
    %322 = vmatprep.subr.mxu0 0.0
    %323 = vmatpush1.xpose.msra.mxu0 0.0
    %324 = vmatprep.subr.mxu0 0.0
    %325 = vmatpush1.xpose.msra.mxu0 0.0
    %326 = vmatprep.subr.mxu0 0.0
    %327 = vmatpush1.xpose.msra.mxu0 0.0
    %328 = vmatprep.subr.mxu0 0.0
    %329 = vmatpush1.xpose.msra.mxu0 0.0
    %330 = vmatprep.subr.mxu0 0.0
    %331 = vmatpush1.xpose.msra.mxu0 0.0
    %332 = vmatprep.subr.mxu0 0.0
    %333 = vmatpush1.xpose.msra.mxu0 0.0
    %334 = vmatprep.subr.mxu0 0.0
    %335 = vmatpush1.xpose.msra.mxu0 0.0
    %336 = vmatprep.subr.mxu0 0.0
    %337 = vmatpush1.xpose.msra.mxu0 0.0
    %338 = vmatprep.subr.mxu0 0.0
    %339 = vmatpush1.xpose.msra.mxu0 0.0
    %340 = vmatprep.subr.mxu0 0.0
    %341 = vmatpush1.xpose.msra.mxu0 0.0
    %342 = vmatprep.mubr.f32.mxu0 0.0
    %343 = vmatmul.mubr.f32.gmra.mrb[0].mxu0 %v264
    %v344 = vpop.f32.mrb[0].mxu0
    %v345 = vadd.f32 0.0, %v344
    %v346 = vpop.f32.mrb[0].mxu0
    %347 = vdwg.mxu0
    %v348 = vlaneseq
    %v349 = vshrl.u32 %v348, 7
    %v350 = vsub.s32 0, %v349
    %v351 = vrot.slane %v345, %v350
    %v352 = vadd.f32 %v253, %v351
    %v353 = vadd.f32 %v256, %v351
    %v354 = vadd.f32 %v259, %v351
    %v355 = vadd.f32 %v262, %v351
    %v356 = vmul.f32 %v229, 2.0
    %v357 = vmul.f32 %v234, 2.0
    %v358 = vmul.f32 %v239, 2.0
    %v359 = vmul.f32 %v244, 2.0
    %v360 = vsub.f32 %v352, %v356
    %v361 = vsub.f32 %v353, %v357
    %v362 = vsub.f32 %v354, %v358
    %v363 = vsub.f32 %v355, %v359
    %v364 = vmax.f32 %v360, 0.0
    %v365 = vmax.f32 %v361, 0.0
    %v366 = vmax.f32 %v362, 0.0
    %v367 = vmax.f32 %v363, 0.0
    %v368 = vsub.f32 0.0, %v364
    %v369 = vsub.f32 0.0, %v365
    %v370 = vsub.f32 0.0, %v366
    %v371 = vsub.f32 0.0, %v367
    %v372 = vmul.f32 %v368, 1.0204082
    %v373 = vmul.f32 %v369, 1.0204082
    %v374 = vmul.f32 %v370, 1.0204082
    %v375 = vmul.f32 %v371, 1.0204082
    %v376 = vmul.f32 %v372, 1.442695
    %v377 = vpow.pop %v376
    %v378 = vmul.f32 %v373, 1.442695
    %v379 = vpow.pop %v378
    %v380 = vmul.f32 %v374, 1.442695
    %v381 = vpow.pop %v380
    %v382 = vmul.f32 %v375, 1.442695
    %v383 = vpow.pop %v382
    %v384 = vsub.f32 %v377, %v126
    %v385 = vsub.f32 %v379, %v131
    %v386 = vsub.f32 %v381, %v136
    %v387 = vsub.f32 %v383, %v141
    %v388 = vlaneseq
    %v389 = vshrl.u32 %v388, 7
    %v390 = vadd.s32 %v389, 8
    %v391 = vadd.s32 %v389, 16
    %v392 = vadd.s32 %v389, 24
    %v393 = vlaneseq
    %v394 = vand.u32 %v393, 127
    %vm395 = vcmp.eq.s32.totalorder %v389, %v394
    %vm396 = vcmp.eq.s32.totalorder %v390, %v394
    %vm397 = vcmp.eq.s32.totalorder %v391, %v394
    %vm398 = vcmp.eq.s32.totalorder %v392, %v394
    %v399 = vadd.f32 %v384, 0.0025
    %v400 = vadd.f32 %v385, 0.0025
    %v401 = vadd.f32 %v386, 0.0025
    %v402 = vadd.f32 %v387, 0.0025
    %v403 = vsel %vm395, %v399, %v384
    %v404 = vsel %vm396, %v400, %v385
    %v405 = vsel %vm397, %v401, %v386
    %v406 = vsel %vm398, %v402, %v387
    %vm407 = vcmask 261120
    %408 = vst.msk [vmem:[#allocation4] sm:$0xff] %vm407, %v403
    %409 = vst.msk [vmem:[#allocation4 + $0x8] sm:$0xff] %vm407, %v404
    %410 = vst.msk [vmem:[#allocation4 + $0x10] sm:$0xff] %vm407, %v405
    %411 = vst.msk [vmem:[#allocation4 + $0x18] sm:$0xff] %vm407, %v406
    %v412 = vadd.f32 %v146, 0.0
    %vm413 = vcmask 253952
    %414 = vst.msk [vmem:[#allocation2] sm:$0x1] %vm413, %v412
    // Predicated region
    $region14: #{_gp_predict_jit.3} parent=1 // pred_check
      _
    $region15: #{_gp_predict_jit.3} parent=1 // pred_check_branch
      %416 = sbr.rel (0) target = $region17
    $region16: #{_gp_predict_jit.3} parent=1 // pred_region
      %s418 = ssub.s32 16, 16
      %419 = vsyncadd [#allocation3], %s418
      %s421 = sshll.u32 [#allocation2], 4
      %s422 = int_to_ptr.vmem [resolvable:$true] %s421
      %424 = dma.vmem_to_hbm [thread:$0]  %s422, 16, %s3, [#allocation3]
    $region17: #{_gp_predict_jit.3} parent=1 // pred_fallthru
      _
    // Predicated region
    $region18: #{_gp_predict_jit.3} parent=1 // pred_check
      _
    $region19: #{_gp_predict_jit.3} parent=1 // pred_check_branch
      %426 = sbr.rel (0) target = $region21
    $region20: #{_gp_predict_jit.3} parent=1 // pred_region
      %s428 = ssub.s32 512, 512
      %429 = vsyncadd [#allocation5], %s428
      %s430 = sshll.u32 [#allocation4], 4
      %s431 = int_to_ptr.vmem [resolvable:$true] %s430
      %436 = dma.vmem_to_hbm [thread:$0]  %s431, 512, %s4, [#allocation5], 128, 128, 8
    $region21: #{_gp_predict_jit.3} parent=1 // pred_fallthru
      _
    // Predicated region
    $region22: #{_gp_predict_jit.3} parent=1 // pred_check
      _
    $region23: #{_gp_predict_jit.3} parent=1 // pred_check_branch
      %438 = sbr.rel (0) target = $region25
    $region24: #{_gp_predict_jit.3} parent=1 // pred_region
      %439 = dma.done [#allocation3], 16
    $region25: #{_gp_predict_jit.3} parent=1 // pred_fallthru
      _
    // Predicated region
    $region26: #{_gp_predict_jit.3} parent=1 // pred_check
      _
    $region27: #{_gp_predict_jit.3} parent=1 // pred_check_branch
      %441 = sbr.rel (0) target = $region29
    $region28: #{_gp_predict_jit.3} parent=1 // pred_region
      %442 = dma.done [#allocation5], 512
    $region29: #{_gp_predict_jit.3} parent=1 // pred_fallthru
      _
    %443 = vsyncpa [#allocation3], 1
    %444 = vsyncpa [#allocation5], 1

</llo_original>
